<compile_context>
chip_gen: v7x
topology: tpu7x:2x2x1
jax: 0.10.0
libtpu: 0.0.40
codegen_flags: <defaults>
</compile_context>

<pallas_src>
import functools

import jax
import jax.numpy as jnp
import numpy as np
from jax.experimental import pallas as pl
from jax.experimental.pallas import tpu as pltpu


# Tap order matches the (kh, kw) reshape of the weights: t = (dh+1)*3 + (dw+1).
_TAPS = tuple((dh, dw) for dh in (-1, 0, 1) for dw in (-1, 0, 1))


def _basic_block_kernel(x_ref, w1_ref, s1_ref, b1_ref, w2_ref, s2_ref, b2_ref,
                        mask_ref, o_ref, acc_ref, *, W):
    """One batch element per grid step.

    x_ref   : (1, H*W, Cp) bf16   input activations (channels padded to Cp)
    w1/w2   : (9, Cp, Cp)  bf16   conv weights, tap-major (kh*3+kw, Cin, Cout)
    s*/b*   : (1, Cp)      f32    folded BN scale / bias
    mask_ref: (9, H*W, 1)  f32    per-tap validity mask (0 where the shifted
                                  source pixel is outside the image)
    o_ref   : (1, H*W, Cp) f32    output
    acc_ref : (H*W, Cp)    f32    VMEM accumulator scratch (reused by both convs)
    """
    HW = acc_ref.shape[0]

    def conv3x3(src_f32, w_ref):
        # 9 shifted MXU matmuls accumulated into the f32 VMEM scratch.
        for t, (dh, dw) in enumerate(_TAPS):
            shift = dh * W + dw
            if shift == 0:
                shifted = src_f32
            else:
                # rolled[p] == src[p + shift]  (wrapped values are masked below)
                shifted = pltpu.roll(src_f32, (-shift) % HW, axis=0)
            contrib = jnp.dot(shifted.astype(jnp.bfloat16), w_ref[t],
                              preferred_element_type=jnp.float32)
            if shift != 0:
                contrib = contrib * mask_ref[t]   # zero out-of-image taps
            if t == 0:
                acc_ref[...] = contrib            # first tap: no pre-zeroing
            else:
                acc_ref[...] += contrib
        return acc_ref[...]

    # conv1 -> bn1 -> relu
    acc1 = conv3x3(x_ref[0].astype(jnp.float32), w1_ref)
    hidden = jnp.maximum(acc1 * s1_ref[0] + b1_ref[0], 0.0)

    # conv2 -> bn2 -> (+ identity) -> relu
    acc2 = conv3x3(hidden, w2_ref)
    out = acc2 * s2_ref[0] + b2_ref[0] + x_ref[0].astype(jnp.float32)
    o_ref[0] = jnp.maximum(out, 0.0).astype(o_ref.dtype)


def basic_block(x_nchw, w1, bn1, w2, bn2, eps=1e-5):
    """Forward pass of BasicBlock (stride=1, downsample=None, relu).

    x_nchw : (N, C, H, W) float32                     (PyTorch layout)
    w1, w2 : (C, C, 3, 3) float32  OIHW, Cin == Cout
    bn1/bn2: (gamma, beta, running_mean, running_var), each shape (C,)
    """
    N, C, H, W = x_nchw.shape
    assert w1.shape == (C, C, 3, 3) and w2.shape == (C, C, 3, 3), (
        "kernel implements the default BasicBlock: stride=1, no downsample")
    HW = H * W
    Cp = ((C + 127) // 128) * 128     # lane-dense channel padding (min 128)

    # NCHW -> (N, H*W, Cp) bf16.
    # TODO(synk): if the surrounding model can stay NHWC these transposes
    # (a full HBM round trip each) should be dropped / fused into neighbors.
    x = jnp.transpose(x_nchw, (0, 2, 3, 1)).reshape(N, HW, C)
    x = jnp.pad(x, ((0, 0), (0, 0), (0, Cp - C))).astype(jnp.bfloat16)

    def prep_weight(w):
        wk = jnp.transpose(w, (2, 3, 1, 0))                    # (kh, kw, Ci, Co)
        wk = jnp.pad(wk, ((0, 0), (0, 0), (0, Cp - C), (0, Cp - C)))
        return wk.reshape(9, Cp, Cp).astype(jnp.bfloat16)

    def fold_bn(bn):
        gamma, beta, mean, var = bn
        scale = gamma / jnp.sqrt(var + eps)
        bias = beta - mean * scale
        scale = jnp.pad(scale, (0, Cp - C)).reshape(1, Cp).astype(jnp.float32)
        bias = jnp.pad(bias, (0, Cp - C)).reshape(1, Cp).astype(jnp.float32)
        return scale, bias

    w1_k, w2_k = prep_weight(w1), prep_weight(w2)
    s1, b1 = fold_bn(bn1)
    s2, b2 = fold_bn(bn2)

    # Per-tap edge masks: 1 where the shifted source pixel is inside the image.
    masks = np.zeros((9, H, W), np.float32)
    for t, (dh, dw) in enumerate(_TAPS):
        masks[t, max(0, -dh):min(H, H - dh), max(0, -dw):min(W, W - dw)] = 1.0
    masks = jnp.asarray(masks.reshape(9, HW, 1))

    kernel = functools.partial(_basic_block_kernel, W=W)

    out = pl.pallas_call(
        kernel,
        out_shape=jax.ShapeDtypeStruct((N, HW, Cp), jnp.float32),
        grid_spec=pltpu.PrefetchScalarGridSpec(
            num_scalar_prefetch=0,
            grid=(N,),
            in_specs=[
                pl.BlockSpec((1, HW, Cp), lambda n: (n, 0, 0)),
                # NOTE: at real ResNet widths (C=512) these constant weight
                # operands should be single-buffered (pipeline_mode=
                # pl.Buffered(1)) to halve their VMEM footprint on v7x.
                pl.BlockSpec((9, Cp, Cp), lambda n: (0, 0, 0)),
                pl.BlockSpec((1, Cp), lambda n: (0, 0)),
                pl.BlockSpec((1, Cp), lambda n: (0, 0)),
                pl.BlockSpec((9, Cp, Cp), lambda n: (0, 0, 0)),
                pl.BlockSpec((1, Cp), lambda n: (0, 0)),
                pl.BlockSpec((1, Cp), lambda n: (0, 0)),
                pl.BlockSpec((9, HW, 1), lambda n: (0, 0, 0)),
            ],
            out_specs=pl.BlockSpec((1, HW, Cp), lambda n: (n, 0, 0)),
            scratch_shapes=[pltpu.VMEM((HW, Cp), jnp.float32)],
        ),
        compiler_params=pltpu.CompilerParams(
            dimension_semantics=("parallel",),
            vmem_limit_bytes=48 * 1024 * 1024,
        ),
    )(x, w1_k, s1, b1, w2_k, s2, b2, masks)

    out = out.reshape(N, H, W, Cp)[..., :C]
    return jnp.transpose(out, (0, 3, 1, 2))                    # back to NCHW


def basic_block_ref(x, w1, bn1, w2, bn2, eps=1e-5):
    """Pure-JAX f32 reference in NCHW, mirroring the PyTorch forward."""
    def conv(xx, ww):
        return jax.lax.conv_general_dilated(
            xx, ww, window_strides=(1, 1), padding=((1, 1), (1, 1)),
            dimension_numbers=('NCHW', 'OIHW', 'NCHW'))

    def bn(xx, p):
        g, b, m, v = p
        g = g[None, :, None, None]; b = b[None, :, None, None]
        m = m[None, :, None, None]; v = v[None, :, None, None]
        return (xx - m) / jnp.sqrt(v + eps) * g + b

    out = jax.nn.relu(bn(conv(x, w1), bn1))
    out = bn(conv(out, w2), bn2)
    return jax.nn.relu(out + x)


if __name__ == "__main__":
    key = jax.random.PRNGKey(0)
    ks = jax.random.split(key, 11)

    # Small shapes consistent with BasicBlock(inplanes=planes, stride=1).
    N, C, H, W = 2, 8, 16, 16

    x = jax.random.normal(ks[0], (N, C, H, W), jnp.float32)
    w1 = jax.random.normal(ks[1], (C, C, 3, 3), jnp.float32) * 0.1
    w2 = jax.random.normal(ks[2], (C, C, 3, 3), jnp.float32) * 0.1

    bn1 = (jax.random.uniform(ks[3], (C,), minval=0.5, maxval=1.5),   # gamma
           jax.random.normal(ks[4], (C,)) * 0.1,                      # beta
           jax.random.normal(ks[5], (C,)) * 0.1,                      # running_mean
           jax.random.uniform(ks[6], (C,), minval=0.5, maxval=1.5))   # running_var
    bn2 = (jax.random.uniform(ks[7], (C,), minval=0.5, maxval=1.5),
           jax.random.normal(ks[8], (C,)) * 0.1,
           jax.random.normal(ks[9], (C,)) * 0.1,
           jax.random.uniform(ks[10], (C,), minval=0.5, maxval=1.5))

    out = basic_block(x, w1, bn1, w2, bn2)
    out = jax.block_until_ready(out)
    assert out.shape == (N, C, H, W)

    ref = basic_block_ref(x, w1, bn1, w2, bn2)
    max_err = float(jnp.max(jnp.abs(out - ref)))
    ref_scale = float(jnp.max(jnp.abs(ref)))
    # bf16 MXU inputs => compare with a mixed-precision-aware tolerance.
    assert max_err <= 3e-2 * ref_scale + 1e-2, (
        f"max abs err {max_err} (ref scale {ref_scale})")

    print("KERNEL_OK")
</pallas_src>

<mosaic_0001>
module attributes {stable_mosaic.version = 11 : i64} {
  func.func @_basic_block_kernel(%arg0: i32, %arg1: memref<1x256x128xbf16, #tpu.memory_space<vmem>>, %arg2: memref<9x128x128xbf16, #tpu.memory_space<vmem>>, %arg3: memref<1x128xf32, #tpu.memory_space<vmem>>, %arg4: memref<1x128xf32, #tpu.memory_space<vmem>>, %arg5: memref<9x128x128xbf16, #tpu.memory_space<vmem>>, %arg6: memref<1x128xf32, #tpu.memory_space<vmem>>, %arg7: memref<1x128xf32, #tpu.memory_space<vmem>>, %arg8: memref<9x256x1xf32, #tpu.memory_space<vmem>>, %arg9: memref<1x256x128xf32, #tpu.memory_space<vmem>>, %arg10: memref<256x128xf32, #tpu.memory_space<vmem>>) attributes {dimension_semantics = [#tpu.dimension_semantics<parallel>], iteration_bounds = array<i64: 2>, scalar_prefetch = 0 : i64, scratch_operands = 1 : i64, tpu.core_type = #tpu.core_type<tc>, window_params = [{transform_indices = @transform_0, window_bounds = array<i64: 1, 256, 128>}, {pipeline_mode = #tpu.pipeline_mode<synchronous>, transform_indices = @transform_1, window_bounds = array<i64: 9, 128, 128>}, {pipeline_mode = #tpu.pipeline_mode<synchronous>, transform_indices = @transform_2, window_bounds = array<i64: 1, 128>}, {pipeline_mode = #tpu.pipeline_mode<synchronous>, transform_indices = @transform_3, window_bounds = array<i64: 1, 128>}, {pipeline_mode = #tpu.pipeline_mode<synchronous>, transform_indices = @transform_4, window_bounds = array<i64: 9, 128, 128>}, {pipeline_mode = #tpu.pipeline_mode<synchronous>, transform_indices = @transform_5, window_bounds = array<i64: 1, 128>}, {pipeline_mode = #tpu.pipeline_mode<synchronous>, transform_indices = @transform_6, window_bounds = array<i64: 1, 128>}, {pipeline_mode = #tpu.pipeline_mode<synchronous>, transform_indices = @transform_7, window_bounds = array<i64: 9, 256, 1>}, {transform_indices = @transform_8, window_bounds = array<i64: 1, 256, 128>}]} {
    %c0 = arith.constant 0 : index
    %c0_0 = arith.constant 0 : index
    %c0_1 = arith.constant 0 : index
    %0 = vector.load %arg1[%c0, %c0_0, %c0_1] : memref<1x256x128xbf16, #tpu.memory_space<vmem>>, vector<1x256x128xbf16>
    %1 = vector.shape_cast %0 : vector<1x256x128xbf16> to vector<256x128xbf16>
    %2 = arith.extf %1 : vector<256x128xbf16> to vector<256x128xf32>
    %c17_i32 = arith.constant 17 : i32
    %3 = tpu.dynamic_rotate %2 by %c17_i32 dim 0 : vector<256x128xf32>, i32 -> vector<256x128xf32>
    %4 = arith.truncf %3 : vector<256x128xf32> to vector<256x128xbf16>
    %c0_2 = arith.constant 0 : index
    %c0_3 = arith.constant 0 : index
    %c0_4 = arith.constant 0 : index
    %5 = vector.load %arg2[%c0_2, %c0_3, %c0_4] : memref<9x128x128xbf16, #tpu.memory_space<vmem>>, vector<1x128x128xbf16>
    %6 = vector.shape_cast %5 : vector<1x128x128xbf16> to vector<128x128xbf16>
    %cst = arith.constant dense<0.000000e+00> : vector<256x128xf32>
    %7 = tpu.matmul %4, %6, %cst {dimension_numbers = #tpu.dot_dimension_numbers<[1], [0], [0], [1], [0, 0, 1, 1], [], []>} : vector<256x128xbf16>, vector<128x128xbf16>, vector<256x128xf32> -> vector<256x128xf32>
    %c0_5 = arith.constant 0 : index
    %c0_6 = arith.constant 0 : index
    %c0_7 = arith.constant 0 : index
    %8 = vector.load %arg8[%c0_5, %c0_6, %c0_7] : memref<9x256x1xf32, #tpu.memory_space<vmem>>, vector<1x256x1xf32>
    %9 = vector.shape_cast %8 : vector<1x256x1xf32> to vector<256x1xf32>
    %10 = vector.broadcast %9 : vector<256x1xf32> to vector<256x128xf32>
    %11 = arith.mulf %7, %10 : vector<256x128xf32>
    %c0_8 = arith.constant 0 : index
    %c0_9 = arith.constant 0 : index
    %12 = vector.load %arg10[%c0_8, %c0_9] : memref<256x128xf32, #tpu.memory_space<vmem>>, vector<256x128xf32>
    tpu.vector_store %arg10[%c0_8, %c0_9], %11 {strides = array<i32>} : memref<256x128xf32, #tpu.memory_space<vmem>>, vector<256x128xf32>,
    %c16_i32 = arith.constant 16 : i32
    %13 = tpu.dynamic_rotate %2 by %c16_i32 dim 0 : vector<256x128xf32>, i32 -> vector<256x128xf32>
    %14 = arith.truncf %13 : vector<256x128xf32> to vector<256x128xbf16>
    %c1 = arith.constant 1 : index
    %c0_10 = arith.constant 0 : index
    %c0_11 = arith.constant 0 : index
    %15 = vector.load %arg2[%c1, %c0_10, %c0_11] : memref<9x128x128xbf16, #tpu.memory_space<vmem>>, vector<1x128x128xbf16>
    %16 = vector.shape_cast %15 : vector<1x128x128xbf16> to vector<128x128xbf16>
    %cst_12 = arith.constant dense<0.000000e+00> : vector<256x128xf32>
    %17 = tpu.matmul %14, %16, %cst_12 {dimension_numbers = #tpu.dot_dimension_numbers<[1], [0], [0], [1], [0, 0, 1, 1], [], []>} : vector<256x128xbf16>, vector<128x128xbf16>, vector<256x128xf32> -> vector<256x128xf32>
    %c1_13 = arith.constant 1 : index
    %c0_14 = arith.constant 0 : index
    %c0_15 = arith.constant 0 : index
    %18 = vector.load %arg8[%c1_13, %c0_14, %c0_15] : memref<9x256x1xf32, #tpu.memory_space<vmem>>, vector<1x256x1xf32>
    %19 = vector.shape_cast %18 : vector<1x256x1xf32> to vector<256x1xf32>
    %20 = vector.broadcast %19 : vector<256x1xf32> to vector<256x128xf32>
    %21 = arith.mulf %17, %20 : vector<256x128xf32>
    %c0_16 = arith.constant 0 : index
    %c0_17 = arith.constant 0 : index
    %22 = vector.load %arg10[%c0_16, %c0_17] : memref<256x128xf32, #tpu.memory_space<vmem>>, vector<256x128xf32>
    %23 = arith.addf %22, %21 : vector<256x128xf32>
    %c0_18 = arith.constant 0 : index
    %c0_19 = arith.constant 0 : index
    %24 = vector.load %arg10[%c0_18, %c0_19] : memref<256x128xf32, #tpu.memory_space<vmem>>, vector<256x128xf32>
    tpu.vector_store %arg10[%c0_18, %c0_19], %23 {strides = array<i32>} : memref<256x128xf32, #tpu.memory_space<vmem>>, vector<256x128xf32>,
    %c15_i32 = arith.constant 15 : i32
    %25 = tpu.dynamic_rotate %2 by %c15_i32 dim 0 : vector<256x128xf32>, i32 -> vector<256x128xf32>
    %26 = arith.truncf %25 : vector<256x128xf32> to vector<256x128xbf16>
    %c2 = arith.constant 2 : index
    %c0_20 = arith.constant 0 : index
    %c0_21 = arith.constant 0 : index
    %27 = vector.load %arg2[%c2, %c0_20, %c0_21] : memref<9x128x128xbf16, #tpu.memory_space<vmem>>, vector<1x128x128xbf16>
    %28 = vector.shape_cast %27 : vector<1x128x128xbf16> to vector<128x128xbf16>
    %cst_22 = arith.constant dense<0.000000e+00> : vector<256x128xf32>
    %29 = tpu.matmul %26, %28, %cst_22 {dimension_numbers = #tpu.dot_dimension_numbers<[1], [0], [0], [1], [0, 0, 1, 1], [], []>} : vector<256x128xbf16>, vector<128x128xbf16>, vector<256x128xf32> -> vector<256x128xf32>
    %c2_23 = arith.constant 2 : index
    %c0_24 = arith.constant 0 : index
    %c0_25 = arith.constant 0 : index
    %30 = vector.load %arg8[%c2_23, %c0_24, %c0_25] : memref<9x256x1xf32, #tpu.memory_space<vmem>>, vector<1x256x1xf32>
    %31 = vector.shape_cast %30 : vector<1x256x1xf32> to vector<256x1xf32>
    %32 = vector.broadcast %31 : vector<256x1xf32> to vector<256x128xf32>
    %33 = arith.mulf %29, %32 : vector<256x128xf32>
    %c0_26 = arith.constant 0 : index
    %c0_27 = arith.constant 0 : index
    %34 = vector.load %arg10[%c0_26, %c0_27] : memref<256x128xf32, #tpu.memory_space<vmem>>, vector<256x128xf32>
    %35 = arith.addf %34, %33 : vector<256x128xf32>
    %c0_28 = arith.constant 0 : index
    %c0_29 = arith.constant 0 : index
    %36 = vector.load %arg10[%c0_28, %c0_29] : memref<256x128xf32, #tpu.memory_space<vmem>>, vector<256x128xf32>
    tpu.vector_store %arg10[%c0_28, %c0_29], %35 {strides = array<i32>} : memref<256x128xf32, #tpu.memory_space<vmem>>, vector<256x128xf32>,
    %c1_i32 = arith.constant 1 : i32
    %37 = tpu.dynamic_rotate %2 by %c1_i32 dim 0 : vector<256x128xf32>, i32 -> vector<256x128xf32>
    %38 = arith.truncf %37 : vector<256x128xf32> to vector<256x128xbf16>
    %c3 = arith.constant 3 : index
    %c0_30 = arith.constant 0 : index
    %c0_31 = arith.constant 0 : index
    %39 = vector.load %arg2[%c3, %c0_30, %c0_31] : memref<9x128x128xbf16, #tpu.memory_space<vmem>>, vector<1x128x128xbf16>
    %40 = vector.shape_cast %39 : vector<1x128x128xbf16> to vector<128x128xbf16>
    %cst_32 = arith.constant dense<0.000000e+00> : vector<256x128xf32>
    %41 = tpu.matmul %38, %40, %cst_32 {dimension_numbers = #tpu.dot_dimension_numbers<[1], [0], [0], [1], [0, 0, 1, 1], [], []>} : vector<256x128xbf16>, vector<128x128xbf16>, vector<256x128xf32> -> vector<256x128xf32>
    %c3_33 = arith.constant 3 : index
    %c0_34 = arith.constant 0 : index
    %c0_35 = arith.constant 0 : index
    %42 = vector.load %arg8[%c3_33, %c0_34, %c0_35] : memref<9x256x1xf32, #tpu.memory_space<vmem>>, vector<1x256x1xf32>
    %43 = vector.shape_cast %42 : vector<1x256x1xf32> to vector<256x1xf32>
    %44 = vector.broadcast %43 : vector<256x1xf32> to vector<256x128xf32>
    %45 = arith.mulf %41, %44 : vector<256x128xf32>
    %c0_36 = arith.constant 0 : index
    %c0_37 = arith.constant 0 : index
    %46 = vector.load %arg10[%c0_36, %c0_37] : memref<256x128xf32, #tpu.memory_space<vmem>>, vector<256x128xf32>
    %47 = arith.addf %46, %45 : vector<256x128xf32>
    %c0_38 = arith.constant 0 : index
    %c0_39 = arith.constant 0 : index
    %48 = vector.load %arg10[%c0_38, %c0_39] : memref<256x128xf32, #tpu.memory_space<vmem>>, vector<256x128xf32>
    tpu.vector_store %arg10[%c0_38, %c0_39], %47 {strides = array<i32>} : memref<256x128xf32, #tpu.memory_space<vmem>>, vector<256x128xf32>,
    %49 = arith.truncf %2 : vector<256x128xf32> to vector<256x128xbf16>
    %c4 = arith.constant 4 : index
    %c0_40 = arith.constant 0 : index
    %c0_41 = arith.constant 0 : index
    %50 = vector.load %arg2[%c4, %c0_40, %c0_41] : memref<9x128x128xbf16, #tpu.memory_space<vmem>>, vector<1x128x128xbf16>
    %51 = vector.shape_cast %50 : vector<1x128x128xbf16> to vector<128x128xbf16>
    %cst_42 = arith.constant dense<0.000000e+00> : vector<256x128xf32>
    %52 = tpu.matmul %49, %51, %cst_42 {dimension_numbers = #tpu.dot_dimension_numbers<[1], [0], [0], [1], [0, 0, 1, 1], [], []>} : vector<256x128xbf16>, vector<128x128xbf16>, vector<256x128xf32> -> vector<256x128xf32>
    %c0_43 = arith.constant 0 : index
    %c0_44 = arith.constant 0 : index
    %53 = vector.load %arg10[%c0_43, %c0_44] : memref<256x128xf32, #tpu.memory_space<vmem>>, vector<256x128xf32>
    %54 = arith.addf %53, %52 : vector<256x128xf32>
    %c0_45 = arith.constant 0 : index
    %c0_46 = arith.constant 0 : index
    %55 = vector.load %arg10[%c0_45, %c0_46] : memref<256x128xf32, #tpu.memory_space<vmem>>, vector<256x128xf32>
    tpu.vector_store %arg10[%c0_45, %c0_46], %54 {strides = array<i32>} : memref<256x128xf32, #tpu.memory_space<vmem>>, vector<256x128xf32>,
    %c255_i32 = arith.constant 255 : i32
    %56 = tpu.dynamic_rotate %2 by %c255_i32 dim 0 : vector<256x128xf32>, i32 -> vector<256x128xf32>
    %57 = arith.truncf %56 : vector<256x128xf32> to vector<256x128xbf16>
    %c5 = arith.constant 5 : index
    %c0_47 = arith.constant 0 : index
    %c0_48 = arith.constant 0 : index
    %58 = vector.load %arg2[%c5, %c0_47, %c0_48] : memref<9x128x128xbf16, #tpu.memory_space<vmem>>, vector<1x128x128xbf16>
    %59 = vector.shape_cast %58 : vector<1x128x128xbf16> to vector<128x128xbf16>
    %cst_49 = arith.constant dense<0.000000e+00> : vector<256x128xf32>
    %60 = tpu.matmul %57, %59, %cst_49 {dimension_numbers = #tpu.dot_dimension_numbers<[1], [0], [0], [1], [0, 0, 1, 1], [], []>} : vector<256x128xbf16>, vector<128x128xbf16>, vector<256x128xf32> -> vector<256x128xf32>
    %c5_50 = arith.constant 5 : index
    %c0_51 = arith.constant 0 : index
    %c0_52 = arith.constant 0 : index
    %61 = vector.load %arg8[%c5_50, %c0_51, %c0_52] : memref<9x256x1xf32, #tpu.memory_space<vmem>>, vector<1x256x1xf32>
    %62 = vector.shape_cast %61 : vector<1x256x1xf32> to vector<256x1xf32>
    %63 = vector.broadcast %62 : vector<256x1xf32> to vector<256x128xf32>
    %64 = arith.mulf %60, %63 : vector<256x128xf32>
    %c0_53 = arith.constant 0 : index
    %c0_54 = arith.constant 0 : index
    %65 = vector.load %arg10[%c0_53, %c0_54] : memref<256x128xf32, #tpu.memory_space<vmem>>, vector<256x128xf32>
    %66 = arith.addf %65, %64 : vector<256x128xf32>
    %c0_55 = arith.constant 0 : index
    %c0_56 = arith.constant 0 : index
    %67 = vector.load %arg10[%c0_55, %c0_56] : memref<256x128xf32, #tpu.memory_space<vmem>>, vector<256x128xf32>
    tpu.vector_store %arg10[%c0_55, %c0_56], %66 {strides = array<i32>} : memref<256x128xf32, #tpu.memory_space<vmem>>, vector<256x128xf32>,
    %c241_i32 = arith.constant 241 : i32
    %68 = tpu.dynamic_rotate %2 by %c241_i32 dim 0 : vector<256x128xf32>, i32 -> vector<256x128xf32>
    %69 = arith.truncf %68 : vector<256x128xf32> to vector<256x128xbf16>
    %c6 = arith.constant 6 : index
    %c0_57 = arith.constant 0 : index
    %c0_58 = arith.constant 0 : index
    %70 = vector.load %arg2[%c6, %c0_57, %c0_58] : memref<9x128x128xbf16, #tpu.memory_space<vmem>>, vector<1x128x128xbf16>
    %71 = vector.shape_cast %70 : vector<1x128x128xbf16> to vector<128x128xbf16>
    %cst_59 = arith.constant dense<0.000000e+00> : vector<256x128xf32>
    %72 = tpu.matmul %69, %71, %cst_59 {dimension_numbers = #tpu.dot_dimension_numbers<[1], [0], [0], [1], [0, 0, 1, 1], [], []>} : vector<256x128xbf16>, vector<128x128xbf16>, vector<256x128xf32> -> vector<256x128xf32>
    %c6_60 = arith.constant 6 : index
    %c0_61 = arith.constant 0 : index
    %c0_62 = arith.constant 0 : index
    %73 = vector.load %arg8[%c6_60, %c0_61, %c0_62] : memref<9x256x1xf32, #tpu.memory_space<vmem>>, vector<1x256x1xf32>
    %74 = vector.shape_cast %73 : vector<1x256x1xf32> to vector<256x1xf32>
    %75 = vector.broadcast %74 : vector<256x1xf32> to vector<256x128xf32>
    %76 = arith.mulf %72, %75 : vector<256x128xf32>
    %c0_63 = arith.constant 0 : index
    %c0_64 = arith.constant 0 : index
    %77 = vector.load %arg10[%c0_63, %c0_64] : memref<256x128xf32, #tpu.memory_space<vmem>>, vector<256x128xf32>
    %78 = arith.addf %77, %76 : vector<256x128xf32>
    %c0_65 = arith.constant 0 : index
    %c0_66 = arith.constant 0 : index
    %79 = vector.load %arg10[%c0_65, %c0_66] : memref<256x128xf32, #tpu.memory_space<vmem>>, vector<256x128xf32>
    tpu.vector_store %arg10[%c0_65, %c0_66], %78 {strides = array<i32>} : memref<256x128xf32, #tpu.memory_space<vmem>>, vector<256x128xf32>,
    %c240_i32 = arith.constant 240 : i32
    %80 = tpu.dynamic_rotate %2 by %c240_i32 dim 0 : vector<256x128xf32>, i32 -> vector<256x128xf32>
    %81 = arith.truncf %80 : vector<256x128xf32> to vector<256x128xbf16>
    %c7 = arith.constant 7 : index
    %c0_67 = arith.constant 0 : index
    %c0_68 = arith.constant 0 : index
    %82 = vector.load %arg2[%c7, %c0_67, %c0_68] : memref<9x128x128xbf16, #tpu.memory_space<vmem>>, vector<1x128x128xbf16>
    %83 = vector.shape_cast %82 : vector<1x128x128xbf16> to vector<128x128xbf16>
    %cst_69 = arith.constant dense<0.000000e+00> : vector<256x128xf32>
    %84 = tpu.matmul %81, %83, %cst_69 {dimension_numbers = #tpu.dot_dimension_numbers<[1], [0], [0], [1], [0, 0, 1, 1], [], []>} : vector<256x128xbf16>, vector<128x128xbf16>, vector<256x128xf32> -> vector<256x128xf32>
    %c7_70 = arith.constant 7 : index
    %c0_71 = arith.constant 0 : index
    %c0_72 = arith.constant 0 : index
    %85 = vector.load %arg8[%c7_70, %c0_71, %c0_72] : memref<9x256x1xf32, #tpu.memory_space<vmem>>, vector<1x256x1xf32>
    %86 = vector.shape_cast %85 : vector<1x256x1xf32> to vector<256x1xf32>
    %87 = vector.broadcast %86 : vector<256x1xf32> to vector<256x128xf32>
    %88 = arith.mulf %84, %87 : vector<256x128xf32>
    %c0_73 = arith.constant 0 : index
    %c0_74 = arith.constant 0 : index
    %89 = vector.load %arg10[%c0_73, %c0_74] : memref<256x128xf32, #tpu.memory_space<vmem>>, vector<256x128xf32>
    %90 = arith.addf %89, %88 : vector<256x128xf32>
    %c0_75 = arith.constant 0 : index
    %c0_76 = arith.constant 0 : index
    %91 = vector.load %arg10[%c0_75, %c0_76] : memref<256x128xf32, #tpu.memory_space<vmem>>, vector<256x128xf32>
    tpu.vector_store %arg10[%c0_75, %c0_76], %90 {strides = array<i32>} : memref<256x128xf32, #tpu.memory_space<vmem>>, vector<256x128xf32>,
    %c239_i32 = arith.constant 239 : i32
    %92 = tpu.dynamic_rotate %2 by %c239_i32 dim 0 : vector<256x128xf32>, i32 -> vector<256x128xf32>
    %93 = arith.truncf %92 : vector<256x128xf32> to vector<256x128xbf16>
    %c8 = arith.constant 8 : index
    %c0_77 = arith.constant 0 : index
    %c0_78 = arith.constant 0 : index
    %94 = vector.load %arg2[%c8, %c0_77, %c0_78] : memref<9x128x128xbf16, #tpu.memory_space<vmem>>, vector<1x128x128xbf16>
    %95 = vector.shape_cast %94 : vector<1x128x128xbf16> to vector<128x128xbf16>
    %cst_79 = arith.constant dense<0.000000e+00> : vector<256x128xf32>
    %96 = tpu.matmul %93, %95, %cst_79 {dimension_numbers = #tpu.dot_dimension_numbers<[1], [0], [0], [1], [0, 0, 1, 1], [], []>} : vector<256x128xbf16>, vector<128x128xbf16>, vector<256x128xf32> -> vector<256x128xf32>
    %c8_80 = arith.constant 8 : index
    %c0_81 = arith.constant 0 : index
    %c0_82 = arith.constant 0 : index
    %97 = vector.load %arg8[%c8_80, %c0_81, %c0_82] : memref<9x256x1xf32, #tpu.memory_space<vmem>>, vector<1x256x1xf32>
    %98 = vector.shape_cast %97 : vector<1x256x1xf32> to vector<256x1xf32>
    %99 = vector.broadcast %98 : vector<256x1xf32> to vector<256x128xf32>
    %100 = arith.mulf %96, %99 : vector<256x128xf32>
    %c0_83 = arith.constant 0 : index
    %c0_84 = arith.constant 0 : index
    %101 = vector.load %arg10[%c0_83, %c0_84] : memref<256x128xf32, #tpu.memory_space<vmem>>, vector<256x128xf32>
    %102 = arith.addf %101, %100 : vector<256x128xf32>
    %c0_85 = arith.constant 0 : index
    %c0_86 = arith.constant 0 : index
    %103 = vector.load %arg10[%c0_85, %c0_86] : memref<256x128xf32, #tpu.memory_space<vmem>>, vector<256x128xf32>
    tpu.vector_store %arg10[%c0_85, %c0_86], %102 {strides = array<i32>} : memref<256x128xf32, #tpu.memory_space<vmem>>, vector<256x128xf32>,
    %c0_87 = arith.constant 0 : index
    %c0_88 = arith.constant 0 : index
    %104 = vector.load %arg10[%c0_87, %c0_88] : memref<256x128xf32, #tpu.memory_space<vmem>>, vector<256x128xf32>
    %c0_89 = arith.constant 0 : index
    %c0_90 = arith.constant 0 : index
    %105 = vector.load %arg3[%c0_89, %c0_90] : memref<1x128xf32, #tpu.memory_space<vmem>>, vector<1x128xf32>
    %106 = vector.shape_cast %105 : vector<1x128xf32> to vector<128xf32>
    %107 = vector.shape_cast %106 : vector<128xf32> to vector<1x128xf32>
    %108 = vector.broadcast %107 : vector<1x128xf32> to vector<256x128xf32>
    %109 = arith.mulf %104, %108 : vector<256x128xf32>
    %c0_91 = arith.constant 0 : index
    %c0_92 = arith.constant 0 : index
    %110 = vector.load %arg4[%c0_91, %c0_92] : memref<1x128xf32, #tpu.memory_space<vmem>>, vector<1x128xf32>
    %111 = vector.shape_cast %110 : vector<1x128xf32> to vector<128xf32>
    %112 = vector.shape_cast %111 : vector<128xf32> to vector<1x128xf32>
    %113 = vector.broadcast %112 : vector<1x128xf32> to vector<256x128xf32>
    %114 = arith.addf %109, %113 : vector<256x128xf32>
    %cst_93 = arith.constant 0.000000e+00 : f32
    %115 = vector.broadcast %cst_93 : f32 to vector<256x128xf32>
    %116 = arith.maximumf %114, %115 : vector<256x128xf32>
    %c17_i32_94 = arith.constant 17 : i32
    %117 = tpu.dynamic_rotate %116 by %c17_i32_94 dim 0 : vector<256x128xf32>, i32 -> vector<256x128xf32>
    %118 = arith.truncf %117 : vector<256x128xf32> to vector<256x128xbf16>
    %c0_95 = arith.constant 0 : index
    %c0_96 = arith.constant 0 : index
    %c0_97 = arith.constant 0 : index
    %119 = vector.load %arg5[%c0_95, %c0_96, %c0_97] : memref<9x128x128xbf16, #tpu.memory_space<vmem>>, vector<1x128x128xbf16>
    %120 = vector.shape_cast %119 : vector<1x128x128xbf16> to vector<128x128xbf16>
    %cst_98 = arith.constant dense<0.000000e+00> : vector<256x128xf32>
    %121 = tpu.matmul %118, %120, %cst_98 {dimension_numbers = #tpu.dot_dimension_numbers<[1], [0], [0], [1], [0, 0, 1, 1], [], []>} : vector<256x128xbf16>, vector<128x128xbf16>, vector<256x128xf32> -> vector<256x128xf32>
    %c0_99 = arith.constant 0 : index
    %c0_100 = arith.constant 0 : index
    %c0_101 = arith.constant 0 : index
    %122 = vector.load %arg8[%c0_99, %c0_100, %c0_101] : memref<9x256x1xf32, #tpu.memory_space<vmem>>, vector<1x256x1xf32>
    %123 = vector.shape_cast %122 : vector<1x256x1xf32> to vector<256x1xf32>
    %124 = vector.broadcast %123 : vector<256x1xf32> to vector<256x128xf32>
    %125 = arith.mulf %121, %124 : vector<256x128xf32>
    %c0_102 = arith.constant 0 : index
    %c0_103 = arith.constant 0 : index
    %126 = vector.load %arg10[%c0_102, %c0_103] : memref<256x128xf32, #tpu.memory_space<vmem>>, vector<256x128xf32>
    tpu.vector_store %arg10[%c0_102, %c0_103], %125 {strides = array<i32>} : memref<256x128xf32, #tpu.memory_space<vmem>>, vector<256x128xf32>,
    %c16_i32_104 = arith.constant 16 : i32
    %127 = tpu.dynamic_rotate %116 by %c16_i32_104 dim 0 : vector<256x128xf32>, i32 -> vector<256x128xf32>
    %128 = arith.truncf %127 : vector<256x128xf32> to vector<256x128xbf16>
    %c1_105 = arith.constant 1 : index
    %c0_106 = arith.constant 0 : index
    %c0_107 = arith.constant 0 : index
    %129 = vector.load %arg5[%c1_105, %c0_106, %c0_107] : memref<9x128x128xbf16, #tpu.memory_space<vmem>>, vector<1x128x128xbf16>
    %130 = vector.shape_cast %129 : vector<1x128x128xbf16> to vector<128x128xbf16>
    %cst_108 = arith.constant dense<0.000000e+00> : vector<256x128xf32>
    %131 = tpu.matmul %128, %130, %cst_108 {dimension_numbers = #tpu.dot_dimension_numbers<[1], [0], [0], [1], [0, 0, 1, 1], [], []>} : vector<256x128xbf16>, vector<128x128xbf16>, vector<256x128xf32> -> vector<256x128xf32>
    %c1_109 = arith.constant 1 : index
    %c0_110 = arith.constant 0 : index
    %c0_111 = arith.constant 0 : index
    %132 = vector.load %arg8[%c1_109, %c0_110, %c0_111] : memref<9x256x1xf32, #tpu.memory_space<vmem>>, vector<1x256x1xf32>
    %133 = vector.shape_cast %132 : vector<1x256x1xf32> to vector<256x1xf32>
    %134 = vector.broadcast %133 : vector<256x1xf32> to vector<256x128xf32>
    %135 = arith.mulf %131, %134 : vector<256x128xf32>
    %c0_112 = arith.constant 0 : index
    %c0_113 = arith.constant 0 : index
    %136 = vector.load %arg10[%c0_112, %c0_113] : memref<256x128xf32, #tpu.memory_space<vmem>>, vector<256x128xf32>
    %137 = arith.addf %136, %135 : vector<256x128xf32>
    %c0_114 = arith.constant 0 : index
    %c0_115 = arith.constant 0 : index
    %138 = vector.load %arg10[%c0_114, %c0_115] : memref<256x128xf32, #tpu.memory_space<vmem>>, vector<256x128xf32>
    tpu.vector_store %arg10[%c0_114, %c0_115], %137 {strides = array<i32>} : memref<256x128xf32, #tpu.memory_space<vmem>>, vector<256x128xf32>,
    %c15_i32_116 = arith.constant 15 : i32
    %139 = tpu.dynamic_rotate %116 by %c15_i32_116 dim 0 : vector<256x128xf32>, i32 -> vector<256x128xf32>
    %140 = arith.truncf %139 : vector<256x128xf32> to vector<256x128xbf16>
    %c2_117 = arith.constant 2 : index
    %c0_118 = arith.constant 0 : index
    %c0_119 = arith.constant 0 : index
    %141 = vector.load %arg5[%c2_117, %c0_118, %c0_119] : memref<9x128x128xbf16, #tpu.memory_space<vmem>>, vector<1x128x128xbf16>
    %142 = vector.shape_cast %141 : vector<1x128x128xbf16> to vector<128x128xbf16>
    %cst_120 = arith.constant dense<0.000000e+00> : vector<256x128xf32>
    %143 = tpu.matmul %140, %142, %cst_120 {dimension_numbers = #tpu.dot_dimension_numbers<[1], [0], [0], [1], [0, 0, 1, 1], [], []>} : vector<256x128xbf16>, vector<128x128xbf16>, vector<256x128xf32> -> vector<256x128xf32>
    %c2_121 = arith.constant 2 : index
    %c0_122 = arith.constant 0 : index
    %c0_123 = arith.constant 0 : index
    %144 = vector.load %arg8[%c2_121, %c0_122, %c0_123] : memref<9x256x1xf32, #tpu.memory_space<vmem>>, vector<1x256x1xf32>
    %145 = vector.shape_cast %144 : vector<1x256x1xf32> to vector<256x1xf32>
    %146 = vector.broadcast %145 : vector<256x1xf32> to vector<256x128xf32>
    %147 = arith.mulf %143, %146 : vector<256x128xf32>
    %c0_124 = arith.constant 0 : index
    %c0_125 = arith.constant 0 : index
    %148 = vector.load %arg10[%c0_124, %c0_125] : memref<256x128xf32, #tpu.memory_space<vmem>>, vector<256x128xf32>
    %149 = arith.addf %148, %147 : vector<256x128xf32>
    %c0_126 = arith.constant 0 : index
    %c0_127 = arith.constant 0 : index
    %150 = vector.load %arg10[%c0_126, %c0_127] : memref<256x128xf32, #tpu.memory_space<vmem>>, vector<256x128xf32>
    tpu.vector_store %arg10[%c0_126, %c0_127], %149 {strides = array<i32>} : memref<256x128xf32, #tpu.memory_space<vmem>>, vector<256x128xf32>,
    %c1_i32_128 = arith.constant 1 : i32
    %151 = tpu.dynamic_rotate %116 by %c1_i32_128 dim 0 : vector<256x128xf32>, i32 -> vector<256x128xf32>
    %152 = arith.truncf %151 : vector<256x128xf32> to vector<256x128xbf16>
    %c3_129 = arith.constant 3 : index
    %c0_130 = arith.constant 0 : index
    %c0_131 = arith.constant 0 : index
    %153 = vector.load %arg5[%c3_129, %c0_130, %c0_131] : memref<9x128x128xbf16, #tpu.memory_space<vmem>>, vector<1x128x128xbf16>
    %154 = vector.shape_cast %153 : vector<1x128x128xbf16> to vector<128x128xbf16>
    %cst_132 = arith.constant dense<0.000000e+00> : vector<256x128xf32>
    %155 = tpu.matmul %152, %154, %cst_132 {dimension_numbers = #tpu.dot_dimension_numbers<[1], [0], [0], [1], [0, 0, 1, 1], [], []>} : vector<256x128xbf16>, vector<128x128xbf16>, vector<256x128xf32> -> vector<256x128xf32>
    %c3_133 = arith.constant 3 : index
    %c0_134 = arith.constant 0 : index
    %c0_135 = arith.constant 0 : index
    %156 = vector.load %arg8[%c3_133, %c0_134, %c0_135] : memref<9x256x1xf32, #tpu.memory_space<vmem>>, vector<1x256x1xf32>
    %157 = vector.shape_cast %156 : vector<1x256x1xf32> to vector<256x1xf32>
    %158 = vector.broadcast %157 : vector<256x1xf32> to vector<256x128xf32>
    %159 = arith.mulf %155, %158 : vector<256x128xf32>
    %c0_136 = arith.constant 0 : index
    %c0_137 = arith.constant 0 : index
    %160 = vector.load %arg10[%c0_136, %c0_137] : memref<256x128xf32, #tpu.memory_space<vmem>>, vector<256x128xf32>
    %161 = arith.addf %160, %159 : vector<256x128xf32>
    %c0_138 = arith.constant 0 : index
    %c0_139 = arith.constant 0 : index
    %162 = vector.load %arg10[%c0_138, %c0_139] : memref<256x128xf32, #tpu.memory_space<vmem>>, vector<256x128xf32>
    tpu.vector_store %arg10[%c0_138, %c0_139], %161 {strides = array<i32>} : memref<256x128xf32, #tpu.memory_space<vmem>>, vector<256x128xf32>,
    %163 = arith.truncf %116 : vector<256x128xf32> to vector<256x128xbf16>
    %c4_140 = arith.constant 4 : index
    %c0_141 = arith.constant 0 : index
    %c0_142 = arith.constant 0 : index
    %164 = vector.load %arg5[%c4_140, %c0_141, %c0_142] : memref<9x128x128xbf16, #tpu.memory_space<vmem>>, vector<1x128x128xbf16>
    %165 = vector.shape_cast %164 : vector<1x128x128xbf16> to vector<128x128xbf16>
    %cst_143 = arith.constant dense<0.000000e+00> : vector<256x128xf32>
    %166 = tpu.matmul %163, %165, %cst_143 {dimension_numbers = #tpu.dot_dimension_numbers<[1], [0], [0], [1], [0, 0, 1, 1], [], []>} : vector<256x128xbf16>, vector<128x128xbf16>, vector<256x128xf32> -> vector<256x128xf32>
    %c0_144 = arith.constant 0 : index
    %c0_145 = arith.constant 0 : index
    %167 = vector.load %arg10[%c0_144, %c0_145] : memref<256x128xf32, #tpu.memory_space<vmem>>, vector<256x128xf32>
    %168 = arith.addf %167, %166 : vector<256x128xf32>
    %c0_146 = arith.constant 0 : index
    %c0_147 = arith.constant 0 : index
    %169 = vector.load %arg10[%c0_146, %c0_147] : memref<256x128xf32, #tpu.memory_space<vmem>>, vector<256x128xf32>
    tpu.vector_store %arg10[%c0_146, %c0_147], %168 {strides = array<i32>} : memref<256x128xf32, #tpu.memory_space<vmem>>, vector<256x128xf32>,
    %c255_i32_148 = arith.constant 255 : i32
    %170 = tpu.dynamic_rotate %116 by %c255_i32_148 dim 0 : vector<256x128xf32>, i32 -> vector<256x128xf32>
    %171 = arith.truncf %170 : vector<256x128xf32> to vector<256x128xbf16>
    %c5_149 = arith.constant 5 : index
    %c0_150 = arith.constant 0 : index
    %c0_151 = arith.constant 0 : index
    %172 = vector.load %arg5[%c5_149, %c0_150, %c0_151] : memref<9x128x128xbf16, #tpu.memory_space<vmem>>, vector<1x128x128xbf16>
    %173 = vector.shape_cast %172 : vector<1x128x128xbf16> to vector<128x128xbf16>
    %cst_152 = arith.constant dense<0.000000e+00> : vector<256x128xf32>
    %174 = tpu.matmul %171, %173, %cst_152 {dimension_numbers = #tpu.dot_dimension_numbers<[1], [0], [0], [1], [0, 0, 1, 1], [], []>} : vector<256x128xbf16>, vector<128x128xbf16>, vector<256x128xf32> -> vector<256x128xf32>
    %c5_153 = arith.constant 5 : index
    %c0_154 = arith.constant 0 : index
    %c0_155 = arith.constant 0 : index
    %175 = vector.load %arg8[%c5_153, %c0_154, %c0_155] : memref<9x256x1xf32, #tpu.memory_space<vmem>>, vector<1x256x1xf32>
    %176 = vector.shape_cast %175 : vector<1x256x1xf32> to vector<256x1xf32>
    %177 = vector.broadcast %176 : vector<256x1xf32> to vector<256x128xf32>
    %178 = arith.mulf %174, %177 : vector<256x128xf32>
    %c0_156 = arith.constant 0 : index
    %c0_157 = arith.constant 0 : index
    %179 = vector.load %arg10[%c0_156, %c0_157] : memref<256x128xf32, #tpu.memory_space<vmem>>, vector<256x128xf32>
    %180 = arith.addf %179, %178 : vector<256x128xf32>
    %c0_158 = arith.constant 0 : index
    %c0_159 = arith.constant 0 : index
    %181 = vector.load %arg10[%c0_158, %c0_159] : memref<256x128xf32, #tpu.memory_space<vmem>>, vector<256x128xf32>
    tpu.vector_store %arg10[%c0_158, %c0_159], %180 {strides = array<i32>} : memref<256x128xf32, #tpu.memory_space<vmem>>, vector<256x128xf32>,
    %c241_i32_160 = arith.constant 241 : i32
    %182 = tpu.dynamic_rotate %116 by %c241_i32_160 dim 0 : vector<256x128xf32>, i32 -> vector<256x128xf32>
    %183 = arith.truncf %182 : vector<256x128xf32> to vector<256x128xbf16>
    %c6_161 = arith.constant 6 : index
    %c0_162 = arith.constant 0 : index
    %c0_163 = arith.constant 0 : index
    %184 = vector.load %arg5[%c6_161, %c0_162, %c0_163] : memref<9x128x128xbf16, #tpu.memory_space<vmem>>, vector<1x128x128xbf16>
    %185 = vector.shape_cast %184 : vector<1x128x128xbf16> to vector<128x128xbf16>
    %cst_164 = arith.constant dense<0.000000e+00> : vector<256x128xf32>
    %186 = tpu.matmul %183, %185, %cst_164 {dimension_numbers = #tpu.dot_dimension_numbers<[1], [0], [0], [1], [0, 0, 1, 1], [], []>} : vector<256x128xbf16>, vector<128x128xbf16>, vector<256x128xf32> -> vector<256x128xf32>
    %c6_165 = arith.constant 6 : index
    %c0_166 = arith.constant 0 : index
    %c0_167 = arith.constant 0 : index
    %187 = vector.load %arg8[%c6_165, %c0_166, %c0_167] : memref<9x256x1xf32, #tpu.memory_space<vmem>>, vector<1x256x1xf32>
    %188 = vector.shape_cast %187 : vector<1x256x1xf32> to vector<256x1xf32>
    %189 = vector.broadcast %188 : vector<256x1xf32> to vector<256x128xf32>
    %190 = arith.mulf %186, %189 : vector<256x128xf32>
    %c0_168 = arith.constant 0 : index
    %c0_169 = arith.constant 0 : index
    %191 = vector.load %arg10[%c0_168, %c0_169] : memref<256x128xf32, #tpu.memory_space<vmem>>, vector<256x128xf32>
    %192 = arith.addf %191, %190 : vector<256x128xf32>
    %c0_170 = arith.constant 0 : index
    %c0_171 = arith.constant 0 : index
    %193 = vector.load %arg10[%c0_170, %c0_171] : memref<256x128xf32, #tpu.memory_space<vmem>>, vector<256x128xf32>
    tpu.vector_store %arg10[%c0_170, %c0_171], %192 {strides = array<i32>} : memref<256x128xf32, #tpu.memory_space<vmem>>, vector<256x128xf32>,
    %c240_i32_172 = arith.constant 240 : i32
    %194 = tpu.dynamic_rotate %116 by %c240_i32_172 dim 0 : vector<256x128xf32>, i32 -> vector<256x128xf32>
    %195 = arith.truncf %194 : vector<256x128xf32> to vector<256x128xbf16>
    %c7_173 = arith.constant 7 : index
    %c0_174 = arith.constant 0 : index
    %c0_175 = arith.constant 0 : index
    %196 = vector.load %arg5[%c7_173, %c0_174, %c0_175] : memref<9x128x128xbf16, #tpu.memory_space<vmem>>, vector<1x128x128xbf16>
    %197 = vector.shape_cast %196 : vector<1x128x128xbf16> to vector<128x128xbf16>
    %cst_176 = arith.constant dense<0.000000e+00> : vector<256x128xf32>
    %198 = tpu.matmul %195, %197, %cst_176 {dimension_numbers = #tpu.dot_dimension_numbers<[1], [0], [0], [1], [0, 0, 1, 1], [], []>} : vector<256x128xbf16>, vector<128x128xbf16>, vector<256x128xf32> -> vector<256x128xf32>
    %c7_177 = arith.constant 7 : index
    %c0_178 = arith.constant 0 : index
    %c0_179 = arith.constant 0 : index
    %199 = vector.load %arg8[%c7_177, %c0_178, %c0_179] : memref<9x256x1xf32, #tpu.memory_space<vmem>>, vector<1x256x1xf32>
    %200 = vector.shape_cast %199 : vector<1x256x1xf32> to vector<256x1xf32>
    %201 = vector.broadcast %200 : vector<256x1xf32> to vector<256x128xf32>
    %202 = arith.mulf %198, %201 : vector<256x128xf32>
    %c0_180 = arith.constant 0 : index
    %c0_181 = arith.constant 0 : index
    %203 = vector.load %arg10[%c0_180, %c0_181] : memref<256x128xf32, #tpu.memory_space<vmem>>, vector<256x128xf32>
    %204 = arith.addf %203, %202 : vector<256x128xf32>
    %c0_182 = arith.constant 0 : index
    %c0_183 = arith.constant 0 : index
    %205 = vector.load %arg10[%c0_182, %c0_183] : memref<256x128xf32, #tpu.memory_space<vmem>>, vector<256x128xf32>
    tpu.vector_store %arg10[%c0_182, %c0_183], %204 {strides = array<i32>} : memref<256x128xf32, #tpu.memory_space<vmem>>, vector<256x128xf32>,
    %c239_i32_184 = arith.constant 239 : i32
    %206 = tpu.dynamic_rotate %116 by %c239_i32_184 dim 0 : vector<256x128xf32>, i32 -> vector<256x128xf32>
    %207 = arith.truncf %206 : vector<256x128xf32> to vector<256x128xbf16>
    %c8_185 = arith.constant 8 : index
    %c0_186 = arith.constant 0 : index
    %c0_187 = arith.constant 0 : index
    %208 = vector.load %arg5[%c8_185, %c0_186, %c0_187] : memref<9x128x128xbf16, #tpu.memory_space<vmem>>, vector<1x128x128xbf16>
    %209 = vector.shape_cast %208 : vector<1x128x128xbf16> to vector<128x128xbf16>
    %cst_188 = arith.constant dense<0.000000e+00> : vector<256x128xf32>
    %210 = tpu.matmul %207, %209, %cst_188 {dimension_numbers = #tpu.dot_dimension_numbers<[1], [0], [0], [1], [0, 0, 1, 1], [], []>} : vector<256x128xbf16>, vector<128x128xbf16>, vector<256x128xf32> -> vector<256x128xf32>
    %c8_189 = arith.constant 8 : index
    %c0_190 = arith.constant 0 : index
    %c0_191 = arith.constant 0 : index
    %211 = vector.load %arg8[%c8_189, %c0_190, %c0_191] : memref<9x256x1xf32, #tpu.memory_space<vmem>>, vector<1x256x1xf32>
    %212 = vector.shape_cast %211 : vector<1x256x1xf32> to vector<256x1xf32>
    %213 = vector.broadcast %212 : vector<256x1xf32> to vector<256x128xf32>
    %214 = arith.mulf %210, %213 : vector<256x128xf32>
    %c0_192 = arith.constant 0 : index
    %c0_193 = arith.constant 0 : index
    %215 = vector.load %arg10[%c0_192, %c0_193] : memref<256x128xf32, #tpu.memory_space<vmem>>, vector<256x128xf32>
    %216 = arith.addf %215, %214 : vector<256x128xf32>
    %c0_194 = arith.constant 0 : index
    %c0_195 = arith.constant 0 : index
    %217 = vector.load %arg10[%c0_194, %c0_195] : memref<256x128xf32, #tpu.memory_space<vmem>>, vector<256x128xf32>
    tpu.vector_store %arg10[%c0_194, %c0_195], %216 {strides = array<i32>} : memref<256x128xf32, #tpu.memory_space<vmem>>, vector<256x128xf32>,
    %c0_196 = arith.constant 0 : index
    %c0_197 = arith.constant 0 : index
    %218 = vector.load %arg10[%c0_196, %c0_197] : memref<256x128xf32, #tpu.memory_space<vmem>>, vector<256x128xf32>
    %c0_198 = arith.constant 0 : index
    %c0_199 = arith.constant 0 : index
    %219 = vector.load %arg6[%c0_198, %c0_199] : memref<1x128xf32, #tpu.memory_space<vmem>>, vector<1x128xf32>
    %220 = vector.shape_cast %219 : vector<1x128xf32> to vector<128xf32>
    %221 = vector.shape_cast %220 : vector<128xf32> to vector<1x128xf32>
    %222 = vector.broadcast %221 : vector<1x128xf32> to vector<256x128xf32>
    %223 = arith.mulf %218, %222 : vector<256x128xf32>
    %c0_200 = arith.constant 0 : index
    %c0_201 = arith.constant 0 : index
    %224 = vector.load %arg7[%c0_200, %c0_201] : memref<1x128xf32, #tpu.memory_space<vmem>>, vector<1x128xf32>
    %225 = vector.shape_cast %224 : vector<1x128xf32> to vector<128xf32>
    %226 = vector.shape_cast %225 : vector<128xf32> to vector<1x128xf32>
    %227 = vector.broadcast %226 : vector<1x128xf32> to vector<256x128xf32>
    %228 = arith.addf %223, %227 : vector<256x128xf32>
    %c0_202 = arith.constant 0 : index
    %c0_203 = arith.constant 0 : index
    %c0_204 = arith.constant 0 : index
    %229 = vector.load %arg1[%c0_202, %c0_203, %c0_204] : memref<1x256x128xbf16, #tpu.memory_space<vmem>>, vector<1x256x128xbf16>
    %230 = vector.shape_cast %229 : vector<1x256x128xbf16> to vector<256x128xbf16>
    %231 = arith.extf %230 : vector<256x128xbf16> to vector<256x128xf32>
    %232 = arith.addf %228, %231 : vector<256x128xf32>
    %cst_205 = arith.constant 0.000000e+00 : f32
    %233 = vector.broadcast %cst_205 : f32 to vector<256x128xf32>
    %234 = arith.maximumf %232, %233 : vector<256x128xf32>
    %c0_206 = arith.constant 0 : index
    %c0_207 = arith.constant 0 : index
    %c0_208 = arith.constant 0 : index
    %235 = vector.load %arg9[%c0_206, %c0_207, %c0_208] : memref<1x256x128xf32, #tpu.memory_space<vmem>>, vector<1x256x128xf32>
    %236 = vector.shape_cast %235 : vector<1x256x128xf32> to vector<256x128xf32>
    %237 = vector.shape_cast %234 : vector<256x128xf32> to vector<1x256x128xf32>
    tpu.vector_store %arg9[%c0_206, %c0_207, %c0_208], %237 {strides = array<i32>} : memref<1x256x128xf32, #tpu.memory_space<vmem>>, vector<1x256x128xf32>,
    return
  }
  func.func @transform_0(%arg0: i32) -> (i32, i32, i32) {
    %c0_i32 = arith.constant 0 : i32
    %c0_i32_0 = arith.constant 0 : i32
    %c0_i32_1 = arith.constant 0 : i32
    return %arg0, %c0_i32, %c0_i32_0 : i32, i32, i32
  }
  func.func @transform_1(%arg0: i32) -> (i32, i32, i32) {
    %c0_i32 = arith.constant 0 : i32
    %c0_i32_0 = arith.constant 0 : i32
    %c0_i32_1 = arith.constant 0 : i32
    %c0_i32_2 = arith.constant 0 : i32
    return %c0_i32, %c0_i32_0, %c0_i32_1 : i32, i32, i32
  }
  func.func @transform_2(%arg0: i32) -> (i32, i32) {
    %c0_i32 = arith.constant 0 : i32
    %c0_i32_0 = arith.constant 0 : i32
    %c0_i32_1 = arith.constant 0 : i32
    return %c0_i32, %c0_i32_0 : i32, i32
  }
  func.func @transform_3(%arg0: i32) -> (i32, i32) {
    %c0_i32 = arith.constant 0 : i32
    %c0_i32_0 = arith.constant 0 : i32
    %c0_i32_1 = arith.constant 0 : i32
    return %c0_i32, %c0_i32_0 : i32, i32
  }
  func.func @transform_4(%arg0: i32) -> (i32, i32, i32) {
    %c0_i32 = arith.constant 0 : i32
    %c0_i32_0 = arith.constant 0 : i32
    %c0_i32_1 = arith.constant 0 : i32
    %c0_i32_2 = arith.constant 0 : i32
    return %c0_i32, %c0_i32_0, %c0_i32_1 : i32, i32, i32
  }
  func.func @transform_5(%arg0: i32) -> (i32, i32) {
    %c0_i32 = arith.constant 0 : i32
    %c0_i32_0 = arith.constant 0 : i32
    %c0_i32_1 = arith.constant 0 : i32
    return %c0_i32, %c0_i32_0 : i32, i32
  }
  func.func @transform_6(%arg0: i32) -> (i32, i32) {
    %c0_i32 = arith.constant 0 : i32
    %c0_i32_0 = arith.constant 0 : i32
    %c0_i32_1 = arith.constant 0 : i32
    return %c0_i32, %c0_i32_0 : i32, i32
  }
  func.func @transform_7(%arg0: i32) -> (i32, i32, i32) {
    %c0_i32 = arith.constant 0 : i32
    %c0_i32_0 = arith.constant 0 : i32
    %c0_i32_1 = arith.constant 0 : i32
    %c0_i32_2 = arith.constant 0 : i32
    return %c0_i32, %c0_i32_0, %c0_i32_1 : i32, i32, i32
  }
  func.func @transform_8(%arg0: i32) -> (i32, i32, i32) {
    %c0_i32 = arith.constant 0 : i32
    %c0_i32_0 = arith.constant 0 : i32
    %c0_i32_1 = arith.constant 0 : i32
    return %arg0, %c0_i32, %c0_i32_0 : i32, i32, i32
  }
}

</mosaic_0001>

<llo_original>
// kernel: tpu_custom_call.1
$region0: #{tpu_custom_call.1}
  #allocation0 [shape = 'u32[]', space=smem, size = 0x4, offset = 0x4, fixed_abs, tag = 'smem constant byte address 0x4 - core index']
  #allocation1 [shape = 'u32[144,128]{1,0:T(1,128)}', space=vmem, size = 0x12000, scoped, tag = 'internal scratch']
  #allocation2 [shape = 'f32[256,128]{1,0:T(8,128)}', space=vmem, size = 0x20000, scoped, tag = 'scratch operand']
  %s0 = inlined_call_operand.vmem [shape: bf16[2,256,128], index: 0, kind: input, shape index: {}]
  %s1 = inlined_call_operand.vmem [shape: bf16[9,128,128], index: 1, kind: input, shape index: {}]
  %s2 = inlined_call_operand.vmem [shape: f32[1,128], index: 2, kind: input, shape index: {}]
  %s3 = inlined_call_operand.vmem [shape: f32[1,128], index: 3, kind: input, shape index: {}]
  %s4 = inlined_call_operand.vmem [shape: bf16[9,128,128], index: 4, kind: input, shape index: {}]
  %s5 = inlined_call_operand.vmem [shape: f32[1,128], index: 5, kind: input, shape index: {}]
  %s6 = inlined_call_operand.vmem [shape: f32[1,128], index: 6, kind: input, shape index: {}]
  %s7 = inlined_call_operand.vmem [shape: f32[9,256,1], index: 7, kind: input, shape index: {}]
  %s8 = inlined_call_operand.hbm [shape: f32[2,256,128], index: 8, kind: output, shape index: {}]
  %s9 = sld [smem:[#allocation0]]
  $region65: #{tpu_custom_call.1} parent=0
    _
  %s11 = ssub.s32 1, %s9
  %s12 = scalar_select 0, %s11, %s9
  $region1: #{tpu_custom_call.1} parent=0
    #allocation3 [shape = 'u8[262144]{0}', space=vmem, size = 0x40000, scoped, tag = 'output window, operand 0']
    #allocation4 [shape = 's32[2]{0}', space=sflag, size = 0x8, scoped, tag = 'scoped memory for tpu_custom_call.1']
    %13 = vsyncpa [#allocation4], 0
    %s14 = scalar_lea.sflag [#allocation4], 1
    %15 = vsyncpa %s14, 0
    loop: start=0, step=1, limit=4
    $region2: #{tpu_custom_call.1} parent=1 // loop_pre_header
      _
    $region3: #{tpu_custom_call.1} parent=1 // loop_header
      %s17 = sphi 0, %s21
      %p18 = scmp.ge.s32.totalorder %s17, 4
      %s27 = sphi 0, %s29
      %s30 = sphi 0, %s27
      %s31 = sphi 0, %s30
      %s47 = sphi 0, %s31
      %s51 = sphi 0, %s51
      %s53 = sphi 0, %s51
      %s54 = sphi 0, %s53
      %s68 = sphi 0, %s54
      %s72 = sphi 0, %s72
      %s74 = sphi 0, %s72
      %s75 = sphi 0, %s74
      %s89 = sphi 0, %s75
      %s93 = sphi 0, %s93
      %s95 = sphi 0, %s93
      %s96 = sphi 0, %s95
      %s110 = sphi 0, %s96
      %s114 = sphi 0, %s114
      %s116 = sphi 0, %s114
      %s117 = sphi 0, %s116
      %s131 = sphi 0, %s117
      %s135 = sphi 0, %s135
      %s137 = sphi 0, %s135
      %s138 = sphi 0, %s137
      %s152 = sphi 0, %s138
      %s156 = sphi 0, %s156
      %s158 = sphi 0, %s156
      %s159 = sphi 0, %s158
      %s173 = sphi 0, %s159
      %s177 = sphi 0, %s177
      %s179 = sphi 0, %s177
      %s180 = sphi 0, %s179
      %s194 = sphi 0, %s180
      %s200 = sphi 0, %s202
      %s203 = sphi 0, %s200
      %s204 = sphi 0, %s203
      %s220 = sphi 0, %s204
    $region4: #{tpu_custom_call.1} parent=1 // loop_header_branch
      %20 = sbr.rel (%p18) target = $region8
    $region5: #{tpu_custom_call.1} parent=1 // loop_body
      %s22 = ssub.s32 %s17, 1
      %s23 = ssub.s32 %s17, 2
      %s24 = sadd.s32 %s17, 1
      %s25 = ssub.s32 %s17, %s24
      %p26 = scmp.eq.s32.totalorder %s25, 0
      %s28 = sadd.s32 %s27, 1
      %s29 = scalar_select %p26, %s27, %s28
      %p32 = pneg %p26
      %p33 = scmp.eq.s32.totalorder %s17, 1
      %p34 = por %p32, %p33
      %p35 = scmp.ne.s32.totalorder %s27, %s30
      %p36 = scmp.eq.s32.totalorder %s17, 0
      %p37 = por %p35, %p36
      %p38 = scmp.ne.s32.totalorder %s27, %s30
      %p39 = scmp.eq.s32.totalorder %s22, 1
      %p40 = por %p38, %p39
      %p41 = scmp.ne.s32.totalorder %s30, %s31
      %p42 = scmp.eq.s32.totalorder %s22, 0
      %p43 = por %p41, %p42
      %p44 = scmp.ne.s32.totalorder %s30, %s31
      %p45 = scmp.eq.s32.totalorder %s23, 1
      %p46 = por %p44, %p45
      %p48 = scmp.ne.s32.totalorder %s31, %s47
      %p49 = scmp.eq.s32.totalorder %s23, 0
      %p50 = por %p48, %p49
      %s52 = sadd.s32 %s51, 1
      %p55 = scmp.eq.s32.totalorder %s17, 1
      %p56 = scmp.ne.s32.totalorder %s51, %s53
      %p57 = scmp.eq.s32.totalorder %s17, 0
      %p58 = por %p56, %p57
      %p59 = scmp.ne.s32.totalorder %s51, %s53
      %p60 = scmp.eq.s32.totalorder %s22, 1
      %p61 = por %p59, %p60
      %p62 = scmp.ne.s32.totalorder %s53, %s54
      %p63 = scmp.eq.s32.totalorder %s22, 0
      %p64 = por %p62, %p63
      %p65 = scmp.ne.s32.totalorder %s53, %s54
      %p66 = scmp.eq.s32.totalorder %s23, 1
      %p67 = por %p65, %p66
      %p69 = scmp.ne.s32.totalorder %s54, %s68
      %p70 = scmp.eq.s32.totalorder %s23, 0
      %p71 = por %p69, %p70
      %s73 = sadd.s32 %s72, 1
      %p76 = scmp.eq.s32.totalorder %s17, 1
      %p77 = scmp.ne.s32.totalorder %s72, %s74
      %p78 = scmp.eq.s32.totalorder %s17, 0
      %p79 = por %p77, %p78
      %p80 = scmp.ne.s32.totalorder %s72, %s74
      %p81 = scmp.eq.s32.totalorder %s22, 1
      %p82 = por %p80, %p81
      %p83 = scmp.ne.s32.totalorder %s74, %s75
      %p84 = scmp.eq.s32.totalorder %s22, 0
      %p85 = por %p83, %p84
      %p86 = scmp.ne.s32.totalorder %s74, %s75
      %p87 = scmp.eq.s32.totalorder %s23, 1
      %p88 = por %p86, %p87
      %p90 = scmp.ne.s32.totalorder %s75, %s89
      %p91 = scmp.eq.s32.totalorder %s23, 0
      %p92 = por %p90, %p91
      %s94 = sadd.s32 %s93, 1
      %p97 = scmp.eq.s32.totalorder %s17, 1
      %p98 = scmp.ne.s32.totalorder %s93, %s95
      %p99 = scmp.eq.s32.totalorder %s17, 0
      %p100 = por %p98, %p99
      %p101 = scmp.ne.s32.totalorder %s93, %s95
      %p102 = scmp.eq.s32.totalorder %s22, 1
      %p103 = por %p101, %p102
      %p104 = scmp.ne.s32.totalorder %s95, %s96
      %p105 = scmp.eq.s32.totalorder %s22, 0
      %p106 = por %p104, %p105
      %p107 = scmp.ne.s32.totalorder %s95, %s96
      %p108 = scmp.eq.s32.totalorder %s23, 1
      %p109 = por %p107, %p108
      %p111 = scmp.ne.s32.totalorder %s96, %s110
      %p112 = scmp.eq.s32.totalorder %s23, 0
      %p113 = por %p111, %p112
      %s115 = sadd.s32 %s114, 1
      %p118 = scmp.eq.s32.totalorder %s17, 1
      %p119 = scmp.ne.s32.totalorder %s114, %s116
      %p120 = scmp.eq.s32.totalorder %s17, 0
      %p121 = por %p119, %p120
      %p122 = scmp.ne.s32.totalorder %s114, %s116
      %p123 = scmp.eq.s32.totalorder %s22, 1
      %p124 = por %p122, %p123
      %p125 = scmp.ne.s32.totalorder %s116, %s117
      %p126 = scmp.eq.s32.totalorder %s22, 0
      %p127 = por %p125, %p126
      %p128 = scmp.ne.s32.totalorder %s116, %s117
      %p129 = scmp.eq.s32.totalorder %s23, 1
      %p130 = por %p128, %p129
      %p132 = scmp.ne.s32.totalorder %s117, %s131
      %p133 = scmp.eq.s32.totalorder %s23, 0
      %p134 = por %p132, %p133
      %s136 = sadd.s32 %s135, 1
      %p139 = scmp.eq.s32.totalorder %s17, 1
      %p140 = scmp.ne.s32.totalorder %s135, %s137
      %p141 = scmp.eq.s32.totalorder %s17, 0
      %p142 = por %p140, %p141
      %p143 = scmp.ne.s32.totalorder %s135, %s137
      %p144 = scmp.eq.s32.totalorder %s22, 1
      %p145 = por %p143, %p144
      %p146 = scmp.ne.s32.totalorder %s137, %s138
      %p147 = scmp.eq.s32.totalorder %s22, 0
      %p148 = por %p146, %p147
      %p149 = scmp.ne.s32.totalorder %s137, %s138
      %p150 = scmp.eq.s32.totalorder %s23, 1
      %p151 = por %p149, %p150
      %p153 = scmp.ne.s32.totalorder %s138, %s152
      %p154 = scmp.eq.s32.totalorder %s23, 0
      %p155 = por %p153, %p154
      %s157 = sadd.s32 %s156, 1
      %p160 = scmp.eq.s32.totalorder %s17, 1
      %p161 = scmp.ne.s32.totalorder %s156, %s158
      %p162 = scmp.eq.s32.totalorder %s17, 0
      %p163 = por %p161, %p162
      %p164 = scmp.ne.s32.totalorder %s156, %s158
      %p165 = scmp.eq.s32.totalorder %s22, 1
      %p166 = por %p164, %p165
      %p167 = scmp.ne.s32.totalorder %s158, %s159
      %p168 = scmp.eq.s32.totalorder %s22, 0
      %p169 = por %p167, %p168
      %p170 = scmp.ne.s32.totalorder %s158, %s159
      %p171 = scmp.eq.s32.totalorder %s23, 1
      %p172 = por %p170, %p171
      %p174 = scmp.ne.s32.totalorder %s159, %s173
      %p175 = scmp.eq.s32.totalorder %s23, 0
      %p176 = por %p174, %p175
      %s178 = sadd.s32 %s177, 1
      %p181 = scmp.eq.s32.totalorder %s17, 1
      %p182 = scmp.ne.s32.totalorder %s177, %s179
      %p183 = scmp.eq.s32.totalorder %s17, 0
      %p184 = por %p182, %p183
      %p185 = scmp.ne.s32.totalorder %s177, %s179
      %p186 = scmp.eq.s32.totalorder %s22, 1
      %p187 = por %p185, %p186
      %p188 = scmp.ne.s32.totalorder %s179, %s180
      %p189 = scmp.eq.s32.totalorder %s22, 0
      %p190 = por %p188, %p189
      %p191 = scmp.ne.s32.totalorder %s179, %s180
      %p192 = scmp.eq.s32.totalorder %s23, 1
      %p193 = por %p191, %p192
      %p195 = scmp.ne.s32.totalorder %s180, %s194
      %p196 = scmp.eq.s32.totalorder %s23, 0
      %p197 = por %p195, %p196
      %s198 = ssub.s32 %s17, %s24
      %p199 = scmp.eq.s32.totalorder %s198, 0
      %s201 = sadd.s32 %s200, 1
      %s202 = scalar_select %p199, %s200, %s201
      %p205 = pneg %p199
      %p206 = scmp.eq.s32.totalorder %s17, 1
      %p207 = por %p205, %p206
      %p208 = scmp.ne.s32.totalorder %s200, %s203
      %p209 = scmp.eq.s32.totalorder %s17, 0
      %p210 = por %p208, %p209
      %p211 = scmp.ne.s32.totalorder %s200, %s203
      %p212 = scmp.eq.s32.totalorder %s22, 1
      %p213 = por %p211, %p212
      %p214 = scmp.ne.s32.totalorder %s203, %s204
      %p215 = scmp.eq.s32.totalorder %s22, 0
      %p216 = por %p214, %p215
      %p217 = scmp.ne.s32.totalorder %s203, %s204
      %p218 = scmp.eq.s32.totalorder %s23, 1
      %p219 = por %p217, %p218
      %p221 = scmp.ne.s32.totalorder %s204, %s220
      %p222 = scmp.eq.s32.totalorder %s23, 0
      %p223 = por %p221, %p222
      %p224 = scmp.le.s32.totalorder 1, %s17
      %p225 = scmp.lt.s32.totalorder %s17, 3
      %p226 = pnand %p224, %p225
      %p227 = pneg %p226
      // Predicated region
      $region9: #{tpu_custom_call.1} parent=5 // pred_check
        _
      $region10: #{tpu_custom_call.1} parent=5 // pred_check_branch
        %229 = sbr.rel (%p226) target = $region12
      $region11: #{tpu_custom_call.1} parent=5 // pred_region
        %s230 = ssub.s32 %s17, 1
        // Predicated region
        $region13: #{tpu_custom_call.1} parent=11 // pred_check
          %p231 = pneg %p64
        $region14: #{tpu_custom_call.1} parent=11 // pred_check_branch
          %233 = sbr.rel (%p231) target = $region16
        $region15: #{tpu_custom_call.1} parent=11 // pred_region
          _
        $region16: #{tpu_custom_call.1} parent=11 // pred_fallthru
          _
        // Predicated region
        $region17: #{tpu_custom_call.1} parent=11 // pred_check
          %p234 = pneg %p85
        $region18: #{tpu_custom_call.1} parent=11 // pred_check_branch
          %236 = sbr.rel (%p234) target = $region20
        $region19: #{tpu_custom_call.1} parent=11 // pred_region
          _
        $region20: #{tpu_custom_call.1} parent=11 // pred_fallthru
          _
        // Predicated region
        $region21: #{tpu_custom_call.1} parent=11 // pred_check
          %p237 = pneg %p106
        $region22: #{tpu_custom_call.1} parent=11 // pred_check_branch
          %239 = sbr.rel (%p237) target = $region24
        $region23: #{tpu_custom_call.1} parent=11 // pred_region
          _
        $region24: #{tpu_custom_call.1} parent=11 // pred_fallthru
          _
        // Predicated region
        $region25: #{tpu_custom_call.1} parent=11 // pred_check
          %p240 = pneg %p127
        $region26: #{tpu_custom_call.1} parent=11 // pred_check_branch
          %242 = sbr.rel (%p240) target = $region28
        $region27: #{tpu_custom_call.1} parent=11 // pred_region
          _
        $region28: #{tpu_custom_call.1} parent=11 // pred_fallthru
          _
        // Predicated region
        $region29: #{tpu_custom_call.1} parent=11 // pred_check
          %p243 = pneg %p148
        $region30: #{tpu_custom_call.1} parent=11 // pred_check_branch
          %245 = sbr.rel (%p243) target = $region32
        $region31: #{tpu_custom_call.1} parent=11 // pred_region
          _
        $region32: #{tpu_custom_call.1} parent=11 // pred_fallthru
          _
        // Predicated region
        $region33: #{tpu_custom_call.1} parent=11 // pred_check
          %p246 = pneg %p169
        $region34: #{tpu_custom_call.1} parent=11 // pred_check_branch
          %248 = sbr.rel (%p246) target = $region36
        $region35: #{tpu_custom_call.1} parent=11 // pred_region
          _
        $region36: #{tpu_custom_call.1} parent=11 // pred_fallthru
          _
        // Predicated region
        $region37: #{tpu_custom_call.1} parent=11 // pred_check
          %p249 = pneg %p190
        $region38: #{tpu_custom_call.1} parent=11 // pred_check_branch
          %251 = sbr.rel (%p249) target = $region40
        $region39: #{tpu_custom_call.1} parent=11 // pred_region
          _
        $region40: #{tpu_custom_call.1} parent=11 // pred_fallthru
          _
      $region12: #{tpu_custom_call.1} parent=5 // pred_fallthru
        _
      %p252 = scmp.lt.s32.totalorder %s17, 2
      // Predicated region
      $region41: #{tpu_custom_call.1} parent=5 // pred_check
        %p253 = pneg %p252
      $region42: #{tpu_custom_call.1} parent=5 // pred_check_branch
        %255 = sbr.rel (%p253) target = $region44
      $region43: #{tpu_custom_call.1} parent=5 // pred_region
        // Predicated region
        $region45: #{tpu_custom_call.1} parent=43 // pred_check
          %p256 = pneg %p37
        $region46: #{tpu_custom_call.1} parent=43 // pred_check_branch
          %258 = sbr.rel (%p256) target = $region48
        $region47: #{tpu_custom_call.1} parent=43 // pred_region
          %p259 = scmp.lt.s32.totalorder %s17, 1
          %s260 = scalar_select %p259, %s17, 1
          %s261 = smul.addr %s260, 32
          %s262 = smul.addr %s261, 4
          %s263 = scalar_lea.vmem %s0, %s262
        $region48: #{tpu_custom_call.1} parent=43 // pred_fallthru
          _
      $region44: #{tpu_custom_call.1} parent=5 // pred_fallthru
        _
      %p264 = scmp.le.s32.totalorder 1, %s17
      %p265 = scmp.lt.s32.totalorder %s17, 3
      %p266 = pnand %p264, %p265
      %p267 = pneg %p266
      // Predicated region
      $region49: #{tpu_custom_call.1} parent=5 // pred_check
        _
      $region50: #{tpu_custom_call.1} parent=5 // pred_check_branch
        %269 = sbr.rel (%p266) target = $region52
      $region51: #{tpu_custom_call.1} parent=5 // pred_region
        %s270 = ssub.s32 %s17, 1
        %p271 = scmp.lt.s32.totalorder %s22, 1
        %s272 = scalar_select %p271, %s22, 1
        %s273 = smul.addr %s272, 32
        %s274 = smul.addr %s273, 4
        %s275 = scalar_lea.vmem %s0, %s274
        %p276 = pneg %p43
        %p277 = pneg %p40
        %p278 = pneg %p64
        %p279 = pneg %p61
        %p280 = pneg %p85
        %p281 = pneg %p82
        %p282 = pneg %p106
        %p283 = pneg %p103
        %p284 = pneg %p127
        %p285 = pneg %p124
        %p286 = pneg %p148
        %p287 = pneg %p145
        %p288 = pneg %p169
        %p289 = pneg %p166
        %p290 = pneg %p190
        %p291 = pneg %p187
        %p292 = pneg %p216
        %p293 = pneg %p213
        %s294 = sand.u32 %s203, 1
        %s295 = scalar_lea.sflag [#allocation4], %s294
        %s296 = sand.u32 %s203, 1
        %s297 = smul.addr %s296, 256
        %s298 = scalar_lea.vmem [#allocation3], %s297
        %p299 = scmp.lt.s32.totalorder %s22, 1
        %s300 = scalar_select %p299, %s22, 1
        %s301 = smul.addr %s300, 32
        %s302 = smul.addr %s301, 4
        %s303 = scalar_lea.vmem %s0, %s302
        %v305 = vld [vmem:[%s303] sm:$0xf]
        %v306 = vld [vmem:[%s303 + $0x4] sm:$0xf]
        %v307 = vld [vmem:[%s303 + $0x8] sm:$0xf]
        %v308 = vld [vmem:[%s303 + $0xc] sm:$0xf]
        %v309 = vld [vmem:[%s303 + $0x10] sm:$0xf]
        %v310 = vld [vmem:[%s303 + $0x14] sm:$0xf]
        %v311 = vld [vmem:[%s303 + $0x18] sm:$0xf]
        %v312 = vld [vmem:[%s303 + $0x1c] sm:$0xf]
        %v313 = vld [vmem:[%s303 + $0x20] sm:$0xf]
        %v314 = vld [vmem:[%s303 + $0x24] sm:$0xf]
        %v315 = vld [vmem:[%s303 + $0x28] sm:$0xf]
        %v316 = vld [vmem:[%s303 + $0x2c] sm:$0xf]
        %v317 = vld [vmem:[%s303 + $0x30] sm:$0xf]
        %v318 = vld [vmem:[%s303 + $0x34] sm:$0xf]
        %v319 = vld [vmem:[%s303 + $0x38] sm:$0xf]
        %v320 = vld [vmem:[%s303 + $0x3c] sm:$0xf]
        %v321 = vld [vmem:[%s303 + $0x40] sm:$0xf]
        %v322 = vld [vmem:[%s303 + $0x44] sm:$0xf]
        %v323 = vld [vmem:[%s303 + $0x48] sm:$0xf]
        %v324 = vld [vmem:[%s303 + $0x4c] sm:$0xf]
        %v325 = vld [vmem:[%s303 + $0x50] sm:$0xf]
        %v326 = vld [vmem:[%s303 + $0x54] sm:$0xf]
        %v327 = vld [vmem:[%s303 + $0x58] sm:$0xf]
        %v328 = vld [vmem:[%s303 + $0x5c] sm:$0xf]
        %v329 = vld [vmem:[%s303 + $0x60] sm:$0xf]
        %v330 = vld [vmem:[%s303 + $0x64] sm:$0xf]
        %v331 = vld [vmem:[%s303 + $0x68] sm:$0xf]
        %v332 = vld [vmem:[%s303 + $0x6c] sm:$0xf]
        %v333 = vld [vmem:[%s303 + $0x70] sm:$0xf]
        %v334 = vld [vmem:[%s303 + $0x74] sm:$0xf]
        %v335 = vld [vmem:[%s303 + $0x78] sm:$0xf]
        %v336 = vld [vmem:[%s303 + $0x7c] sm:$0xf]
        %v337 = vunpack.c.l.bf16 %v305
        %v338 = vunpack.c.l.bf16 %v306
        %v339 = vunpack.c.l.bf16 %v307
        %v340 = vunpack.c.l.bf16 %v308
        %v341 = vunpack.c.l.bf16 %v309
        %v342 = vunpack.c.l.bf16 %v310
        %v343 = vunpack.c.l.bf16 %v311
        %v344 = vunpack.c.l.bf16 %v312
        %v345 = vunpack.c.l.bf16 %v313
        %v346 = vunpack.c.l.bf16 %v314
        %v347 = vunpack.c.l.bf16 %v315
        %v348 = vunpack.c.l.bf16 %v316
        %v349 = vunpack.c.l.bf16 %v317
        %v350 = vunpack.c.l.bf16 %v318
        %v351 = vunpack.c.l.bf16 %v319
        %v352 = vunpack.c.l.bf16 %v320
        %v353 = vunpack.c.l.bf16 %v321
        %v354 = vunpack.c.l.bf16 %v322
        %v355 = vunpack.c.l.bf16 %v323
        %v356 = vunpack.c.l.bf16 %v324
        %v357 = vunpack.c.l.bf16 %v325
        %v358 = vunpack.c.l.bf16 %v326
        %v359 = vunpack.c.l.bf16 %v327
        %v360 = vunpack.c.l.bf16 %v328
        %v361 = vunpack.c.l.bf16 %v329
        %v362 = vunpack.c.l.bf16 %v330
        %v363 = vunpack.c.l.bf16 %v331
        %v364 = vunpack.c.l.bf16 %v332
        %v365 = vunpack.c.l.bf16 %v333
        %v366 = vunpack.c.l.bf16 %v334
        %v367 = vunpack.c.l.bf16 %v335
        %v368 = vunpack.c.l.bf16 %v336
        %v369 = vrot.slane %v337, 7
        %v370 = vrot.slane %v338, 7
        %v371 = vrot.slane %v339, 7
        %v372 = vrot.slane %v340, 7
        %v373 = vrot.slane %v341, 7
        %v374 = vrot.slane %v342, 7
        %v375 = vrot.slane %v343, 7
        %v376 = vrot.slane %v344, 7
        %v377 = vrot.slane %v345, 7
        %v378 = vrot.slane %v346, 7
        %v379 = vrot.slane %v347, 7
        %v380 = vrot.slane %v348, 7
        %v381 = vrot.slane %v349, 7
        %v382 = vrot.slane %v350, 7
        %v383 = vrot.slane %v351, 7
        %v384 = vrot.slane %v352, 7
        %v385 = vrot.slane %v353, 7
        %v386 = vrot.slane %v354, 7
        %v387 = vrot.slane %v355, 7
        %v388 = vrot.slane %v356, 7
        %v389 = vrot.slane %v357, 7
        %v390 = vrot.slane %v358, 7
        %v391 = vrot.slane %v359, 7
        %v392 = vrot.slane %v360, 7
        %v393 = vrot.slane %v361, 7
        %v394 = vrot.slane %v362, 7
        %v395 = vrot.slane %v363, 7
        %v396 = vrot.slane %v364, 7
        %v397 = vrot.slane %v365, 7
        %v398 = vrot.slane %v366, 7
        %v399 = vrot.slane %v367, 7
        %v400 = vrot.slane %v368, 7
        %v401 = vlaneseq
        %v402 = vshrl.u32 %v401, 7
        %vm403 = vcmp.lt.s32.totalorder %v402, 1
        %v404 = vsel %vm403, %v399, %v400
        %v405 = vsel %vm403, %v398, %v399
        %v406 = vsel %vm403, %v397, %v398
        %v407 = vsel %vm403, %v396, %v397
        %v408 = vsel %vm403, %v395, %v396
        %v409 = vsel %vm403, %v394, %v395
        %v410 = vsel %vm403, %v393, %v394
        %v411 = vsel %vm403, %v392, %v393
        %v412 = vsel %vm403, %v391, %v392
        %v413 = vsel %vm403, %v390, %v391
        %v414 = vsel %vm403, %v389, %v390
        %v415 = vsel %vm403, %v388, %v389
        %v416 = vsel %vm403, %v387, %v388
        %v417 = vsel %vm403, %v386, %v387
        %v418 = vsel %vm403, %v385, %v386
        %v419 = vsel %vm403, %v384, %v385
        %v420 = vsel %vm403, %v383, %v384
        %v421 = vsel %vm403, %v382, %v383
        %v422 = vsel %vm403, %v381, %v382
        %v423 = vsel %vm403, %v380, %v381
        %v424 = vsel %vm403, %v379, %v380
        %v425 = vsel %vm403, %v378, %v379
        %v426 = vsel %vm403, %v377, %v378
        %v427 = vsel %vm403, %v376, %v377
        %v428 = vsel %vm403, %v375, %v376
        %v429 = vsel %vm403, %v374, %v375
        %v430 = vsel %vm403, %v373, %v374
        %v431 = vsel %vm403, %v372, %v373
        %v432 = vsel %vm403, %v371, %v372
        %v433 = vsel %vm403, %v370, %v371
        %v434 = vsel %vm403, %v369, %v370
        %v435 = vsel %vm403, %v400, %v369
        %v436 = vpack.c.bf16 %v404, %v405
        %v437 = vpack.c.bf16 %v434, %v435
        %v438 = vpack.c.bf16 %v432, %v433
        %v439 = vpack.c.bf16 %v430, %v431
        %v440 = vpack.c.bf16 %v428, %v429
        %v441 = vpack.c.bf16 %v426, %v427
        %v442 = vpack.c.bf16 %v424, %v425
        %v443 = vpack.c.bf16 %v422, %v423
        %v444 = vpack.c.bf16 %v420, %v421
        %v445 = vpack.c.bf16 %v418, %v419
        %v446 = vpack.c.bf16 %v416, %v417
        %v447 = vpack.c.bf16 %v414, %v415
        %v448 = vpack.c.bf16 %v412, %v413
        %v449 = vpack.c.bf16 %v410, %v411
        %v450 = vpack.c.bf16 %v408, %v409
        %v451 = vpack.c.bf16 %v406, %v407
        %v452 = vld [vmem:[%s1] sm:$0xf]
        %v453 = vld [vmem:[%s1 + $0x4] sm:$0xf]
        %v454 = vld [vmem:[%s1 + $0x8] sm:$0xf]
        %v455 = vld [vmem:[%s1 + $0xc] sm:$0xf]
        %v456 = vld [vmem:[%s1 + $0x10] sm:$0xf]
        %v457 = vld [vmem:[%s1 + $0x14] sm:$0xf]
        %v458 = vld [vmem:[%s1 + $0x18] sm:$0xf]
        %v459 = vld [vmem:[%s1 + $0x1c] sm:$0xf]
        %v460 = vld [vmem:[%s1 + $0x20] sm:$0xf]
        %v461 = vld [vmem:[%s1 + $0x24] sm:$0xf]
        %v462 = vld [vmem:[%s1 + $0x28] sm:$0xf]
        %v463 = vld [vmem:[%s1 + $0x2c] sm:$0xf]
        %v464 = vld [vmem:[%s1 + $0x30] sm:$0xf]
        %v465 = vld [vmem:[%s1 + $0x34] sm:$0xf]
        %v466 = vld [vmem:[%s1 + $0x38] sm:$0xf]
        %v467 = vld [vmem:[%s1 + $0x3c] sm:$0xf]
        %v484 = vunpack.c.l.b16 %v452
        %v485 = vunpack.c.l.b16 %v453
        %v486 = vunpack.c.l.b16 %v454
        %v487 = vunpack.c.l.b16 %v455
        %v488 = vunpack.c.l.b16 %v456
        %v489 = vunpack.c.l.b16 %v457
        %v490 = vunpack.c.l.b16 %v458
        %v491 = vunpack.c.l.b16 %v459
        %v492 = vunpack.c.l.b16 %v460
        %v493 = vunpack.c.l.b16 %v461
        %v494 = vunpack.c.l.b16 %v462
        %v495 = vunpack.c.l.b16 %v463
        %v496 = vunpack.c.l.b16 %v464
        %v497 = vunpack.c.l.b16 %v465
        %v498 = vunpack.c.l.b16 %v466
        %v499 = vunpack.c.l.b16 %v467
        %v500 = vpack.c.b16 %v485, %v484
        %v501 = vpack.c.b16 %v487, %v486
        %v502 = vpack.c.b16 %v489, %v488
        %v503 = vpack.c.b16 %v491, %v490
        %v504 = vpack.c.b16 %v493, %v492
        %v505 = vpack.c.b16 %v495, %v494
        %v506 = vpack.c.b16 %v497, %v496
        %v507 = vpack.c.b16 %v499, %v498
        %516 = vmatprep.subr.bf16.mxu0 0
        %517 = vmatpush1.bf16.msra.mxu0 %v500
        %518 = vmatprep.subr.bf16.mxu0 0
        %519 = vmatpush1.bf16.msra.mxu0 %v501
        %520 = vmatprep.subr.bf16.mxu0 0
        %521 = vmatpush1.bf16.msra.mxu0 %v502
        %522 = vmatprep.subr.bf16.mxu0 0
        %523 = vmatpush1.bf16.msra.mxu0 %v503
        %524 = vmatprep.subr.bf16.mxu0 0
        %525 = vmatpush1.bf16.msra.mxu0 %v504
        %526 = vmatprep.subr.bf16.mxu0 0
        %527 = vmatpush1.bf16.msra.mxu0 %v505
        %528 = vmatprep.subr.bf16.mxu0 0
        %529 = vmatpush1.bf16.msra.mxu0 %v506
        %530 = vmatprep.subr.bf16.mxu0 0
        %531 = vmatpush1.bf16.msra.mxu0 %v507
        %532 = vmatprep.subr.bf16.mxu0 0
        %533 = vmatpush1.bf16.msra.mxu0 0
        %534 = vmatprep.subr.bf16.mxu0 0
        %535 = vmatpush1.bf16.msra.mxu0 0
        %536 = vmatprep.subr.bf16.mxu0 0
        %537 = vmatpush1.bf16.msra.mxu0 0
        %538 = vmatprep.subr.bf16.mxu0 0
        %539 = vmatpush1.bf16.msra.mxu0 0
        %540 = vmatprep.subr.bf16.mxu0 0
        %541 = vmatpush1.bf16.msra.mxu0 0
        %542 = vmatprep.subr.bf16.mxu0 0
        %543 = vmatpush1.bf16.msra.mxu0 0
        %544 = vmatprep.subr.bf16.mxu0 0
        %545 = vmatpush1.bf16.msra.mxu0 0
        %546 = vmatprep.subr.bf16.mxu0 0
        %547 = vmatpush1.bf16.msra.mxu0 0
        %548 = vmatprep.mubr.bf16.mxu0 0
        %549 = vmatmul.mubr.bf16.gmra.mrb[0].mxu0 %v436
        %v550 = vpop.f32.mrb[0].mxu0
        %v551 = vadd.f32 0.0, %v550
        %v552 = vpop.f32.mrb[0].mxu0
        %v553 = vpop.f32.mrb[0].mxu0
        %v554 = vadd.f32 0.0, %v553
        %v555 = vpop.f32.mrb[0].mxu0
        %556 = vmatprep.mubr.bf16.mxu0 0
        %557 = vmatmul.mubr.bf16.gmra.mrb[0].mxu0 %v437
        %v558 = vpop.f32.mrb[0].mxu0
        %v559 = vadd.f32 0.0, %v558
        %v560 = vpop.f32.mrb[0].mxu0
        %v561 = vpop.f32.mrb[0].mxu0
        %v562 = vadd.f32 0.0, %v561
        %v563 = vpop.f32.mrb[0].mxu0
        %564 = vmatprep.mubr.bf16.mxu0 0
        %565 = vmatmul.mubr.bf16.gmra.mrb[0].mxu0 %v438
        %v566 = vpop.f32.mrb[0].mxu0
        %v567 = vadd.f32 0.0, %v566
        %v568 = vpop.f32.mrb[0].mxu0
        %v569 = vpop.f32.mrb[0].mxu0
        %v570 = vadd.f32 0.0, %v569
        %v571 = vpop.f32.mrb[0].mxu0
        %572 = vmatprep.mubr.bf16.mxu0 0
        %573 = vmatmul.mubr.bf16.gmra.mrb[0].mxu0 %v439
        %v574 = vpop.f32.mrb[0].mxu0
        %v575 = vadd.f32 0.0, %v574
        %v576 = vpop.f32.mrb[0].mxu0
        %v577 = vpop.f32.mrb[0].mxu0
        %v578 = vadd.f32 0.0, %v577
        %v579 = vpop.f32.mrb[0].mxu0
        %580 = vmatprep.mubr.bf16.mxu0 0
        %581 = vmatmul.mubr.bf16.gmra.mrb[0].mxu0 %v440
        %v582 = vpop.f32.mrb[0].mxu0
        %v583 = vadd.f32 0.0, %v582
        %v584 = vpop.f32.mrb[0].mxu0
        %v585 = vpop.f32.mrb[0].mxu0
        %v586 = vadd.f32 0.0, %v585
        %v587 = vpop.f32.mrb[0].mxu0
        %588 = vmatprep.mubr.bf16.mxu0 0
        %589 = vmatmul.mubr.bf16.gmra.mrb[0].mxu0 %v441
        %v590 = vpop.f32.mrb[0].mxu0
        %v591 = vadd.f32 0.0, %v590
        %v592 = vpop.f32.mrb[0].mxu0
        %v593 = vpop.f32.mrb[0].mxu0
        %v594 = vadd.f32 0.0, %v593
        %v595 = vpop.f32.mrb[0].mxu0
        %596 = vmatprep.mubr.bf16.mxu0 0
        %597 = vmatmul.mubr.bf16.gmra.mrb[0].mxu0 %v442
        %v598 = vpop.f32.mrb[0].mxu0
        %v599 = vadd.f32 0.0, %v598
        %v600 = vpop.f32.mrb[0].mxu0
        %v601 = vpop.f32.mrb[0].mxu0
        %v602 = vadd.f32 0.0, %v601
        %v603 = vpop.f32.mrb[0].mxu0
        %604 = vmatprep.mubr.bf16.mxu0 0
        %605 = vmatmul.mubr.bf16.gmra.mrb[0].mxu0 %v443
        %v606 = vpop.f32.mrb[0].mxu0
        %v607 = vadd.f32 0.0, %v606
        %v608 = vpop.f32.mrb[0].mxu0
        %v609 = vpop.f32.mrb[0].mxu0
        %v610 = vadd.f32 0.0, %v609
        %v611 = vpop.f32.mrb[0].mxu0
        %612 = vmatprep.mubr.bf16.mxu0 0
        %613 = vmatmul.mubr.bf16.gmra.mrb[0].mxu0 %v444
        %v614 = vpop.f32.mrb[0].mxu0
        %v615 = vadd.f32 0.0, %v614
        %v616 = vpop.f32.mrb[0].mxu0
        %v617 = vpop.f32.mrb[0].mxu0
        %v618 = vadd.f32 0.0, %v617
        %v619 = vpop.f32.mrb[0].mxu0
        %620 = vmatprep.mubr.bf16.mxu0 0
        %621 = vmatmul.mubr.bf16.gmra.mrb[0].mxu0 %v445
        %v622 = vpop.f32.mrb[0].mxu0
        %v623 = vadd.f32 0.0, %v622
        %v624 = vpop.f32.mrb[0].mxu0
        %v625 = vpop.f32.mrb[0].mxu0
        %v626 = vadd.f32 0.0, %v625
        %v627 = vpop.f32.mrb[0].mxu0
        %628 = vmatprep.mubr.bf16.mxu0 0
        %629 = vmatmul.mubr.bf16.gmra.mrb[0].mxu0 %v446
        %v630 = vpop.f32.mrb[0].mxu0
        %v631 = vadd.f32 0.0, %v630
        %v632 = vpop.f32.mrb[0].mxu0
        %v633 = vpop.f32.mrb[0].mxu0
        %v634 = vadd.f32 0.0, %v633
        %v635 = vpop.f32.mrb[0].mxu0
        %636 = vmatprep.mubr.bf16.mxu0 0
        %637 = vmatmul.mubr.bf16.gmra.mrb[0].mxu0 %v447
        %v638 = vpop.f32.mrb[0].mxu0
        %v639 = vadd.f32 0.0, %v638
        %v640 = vpop.f32.mrb[0].mxu0
        %v641 = vpop.f32.mrb[0].mxu0
        %v642 = vadd.f32 0.0, %v641
        %v643 = vpop.f32.mrb[0].mxu0
        %644 = vmatprep.mubr.bf16.mxu0 0
        %645 = vmatmul.mubr.bf16.gmra.mrb[0].mxu0 %v448
        %v646 = vpop.f32.mrb[0].mxu0
        %v647 = vadd.f32 0.0, %v646
        %v648 = vpop.f32.mrb[0].mxu0
        %v649 = vpop.f32.mrb[0].mxu0
        %v650 = vadd.f32 0.0, %v649
        %v651 = vpop.f32.mrb[0].mxu0
        %652 = vmatprep.mubr.bf16.mxu0 0
        %653 = vmatmul.mubr.bf16.gmra.mrb[0].mxu0 %v449
        %v654 = vpop.f32.mrb[0].mxu0
        %v655 = vadd.f32 0.0, %v654
        %v656 = vpop.f32.mrb[0].mxu0
        %v657 = vpop.f32.mrb[0].mxu0
        %v658 = vadd.f32 0.0, %v657
        %v659 = vpop.f32.mrb[0].mxu0
        %660 = vmatprep.mubr.bf16.mxu0 0
        %661 = vmatmul.mubr.bf16.gmra.mrb[0].mxu0 %v450
        %v662 = vpop.f32.mrb[0].mxu0
        %v663 = vadd.f32 0.0, %v662
        %v664 = vpop.f32.mrb[0].mxu0
        %v665 = vpop.f32.mrb[0].mxu0
        %v666 = vadd.f32 0.0, %v665
        %v667 = vpop.f32.mrb[0].mxu0
        %668 = vmatprep.mubr.bf16.mxu0 0
        %669 = vmatmul.mubr.bf16.gmra.mrb[0].mxu0 %v451
        %v670 = vpop.f32.mrb[0].mxu0
        %v671 = vadd.f32 0.0, %v670
        %v672 = vpop.f32.mrb[0].mxu0
        %v673 = vpop.f32.mrb[0].mxu0
        %v674 = vadd.f32 0.0, %v673
        %v675 = vpop.f32.mrb[0].mxu0
        %676 = vdwg.mxu0
        %v677 = vld [vmem:[%s7] sm:$0xff]
        %v678 = vld [vmem:[%s7 + $0x8] sm:$0xff]
        %v679 = vld [vmem:[%s7 + $0x10] sm:$0xff]
        %v680 = vld [vmem:[%s7 + $0x18] sm:$0xff]
        %v681 = vld [vmem:[%s7 + $0x20] sm:$0xff]
        %v682 = vld [vmem:[%s7 + $0x28] sm:$0xff]
        %v683 = vld [vmem:[%s7 + $0x30] sm:$0xff]
        %v684 = vld [vmem:[%s7 + $0x38] sm:$0xff]
        %v685 = vld [vmem:[%s7 + $0x40] sm:$0xff]
        %v686 = vld [vmem:[%s7 + $0x48] sm:$0xff]
        %v687 = vld [vmem:[%s7 + $0x50] sm:$0xff]
        %v688 = vld [vmem:[%s7 + $0x58] sm:$0xff]
        %v689 = vld [vmem:[%s7 + $0x60] sm:$0xff]
        %v690 = vld [vmem:[%s7 + $0x68] sm:$0xff]
        %v691 = vld [vmem:[%s7 + $0x70] sm:$0xff]
        %v692 = vld [vmem:[%s7 + $0x78] sm:$0xff]
        %v693 = vld [vmem:[%s7 + $0x80] sm:$0xff]
        %v694 = vld [vmem:[%s7 + $0x88] sm:$0xff]
        %v695 = vld [vmem:[%s7 + $0x90] sm:$0xff]
        %v696 = vld [vmem:[%s7 + $0x98] sm:$0xff]
        %v697 = vld [vmem:[%s7 + $0xa0] sm:$0xff]
        %v698 = vld [vmem:[%s7 + $0xa8] sm:$0xff]
        %v699 = vld [vmem:[%s7 + $0xb0] sm:$0xff]
        %v700 = vld [vmem:[%s7 + $0xb8] sm:$0xff]
        %v701 = vld [vmem:[%s7 + $0xc0] sm:$0xff]
        %v702 = vld [vmem:[%s7 + $0xc8] sm:$0xff]
        %v703 = vld [vmem:[%s7 + $0xd0] sm:$0xff]
        %v704 = vld [vmem:[%s7 + $0xd8] sm:$0xff]
        %v705 = vld [vmem:[%s7 + $0xe0] sm:$0xff]
        %v706 = vld [vmem:[%s7 + $0xe8] sm:$0xff]
        %v707 = vld [vmem:[%s7 + $0xf0] sm:$0xff]
        %v708 = vld [vmem:[%s7 + $0xf8] sm:$0xff]
        %710 = vset.pattern.permute.xlu0 0
        %711 = vperm.xlu0 %710, %v677
        %v712 = vpop.permute.xlu0 %711
        %715 = vset.pattern.permute.xlu0 0
        %716 = vperm.xlu0 %715, %v678
        %v717 = vpop.permute.xlu0 %716
        %720 = vset.pattern.permute.xlu0 0
        %721 = vperm.xlu0 %720, %v679
        %v722 = vpop.permute.xlu0 %721
        %725 = vset.pattern.permute.xlu0 0
        %726 = vperm.xlu0 %725, %v680
        %v727 = vpop.permute.xlu0 %726
        %730 = vset.pattern.permute.xlu0 0
        %731 = vperm.xlu0 %730, %v681
        %v732 = vpop.permute.xlu0 %731
        %735 = vset.pattern.permute.xlu0 0
        %736 = vperm.xlu0 %735, %v682
        %v737 = vpop.permute.xlu0 %736
        %740 = vset.pattern.permute.xlu0 0
        %741 = vperm.xlu0 %740, %v683
        %v742 = vpop.permute.xlu0 %741
        %745 = vset.pattern.permute.xlu0 0
        %746 = vperm.xlu0 %745, %v684
        %v747 = vpop.permute.xlu0 %746
        %750 = vset.pattern.permute.xlu0 0
        %751 = vperm.xlu0 %750, %v685
        %v752 = vpop.permute.xlu0 %751
        %755 = vset.pattern.permute.xlu0 0
        %756 = vperm.xlu0 %755, %v686
        %v757 = vpop.permute.xlu0 %756
        %760 = vset.pattern.permute.xlu0 0
        %761 = vperm.xlu0 %760, %v687
        %v762 = vpop.permute.xlu0 %761
        %765 = vset.pattern.permute.xlu0 0
        %766 = vperm.xlu0 %765, %v688
        %v767 = vpop.permute.xlu0 %766
        %770 = vset.pattern.permute.xlu0 0
        %771 = vperm.xlu0 %770, %v689
        %v772 = vpop.permute.xlu0 %771
        %775 = vset.pattern.permute.xlu0 0
        %776 = vperm.xlu0 %775, %v690
        %v777 = vpop.permute.xlu0 %776
        %780 = vset.pattern.permute.xlu0 0
        %781 = vperm.xlu0 %780, %v691
        %v782 = vpop.permute.xlu0 %781
        %785 = vset.pattern.permute.xlu0 0
        %786 = vperm.xlu0 %785, %v692
        %v787 = vpop.permute.xlu0 %786
        %790 = vset.pattern.permute.xlu0 0
        %791 = vperm.xlu0 %790, %v693
        %v792 = vpop.permute.xlu0 %791
        %795 = vset.pattern.permute.xlu0 0
        %796 = vperm.xlu0 %795, %v694
        %v797 = vpop.permute.xlu0 %796
        %800 = vset.pattern.permute.xlu0 0
        %801 = vperm.xlu0 %800, %v695
        %v802 = vpop.permute.xlu0 %801
        %805 = vset.pattern.permute.xlu0 0
        %806 = vperm.xlu0 %805, %v696
        %v807 = vpop.permute.xlu0 %806
        %810 = vset.pattern.permute.xlu0 0
        %811 = vperm.xlu0 %810, %v697
        %v812 = vpop.permute.xlu0 %811
        %815 = vset.pattern.permute.xlu0 0
        %816 = vperm.xlu0 %815, %v698
        %v817 = vpop.permute.xlu0 %816
        %820 = vset.pattern.permute.xlu0 0
        %821 = vperm.xlu0 %820, %v699
        %v822 = vpop.permute.xlu0 %821
        %825 = vset.pattern.permute.xlu0 0
        %826 = vperm.xlu0 %825, %v700
        %v827 = vpop.permute.xlu0 %826
        %830 = vset.pattern.permute.xlu0 0
        %831 = vperm.xlu0 %830, %v701
        %v832 = vpop.permute.xlu0 %831
        %835 = vset.pattern.permute.xlu0 0
        %836 = vperm.xlu0 %835, %v702
        %v837 = vpop.permute.xlu0 %836
        %840 = vset.pattern.permute.xlu0 0
        %841 = vperm.xlu0 %840, %v703
        %v842 = vpop.permute.xlu0 %841
        %845 = vset.pattern.permute.xlu0 0
        %846 = vperm.xlu0 %845, %v704
        %v847 = vpop.permute.xlu0 %846
        %850 = vset.pattern.permute.xlu0 0
        %851 = vperm.xlu0 %850, %v705
        %v852 = vpop.permute.xlu0 %851
        %855 = vset.pattern.permute.xlu0 0
        %856 = vperm.xlu0 %855, %v706
        %v857 = vpop.permute.xlu0 %856
        %860 = vset.pattern.permute.xlu0 0
        %861 = vperm.xlu0 %860, %v707
        %v862 = vpop.permute.xlu0 %861
        %865 = vset.pattern.permute.xlu0 0
        %866 = vperm.xlu0 %865, %v708
        %v867 = vpop.permute.xlu0 %866
        %v869 = vmul.f32 %v551, %v712
        %v870 = vmul.f32 %v554, %v717
        %v871 = vmul.f32 %v559, %v722
        %v872 = vmul.f32 %v562, %v727
        %v873 = vmul.f32 %v567, %v732
        %v874 = vmul.f32 %v570, %v737
        %v875 = vmul.f32 %v575, %v742
        %v876 = vmul.f32 %v578, %v747
        %v877 = vmul.f32 %v583, %v752
        %v878 = vmul.f32 %v586, %v757
        %v879 = vmul.f32 %v591, %v762
        %v880 = vmul.f32 %v594, %v767
        %v881 = vmul.f32 %v599, %v772
        %v882 = vmul.f32 %v602, %v777
        %v883 = vmul.f32 %v607, %v782
        %v884 = vmul.f32 %v610, %v787
        %v885 = vmul.f32 %v615, %v792
        %v886 = vmul.f32 %v618, %v797
        %v887 = vmul.f32 %v623, %v802
        %v888 = vmul.f32 %v626, %v807
        %v889 = vmul.f32 %v631, %v812
        %v890 = vmul.f32 %v634, %v817
        %v891 = vmul.f32 %v639, %v822
        %v892 = vmul.f32 %v642, %v827
        %v893 = vmul.f32 %v647, %v832
        %v894 = vmul.f32 %v650, %v837
        %v895 = vmul.f32 %v655, %v842
        %v896 = vmul.f32 %v658, %v847
        %v897 = vmul.f32 %v663, %v852
        %v898 = vmul.f32 %v666, %v857
        %v899 = vmul.f32 %v671, %v862
        %v900 = vmul.f32 %v674, %v867
        %901 = vst [vmem:[#allocation2] sm:$0xff] %v869
        %902 = vst [vmem:[#allocation2 + $0x8] sm:$0xff] %v870
        %903 = vst [vmem:[#allocation2 + $0x10] sm:$0xff] %v871
        %904 = vst [vmem:[#allocation2 + $0x18] sm:$0xff] %v872
        %905 = vst [vmem:[#allocation2 + $0x20] sm:$0xff] %v873
        %906 = vst [vmem:[#allocation2 + $0x28] sm:$0xff] %v874
        %907 = vst [vmem:[#allocation2 + $0x30] sm:$0xff] %v875
        %908 = vst [vmem:[#allocation2 + $0x38] sm:$0xff] %v876
        %909 = vst [vmem:[#allocation2 + $0x40] sm:$0xff] %v877
        %910 = vst [vmem:[#allocation2 + $0x48] sm:$0xff] %v878
        %911 = vst [vmem:[#allocation2 + $0x50] sm:$0xff] %v879
        %912 = vst [vmem:[#allocation2 + $0x58] sm:$0xff] %v880
        %913 = vst [vmem:[#allocation2 + $0x60] sm:$0xff] %v881
        %914 = vst [vmem:[#allocation2 + $0x68] sm:$0xff] %v882
        %915 = vst [vmem:[#allocation2 + $0x70] sm:$0xff] %v883
        %916 = vst [vmem:[#allocation2 + $0x78] sm:$0xff] %v884
        %917 = vst [vmem:[#allocation2 + $0x80] sm:$0xff] %v885
        %918 = vst [vmem:[#allocation2 + $0x88] sm:$0xff] %v886
        %919 = vst [vmem:[#allocation2 + $0x90] sm:$0xff] %v887
        %920 = vst [vmem:[#allocation2 + $0x98] sm:$0xff] %v888
        %921 = vst [vmem:[#allocation2 + $0xa0] sm:$0xff] %v889
        %922 = vst [vmem:[#allocation2 + $0xa8] sm:$0xff] %v890
        %923 = vst [vmem:[#allocation2 + $0xb0] sm:$0xff] %v891
        %924 = vst [vmem:[#allocation2 + $0xb8] sm:$0xff] %v892
        %925 = vst [vmem:[#allocation2 + $0xc0] sm:$0xff] %v893
        %926 = vst [vmem:[#allocation2 + $0xc8] sm:$0xff] %v894
        %927 = vst [vmem:[#allocation2 + $0xd0] sm:$0xff] %v895
        %928 = vst [vmem:[#allocation2 + $0xd8] sm:$0xff] %v896
        %929 = vst [vmem:[#allocation2 + $0xe0] sm:$0xff] %v897
        %930 = vst [vmem:[#allocation2 + $0xe8] sm:$0xff] %v898
        %931 = vst [vmem:[#allocation2 + $0xf0] sm:$0xff] %v899
        %932 = vst [vmem:[#allocation2 + $0xf8] sm:$0xff] %v900
        %v933 = vpack.c.bf16 %v368, %v367
        %v934 = vpack.c.bf16 %v338, %v337
        %v935 = vpack.c.bf16 %v340, %v339
        %v936 = vpack.c.bf16 %v342, %v341
        %v937 = vpack.c.bf16 %v344, %v343
        %v938 = vpack.c.bf16 %v346, %v345
        %v939 = vpack.c.bf16 %v348, %v347
        %v940 = vpack.c.bf16 %v350, %v349
        %v941 = vpack.c.bf16 %v352, %v351
        %v942 = vpack.c.bf16 %v354, %v353
        %v943 = vpack.c.bf16 %v356, %v355
        %v944 = vpack.c.bf16 %v358, %v357
        %v945 = vpack.c.bf16 %v360, %v359
        %v946 = vpack.c.bf16 %v362, %v361
        %v947 = vpack.c.bf16 %v364, %v363
        %v948 = vpack.c.bf16 %v366, %v365
        %s949 = scalar_lea.vmem %s1, 64
        %v950 = vld [vmem:[%s949] sm:$0xf]
        %v951 = vld [vmem:[%s949 + $0x4] sm:$0xf]
        %v952 = vld [vmem:[%s949 + $0x8] sm:$0xf]
        %v953 = vld [vmem:[%s949 + $0xc] sm:$0xf]
        %v954 = vld [vmem:[%s949 + $0x10] sm:$0xf]
        %v955 = vld [vmem:[%s949 + $0x14] sm:$0xf]
        %v956 = vld [vmem:[%s949 + $0x18] sm:$0xf]
        %v957 = vld [vmem:[%s949 + $0x1c] sm:$0xf]
        %v958 = vld [vmem:[%s949 + $0x20] sm:$0xf]
        %v959 = vld [vmem:[%s949 + $0x24] sm:$0xf]
        %v960 = vld [vmem:[%s949 + $0x28] sm:$0xf]
        %v961 = vld [vmem:[%s949 + $0x2c] sm:$0xf]
        %v962 = vld [vmem:[%s949 + $0x30] sm:$0xf]
        %v963 = vld [vmem:[%s949 + $0x34] sm:$0xf]
        %v964 = vld [vmem:[%s949 + $0x38] sm:$0xf]
        %v965 = vld [vmem:[%s949 + $0x3c] sm:$0xf]
        %v982 = vunpack.c.l.b16 %v950
        %v983 = vunpack.c.l.b16 %v951
        %v984 = vunpack.c.l.b16 %v952
        %v985 = vunpack.c.l.b16 %v953
        %v986 = vunpack.c.l.b16 %v954
        %v987 = vunpack.c.l.b16 %v955
        %v988 = vunpack.c.l.b16 %v956
        %v989 = vunpack.c.l.b16 %v957
        %v990 = vunpack.c.l.b16 %v958
        %v991 = vunpack.c.l.b16 %v959
        %v992 = vunpack.c.l.b16 %v960
        %v993 = vunpack.c.l.b16 %v961
        %v994 = vunpack.c.l.b16 %v962
        %v995 = vunpack.c.l.b16 %v963
        %v996 = vunpack.c.l.b16 %v964
        %v997 = vunpack.c.l.b16 %v965
        %v998 = vpack.c.b16 %v983, %v982
        %v999 = vpack.c.b16 %v985, %v984
        %v1000 = vpack.c.b16 %v987, %v986
        %v1001 = vpack.c.b16 %v989, %v988
        %v1002 = vpack.c.b16 %v991, %v990
        %v1003 = vpack.c.b16 %v993, %v992
        %v1004 = vpack.c.b16 %v995, %v994
        %v1005 = vpack.c.b16 %v997, %v996
        %1014 = vmatprep.subr.bf16.mxu0 0
        %1015 = vmatpush1.bf16.msra.mxu0 %v998
        %1016 = vmatprep.subr.bf16.mxu0 0
        %1017 = vmatpush1.bf16.msra.mxu0 %v999
        %1018 = vmatprep.subr.bf16.mxu0 0
        %1019 = vmatpush1.bf16.msra.mxu0 %v1000
        %1020 = vmatprep.subr.bf16.mxu0 0
        %1021 = vmatpush1.bf16.msra.mxu0 %v1001
        %1022 = vmatprep.subr.bf16.mxu0 0
        %1023 = vmatpush1.bf16.msra.mxu0 %v1002
        %1024 = vmatprep.subr.bf16.mxu0 0
        %1025 = vmatpush1.bf16.msra.mxu0 %v1003
        %1026 = vmatprep.subr.bf16.mxu0 0
        %1027 = vmatpush1.bf16.msra.mxu0 %v1004
        %1028 = vmatprep.subr.bf16.mxu0 0
        %1029 = vmatpush1.bf16.msra.mxu0 %v1005
        %1030 = vmatprep.subr.bf16.mxu0 0
        %1031 = vmatpush1.bf16.msra.mxu0 0
        %1032 = vmatprep.subr.bf16.mxu0 0
        %1033 = vmatpush1.bf16.msra.mxu0 0
        %1034 = vmatprep.subr.bf16.mxu0 0
        %1035 = vmatpush1.bf16.msra.mxu0 0
        %1036 = vmatprep.subr.bf16.mxu0 0
        %1037 = vmatpush1.bf16.msra.mxu0 0
        %1038 = vmatprep.subr.bf16.mxu0 0
        %1039 = vmatpush1.bf16.msra.mxu0 0
        %1040 = vmatprep.subr.bf16.mxu0 0
        %1041 = vmatpush1.bf16.msra.mxu0 0
        %1042 = vmatprep.subr.bf16.mxu0 0
        %1043 = vmatpush1.bf16.msra.mxu0 0
        %1044 = vmatprep.subr.bf16.mxu0 0
        %1045 = vmatpush1.bf16.msra.mxu0 0
        %1046 = vmatprep.mubr.bf16.mxu0 0
        %1047 = vmatmul.mubr.bf16.gmra.mrb[0].mxu0 %v933
        %v1048 = vpop.f32.mrb[0].mxu0
        %v1049 = vadd.f32 0.0, %v1048
        %v1050 = vpop.f32.mrb[0].mxu0
        %v1051 = vpop.f32.mrb[0].mxu0
        %v1052 = vadd.f32 0.0, %v1051
        %v1053 = vpop.f32.mrb[0].mxu0
        %1054 = vmatprep.mubr.bf16.mxu0 0
        %1055 = vmatmul.mubr.bf16.gmra.mrb[0].mxu0 %v934
        %v1056 = vpop.f32.mrb[0].mxu0
        %v1057 = vadd.f32 0.0, %v1056
        %v1058 = vpop.f32.mrb[0].mxu0
        %v1059 = vpop.f32.mrb[0].mxu0
        %v1060 = vadd.f32 0.0, %v1059
        %v1061 = vpop.f32.mrb[0].mxu0
        %1062 = vmatprep.mubr.bf16.mxu0 0
        %1063 = vmatmul.mubr.bf16.gmra.mrb[0].mxu0 %v935
        %v1064 = vpop.f32.mrb[0].mxu0
        %v1065 = vadd.f32 0.0, %v1064
        %v1066 = vpop.f32.mrb[0].mxu0
        %v1067 = vpop.f32.mrb[0].mxu0
        %v1068 = vadd.f32 0.0, %v1067
        %v1069 = vpop.f32.mrb[0].mxu0
        %1070 = vmatprep.mubr.bf16.mxu0 0
        %1071 = vmatmul.mubr.bf16.gmra.mrb[0].mxu0 %v936
        %v1072 = vpop.f32.mrb[0].mxu0
        %v1073 = vadd.f32 0.0, %v1072
        %v1074 = vpop.f32.mrb[0].mxu0
        %v1075 = vpop.f32.mrb[0].mxu0
        %v1076 = vadd.f32 0.0, %v1075
        %v1077 = vpop.f32.mrb[0].mxu0
        %1078 = vmatprep.mubr.bf16.mxu0 0
        %1079 = vmatmul.mubr.bf16.gmra.mrb[0].mxu0 %v937
        %v1080 = vpop.f32.mrb[0].mxu0
        %v1081 = vadd.f32 0.0, %v1080
        %v1082 = vpop.f32.mrb[0].mxu0
        %v1083 = vpop.f32.mrb[0].mxu0
        %v1084 = vadd.f32 0.0, %v1083
        %v1085 = vpop.f32.mrb[0].mxu0
        %1086 = vmatprep.mubr.bf16.mxu0 0
        %1087 = vmatmul.mubr.bf16.gmra.mrb[0].mxu0 %v938
        %v1088 = vpop.f32.mrb[0].mxu0
        %v1089 = vadd.f32 0.0, %v1088
        %v1090 = vpop.f32.mrb[0].mxu0
        %v1091 = vpop.f32.mrb[0].mxu0
        %v1092 = vadd.f32 0.0, %v1091
        %v1093 = vpop.f32.mrb[0].mxu0
        %1094 = vmatprep.mubr.bf16.mxu0 0
        %1095 = vmatmul.mubr.bf16.gmra.mrb[0].mxu0 %v939
        %v1096 = vpop.f32.mrb[0].mxu0
        %v1097 = vadd.f32 0.0, %v1096
        %v1098 = vpop.f32.mrb[0].mxu0
        %v1099 = vpop.f32.mrb[0].mxu0
        %v1100 = vadd.f32 0.0, %v1099
        %v1101 = vpop.f32.mrb[0].mxu0
        %1102 = vmatprep.mubr.bf16.mxu0 0
        %1103 = vmatmul.mubr.bf16.gmra.mrb[0].mxu0 %v940
        %v1104 = vpop.f32.mrb[0].mxu0
        %v1105 = vadd.f32 0.0, %v1104
        %v1106 = vpop.f32.mrb[0].mxu0
        %v1107 = vpop.f32.mrb[0].mxu0
        %v1108 = vadd.f32 0.0, %v1107
        %v1109 = vpop.f32.mrb[0].mxu0
        %1110 = vmatprep.mubr.bf16.mxu0 0
        %1111 = vmatmul.mubr.bf16.gmra.mrb[0].mxu0 %v941
        %v1112 = vpop.f32.mrb[0].mxu0
        %v1113 = vadd.f32 0.0, %v1112
        %v1114 = vpop.f32.mrb[0].mxu0
        %v1115 = vpop.f32.mrb[0].mxu0
        %v1116 = vadd.f32 0.0, %v1115
        %v1117 = vpop.f32.mrb[0].mxu0
        %1118 = vmatprep.mubr.bf16.mxu0 0
        %1119 = vmatmul.mubr.bf16.gmra.mrb[0].mxu0 %v942
        %v1120 = vpop.f32.mrb[0].mxu0
        %v1121 = vadd.f32 0.0, %v1120
        %v1122 = vpop.f32.mrb[0].mxu0
        %v1123 = vpop.f32.mrb[0].mxu0
        %v1124 = vadd.f32 0.0, %v1123
        %v1125 = vpop.f32.mrb[0].mxu0
        %1126 = vmatprep.mubr.bf16.mxu0 0
        %1127 = vmatmul.mubr.bf16.gmra.mrb[0].mxu0 %v943
        %v1128 = vpop.f32.mrb[0].mxu0
        %v1129 = vadd.f32 0.0, %v1128
        %v1130 = vpop.f32.mrb[0].mxu0
        %v1131 = vpop.f32.mrb[0].mxu0
        %v1132 = vadd.f32 0.0, %v1131
        %v1133 = vpop.f32.mrb[0].mxu0
        %1134 = vmatprep.mubr.bf16.mxu0 0
        %1135 = vmatmul.mubr.bf16.gmra.mrb[0].mxu0 %v944
        %v1136 = vpop.f32.mrb[0].mxu0
        %v1137 = vadd.f32 0.0, %v1136
        %v1138 = vpop.f32.mrb[0].mxu0
        %v1139 = vpop.f32.mrb[0].mxu0
        %v1140 = vadd.f32 0.0, %v1139
        %v1141 = vpop.f32.mrb[0].mxu0
        %1142 = vmatprep.mubr.bf16.mxu0 0
        %1143 = vmatmul.mubr.bf16.gmra.mrb[0].mxu0 %v945
        %v1144 = vpop.f32.mrb[0].mxu0
        %v1145 = vadd.f32 0.0, %v1144
        %v1146 = vpop.f32.mrb[0].mxu0
        %v1147 = vpop.f32.mrb[0].mxu0
        %v1148 = vadd.f32 0.0, %v1147
        %v1149 = vpop.f32.mrb[0].mxu0
        %1150 = vmatprep.mubr.bf16.mxu0 0
        %1151 = vmatmul.mubr.bf16.gmra.mrb[0].mxu0 %v946
        %v1152 = vpop.f32.mrb[0].mxu0
        %v1153 = vadd.f32 0.0, %v1152
        %v1154 = vpop.f32.mrb[0].mxu0
        %v1155 = vpop.f32.mrb[0].mxu0
        %v1156 = vadd.f32 0.0, %v1155
        %v1157 = vpop.f32.mrb[0].mxu0
        %1158 = vmatprep.mubr.bf16.mxu0 0
        %1159 = vmatmul.mubr.bf16.gmra.mrb[0].mxu0 %v947
        %v1160 = vpop.f32.mrb[0].mxu0
        %v1161 = vadd.f32 0.0, %v1160
        %v1162 = vpop.f32.mrb[0].mxu0
        %v1163 = vpop.f32.mrb[0].mxu0
        %v1164 = vadd.f32 0.0, %v1163
        %v1165 = vpop.f32.mrb[0].mxu0
        %1166 = vmatprep.mubr.bf16.mxu0 0
        %1167 = vmatmul.mubr.bf16.gmra.mrb[0].mxu0 %v948
        %v1168 = vpop.f32.mrb[0].mxu0
        %v1169 = vadd.f32 0.0, %v1168
        %v1170 = vpop.f32.mrb[0].mxu0
        %v1171 = vpop.f32.mrb[0].mxu0
        %v1172 = vadd.f32 0.0, %v1171
        %v1173 = vpop.f32.mrb[0].mxu0
        %1174 = vdwg.mxu0
        %s1175 = scalar_lea.vmem %s7, 256
        %v1176 = vld [vmem:[%s1175] sm:$0xff]
        %v1177 = vld [vmem:[%s1175 + $0x8] sm:$0xff]
        %v1178 = vld [vmem:[%s1175 + $0x10] sm:$0xff]
        %v1179 = vld [vmem:[%s1175 + $0x18] sm:$0xff]
        %v1180 = vld [vmem:[%s1175 + $0x20] sm:$0xff]
        %v1181 = vld [vmem:[%s1175 + $0x28] sm:$0xff]
        %v1182 = vld [vmem:[%s1175 + $0x30] sm:$0xff]
        %v1183 = vld [vmem:[%s1175 + $0x38] sm:$0xff]
        %v1184 = vld [vmem:[%s1175 + $0x40] sm:$0xff]
        %v1185 = vld [vmem:[%s1175 + $0x48] sm:$0xff]
        %v1186 = vld [vmem:[%s1175 + $0x50] sm:$0xff]
        %v1187 = vld [vmem:[%s1175 + $0x58] sm:$0xff]
        %v1188 = vld [vmem:[%s1175 + $0x60] sm:$0xff]
        %v1189 = vld [vmem:[%s1175 + $0x68] sm:$0xff]
        %v1190 = vld [vmem:[%s1175 + $0x70] sm:$0xff]
        %v1191 = vld [vmem:[%s1175 + $0x78] sm:$0xff]
        %v1192 = vld [vmem:[%s1175 + $0x80] sm:$0xff]
        %v1193 = vld [vmem:[%s1175 + $0x88] sm:$0xff]
        %v1194 = vld [vmem:[%s1175 + $0x90] sm:$0xff]
        %v1195 = vld [vmem:[%s1175 + $0x98] sm:$0xff]
        %v1196 = vld [vmem:[%s1175 + $0xa0] sm:$0xff]
        %v1197 = vld [vmem:[%s1175 + $0xa8] sm:$0xff]
        %v1198 = vld [vmem:[%s1175 + $0xb0] sm:$0xff]
        %v1199 = vld [vmem:[%s1175 + $0xb8] sm:$0xff]
        %v1200 = vld [vmem:[%s1175 + $0xc0] sm:$0xff]
        %v1201 = vld [vmem:[%s1175 + $0xc8] sm:$0xff]
        %v1202 = vld [vmem:[%s1175 + $0xd0] sm:$0xff]
        %v1203 = vld [vmem:[%s1175 + $0xd8] sm:$0xff]
        %v1204 = vld [vmem:[%s1175 + $0xe0] sm:$0xff]
        %v1205 = vld [vmem:[%s1175 + $0xe8] sm:$0xff]
        %v1206 = vld [vmem:[%s1175 + $0xf0] sm:$0xff]
        %v1207 = vld [vmem:[%s1175 + $0xf8] sm:$0xff]
        %1209 = vset.pattern.permute.xlu0 0
        %1210 = vperm.xlu0 %1209, %v1176
        %v1211 = vpop.permute.xlu0 %1210
        %1214 = vset.pattern.permute.xlu0 0
        %1215 = vperm.xlu0 %1214, %v1177
        %v1216 = vpop.permute.xlu0 %1215
        %1219 = vset.pattern.permute.xlu0 0
        %1220 = vperm.xlu0 %1219, %v1178
        %v1221 = vpop.permute.xlu0 %1220
        %1224 = vset.pattern.permute.xlu0 0
        %1225 = vperm.xlu0 %1224, %v1179
        %v1226 = vpop.permute.xlu0 %1225
        %1229 = vset.pattern.permute.xlu0 0
        %1230 = vperm.xlu0 %1229, %v1180
        %v1231 = vpop.permute.xlu0 %1230
        %1234 = vset.pattern.permute.xlu0 0
        %1235 = vperm.xlu0 %1234, %v1181
        %v1236 = vpop.permute.xlu0 %1235
        %1239 = vset.pattern.permute.xlu0 0
        %1240 = vperm.xlu0 %1239, %v1182
        %v1241 = vpop.permute.xlu0 %1240
        %1244 = vset.pattern.permute.xlu0 0
        %1245 = vperm.xlu0 %1244, %v1183
        %v1246 = vpop.permute.xlu0 %1245
        %1249 = vset.pattern.permute.xlu0 0
        %1250 = vperm.xlu0 %1249, %v1184
        %v1251 = vpop.permute.xlu0 %1250
        %1254 = vset.pattern.permute.xlu0 0
        %1255 = vperm.xlu0 %1254, %v1185
        %v1256 = vpop.permute.xlu0 %1255
        %1259 = vset.pattern.permute.xlu0 0
        %1260 = vperm.xlu0 %1259, %v1186
        %v1261 = vpop.permute.xlu0 %1260
        %1264 = vset.pattern.permute.xlu0 0
        %1265 = vperm.xlu0 %1264, %v1187
        %v1266 = vpop.permute.xlu0 %1265
        %1269 = vset.pattern.permute.xlu0 0
        %1270 = vperm.xlu0 %1269, %v1188
        %v1271 = vpop.permute.xlu0 %1270
        %1274 = vset.pattern.permute.xlu0 0
        %1275 = vperm.xlu0 %1274, %v1189
        %v1276 = vpop.permute.xlu0 %1275
        %1279 = vset.pattern.permute.xlu0 0
        %1280 = vperm.xlu0 %1279, %v1190
        %v1281 = vpop.permute.xlu0 %1280
        %1284 = vset.pattern.permute.xlu0 0
        %1285 = vperm.xlu0 %1284, %v1191
        %v1286 = vpop.permute.xlu0 %1285
        %1289 = vset.pattern.permute.xlu0 0
        %1290 = vperm.xlu0 %1289, %v1192
        %v1291 = vpop.permute.xlu0 %1290
        %1294 = vset.pattern.permute.xlu0 0
        %1295 = vperm.xlu0 %1294, %v1193
        %v1296 = vpop.permute.xlu0 %1295
        %1299 = vset.pattern.permute.xlu0 0
        %1300 = vperm.xlu0 %1299, %v1194
        %v1301 = vpop.permute.xlu0 %1300
        %1304 = vset.pattern.permute.xlu0 0
        %1305 = vperm.xlu0 %1304, %v1195
        %v1306 = vpop.permute.xlu0 %1305
        %1309 = vset.pattern.permute.xlu0 0
        %1310 = vperm.xlu0 %1309, %v1196
        %v1311 = vpop.permute.xlu0 %1310
        %1314 = vset.pattern.permute.xlu0 0
        %1315 = vperm.xlu0 %1314, %v1197
        %v1316 = vpop.permute.xlu0 %1315
        %1319 = vset.pattern.permute.xlu0 0
        %1320 = vperm.xlu0 %1319, %v1198
        %v1321 = vpop.permute.xlu0 %1320
        %1324 = vset.pattern.permute.xlu0 0
        %1325 = vperm.xlu0 %1324, %v1199
        %v1326 = vpop.permute.xlu0 %1325
        %1329 = vset.pattern.permute.xlu0 0
        %1330 = vperm.xlu0 %1329, %v1200
        %v1331 = vpop.permute.xlu0 %1330
        %1334 = vset.pattern.permute.xlu0 0
        %1335 = vperm.xlu0 %1334, %v1201
        %v1336 = vpop.permute.xlu0 %1335
        %1339 = vset.pattern.permute.xlu0 0
        %1340 = vperm.xlu0 %1339, %v1202
        %v1341 = vpop.permute.xlu0 %1340
        %1344 = vset.pattern.permute.xlu0 0
        %1345 = vperm.xlu0 %1344, %v1203
        %v1346 = vpop.permute.xlu0 %1345
        %1349 = vset.pattern.permute.xlu0 0
        %1350 = vperm.xlu0 %1349, %v1204
        %v1351 = vpop.permute.xlu0 %1350
        %1354 = vset.pattern.permute.xlu0 0
        %1355 = vperm.xlu0 %1354, %v1205
        %v1356 = vpop.permute.xlu0 %1355
        %1359 = vset.pattern.permute.xlu0 0
        %1360 = vperm.xlu0 %1359, %v1206
        %v1361 = vpop.permute.xlu0 %1360
        %1364 = vset.pattern.permute.xlu0 0
        %1365 = vperm.xlu0 %1364, %v1207
        %v1366 = vpop.permute.xlu0 %1365
        %v1368 = vmul.f32 %v1049, %v1211
        %v1369 = vmul.f32 %v1052, %v1216
        %v1370 = vmul.f32 %v1057, %v1221
        %v1371 = vmul.f32 %v1060, %v1226
        %v1372 = vmul.f32 %v1065, %v1231
        %v1373 = vmul.f32 %v1068, %v1236
        %v1374 = vmul.f32 %v1073, %v1241
        %v1375 = vmul.f32 %v1076, %v1246
        %v1376 = vmul.f32 %v1081, %v1251
        %v1377 = vmul.f32 %v1084, %v1256
        %v1378 = vmul.f32 %v1089, %v1261
        %v1379 = vmul.f32 %v1092, %v1266
        %v1380 = vmul.f32 %v1097, %v1271
        %v1381 = vmul.f32 %v1100, %v1276
        %v1382 = vmul.f32 %v1105, %v1281
        %v1383 = vmul.f32 %v1108, %v1286
        %v1384 = vmul.f32 %v1113, %v1291
        %v1385 = vmul.f32 %v1116, %v1296
        %v1386 = vmul.f32 %v1121, %v1301
        %v1387 = vmul.f32 %v1124, %v1306
        %v1388 = vmul.f32 %v1129, %v1311
        %v1389 = vmul.f32 %v1132, %v1316
        %v1390 = vmul.f32 %v1137, %v1321
        %v1391 = vmul.f32 %v1140, %v1326
        %v1392 = vmul.f32 %v1145, %v1331
        %v1393 = vmul.f32 %v1148, %v1336
        %v1394 = vmul.f32 %v1153, %v1341
        %v1395 = vmul.f32 %v1156, %v1346
        %v1396 = vmul.f32 %v1161, %v1351
        %v1397 = vmul.f32 %v1164, %v1356
        %v1398 = vmul.f32 %v1169, %v1361
        %v1399 = vmul.f32 %v1172, %v1366
        %v1400 = vld [vmem:[#allocation2] sm:$0xff]
        %v1401 = vld [vmem:[#allocation2 + $0x8] sm:$0xff]
        %v1402 = vld [vmem:[#allocation2 + $0x10] sm:$0xff]
        %v1403 = vld [vmem:[#allocation2 + $0x18] sm:$0xff]
        %v1404 = vld [vmem:[#allocation2 + $0x20] sm:$0xff]
        %v1405 = vld [vmem:[#allocation2 + $0x28] sm:$0xff]
        %v1406 = vld [vmem:[#allocation2 + $0x30] sm:$0xff]
        %v1407 = vld [vmem:[#allocation2 + $0x38] sm:$0xff]
        %v1408 = vld [vmem:[#allocation2 + $0x40] sm:$0xff]
        %v1409 = vld [vmem:[#allocation2 + $0x48] sm:$0xff]
        %v1410 = vld [vmem:[#allocation2 + $0x50] sm:$0xff]
        %v1411 = vld [vmem:[#allocation2 + $0x58] sm:$0xff]
        %v1412 = vld [vmem:[#allocation2 + $0x60] sm:$0xff]
        %v1413 = vld [vmem:[#allocation2 + $0x68] sm:$0xff]
        %v1414 = vld [vmem:[#allocation2 + $0x70] sm:$0xff]
        %v1415 = vld [vmem:[#allocation2 + $0x78] sm:$0xff]
        %v1416 = vld [vmem:[#allocation2 + $0x80] sm:$0xff]
        %v1417 = vld [vmem:[#allocation2 + $0x88] sm:$0xff]
        %v1418 = vld [vmem:[#allocation2 + $0x90] sm:$0xff]
        %v1419 = vld [vmem:[#allocation2 + $0x98] sm:$0xff]
        %v1420 = vld [vmem:[#allocation2 + $0xa0] sm:$0xff]
        %v1421 = vld [vmem:[#allocation2 + $0xa8] sm:$0xff]
        %v1422 = vld [vmem:[#allocation2 + $0xb0] sm:$0xff]
        %v1423 = vld [vmem:[#allocation2 + $0xb8] sm:$0xff]
        %v1424 = vld [vmem:[#allocation2 + $0xc0] sm:$0xff]
        %v1425 = vld [vmem:[#allocation2 + $0xc8] sm:$0xff]
        %v1426 = vld [vmem:[#allocation2 + $0xd0] sm:$0xff]
        %v1427 = vld [vmem:[#allocation2 + $0xd8] sm:$0xff]
        %v1428 = vld [vmem:[#allocation2 + $0xe0] sm:$0xff]
        %v1429 = vld [vmem:[#allocation2 + $0xe8] sm:$0xff]
        %v1430 = vld [vmem:[#allocation2 + $0xf0] sm:$0xff]
        %v1431 = vld [vmem:[#allocation2 + $0xf8] sm:$0xff]
        %v1432 = vadd.f32 %v1400, %v1368
        %v1433 = vadd.f32 %v1401, %v1369
        %v1434 = vadd.f32 %v1402, %v1370
        %v1435 = vadd.f32 %v1403, %v1371
        %v1436 = vadd.f32 %v1404, %v1372
        %v1437 = vadd.f32 %v1405, %v1373
        %v1438 = vadd.f32 %v1406, %v1374
        %v1439 = vadd.f32 %v1407, %v1375
        %v1440 = vadd.f32 %v1408, %v1376
        %v1441 = vadd.f32 %v1409, %v1377
        %v1442 = vadd.f32 %v1410, %v1378
        %v1443 = vadd.f32 %v1411, %v1379
        %v1444 = vadd.f32 %v1412, %v1380
        %v1445 = vadd.f32 %v1413, %v1381
        %v1446 = vadd.f32 %v1414, %v1382
        %v1447 = vadd.f32 %v1415, %v1383
        %v1448 = vadd.f32 %v1416, %v1384
        %v1449 = vadd.f32 %v1417, %v1385
        %v1450 = vadd.f32 %v1418, %v1386
        %v1451 = vadd.f32 %v1419, %v1387
        %v1452 = vadd.f32 %v1420, %v1388
        %v1453 = vadd.f32 %v1421, %v1389
        %v1454 = vadd.f32 %v1422, %v1390
        %v1455 = vadd.f32 %v1423, %v1391
        %v1456 = vadd.f32 %v1424, %v1392
        %v1457 = vadd.f32 %v1425, %v1393
        %v1458 = vadd.f32 %v1426, %v1394
        %v1459 = vadd.f32 %v1427, %v1395
        %v1460 = vadd.f32 %v1428, %v1396
        %v1461 = vadd.f32 %v1429, %v1397
        %v1462 = vadd.f32 %v1430, %v1398
        %v1463 = vadd.f32 %v1431, %v1399
        %1464 = vst [vmem:[#allocation2] sm:$0xff] %v1432
        %1465 = vst [vmem:[#allocation2 + $0x8] sm:$0xff] %v1433
        %1466 = vst [vmem:[#allocation2 + $0x10] sm:$0xff] %v1434
        %1467 = vst [vmem:[#allocation2 + $0x18] sm:$0xff] %v1435
        %1468 = vst [vmem:[#allocation2 + $0x20] sm:$0xff] %v1436
        %1469 = vst [vmem:[#allocation2 + $0x28] sm:$0xff] %v1437
        %1470 = vst [vmem:[#allocation2 + $0x30] sm:$0xff] %v1438
        %1471 = vst [vmem:[#allocation2 + $0x38] sm:$0xff] %v1439
        %1472 = vst [vmem:[#allocation2 + $0x40] sm:$0xff] %v1440
        %1473 = vst [vmem:[#allocation2 + $0x48] sm:$0xff] %v1441
        %1474 = vst [vmem:[#allocation2 + $0x50] sm:$0xff] %v1442
        %1475 = vst [vmem:[#allocation2 + $0x58] sm:$0xff] %v1443
        %1476 = vst [vmem:[#allocation2 + $0x60] sm:$0xff] %v1444
        %1477 = vst [vmem:[#allocation2 + $0x68] sm:$0xff] %v1445
        %1478 = vst [vmem:[#allocation2 + $0x70] sm:$0xff] %v1446
        %1479 = vst [vmem:[#allocation2 + $0x78] sm:$0xff] %v1447
        %1480 = vst [vmem:[#allocation2 + $0x80] sm:$0xff] %v1448
        %1481 = vst [vmem:[#allocation2 + $0x88] sm:$0xff] %v1449
        %1482 = vst [vmem:[#allocation2 + $0x90] sm:$0xff] %v1450
        %1483 = vst [vmem:[#allocation2 + $0x98] sm:$0xff] %v1451
        %1484 = vst [vmem:[#allocation2 + $0xa0] sm:$0xff] %v1452
        %1485 = vst [vmem:[#allocation2 + $0xa8] sm:$0xff] %v1453
        %1486 = vst [vmem:[#allocation2 + $0xb0] sm:$0xff] %v1454
        %1487 = vst [vmem:[#allocation2 + $0xb8] sm:$0xff] %v1455
        %1488 = vst [vmem:[#allocation2 + $0xc0] sm:$0xff] %v1456
        %1489 = vst [vmem:[#allocation2 + $0xc8] sm:$0xff] %v1457
        %1490 = vst [vmem:[#allocation2 + $0xd0] sm:$0xff] %v1458
        %1491 = vst [vmem:[#allocation2 + $0xd8] sm:$0xff] %v1459
        %1492 = vst [vmem:[#allocation2 + $0xe0] sm:$0xff] %v1460
        %1493 = vst [vmem:[#allocation2 + $0xe8] sm:$0xff] %v1461
        %1494 = vst [vmem:[#allocation2 + $0xf0] sm:$0xff] %v1462
        %1495 = vst [vmem:[#allocation2 + $0xf8] sm:$0xff] %v1463
        %v1496 = vrot.slane %v337, 1
        %v1497 = vrot.slane %v338, 1
        %v1498 = vrot.slane %v339, 1
        %v1499 = vrot.slane %v340, 1
        %v1500 = vrot.slane %v341, 1
        %v1501 = vrot.slane %v342, 1
        %v1502 = vrot.slane %v343, 1
        %v1503 = vrot.slane %v344, 1
        %v1504 = vrot.slane %v345, 1
        %v1505 = vrot.slane %v346, 1
        %v1506 = vrot.slane %v347, 1
        %v1507 = vrot.slane %v348, 1
        %v1508 = vrot.slane %v349, 1
        %v1509 = vrot.slane %v350, 1
        %v1510 = vrot.slane %v351, 1
        %v1511 = vrot.slane %v352, 1
        %v1512 = vrot.slane %v353, 1
        %v1513 = vrot.slane %v354, 1
        %v1514 = vrot.slane %v355, 1
        %v1515 = vrot.slane %v356, 1
        %v1516 = vrot.slane %v357, 1
        %v1517 = vrot.slane %v358, 1
        %v1518 = vrot.slane %v359, 1
        %v1519 = vrot.slane %v360, 1
        %v1520 = vrot.slane %v361, 1
        %v1521 = vrot.slane %v362, 1
        %v1522 = vrot.slane %v363, 1
        %v1523 = vrot.slane %v364, 1
        %v1524 = vrot.slane %v365, 1
        %v1525 = vrot.slane %v366, 1
        %v1526 = vrot.slane %v367, 1
        %v1527 = vrot.slane %v368, 1
        %vm1528 = vcmp.lt.s32.totalorder %v402, 7
        %v1529 = vsel %vm1528, %v1526, %v1527
        %v1530 = vsel %vm1528, %v1525, %v1526
        %v1531 = vsel %vm1528, %v1524, %v1525
        %v1532 = vsel %vm1528, %v1523, %v1524
        %v1533 = vsel %vm1528, %v1522, %v1523
        %v1534 = vsel %vm1528, %v1521, %v1522
        %v1535 = vsel %vm1528, %v1520, %v1521
        %v1536 = vsel %vm1528, %v1519, %v1520
        %v1537 = vsel %vm1528, %v1518, %v1519
        %v1538 = vsel %vm1528, %v1517, %v1518
        %v1539 = vsel %vm1528, %v1516, %v1517
        %v1540 = vsel %vm1528, %v1515, %v1516
        %v1541 = vsel %vm1528, %v1514, %v1515
        %v1542 = vsel %vm1528, %v1513, %v1514
        %v1543 = vsel %vm1528, %v1512, %v1513
        %v1544 = vsel %vm1528, %v1511, %v1512
        %v1545 = vsel %vm1528, %v1510, %v1511
        %v1546 = vsel %vm1528, %v1509, %v1510
        %v1547 = vsel %vm1528, %v1508, %v1509
        %v1548 = vsel %vm1528, %v1507, %v1508
        %v1549 = vsel %vm1528, %v1506, %v1507
        %v1550 = vsel %vm1528, %v1505, %v1506
        %v1551 = vsel %vm1528, %v1504, %v1505
        %v1552 = vsel %vm1528, %v1503, %v1504
        %v1553 = vsel %vm1528, %v1502, %v1503
        %v1554 = vsel %vm1528, %v1501, %v1502
        %v1555 = vsel %vm1528, %v1500, %v1501
        %v1556 = vsel %vm1528, %v1499, %v1500
        %v1557 = vsel %vm1528, %v1498, %v1499
        %v1558 = vsel %vm1528, %v1497, %v1498
        %v1559 = vsel %vm1528, %v1496, %v1497
        %v1560 = vsel %vm1528, %v1527, %v1496
        %v1561 = vpack.c.bf16 %v1560, %v1529
        %v1562 = vpack.c.bf16 %v1558, %v1559
        %v1563 = vpack.c.bf16 %v1556, %v1557
        %v1564 = vpack.c.bf16 %v1554, %v1555
        %v1565 = vpack.c.bf16 %v1552, %v1553
        %v1566 = vpack.c.bf16 %v1550, %v1551
        %v1567 = vpack.c.bf16 %v1548, %v1549
        %v1568 = vpack.c.bf16 %v1546, %v1547
        %v1569 = vpack.c.bf16 %v1544, %v1545
        %v1570 = vpack.c.bf16 %v1542, %v1543
        %v1571 = vpack.c.bf16 %v1540, %v1541
        %v1572 = vpack.c.bf16 %v1538, %v1539
        %v1573 = vpack.c.bf16 %v1536, %v1537
        %v1574 = vpack.c.bf16 %v1534, %v1535
        %v1575 = vpack.c.bf16 %v1532, %v1533
        %v1576 = vpack.c.bf16 %v1530, %v1531
        %s1577 = scalar_lea.vmem %s1, 128
        %v1578 = vld [vmem:[%s1577] sm:$0xf]
        %v1579 = vld [vmem:[%s1577 + $0x4] sm:$0xf]
        %v1580 = vld [vmem:[%s1577 + $0x8] sm:$0xf]
        %v1581 = vld [vmem:[%s1577 + $0xc] sm:$0xf]
        %v1582 = vld [vmem:[%s1577 + $0x10] sm:$0xf]
        %v1583 = vld [vmem:[%s1577 + $0x14] sm:$0xf]
        %v1584 = vld [vmem:[%s1577 + $0x18] sm:$0xf]
        %v1585 = vld [vmem:[%s1577 + $0x1c] sm:$0xf]
        %v1586 = vld [vmem:[%s1577 + $0x20] sm:$0xf]
        %v1587 = vld [vmem:[%s1577 + $0x24] sm:$0xf]
        %v1588 = vld [vmem:[%s1577 + $0x28] sm:$0xf]
        %v1589 = vld [vmem:[%s1577 + $0x2c] sm:$0xf]
        %v1590 = vld [vmem:[%s1577 + $0x30] sm:$0xf]
        %v1591 = vld [vmem:[%s1577 + $0x34] sm:$0xf]
        %v1592 = vld [vmem:[%s1577 + $0x38] sm:$0xf]
        %v1593 = vld [vmem:[%s1577 + $0x3c] sm:$0xf]
        %v1610 = vunpack.c.l.b16 %v1578
        %v1611 = vunpack.c.l.b16 %v1579
        %v1612 = vunpack.c.l.b16 %v1580
        %v1613 = vunpack.c.l.b16 %v1581
        %v1614 = vunpack.c.l.b16 %v1582
        %v1615 = vunpack.c.l.b16 %v1583
        %v1616 = vunpack.c.l.b16 %v1584
        %v1617 = vunpack.c.l.b16 %v1585
        %v1618 = vunpack.c.l.b16 %v1586
        %v1619 = vunpack.c.l.b16 %v1587
        %v1620 = vunpack.c.l.b16 %v1588
        %v1621 = vunpack.c.l.b16 %v1589
        %v1622 = vunpack.c.l.b16 %v1590
        %v1623 = vunpack.c.l.b16 %v1591
        %v1624 = vunpack.c.l.b16 %v1592
        %v1625 = vunpack.c.l.b16 %v1593
        %v1626 = vpack.c.b16 %v1611, %v1610
        %v1627 = vpack.c.b16 %v1613, %v1612
        %v1628 = vpack.c.b16 %v1615, %v1614
        %v1629 = vpack.c.b16 %v1617, %v1616
        %v1630 = vpack.c.b16 %v1619, %v1618
        %v1631 = vpack.c.b16 %v1621, %v1620
        %v1632 = vpack.c.b16 %v1623, %v1622
        %v1633 = vpack.c.b16 %v1625, %v1624
        %1642 = vmatprep.subr.bf16.mxu0 0
        %1643 = vmatpush1.bf16.msra.mxu0 %v1626
        %1644 = vmatprep.subr.bf16.mxu0 0
        %1645 = vmatpush1.bf16.msra.mxu0 %v1627
        %1646 = vmatprep.subr.bf16.mxu0 0
        %1647 = vmatpush1.bf16.msra.mxu0 %v1628
        %1648 = vmatprep.subr.bf16.mxu0 0
        %1649 = vmatpush1.bf16.msra.mxu0 %v1629
        %1650 = vmatprep.subr.bf16.mxu0 0
        %1651 = vmatpush1.bf16.msra.mxu0 %v1630
        %1652 = vmatprep.subr.bf16.mxu0 0
        %1653 = vmatpush1.bf16.msra.mxu0 %v1631
        %1654 = vmatprep.subr.bf16.mxu0 0
        %1655 = vmatpush1.bf16.msra.mxu0 %v1632
        %1656 = vmatprep.subr.bf16.mxu0 0
        %1657 = vmatpush1.bf16.msra.mxu0 %v1633
        %1658 = vmatprep.subr.bf16.mxu0 0
        %1659 = vmatpush1.bf16.msra.mxu0 0
        %1660 = vmatprep.subr.bf16.mxu0 0
        %1661 = vmatpush1.bf16.msra.mxu0 0
        %1662 = vmatprep.subr.bf16.mxu0 0
        %1663 = vmatpush1.bf16.msra.mxu0 0
        %1664 = vmatprep.subr.bf16.mxu0 0
        %1665 = vmatpush1.bf16.msra.mxu0 0
        %1666 = vmatprep.subr.bf16.mxu0 0
        %1667 = vmatpush1.bf16.msra.mxu0 0
        %1668 = vmatprep.subr.bf16.mxu0 0
        %1669 = vmatpush1.bf16.msra.mxu0 0
        %1670 = vmatprep.subr.bf16.mxu0 0
        %1671 = vmatpush1.bf16.msra.mxu0 0
        %1672 = vmatprep.subr.bf16.mxu0 0
        %1673 = vmatpush1.bf16.msra.mxu0 0
        %1674 = vmatprep.mubr.bf16.mxu0 0
        %1675 = vmatmul.mubr.bf16.gmra.mrb[0].mxu0 %v1561
        %v1676 = vpop.f32.mrb[0].mxu0
        %v1677 = vadd.f32 0.0, %v1676
        %v1678 = vpop.f32.mrb[0].mxu0
        %v1679 = vpop.f32.mrb[0].mxu0
        %v1680 = vadd.f32 0.0, %v1679
        %v1681 = vpop.f32.mrb[0].mxu0
        %1682 = vmatprep.mubr.bf16.mxu0 0
        %1683 = vmatmul.mubr.bf16.gmra.mrb[0].mxu0 %v1562
        %v1684 = vpop.f32.mrb[0].mxu0
        %v1685 = vadd.f32 0.0, %v1684
        %v1686 = vpop.f32.mrb[0].mxu0
        %v1687 = vpop.f32.mrb[0].mxu0
        %v1688 = vadd.f32 0.0, %v1687
        %v1689 = vpop.f32.mrb[0].mxu0
        %1690 = vmatprep.mubr.bf16.mxu0 0
        %1691 = vmatmul.mubr.bf16.gmra.mrb[0].mxu0 %v1563
        %v1692 = vpop.f32.mrb[0].mxu0
        %v1693 = vadd.f32 0.0, %v1692
        %v1694 = vpop.f32.mrb[0].mxu0
        %v1695 = vpop.f32.mrb[0].mxu0
        %v1696 = vadd.f32 0.0, %v1695
        %v1697 = vpop.f32.mrb[0].mxu0
        %1698 = vmatprep.mubr.bf16.mxu0 0
        %1699 = vmatmul.mubr.bf16.gmra.mrb[0].mxu0 %v1564
        %v1700 = vpop.f32.mrb[0].mxu0
        %v1701 = vadd.f32 0.0, %v1700
        %v1702 = vpop.f32.mrb[0].mxu0
        %v1703 = vpop.f32.mrb[0].mxu0
        %v1704 = vadd.f32 0.0, %v1703
        %v1705 = vpop.f32.mrb[0].mxu0
        %1706 = vmatprep.mubr.bf16.mxu0 0
        %1707 = vmatmul.mubr.bf16.gmra.mrb[0].mxu0 %v1565
        %v1708 = vpop.f32.mrb[0].mxu0
        %v1709 = vadd.f32 0.0, %v1708
        %v1710 = vpop.f32.mrb[0].mxu0
        %v1711 = vpop.f32.mrb[0].mxu0
        %v1712 = vadd.f32 0.0, %v1711
        %v1713 = vpop.f32.mrb[0].mxu0
        %1714 = vmatprep.mubr.bf16.mxu0 0
        %1715 = vmatmul.mubr.bf16.gmra.mrb[0].mxu0 %v1566
        %v1716 = vpop.f32.mrb[0].mxu0
        %v1717 = vadd.f32 0.0, %v1716
        %v1718 = vpop.f32.mrb[0].mxu0
        %v1719 = vpop.f32.mrb[0].mxu0
        %v1720 = vadd.f32 0.0, %v1719
        %v1721 = vpop.f32.mrb[0].mxu0
        %1722 = vmatprep.mubr.bf16.mxu0 0
        %1723 = vmatmul.mubr.bf16.gmra.mrb[0].mxu0 %v1567
        %v1724 = vpop.f32.mrb[0].mxu0
        %v1725 = vadd.f32 0.0, %v1724
        %v1726 = vpop.f32.mrb[0].mxu0
        %v1727 = vpop.f32.mrb[0].mxu0
        %v1728 = vadd.f32 0.0, %v1727
        %v1729 = vpop.f32.mrb[0].mxu0
        %1730 = vmatprep.mubr.bf16.mxu0 0
        %1731 = vmatmul.mubr.bf16.gmra.mrb[0].mxu0 %v1568
        %v1732 = vpop.f32.mrb[0].mxu0
        %v1733 = vadd.f32 0.0, %v1732
        %v1734 = vpop.f32.mrb[0].mxu0
        %v1735 = vpop.f32.mrb[0].mxu0
        %v1736 = vadd.f32 0.0, %v1735
        %v1737 = vpop.f32.mrb[0].mxu0
        %1738 = vmatprep.mubr.bf16.mxu0 0
        %1739 = vmatmul.mubr.bf16.gmra.mrb[0].mxu0 %v1569
        %v1740 = vpop.f32.mrb[0].mxu0
        %v1741 = vadd.f32 0.0, %v1740
        %v1742 = vpop.f32.mrb[0].mxu0
        %v1743 = vpop.f32.mrb[0].mxu0
        %v1744 = vadd.f32 0.0, %v1743
        %v1745 = vpop.f32.mrb[0].mxu0
        %1746 = vmatprep.mubr.bf16.mxu0 0
        %1747 = vmatmul.mubr.bf16.gmra.mrb[0].mxu0 %v1570
        %v1748 = vpop.f32.mrb[0].mxu0
        %v1749 = vadd.f32 0.0, %v1748
        %v1750 = vpop.f32.mrb[0].mxu0
        %v1751 = vpop.f32.mrb[0].mxu0
        %v1752 = vadd.f32 0.0, %v1751
        %v1753 = vpop.f32.mrb[0].mxu0
        %1754 = vmatprep.mubr.bf16.mxu0 0
        %1755 = vmatmul.mubr.bf16.gmra.mrb[0].mxu0 %v1571
        %v1756 = vpop.f32.mrb[0].mxu0
        %v1757 = vadd.f32 0.0, %v1756
        %v1758 = vpop.f32.mrb[0].mxu0
        %v1759 = vpop.f32.mrb[0].mxu0
        %v1760 = vadd.f32 0.0, %v1759
        %v1761 = vpop.f32.mrb[0].mxu0
        %1762 = vmatprep.mubr.bf16.mxu0 0
        %1763 = vmatmul.mubr.bf16.gmra.mrb[0].mxu0 %v1572
        %v1764 = vpop.f32.mrb[0].mxu0
        %v1765 = vadd.f32 0.0, %v1764
        %v1766 = vpop.f32.mrb[0].mxu0
        %v1767 = vpop.f32.mrb[0].mxu0
        %v1768 = vadd.f32 0.0, %v1767
        %v1769 = vpop.f32.mrb[0].mxu0
        %1770 = vmatprep.mubr.bf16.mxu0 0
        %1771 = vmatmul.mubr.bf16.gmra.mrb[0].mxu0 %v1573
        %v1772 = vpop.f32.mrb[0].mxu0
        %v1773 = vadd.f32 0.0, %v1772
        %v1774 = vpop.f32.mrb[0].mxu0
        %v1775 = vpop.f32.mrb[0].mxu0
        %v1776 = vadd.f32 0.0, %v1775
        %v1777 = vpop.f32.mrb[0].mxu0
        %1778 = vmatprep.mubr.bf16.mxu0 0
        %1779 = vmatmul.mubr.bf16.gmra.mrb[0].mxu0 %v1574
        %v1780 = vpop.f32.mrb[0].mxu0
        %v1781 = vadd.f32 0.0, %v1780
        %v1782 = vpop.f32.mrb[0].mxu0
        %v1783 = vpop.f32.mrb[0].mxu0
        %v1784 = vadd.f32 0.0, %v1783
        %v1785 = vpop.f32.mrb[0].mxu0
        %1786 = vmatprep.mubr.bf16.mxu0 0
        %1787 = vmatmul.mubr.bf16.gmra.mrb[0].mxu0 %v1575
        %v1788 = vpop.f32.mrb[0].mxu0
        %v1789 = vadd.f32 0.0, %v1788
        %v1790 = vpop.f32.mrb[0].mxu0
        %v1791 = vpop.f32.mrb[0].mxu0
        %v1792 = vadd.f32 0.0, %v1791
        %v1793 = vpop.f32.mrb[0].mxu0
        %1794 = vmatprep.mubr.bf16.mxu0 0
        %1795 = vmatmul.mubr.bf16.gmra.mrb[0].mxu0 %v1576
        %v1796 = vpop.f32.mrb[0].mxu0
        %v1797 = vadd.f32 0.0, %v1796
        %v1798 = vpop.f32.mrb[0].mxu0
        %v1799 = vpop.f32.mrb[0].mxu0
        %v1800 = vadd.f32 0.0, %v1799
        %v1801 = vpop.f32.mrb[0].mxu0
        %1802 = vdwg.mxu0
        %s1803 = scalar_lea.vmem %s7, 512
        %v1804 = vld [vmem:[%s1803] sm:$0xff]
        %v1805 = vld [vmem:[%s1803 + $0x8] sm:$0xff]
        %v1806 = vld [vmem:[%s1803 + $0x10] sm:$0xff]
        %v1807 = vld [vmem:[%s1803 + $0x18] sm:$0xff]
        %v1808 = vld [vmem:[%s1803 + $0x20] sm:$0xff]
        %v1809 = vld [vmem:[%s1803 + $0x28] sm:$0xff]
        %v1810 = vld [vmem:[%s1803 + $0x30] sm:$0xff]
        %v1811 = vld [vmem:[%s1803 + $0x38] sm:$0xff]
        %v1812 = vld [vmem:[%s1803 + $0x40] sm:$0xff]
        %v1813 = vld [vmem:[%s1803 + $0x48] sm:$0xff]
        %v1814 = vld [vmem:[%s1803 + $0x50] sm:$0xff]
        %v1815 = vld [vmem:[%s1803 + $0x58] sm:$0xff]
        %v1816 = vld [vmem:[%s1803 + $0x60] sm:$0xff]
        %v1817 = vld [vmem:[%s1803 + $0x68] sm:$0xff]
        %v1818 = vld [vmem:[%s1803 + $0x70] sm:$0xff]
        %v1819 = vld [vmem:[%s1803 + $0x78] sm:$0xff]
        %v1820 = vld [vmem:[%s1803 + $0x80] sm:$0xff]
        %v1821 = vld [vmem:[%s1803 + $0x88] sm:$0xff]
        %v1822 = vld [vmem:[%s1803 + $0x90] sm:$0xff]
        %v1823 = vld [vmem:[%s1803 + $0x98] sm:$0xff]
        %v1824 = vld [vmem:[%s1803 + $0xa0] sm:$0xff]
        %v1825 = vld [vmem:[%s1803 + $0xa8] sm:$0xff]
        %v1826 = vld [vmem:[%s1803 + $0xb0] sm:$0xff]
        %v1827 = vld [vmem:[%s1803 + $0xb8] sm:$0xff]
        %v1828 = vld [vmem:[%s1803 + $0xc0] sm:$0xff]
        %v1829 = vld [vmem:[%s1803 + $0xc8] sm:$0xff]
        %v1830 = vld [vmem:[%s1803 + $0xd0] sm:$0xff]
        %v1831 = vld [vmem:[%s1803 + $0xd8] sm:$0xff]
        %v1832 = vld [vmem:[%s1803 + $0xe0] sm:$0xff]
        %v1833 = vld [vmem:[%s1803 + $0xe8] sm:$0xff]
        %v1834 = vld [vmem:[%s1803 + $0xf0] sm:$0xff]
        %v1835 = vld [vmem:[%s1803 + $0xf8] sm:$0xff]
        %1837 = vset.pattern.permute.xlu0 0
        %1838 = vperm.xlu0 %1837, %v1804
        %v1839 = vpop.permute.xlu0 %1838
        %1842 = vset.pattern.permute.xlu0 0
        %1843 = vperm.xlu0 %1842, %v1805
        %v1844 = vpop.permute.xlu0 %1843
        %1847 = vset.pattern.permute.xlu0 0
        %1848 = vperm.xlu0 %1847, %v1806
        %v1849 = vpop.permute.xlu0 %1848
        %1852 = vset.pattern.permute.xlu0 0
        %1853 = vperm.xlu0 %1852, %v1807
        %v1854 = vpop.permute.xlu0 %1853
        %1857 = vset.pattern.permute.xlu0 0
        %1858 = vperm.xlu0 %1857, %v1808
        %v1859 = vpop.permute.xlu0 %1858
        %1862 = vset.pattern.permute.xlu0 0
        %1863 = vperm.xlu0 %1862, %v1809
        %v1864 = vpop.permute.xlu0 %1863
        %1867 = vset.pattern.permute.xlu0 0
        %1868 = vperm.xlu0 %1867, %v1810
        %v1869 = vpop.permute.xlu0 %1868
        %1872 = vset.pattern.permute.xlu0 0
        %1873 = vperm.xlu0 %1872, %v1811
        %v1874 = vpop.permute.xlu0 %1873
        %1877 = vset.pattern.permute.xlu0 0
        %1878 = vperm.xlu0 %1877, %v1812
        %v1879 = vpop.permute.xlu0 %1878
        %1882 = vset.pattern.permute.xlu0 0
        %1883 = vperm.xlu0 %1882, %v1813
        %v1884 = vpop.permute.xlu0 %1883
        %1887 = vset.pattern.permute.xlu0 0
        %1888 = vperm.xlu0 %1887, %v1814
        %v1889 = vpop.permute.xlu0 %1888
        %1892 = vset.pattern.permute.xlu0 0
        %1893 = vperm.xlu0 %1892, %v1815
        %v1894 = vpop.permute.xlu0 %1893
        %1897 = vset.pattern.permute.xlu0 0
        %1898 = vperm.xlu0 %1897, %v1816
        %v1899 = vpop.permute.xlu0 %1898
        %1902 = vset.pattern.permute.xlu0 0
        %1903 = vperm.xlu0 %1902, %v1817
        %v1904 = vpop.permute.xlu0 %1903
        %1907 = vset.pattern.permute.xlu0 0
        %1908 = vperm.xlu0 %1907, %v1818
        %v1909 = vpop.permute.xlu0 %1908
        %1912 = vset.pattern.permute.xlu0 0
        %1913 = vperm.xlu0 %1912, %v1819
        %v1914 = vpop.permute.xlu0 %1913
        %1917 = vset.pattern.permute.xlu0 0
        %1918 = vperm.xlu0 %1917, %v1820
        %v1919 = vpop.permute.xlu0 %1918
        %1922 = vset.pattern.permute.xlu0 0
        %1923 = vperm.xlu0 %1922, %v1821
        %v1924 = vpop.permute.xlu0 %1923
        %1927 = vset.pattern.permute.xlu0 0
        %1928 = vperm.xlu0 %1927, %v1822
        %v1929 = vpop.permute.xlu0 %1928
        %1932 = vset.pattern.permute.xlu0 0
        %1933 = vperm.xlu0 %1932, %v1823
        %v1934 = vpop.permute.xlu0 %1933
        %1937 = vset.pattern.permute.xlu0 0
        %1938 = vperm.xlu0 %1937, %v1824
        %v1939 = vpop.permute.xlu0 %1938
        %1942 = vset.pattern.permute.xlu0 0
        %1943 = vperm.xlu0 %1942, %v1825
        %v1944 = vpop.permute.xlu0 %1943
        %1947 = vset.pattern.permute.xlu0 0
        %1948 = vperm.xlu0 %1947, %v1826
        %v1949 = vpop.permute.xlu0 %1948
        %1952 = vset.pattern.permute.xlu0 0
        %1953 = vperm.xlu0 %1952, %v1827
        %v1954 = vpop.permute.xlu0 %1953
        %1957 = vset.pattern.permute.xlu0 0
        %1958 = vperm.xlu0 %1957, %v1828
        %v1959 = vpop.permute.xlu0 %1958
        %1962 = vset.pattern.permute.xlu0 0
        %1963 = vperm.xlu0 %1962, %v1829
        %v1964 = vpop.permute.xlu0 %1963
        %1967 = vset.pattern.permute.xlu0 0
        %1968 = vperm.xlu0 %1967, %v1830
        %v1969 = vpop.permute.xlu0 %1968
        %1972 = vset.pattern.permute.xlu0 0
        %1973 = vperm.xlu0 %1972, %v1831
        %v1974 = vpop.permute.xlu0 %1973
        %1977 = vset.pattern.permute.xlu0 0
        %1978 = vperm.xlu0 %1977, %v1832
        %v1979 = vpop.permute.xlu0 %1978
        %1982 = vset.pattern.permute.xlu0 0
        %1983 = vperm.xlu0 %1982, %v1833
        %v1984 = vpop.permute.xlu0 %1983
        %1987 = vset.pattern.permute.xlu0 0
        %1988 = vperm.xlu0 %1987, %v1834
        %v1989 = vpop.permute.xlu0 %1988
        %1992 = vset.pattern.permute.xlu0 0
        %1993 = vperm.xlu0 %1992, %v1835
        %v1994 = vpop.permute.xlu0 %1993
        %v1996 = vmul.f32 %v1677, %v1839
        %v1997 = vmul.f32 %v1680, %v1844
        %v1998 = vmul.f32 %v1685, %v1849
        %v1999 = vmul.f32 %v1688, %v1854
        %v2000 = vmul.f32 %v1693, %v1859
        %v2001 = vmul.f32 %v1696, %v1864
        %v2002 = vmul.f32 %v1701, %v1869
        %v2003 = vmul.f32 %v1704, %v1874
        %v2004 = vmul.f32 %v1709, %v1879
        %v2005 = vmul.f32 %v1712, %v1884
        %v2006 = vmul.f32 %v1717, %v1889
        %v2007 = vmul.f32 %v1720, %v1894
        %v2008 = vmul.f32 %v1725, %v1899
        %v2009 = vmul.f32 %v1728, %v1904
        %v2010 = vmul.f32 %v1733, %v1909
        %v2011 = vmul.f32 %v1736, %v1914
        %v2012 = vmul.f32 %v1741, %v1919
        %v2013 = vmul.f32 %v1744, %v1924
        %v2014 = vmul.f32 %v1749, %v1929
        %v2015 = vmul.f32 %v1752, %v1934
        %v2016 = vmul.f32 %v1757, %v1939
        %v2017 = vmul.f32 %v1760, %v1944
        %v2018 = vmul.f32 %v1765, %v1949
        %v2019 = vmul.f32 %v1768, %v1954
        %v2020 = vmul.f32 %v1773, %v1959
        %v2021 = vmul.f32 %v1776, %v1964
        %v2022 = vmul.f32 %v1781, %v1969
        %v2023 = vmul.f32 %v1784, %v1974
        %v2024 = vmul.f32 %v1789, %v1979
        %v2025 = vmul.f32 %v1792, %v1984
        %v2026 = vmul.f32 %v1797, %v1989
        %v2027 = vmul.f32 %v1800, %v1994
        %v2028 = vld [vmem:[#allocation2] sm:$0xff]
        %v2029 = vld [vmem:[#allocation2 + $0x8] sm:$0xff]
        %v2030 = vld [vmem:[#allocation2 + $0x10] sm:$0xff]
        %v2031 = vld [vmem:[#allocation2 + $0x18] sm:$0xff]
        %v2032 = vld [vmem:[#allocation2 + $0x20] sm:$0xff]
        %v2033 = vld [vmem:[#allocation2 + $0x28] sm:$0xff]
        %v2034 = vld [vmem:[#allocation2 + $0x30] sm:$0xff]
        %v2035 = vld [vmem:[#allocation2 + $0x38] sm:$0xff]
        %v2036 = vld [vmem:[#allocation2 + $0x40] sm:$0xff]
        %v2037 = vld [vmem:[#allocation2 + $0x48] sm:$0xff]
        %v2038 = vld [vmem:[#allocation2 + $0x50] sm:$0xff]
        %v2039 = vld [vmem:[#allocation2 + $0x58] sm:$0xff]
        %v2040 = vld [vmem:[#allocation2 + $0x60] sm:$0xff]
        %v2041 = vld [vmem:[#allocation2 + $0x68] sm:$0xff]
        %v2042 = vld [vmem:[#allocation2 + $0x70] sm:$0xff]
        %v2043 = vld [vmem:[#allocation2 + $0x78] sm:$0xff]
        %v2044 = vld [vmem:[#allocation2 + $0x80] sm:$0xff]
        %v2045 = vld [vmem:[#allocation2 + $0x88] sm:$0xff]
        %v2046 = vld [vmem:[#allocation2 + $0x90] sm:$0xff]
        %v2047 = vld [vmem:[#allocation2 + $0x98] sm:$0xff]
        %v2048 = vld [vmem:[#allocation2 + $0xa0] sm:$0xff]
        %v2049 = vld [vmem:[#allocation2 + $0xa8] sm:$0xff]
        %v2050 = vld [vmem:[#allocation2 + $0xb0] sm:$0xff]
        %v2051 = vld [vmem:[#allocation2 + $0xb8] sm:$0xff]
        %v2052 = vld [vmem:[#allocation2 + $0xc0] sm:$0xff]
        %v2053 = vld [vmem:[#allocation2 + $0xc8] sm:$0xff]
        %v2054 = vld [vmem:[#allocation2 + $0xd0] sm:$0xff]
        %v2055 = vld [vmem:[#allocation2 + $0xd8] sm:$0xff]
        %v2056 = vld [vmem:[#allocation2 + $0xe0] sm:$0xff]
        %v2057 = vld [vmem:[#allocation2 + $0xe8] sm:$0xff]
        %v2058 = vld [vmem:[#allocation2 + $0xf0] sm:$0xff]
        %v2059 = vld [vmem:[#allocation2 + $0xf8] sm:$0xff]
        %v2060 = vadd.f32 %v2028, %v1996
        %v2061 = vadd.f32 %v2029, %v1997
        %v2062 = vadd.f32 %v2030, %v1998
        %v2063 = vadd.f32 %v2031, %v1999
        %v2064 = vadd.f32 %v2032, %v2000
        %v2065 = vadd.f32 %v2033, %v2001
        %v2066 = vadd.f32 %v2034, %v2002
        %v2067 = vadd.f32 %v2035, %v2003
        %v2068 = vadd.f32 %v2036, %v2004
        %v2069 = vadd.f32 %v2037, %v2005
        %v2070 = vadd.f32 %v2038, %v2006
        %v2071 = vadd.f32 %v2039, %v2007
        %v2072 = vadd.f32 %v2040, %v2008
        %v2073 = vadd.f32 %v2041, %v2009
        %v2074 = vadd.f32 %v2042, %v2010
        %v2075 = vadd.f32 %v2043, %v2011
        %v2076 = vadd.f32 %v2044, %v2012
        %v2077 = vadd.f32 %v2045, %v2013
        %v2078 = vadd.f32 %v2046, %v2014
        %v2079 = vadd.f32 %v2047, %v2015
        %v2080 = vadd.f32 %v2048, %v2016
        %v2081 = vadd.f32 %v2049, %v2017
        %v2082 = vadd.f32 %v2050, %v2018
        %v2083 = vadd.f32 %v2051, %v2019
        %v2084 = vadd.f32 %v2052, %v2020
        %v2085 = vadd.f32 %v2053, %v2021
        %v2086 = vadd.f32 %v2054, %v2022
        %v2087 = vadd.f32 %v2055, %v2023
        %v2088 = vadd.f32 %v2056, %v2024
        %v2089 = vadd.f32 %v2057, %v2025
        %v2090 = vadd.f32 %v2058, %v2026
        %v2091 = vadd.f32 %v2059, %v2027
        %2092 = vst [vmem:[#allocation2] sm:$0xff] %v2060
        %2093 = vst [vmem:[#allocation2 + $0x8] sm:$0xff] %v2061
        %2094 = vst [vmem:[#allocation2 + $0x10] sm:$0xff] %v2062
        %2095 = vst [vmem:[#allocation2 + $0x18] sm:$0xff] %v2063
        %2096 = vst [vmem:[#allocation2 + $0x20] sm:$0xff] %v2064
        %2097 = vst [vmem:[#allocation2 + $0x28] sm:$0xff] %v2065
        %2098 = vst [vmem:[#allocation2 + $0x30] sm:$0xff] %v2066
        %2099 = vst [vmem:[#allocation2 + $0x38] sm:$0xff] %v2067
        %2100 = vst [vmem:[#allocation2 + $0x40] sm:$0xff] %v2068
        %2101 = vst [vmem:[#allocation2 + $0x48] sm:$0xff] %v2069
        %2102 = vst [vmem:[#allocation2 + $0x50] sm:$0xff] %v2070
        %2103 = vst [vmem:[#allocation2 + $0x58] sm:$0xff] %v2071
        %2104 = vst [vmem:[#allocation2 + $0x60] sm:$0xff] %v2072
        %2105 = vst [vmem:[#allocation2 + $0x68] sm:$0xff] %v2073
        %2106 = vst [vmem:[#allocation2 + $0x70] sm:$0xff] %v2074
        %2107 = vst [vmem:[#allocation2 + $0x78] sm:$0xff] %v2075
        %2108 = vst [vmem:[#allocation2 + $0x80] sm:$0xff] %v2076
        %2109 = vst [vmem:[#allocation2 + $0x88] sm:$0xff] %v2077
        %2110 = vst [vmem:[#allocation2 + $0x90] sm:$0xff] %v2078
        %2111 = vst [vmem:[#allocation2 + $0x98] sm:$0xff] %v2079
        %2112 = vst [vmem:[#allocation2 + $0xa0] sm:$0xff] %v2080
        %2113 = vst [vmem:[#allocation2 + $0xa8] sm:$0xff] %v2081
        %2114 = vst [vmem:[#allocation2 + $0xb0] sm:$0xff] %v2082
        %2115 = vst [vmem:[#allocation2 + $0xb8] sm:$0xff] %v2083
        %2116 = vst [vmem:[#allocation2 + $0xc0] sm:$0xff] %v2084
        %2117 = vst [vmem:[#allocation2 + $0xc8] sm:$0xff] %v2085
        %2118 = vst [vmem:[#allocation2 + $0xd0] sm:$0xff] %v2086
        %2119 = vst [vmem:[#allocation2 + $0xd8] sm:$0xff] %v2087
        %2120 = vst [vmem:[#allocation2 + $0xe0] sm:$0xff] %v2088
        %2121 = vst [vmem:[#allocation2 + $0xe8] sm:$0xff] %v2089
        %2122 = vst [vmem:[#allocation2 + $0xf0] sm:$0xff] %v2090
        %2123 = vst [vmem:[#allocation2 + $0xf8] sm:$0xff] %v2091
        %s2124 = scalar_lea.vmem %s1, 192
        %v2125 = vld [vmem:[%s2124] sm:$0xf]
        %v2126 = vld [vmem:[%s2124 + $0x4] sm:$0xf]
        %v2127 = vld [vmem:[%s2124 + $0x8] sm:$0xf]
        %v2128 = vld [vmem:[%s2124 + $0xc] sm:$0xf]
        %v2129 = vld [vmem:[%s2124 + $0x10] sm:$0xf]
        %v2130 = vld [vmem:[%s2124 + $0x14] sm:$0xf]
        %v2131 = vld [vmem:[%s2124 + $0x18] sm:$0xf]
        %v2132 = vld [vmem:[%s2124 + $0x1c] sm:$0xf]
        %v2133 = vld [vmem:[%s2124 + $0x20] sm:$0xf]
        %v2134 = vld [vmem:[%s2124 + $0x24] sm:$0xf]
        %v2135 = vld [vmem:[%s2124 + $0x28] sm:$0xf]
        %v2136 = vld [vmem:[%s2124 + $0x2c] sm:$0xf]
        %v2137 = vld [vmem:[%s2124 + $0x30] sm:$0xf]
        %v2138 = vld [vmem:[%s2124 + $0x34] sm:$0xf]
        %v2139 = vld [vmem:[%s2124 + $0x38] sm:$0xf]
        %v2140 = vld [vmem:[%s2124 + $0x3c] sm:$0xf]
        %v2157 = vunpack.c.l.b16 %v2125
        %v2158 = vunpack.c.l.b16 %v2126
        %v2159 = vunpack.c.l.b16 %v2127
        %v2160 = vunpack.c.l.b16 %v2128
        %v2161 = vunpack.c.l.b16 %v2129
        %v2162 = vunpack.c.l.b16 %v2130
        %v2163 = vunpack.c.l.b16 %v2131
        %v2164 = vunpack.c.l.b16 %v2132
        %v2165 = vunpack.c.l.b16 %v2133
        %v2166 = vunpack.c.l.b16 %v2134
        %v2167 = vunpack.c.l.b16 %v2135
        %v2168 = vunpack.c.l.b16 %v2136
        %v2169 = vunpack.c.l.b16 %v2137
        %v2170 = vunpack.c.l.b16 %v2138
        %v2171 = vunpack.c.l.b16 %v2139
        %v2172 = vunpack.c.l.b16 %v2140
        %v2173 = vpack.c.b16 %v2158, %v2157
        %v2174 = vpack.c.b16 %v2160, %v2159
        %v2175 = vpack.c.b16 %v2162, %v2161
        %v2176 = vpack.c.b16 %v2164, %v2163
        %v2177 = vpack.c.b16 %v2166, %v2165
        %v2178 = vpack.c.b16 %v2168, %v2167
        %v2179 = vpack.c.b16 %v2170, %v2169
        %v2180 = vpack.c.b16 %v2172, %v2171
        %2189 = vmatprep.subr.bf16.mxu0 0
        %2190 = vmatpush1.bf16.msra.mxu0 %v2173
        %2191 = vmatprep.subr.bf16.mxu0 0
        %2192 = vmatpush1.bf16.msra.mxu0 %v2174
        %2193 = vmatprep.subr.bf16.mxu0 0
        %2194 = vmatpush1.bf16.msra.mxu0 %v2175
        %2195 = vmatprep.subr.bf16.mxu0 0
        %2196 = vmatpush1.bf16.msra.mxu0 %v2176
        %2197 = vmatprep.subr.bf16.mxu0 0
        %2198 = vmatpush1.bf16.msra.mxu0 %v2177
        %2199 = vmatprep.subr.bf16.mxu0 0
        %2200 = vmatpush1.bf16.msra.mxu0 %v2178
        %2201 = vmatprep.subr.bf16.mxu0 0
        %2202 = vmatpush1.bf16.msra.mxu0 %v2179
        %2203 = vmatprep.subr.bf16.mxu0 0
        %2204 = vmatpush1.bf16.msra.mxu0 %v2180
        %2205 = vmatprep.subr.bf16.mxu0 0
        %2206 = vmatpush1.bf16.msra.mxu0 0
        %2207 = vmatprep.subr.bf16.mxu0 0
        %2208 = vmatpush1.bf16.msra.mxu0 0
        %2209 = vmatprep.subr.bf16.mxu0 0
        %2210 = vmatpush1.bf16.msra.mxu0 0
        %2211 = vmatprep.subr.bf16.mxu0 0
        %2212 = vmatpush1.bf16.msra.mxu0 0
        %2213 = vmatprep.subr.bf16.mxu0 0
        %2214 = vmatpush1.bf16.msra.mxu0 0
        %2215 = vmatprep.subr.bf16.mxu0 0
        %2216 = vmatpush1.bf16.msra.mxu0 0
        %2217 = vmatprep.subr.bf16.mxu0 0
        %2218 = vmatpush1.bf16.msra.mxu0 0
        %2219 = vmatprep.subr.bf16.mxu0 0
        %2220 = vmatpush1.bf16.msra.mxu0 0
        %2221 = vmatprep.mubr.bf16.mxu0 0
        %2222 = vmatmul.mubr.bf16.gmra.mrb[0].mxu0 %v437
        %v2223 = vpop.f32.mrb[0].mxu0
        %v2224 = vadd.f32 0.0, %v2223
        %v2225 = vpop.f32.mrb[0].mxu0
        %v2226 = vpop.f32.mrb[0].mxu0
        %v2227 = vadd.f32 0.0, %v2226
        %v2228 = vpop.f32.mrb[0].mxu0
        %2229 = vmatprep.mubr.bf16.mxu0 0
        %2230 = vmatmul.mubr.bf16.gmra.mrb[0].mxu0 %v438
        %v2231 = vpop.f32.mrb[0].mxu0
        %v2232 = vadd.f32 0.0, %v2231
        %v2233 = vpop.f32.mrb[0].mxu0
        %v2234 = vpop.f32.mrb[0].mxu0
        %v2235 = vadd.f32 0.0, %v2234
        %v2236 = vpop.f32.mrb[0].mxu0
        %2237 = vmatprep.mubr.bf16.mxu0 0
        %2238 = vmatmul.mubr.bf16.gmra.mrb[0].mxu0 %v439
        %v2239 = vpop.f32.mrb[0].mxu0
        %v2240 = vadd.f32 0.0, %v2239
        %v2241 = vpop.f32.mrb[0].mxu0
        %v2242 = vpop.f32.mrb[0].mxu0
        %v2243 = vadd.f32 0.0, %v2242
        %v2244 = vpop.f32.mrb[0].mxu0
        %2245 = vmatprep.mubr.bf16.mxu0 0
        %2246 = vmatmul.mubr.bf16.gmra.mrb[0].mxu0 %v440
        %v2247 = vpop.f32.mrb[0].mxu0
        %v2248 = vadd.f32 0.0, %v2247
        %v2249 = vpop.f32.mrb[0].mxu0
        %v2250 = vpop.f32.mrb[0].mxu0
        %v2251 = vadd.f32 0.0, %v2250
        %v2252 = vpop.f32.mrb[0].mxu0
        %2253 = vmatprep.mubr.bf16.mxu0 0
        %2254 = vmatmul.mubr.bf16.gmra.mrb[0].mxu0 %v441
        %v2255 = vpop.f32.mrb[0].mxu0
        %v2256 = vadd.f32 0.0, %v2255
        %v2257 = vpop.f32.mrb[0].mxu0
        %v2258 = vpop.f32.mrb[0].mxu0
        %v2259 = vadd.f32 0.0, %v2258
        %v2260 = vpop.f32.mrb[0].mxu0
        %2261 = vmatprep.mubr.bf16.mxu0 0
        %2262 = vmatmul.mubr.bf16.gmra.mrb[0].mxu0 %v442
        %v2263 = vpop.f32.mrb[0].mxu0
        %v2264 = vadd.f32 0.0, %v2263
        %v2265 = vpop.f32.mrb[0].mxu0
        %v2266 = vpop.f32.mrb[0].mxu0
        %v2267 = vadd.f32 0.0, %v2266
        %v2268 = vpop.f32.mrb[0].mxu0
        %2269 = vmatprep.mubr.bf16.mxu0 0
        %2270 = vmatmul.mubr.bf16.gmra.mrb[0].mxu0 %v443
        %v2271 = vpop.f32.mrb[0].mxu0
        %v2272 = vadd.f32 0.0, %v2271
        %v2273 = vpop.f32.mrb[0].mxu0
        %v2274 = vpop.f32.mrb[0].mxu0
        %v2275 = vadd.f32 0.0, %v2274
        %v2276 = vpop.f32.mrb[0].mxu0
        %2277 = vmatprep.mubr.bf16.mxu0 0
        %2278 = vmatmul.mubr.bf16.gmra.mrb[0].mxu0 %v444
        %v2279 = vpop.f32.mrb[0].mxu0
        %v2280 = vadd.f32 0.0, %v2279
        %v2281 = vpop.f32.mrb[0].mxu0
        %v2282 = vpop.f32.mrb[0].mxu0
        %v2283 = vadd.f32 0.0, %v2282
        %v2284 = vpop.f32.mrb[0].mxu0
        %2285 = vmatprep.mubr.bf16.mxu0 0
        %2286 = vmatmul.mubr.bf16.gmra.mrb[0].mxu0 %v445
        %v2287 = vpop.f32.mrb[0].mxu0
        %v2288 = vadd.f32 0.0, %v2287
        %v2289 = vpop.f32.mrb[0].mxu0
        %v2290 = vpop.f32.mrb[0].mxu0
        %v2291 = vadd.f32 0.0, %v2290
        %v2292 = vpop.f32.mrb[0].mxu0
        %2293 = vmatprep.mubr.bf16.mxu0 0
        %2294 = vmatmul.mubr.bf16.gmra.mrb[0].mxu0 %v446
        %v2295 = vpop.f32.mrb[0].mxu0
        %v2296 = vadd.f32 0.0, %v2295
        %v2297 = vpop.f32.mrb[0].mxu0
        %v2298 = vpop.f32.mrb[0].mxu0
        %v2299 = vadd.f32 0.0, %v2298
        %v2300 = vpop.f32.mrb[0].mxu0
        %2301 = vmatprep.mubr.bf16.mxu0 0
        %2302 = vmatmul.mubr.bf16.gmra.mrb[0].mxu0 %v447
        %v2303 = vpop.f32.mrb[0].mxu0
        %v2304 = vadd.f32 0.0, %v2303
        %v2305 = vpop.f32.mrb[0].mxu0
        %v2306 = vpop.f32.mrb[0].mxu0
        %v2307 = vadd.f32 0.0, %v2306
        %v2308 = vpop.f32.mrb[0].mxu0
        %2309 = vmatprep.mubr.bf16.mxu0 0
        %2310 = vmatmul.mubr.bf16.gmra.mrb[0].mxu0 %v448
        %v2311 = vpop.f32.mrb[0].mxu0
        %v2312 = vadd.f32 0.0, %v2311
        %v2313 = vpop.f32.mrb[0].mxu0
        %v2314 = vpop.f32.mrb[0].mxu0
        %v2315 = vadd.f32 0.0, %v2314
        %v2316 = vpop.f32.mrb[0].mxu0
        %2317 = vmatprep.mubr.bf16.mxu0 0
        %2318 = vmatmul.mubr.bf16.gmra.mrb[0].mxu0 %v449
        %v2319 = vpop.f32.mrb[0].mxu0
        %v2320 = vadd.f32 0.0, %v2319
        %v2321 = vpop.f32.mrb[0].mxu0
        %v2322 = vpop.f32.mrb[0].mxu0
        %v2323 = vadd.f32 0.0, %v2322
        %v2324 = vpop.f32.mrb[0].mxu0
        %2325 = vmatprep.mubr.bf16.mxu0 0
        %2326 = vmatmul.mubr.bf16.gmra.mrb[0].mxu0 %v450
        %v2327 = vpop.f32.mrb[0].mxu0
        %v2328 = vadd.f32 0.0, %v2327
        %v2329 = vpop.f32.mrb[0].mxu0
        %v2330 = vpop.f32.mrb[0].mxu0
        %v2331 = vadd.f32 0.0, %v2330
        %v2332 = vpop.f32.mrb[0].mxu0
        %2333 = vmatprep.mubr.bf16.mxu0 0
        %2334 = vmatmul.mubr.bf16.gmra.mrb[0].mxu0 %v451
        %v2335 = vpop.f32.mrb[0].mxu0
        %v2336 = vadd.f32 0.0, %v2335
        %v2337 = vpop.f32.mrb[0].mxu0
        %v2338 = vpop.f32.mrb[0].mxu0
        %v2339 = vadd.f32 0.0, %v2338
        %v2340 = vpop.f32.mrb[0].mxu0
        %2341 = vmatprep.mubr.bf16.mxu0 0
        %2342 = vmatmul.mubr.bf16.gmra.mrb[0].mxu0 %v436
        %v2343 = vpop.f32.mrb[0].mxu0
        %v2344 = vadd.f32 0.0, %v2343
        %v2345 = vpop.f32.mrb[0].mxu0
        %v2346 = vpop.f32.mrb[0].mxu0
        %v2347 = vadd.f32 0.0, %v2346
        %v2348 = vpop.f32.mrb[0].mxu0
        %2349 = vdwg.mxu0
        %s2350 = scalar_lea.vmem %s7, 768
        %v2351 = vld [vmem:[%s2350] sm:$0xff]
        %v2352 = vld [vmem:[%s2350 + $0x8] sm:$0xff]
        %v2353 = vld [vmem:[%s2350 + $0x10] sm:$0xff]
        %v2354 = vld [vmem:[%s2350 + $0x18] sm:$0xff]
        %v2355 = vld [vmem:[%s2350 + $0x20] sm:$0xff]
        %v2356 = vld [vmem:[%s2350 + $0x28] sm:$0xff]
        %v2357 = vld [vmem:[%s2350 + $0x30] sm:$0xff]
        %v2358 = vld [vmem:[%s2350 + $0x38] sm:$0xff]
        %v2359 = vld [vmem:[%s2350 + $0x40] sm:$0xff]
        %v2360 = vld [vmem:[%s2350 + $0x48] sm:$0xff]
        %v2361 = vld [vmem:[%s2350 + $0x50] sm:$0xff]
        %v2362 = vld [vmem:[%s2350 + $0x58] sm:$0xff]
        %v2363 = vld [vmem:[%s2350 + $0x60] sm:$0xff]
        %v2364 = vld [vmem:[%s2350 + $0x68] sm:$0xff]
        %v2365 = vld [vmem:[%s2350 + $0x70] sm:$0xff]
        %v2366 = vld [vmem:[%s2350 + $0x78] sm:$0xff]
        %v2367 = vld [vmem:[%s2350 + $0x80] sm:$0xff]
        %v2368 = vld [vmem:[%s2350 + $0x88] sm:$0xff]
        %v2369 = vld [vmem:[%s2350 + $0x90] sm:$0xff]
        %v2370 = vld [vmem:[%s2350 + $0x98] sm:$0xff]
        %v2371 = vld [vmem:[%s2350 + $0xa0] sm:$0xff]
        %v2372 = vld [vmem:[%s2350 + $0xa8] sm:$0xff]
        %v2373 = vld [vmem:[%s2350 + $0xb0] sm:$0xff]
        %v2374 = vld [vmem:[%s2350 + $0xb8] sm:$0xff]
        %v2375 = vld [vmem:[%s2350 + $0xc0] sm:$0xff]
        %v2376 = vld [vmem:[%s2350 + $0xc8] sm:$0xff]
        %v2377 = vld [vmem:[%s2350 + $0xd0] sm:$0xff]
        %v2378 = vld [vmem:[%s2350 + $0xd8] sm:$0xff]
        %v2379 = vld [vmem:[%s2350 + $0xe0] sm:$0xff]
        %v2380 = vld [vmem:[%s2350 + $0xe8] sm:$0xff]
        %v2381 = vld [vmem:[%s2350 + $0xf0] sm:$0xff]
        %v2382 = vld [vmem:[%s2350 + $0xf8] sm:$0xff]
        %2384 = vset.pattern.permute.xlu0 0
        %2385 = vperm.xlu0 %2384, %v2351
        %v2386 = vpop.permute.xlu0 %2385
        %2389 = vset.pattern.permute.xlu0 0
        %2390 = vperm.xlu0 %2389, %v2352
        %v2391 = vpop.permute.xlu0 %2390
        %2394 = vset.pattern.permute.xlu0 0
        %2395 = vperm.xlu0 %2394, %v2353
        %v2396 = vpop.permute.xlu0 %2395
        %2399 = vset.pattern.permute.xlu0 0
        %2400 = vperm.xlu0 %2399, %v2354
        %v2401 = vpop.permute.xlu0 %2400
        %2404 = vset.pattern.permute.xlu0 0
        %2405 = vperm.xlu0 %2404, %v2355
        %v2406 = vpop.permute.xlu0 %2405
        %2409 = vset.pattern.permute.xlu0 0
        %2410 = vperm.xlu0 %2409, %v2356
        %v2411 = vpop.permute.xlu0 %2410
        %2414 = vset.pattern.permute.xlu0 0
        %2415 = vperm.xlu0 %2414, %v2357
        %v2416 = vpop.permute.xlu0 %2415
        %2419 = vset.pattern.permute.xlu0 0
        %2420 = vperm.xlu0 %2419, %v2358
        %v2421 = vpop.permute.xlu0 %2420
        %2424 = vset.pattern.permute.xlu0 0
        %2425 = vperm.xlu0 %2424, %v2359
        %v2426 = vpop.permute.xlu0 %2425
        %2429 = vset.pattern.permute.xlu0 0
        %2430 = vperm.xlu0 %2429, %v2360
        %v2431 = vpop.permute.xlu0 %2430
        %2434 = vset.pattern.permute.xlu0 0
        %2435 = vperm.xlu0 %2434, %v2361
        %v2436 = vpop.permute.xlu0 %2435
        %2439 = vset.pattern.permute.xlu0 0
        %2440 = vperm.xlu0 %2439, %v2362
        %v2441 = vpop.permute.xlu0 %2440
        %2444 = vset.pattern.permute.xlu0 0
        %2445 = vperm.xlu0 %2444, %v2363
        %v2446 = vpop.permute.xlu0 %2445
        %2449 = vset.pattern.permute.xlu0 0
        %2450 = vperm.xlu0 %2449, %v2364
        %v2451 = vpop.permute.xlu0 %2450
        %2454 = vset.pattern.permute.xlu0 0
        %2455 = vperm.xlu0 %2454, %v2365
        %v2456 = vpop.permute.xlu0 %2455
        %2459 = vset.pattern.permute.xlu0 0
        %2460 = vperm.xlu0 %2459, %v2366
        %v2461 = vpop.permute.xlu0 %2460
        %2464 = vset.pattern.permute.xlu0 0
        %2465 = vperm.xlu0 %2464, %v2367
        %v2466 = vpop.permute.xlu0 %2465
        %2469 = vset.pattern.permute.xlu0 0
        %2470 = vperm.xlu0 %2469, %v2368
        %v2471 = vpop.permute.xlu0 %2470
        %2474 = vset.pattern.permute.xlu0 0
        %2475 = vperm.xlu0 %2474, %v2369
        %v2476 = vpop.permute.xlu0 %2475
        %2479 = vset.pattern.permute.xlu0 0
        %2480 = vperm.xlu0 %2479, %v2370
        %v2481 = vpop.permute.xlu0 %2480
        %2484 = vset.pattern.permute.xlu0 0
        %2485 = vperm.xlu0 %2484, %v2371
        %v2486 = vpop.permute.xlu0 %2485
        %2489 = vset.pattern.permute.xlu0 0
        %2490 = vperm.xlu0 %2489, %v2372
        %v2491 = vpop.permute.xlu0 %2490
        %2494 = vset.pattern.permute.xlu0 0
        %2495 = vperm.xlu0 %2494, %v2373
        %v2496 = vpop.permute.xlu0 %2495
        %2499 = vset.pattern.permute.xlu0 0
        %2500 = vperm.xlu0 %2499, %v2374
        %v2501 = vpop.permute.xlu0 %2500
        %2504 = vset.pattern.permute.xlu0 0
        %2505 = vperm.xlu0 %2504, %v2375
        %v2506 = vpop.permute.xlu0 %2505
        %2509 = vset.pattern.permute.xlu0 0
        %2510 = vperm.xlu0 %2509, %v2376
        %v2511 = vpop.permute.xlu0 %2510
        %2514 = vset.pattern.permute.xlu0 0
        %2515 = vperm.xlu0 %2514, %v2377
        %v2516 = vpop.permute.xlu0 %2515
        %2519 = vset.pattern.permute.xlu0 0
        %2520 = vperm.xlu0 %2519, %v2378
        %v2521 = vpop.permute.xlu0 %2520
        %2524 = vset.pattern.permute.xlu0 0
        %2525 = vperm.xlu0 %2524, %v2379
        %v2526 = vpop.permute.xlu0 %2525
        %2529 = vset.pattern.permute.xlu0 0
        %2530 = vperm.xlu0 %2529, %v2380
        %v2531 = vpop.permute.xlu0 %2530
        %2534 = vset.pattern.permute.xlu0 0
        %2535 = vperm.xlu0 %2534, %v2381
        %v2536 = vpop.permute.xlu0 %2535
        %2539 = vset.pattern.permute.xlu0 0
        %2540 = vperm.xlu0 %2539, %v2382
        %v2541 = vpop.permute.xlu0 %2540
        %v2543 = vmul.f32 %v2224, %v2386
        %v2544 = vmul.f32 %v2227, %v2391
        %v2545 = vmul.f32 %v2232, %v2396
        %v2546 = vmul.f32 %v2235, %v2401
        %v2547 = vmul.f32 %v2240, %v2406
        %v2548 = vmul.f32 %v2243, %v2411
        %v2549 = vmul.f32 %v2248, %v2416
        %v2550 = vmul.f32 %v2251, %v2421
        %v2551 = vmul.f32 %v2256, %v2426
        %v2552 = vmul.f32 %v2259, %v2431
        %v2553 = vmul.f32 %v2264, %v2436
        %v2554 = vmul.f32 %v2267, %v2441
        %v2555 = vmul.f32 %v2272, %v2446
        %v2556 = vmul.f32 %v2275, %v2451
        %v2557 = vmul.f32 %v2280, %v2456
        %v2558 = vmul.f32 %v2283, %v2461
        %v2559 = vmul.f32 %v2288, %v2466
        %v2560 = vmul.f32 %v2291, %v2471
        %v2561 = vmul.f32 %v2296, %v2476
        %v2562 = vmul.f32 %v2299, %v2481
        %v2563 = vmul.f32 %v2304, %v2486
        %v2564 = vmul.f32 %v2307, %v2491
        %v2565 = vmul.f32 %v2312, %v2496
        %v2566 = vmul.f32 %v2315, %v2501
        %v2567 = vmul.f32 %v2320, %v2506
        %v2568 = vmul.f32 %v2323, %v2511
        %v2569 = vmul.f32 %v2328, %v2516
        %v2570 = vmul.f32 %v2331, %v2521
        %v2571 = vmul.f32 %v2336, %v2526
        %v2572 = vmul.f32 %v2339, %v2531
        %v2573 = vmul.f32 %v2344, %v2536
        %v2574 = vmul.f32 %v2347, %v2541
        %v2575 = vld [vmem:[#allocation2] sm:$0xff]
        %v2576 = vld [vmem:[#allocation2 + $0x8] sm:$0xff]
        %v2577 = vld [vmem:[#allocation2 + $0x10] sm:$0xff]
        %v2578 = vld [vmem:[#allocation2 + $0x18] sm:$0xff]
        %v2579 = vld [vmem:[#allocation2 + $0x20] sm:$0xff]
        %v2580 = vld [vmem:[#allocation2 + $0x28] sm:$0xff]
        %v2581 = vld [vmem:[#allocation2 + $0x30] sm:$0xff]
        %v2582 = vld [vmem:[#allocation2 + $0x38] sm:$0xff]
        %v2583 = vld [vmem:[#allocation2 + $0x40] sm:$0xff]
        %v2584 = vld [vmem:[#allocation2 + $0x48] sm:$0xff]
        %v2585 = vld [vmem:[#allocation2 + $0x50] sm:$0xff]
        %v2586 = vld [vmem:[#allocation2 + $0x58] sm:$0xff]
        %v2587 = vld [vmem:[#allocation2 + $0x60] sm:$0xff]
        %v2588 = vld [vmem:[#allocation2 + $0x68] sm:$0xff]
        %v2589 = vld [vmem:[#allocation2 + $0x70] sm:$0xff]
        %v2590 = vld [vmem:[#allocation2 + $0x78] sm:$0xff]
        %v2591 = vld [vmem:[#allocation2 + $0x80] sm:$0xff]
        %v2592 = vld [vmem:[#allocation2 + $0x88] sm:$0xff]
        %v2593 = vld [vmem:[#allocation2 + $0x90] sm:$0xff]
        %v2594 = vld [vmem:[#allocation2 + $0x98] sm:$0xff]
        %v2595 = vld [vmem:[#allocation2 + $0xa0] sm:$0xff]
        %v2596 = vld [vmem:[#allocation2 + $0xa8] sm:$0xff]
        %v2597 = vld [vmem:[#allocation2 + $0xb0] sm:$0xff]
        %v2598 = vld [vmem:[#allocation2 + $0xb8] sm:$0xff]
        %v2599 = vld [vmem:[#allocation2 + $0xc0] sm:$0xff]
        %v2600 = vld [vmem:[#allocation2 + $0xc8] sm:$0xff]
        %v2601 = vld [vmem:[#allocation2 + $0xd0] sm:$0xff]
        %v2602 = vld [vmem:[#allocation2 + $0xd8] sm:$0xff]
        %v2603 = vld [vmem:[#allocation2 + $0xe0] sm:$0xff]
        %v2604 = vld [vmem:[#allocation2 + $0xe8] sm:$0xff]
        %v2605 = vld [vmem:[#allocation2 + $0xf0] sm:$0xff]
        %v2606 = vld [vmem:[#allocation2 + $0xf8] sm:$0xff]
        %v2607 = vadd.f32 %v2575, %v2543
        %v2608 = vadd.f32 %v2576, %v2544
        %v2609 = vadd.f32 %v2577, %v2545
        %v2610 = vadd.f32 %v2578, %v2546
        %v2611 = vadd.f32 %v2579, %v2547
        %v2612 = vadd.f32 %v2580, %v2548
        %v2613 = vadd.f32 %v2581, %v2549
        %v2614 = vadd.f32 %v2582, %v2550
        %v2615 = vadd.f32 %v2583, %v2551
        %v2616 = vadd.f32 %v2584, %v2552
        %v2617 = vadd.f32 %v2585, %v2553
        %v2618 = vadd.f32 %v2586, %v2554
        %v2619 = vadd.f32 %v2587, %v2555
        %v2620 = vadd.f32 %v2588, %v2556
        %v2621 = vadd.f32 %v2589, %v2557
        %v2622 = vadd.f32 %v2590, %v2558
        %v2623 = vadd.f32 %v2591, %v2559
        %v2624 = vadd.f32 %v2592, %v2560
        %v2625 = vadd.f32 %v2593, %v2561
        %v2626 = vadd.f32 %v2594, %v2562
        %v2627 = vadd.f32 %v2595, %v2563
        %v2628 = vadd.f32 %v2596, %v2564
        %v2629 = vadd.f32 %v2597, %v2565
        %v2630 = vadd.f32 %v2598, %v2566
        %v2631 = vadd.f32 %v2599, %v2567
        %v2632 = vadd.f32 %v2600, %v2568
        %v2633 = vadd.f32 %v2601, %v2569
        %v2634 = vadd.f32 %v2602, %v2570
        %v2635 = vadd.f32 %v2603, %v2571
        %v2636 = vadd.f32 %v2604, %v2572
        %v2637 = vadd.f32 %v2605, %v2573
        %v2638 = vadd.f32 %v2606, %v2574
        %2639 = vst [vmem:[#allocation2] sm:$0xff] %v2607
        %2640 = vst [vmem:[#allocation2 + $0x8] sm:$0xff] %v2608
        %2641 = vst [vmem:[#allocation2 + $0x10] sm:$0xff] %v2609
        %2642 = vst [vmem:[#allocation2 + $0x18] sm:$0xff] %v2610
        %2643 = vst [vmem:[#allocation2 + $0x20] sm:$0xff] %v2611
        %2644 = vst [vmem:[#allocation2 + $0x28] sm:$0xff] %v2612
        %2645 = vst [vmem:[#allocation2 + $0x30] sm:$0xff] %v2613
        %2646 = vst [vmem:[#allocation2 + $0x38] sm:$0xff] %v2614
        %2647 = vst [vmem:[#allocation2 + $0x40] sm:$0xff] %v2615
        %2648 = vst [vmem:[#allocation2 + $0x48] sm:$0xff] %v2616
        %2649 = vst [vmem:[#allocation2 + $0x50] sm:$0xff] %v2617
        %2650 = vst [vmem:[#allocation2 + $0x58] sm:$0xff] %v2618
        %2651 = vst [vmem:[#allocation2 + $0x60] sm:$0xff] %v2619
        %2652 = vst [vmem:[#allocation2 + $0x68] sm:$0xff] %v2620
        %2653 = vst [vmem:[#allocation2 + $0x70] sm:$0xff] %v2621
        %2654 = vst [vmem:[#allocation2 + $0x78] sm:$0xff] %v2622
        %2655 = vst [vmem:[#allocation2 + $0x80] sm:$0xff] %v2623
        %2656 = vst [vmem:[#allocation2 + $0x88] sm:$0xff] %v2624
        %2657 = vst [vmem:[#allocation2 + $0x90] sm:$0xff] %v2625
        %2658 = vst [vmem:[#allocation2 + $0x98] sm:$0xff] %v2626
        %2659 = vst [vmem:[#allocation2 + $0xa0] sm:$0xff] %v2627
        %2660 = vst [vmem:[#allocation2 + $0xa8] sm:$0xff] %v2628
        %2661 = vst [vmem:[#allocation2 + $0xb0] sm:$0xff] %v2629
        %2662 = vst [vmem:[#allocation2 + $0xb8] sm:$0xff] %v2630
        %2663 = vst [vmem:[#allocation2 + $0xc0] sm:$0xff] %v2631
        %2664 = vst [vmem:[#allocation2 + $0xc8] sm:$0xff] %v2632
        %2665 = vst [vmem:[#allocation2 + $0xd0] sm:$0xff] %v2633
        %2666 = vst [vmem:[#allocation2 + $0xd8] sm:$0xff] %v2634
        %2667 = vst [vmem:[#allocation2 + $0xe0] sm:$0xff] %v2635
        %2668 = vst [vmem:[#allocation2 + $0xe8] sm:$0xff] %v2636
        %2669 = vst [vmem:[#allocation2 + $0xf0] sm:$0xff] %v2637
        %2670 = vst [vmem:[#allocation2 + $0xf8] sm:$0xff] %v2638
        %s2671 = scalar_lea.vmem %s1, 256
        %v2672 = vld [vmem:[%s2671] sm:$0xf]
        %v2673 = vld [vmem:[%s2671 + $0x4] sm:$0xf]
        %v2674 = vld [vmem:[%s2671 + $0x8] sm:$0xf]
        %v2675 = vld [vmem:[%s2671 + $0xc] sm:$0xf]
        %v2676 = vld [vmem:[%s2671 + $0x10] sm:$0xf]
        %v2677 = vld [vmem:[%s2671 + $0x14] sm:$0xf]
        %v2678 = vld [vmem:[%s2671 + $0x18] sm:$0xf]
        %v2679 = vld [vmem:[%s2671 + $0x1c] sm:$0xf]
        %v2680 = vld [vmem:[%s2671 + $0x20] sm:$0xf]
        %v2681 = vld [vmem:[%s2671 + $0x24] sm:$0xf]
        %v2682 = vld [vmem:[%s2671 + $0x28] sm:$0xf]
        %v2683 = vld [vmem:[%s2671 + $0x2c] sm:$0xf]
        %v2684 = vld [vmem:[%s2671 + $0x30] sm:$0xf]
        %v2685 = vld [vmem:[%s2671 + $0x34] sm:$0xf]
        %v2686 = vld [vmem:[%s2671 + $0x38] sm:$0xf]
        %v2687 = vld [vmem:[%s2671 + $0x3c] sm:$0xf]
        %v2720 = vunpack.c.l.b16 %v305
        %v2721 = vunpack.c.l.b16 %v306
        %v2722 = vunpack.c.l.b16 %v307
        %v2723 = vunpack.c.l.b16 %v308
        %v2724 = vunpack.c.l.b16 %v309
        %v2725 = vunpack.c.l.b16 %v310
        %v2726 = vunpack.c.l.b16 %v311
        %v2727 = vunpack.c.l.b16 %v312
        %v2728 = vunpack.c.l.b16 %v313
        %v2729 = vunpack.c.l.b16 %v314
        %v2730 = vunpack.c.l.b16 %v315
        %v2731 = vunpack.c.l.b16 %v316
        %v2732 = vunpack.c.l.b16 %v317
        %v2733 = vunpack.c.l.b16 %v318
        %v2734 = vunpack.c.l.b16 %v319
        %v2735 = vunpack.c.l.b16 %v320
        %v2736 = vunpack.c.l.b16 %v321
        %v2737 = vunpack.c.l.b16 %v322
        %v2738 = vunpack.c.l.b16 %v323
        %v2739 = vunpack.c.l.b16 %v324
        %v2740 = vunpack.c.l.b16 %v325
        %v2741 = vunpack.c.l.b16 %v326
        %v2742 = vunpack.c.l.b16 %v327
        %v2743 = vunpack.c.l.b16 %v328
        %v2744 = vunpack.c.l.b16 %v329
        %v2745 = vunpack.c.l.b16 %v330
        %v2746 = vunpack.c.l.b16 %v331
        %v2747 = vunpack.c.l.b16 %v332
        %v2748 = vunpack.c.l.b16 %v333
        %v2749 = vunpack.c.l.b16 %v334
        %v2750 = vunpack.c.l.b16 %v335
        %v2751 = vunpack.c.l.b16 %v336
        %v2752 = vpack.c.b16 %v2721, %v2720
        %v2753 = vpack.c.b16 %v2723, %v2722
        %v2754 = vpack.c.b16 %v2725, %v2724
        %v2755 = vpack.c.b16 %v2727, %v2726
        %v2756 = vpack.c.b16 %v2729, %v2728
        %v2757 = vpack.c.b16 %v2731, %v2730
        %v2758 = vpack.c.b16 %v2733, %v2732
        %v2759 = vpack.c.b16 %v2735, %v2734
        %v2760 = vpack.c.b16 %v2737, %v2736
        %v2761 = vpack.c.b16 %v2739, %v2738
        %v2762 = vpack.c.b16 %v2741, %v2740
        %v2763 = vpack.c.b16 %v2743, %v2742
        %v2764 = vpack.c.b16 %v2745, %v2744
        %v2765 = vpack.c.b16 %v2747, %v2746
        %v2766 = vpack.c.b16 %v2749, %v2748
        %v2767 = vpack.c.b16 %v2751, %v2750
        %v2800 = vunpack.c.l.b16 %v2672
        %v2801 = vunpack.c.l.b16 %v2673
        %v2802 = vunpack.c.l.b16 %v2674
        %v2803 = vunpack.c.l.b16 %v2675
        %v2804 = vunpack.c.l.b16 %v2676
        %v2805 = vunpack.c.l.b16 %v2677
        %v2806 = vunpack.c.l.b16 %v2678
        %v2807 = vunpack.c.l.b16 %v2679
        %v2808 = vunpack.c.l.b16 %v2680
        %v2809 = vunpack.c.l.b16 %v2681
        %v2810 = vunpack.c.l.b16 %v2682
        %v2811 = vunpack.c.l.b16 %v2683
        %v2812 = vunpack.c.l.b16 %v2684
        %v2813 = vunpack.c.l.b16 %v2685
        %v2814 = vunpack.c.l.b16 %v2686
        %v2815 = vunpack.c.l.b16 %v2687
        %v2816 = vpack.c.b16 %v2801, %v2800
        %v2817 = vpack.c.b16 %v2803, %v2802
        %v2818 = vpack.c.b16 %v2805, %v2804
        %v2819 = vpack.c.b16 %v2807, %v2806
        %v2820 = vpack.c.b16 %v2809, %v2808
        %v2821 = vpack.c.b16 %v2811, %v2810
        %v2822 = vpack.c.b16 %v2813, %v2812
        %v2823 = vpack.c.b16 %v2815, %v2814
        %2832 = vmatprep.subr.bf16.mxu0 0
        %2833 = vmatpush1.bf16.msra.mxu0 %v2816
        %2834 = vmatprep.subr.bf16.mxu0 0
        %2835 = vmatpush1.bf16.msra.mxu0 %v2817
        %2836 = vmatprep.subr.bf16.mxu0 0
        %2837 = vmatpush1.bf16.msra.mxu0 %v2818
        %2838 = vmatprep.subr.bf16.mxu0 0
        %2839 = vmatpush1.bf16.msra.mxu0 %v2819
        %2840 = vmatprep.subr.bf16.mxu0 0
        %2841 = vmatpush1.bf16.msra.mxu0 %v2820
        %2842 = vmatprep.subr.bf16.mxu0 0
        %2843 = vmatpush1.bf16.msra.mxu0 %v2821
        %2844 = vmatprep.subr.bf16.mxu0 0
        %2845 = vmatpush1.bf16.msra.mxu0 %v2822
        %2846 = vmatprep.subr.bf16.mxu0 0
        %2847 = vmatpush1.bf16.msra.mxu0 %v2823
        %2848 = vmatprep.subr.bf16.mxu0 0
        %2849 = vmatpush1.bf16.msra.mxu0 0
        %2850 = vmatprep.subr.bf16.mxu0 0
        %2851 = vmatpush1.bf16.msra.mxu0 0
        %2852 = vmatprep.subr.bf16.mxu0 0
        %2853 = vmatpush1.bf16.msra.mxu0 0
        %2854 = vmatprep.subr.bf16.mxu0 0
        %2855 = vmatpush1.bf16.msra.mxu0 0
        %2856 = vmatprep.subr.bf16.mxu0 0
        %2857 = vmatpush1.bf16.msra.mxu0 0
        %2858 = vmatprep.subr.bf16.mxu0 0
        %2859 = vmatpush1.bf16.msra.mxu0 0
        %2860 = vmatprep.subr.bf16.mxu0 0
        %2861 = vmatpush1.bf16.msra.mxu0 0
        %2862 = vmatprep.subr.bf16.mxu0 0
        %2863 = vmatpush1.bf16.msra.mxu0 0
        %2864 = vmatprep.mubr.bf16.mxu0 0
        %2865 = vmatmul.mubr.bf16.gmra.mrb[0].mxu0 %v2752
        %v2866 = vpop.f32.mrb[0].mxu0
        %v2867 = vadd.f32 0.0, %v2866
        %v2868 = vpop.f32.mrb[0].mxu0
        %v2869 = vpop.f32.mrb[0].mxu0
        %v2870 = vadd.f32 0.0, %v2869
        %v2871 = vpop.f32.mrb[0].mxu0
        %2872 = vmatprep.mubr.bf16.mxu0 0
        %2873 = vmatmul.mubr.bf16.gmra.mrb[0].mxu0 %v2753
        %v2874 = vpop.f32.mrb[0].mxu0
        %v2875 = vadd.f32 0.0, %v2874
        %v2876 = vpop.f32.mrb[0].mxu0
        %v2877 = vpop.f32.mrb[0].mxu0
        %v2878 = vadd.f32 0.0, %v2877
        %v2879 = vpop.f32.mrb[0].mxu0
        %2880 = vmatprep.mubr.bf16.mxu0 0
        %2881 = vmatmul.mubr.bf16.gmra.mrb[0].mxu0 %v2754
        %v2882 = vpop.f32.mrb[0].mxu0
        %v2883 = vadd.f32 0.0, %v2882
        %v2884 = vpop.f32.mrb[0].mxu0
        %v2885 = vpop.f32.mrb[0].mxu0
        %v2886 = vadd.f32 0.0, %v2885
        %v2887 = vpop.f32.mrb[0].mxu0
        %2888 = vmatprep.mubr.bf16.mxu0 0
        %2889 = vmatmul.mubr.bf16.gmra.mrb[0].mxu0 %v2755
        %v2890 = vpop.f32.mrb[0].mxu0
        %v2891 = vadd.f32 0.0, %v2890
        %v2892 = vpop.f32.mrb[0].mxu0
        %v2893 = vpop.f32.mrb[0].mxu0
        %v2894 = vadd.f32 0.0, %v2893
        %v2895 = vpop.f32.mrb[0].mxu0
        %2896 = vmatprep.mubr.bf16.mxu0 0
        %2897 = vmatmul.mubr.bf16.gmra.mrb[0].mxu0 %v2756
        %v2898 = vpop.f32.mrb[0].mxu0
        %v2899 = vadd.f32 0.0, %v2898
        %v2900 = vpop.f32.mrb[0].mxu0
        %v2901 = vpop.f32.mrb[0].mxu0
        %v2902 = vadd.f32 0.0, %v2901
        %v2903 = vpop.f32.mrb[0].mxu0
        %2904 = vmatprep.mubr.bf16.mxu0 0
        %2905 = vmatmul.mubr.bf16.gmra.mrb[0].mxu0 %v2757
        %v2906 = vpop.f32.mrb[0].mxu0
        %v2907 = vadd.f32 0.0, %v2906
        %v2908 = vpop.f32.mrb[0].mxu0
        %v2909 = vpop.f32.mrb[0].mxu0
        %v2910 = vadd.f32 0.0, %v2909
        %v2911 = vpop.f32.mrb[0].mxu0
        %2912 = vmatprep.mubr.bf16.mxu0 0
        %2913 = vmatmul.mubr.bf16.gmra.mrb[0].mxu0 %v2758
        %v2914 = vpop.f32.mrb[0].mxu0
        %v2915 = vadd.f32 0.0, %v2914
        %v2916 = vpop.f32.mrb[0].mxu0
        %v2917 = vpop.f32.mrb[0].mxu0
        %v2918 = vadd.f32 0.0, %v2917
        %v2919 = vpop.f32.mrb[0].mxu0
        %2920 = vmatprep.mubr.bf16.mxu0 0
        %2921 = vmatmul.mubr.bf16.gmra.mrb[0].mxu0 %v2759
        %v2922 = vpop.f32.mrb[0].mxu0
        %v2923 = vadd.f32 0.0, %v2922
        %v2924 = vpop.f32.mrb[0].mxu0
        %v2925 = vpop.f32.mrb[0].mxu0
        %v2926 = vadd.f32 0.0, %v2925
        %v2927 = vpop.f32.mrb[0].mxu0
        %2928 = vmatprep.mubr.bf16.mxu0 0
        %2929 = vmatmul.mubr.bf16.gmra.mrb[0].mxu0 %v2760
        %v2930 = vpop.f32.mrb[0].mxu0
        %v2931 = vadd.f32 0.0, %v2930
        %v2932 = vpop.f32.mrb[0].mxu0
        %v2933 = vpop.f32.mrb[0].mxu0
        %v2934 = vadd.f32 0.0, %v2933
        %v2935 = vpop.f32.mrb[0].mxu0
        %2936 = vmatprep.mubr.bf16.mxu0 0
        %2937 = vmatmul.mubr.bf16.gmra.mrb[0].mxu0 %v2761
        %v2938 = vpop.f32.mrb[0].mxu0
        %v2939 = vadd.f32 0.0, %v2938
        %v2940 = vpop.f32.mrb[0].mxu0
        %v2941 = vpop.f32.mrb[0].mxu0
        %v2942 = vadd.f32 0.0, %v2941
        %v2943 = vpop.f32.mrb[0].mxu0
        %2944 = vmatprep.mubr.bf16.mxu0 0
        %2945 = vmatmul.mubr.bf16.gmra.mrb[0].mxu0 %v2762
        %v2946 = vpop.f32.mrb[0].mxu0
        %v2947 = vadd.f32 0.0, %v2946
        %v2948 = vpop.f32.mrb[0].mxu0
        %v2949 = vpop.f32.mrb[0].mxu0
        %v2950 = vadd.f32 0.0, %v2949
        %v2951 = vpop.f32.mrb[0].mxu0
        %2952 = vmatprep.mubr.bf16.mxu0 0
        %2953 = vmatmul.mubr.bf16.gmra.mrb[0].mxu0 %v2763
        %v2954 = vpop.f32.mrb[0].mxu0
        %v2955 = vadd.f32 0.0, %v2954
        %v2956 = vpop.f32.mrb[0].mxu0
        %v2957 = vpop.f32.mrb[0].mxu0
        %v2958 = vadd.f32 0.0, %v2957
        %v2959 = vpop.f32.mrb[0].mxu0
        %2960 = vmatprep.mubr.bf16.mxu0 0
        %2961 = vmatmul.mubr.bf16.gmra.mrb[0].mxu0 %v2764
        %v2962 = vpop.f32.mrb[0].mxu0
        %v2963 = vadd.f32 0.0, %v2962
        %v2964 = vpop.f32.mrb[0].mxu0
        %v2965 = vpop.f32.mrb[0].mxu0
        %v2966 = vadd.f32 0.0, %v2965
        %v2967 = vpop.f32.mrb[0].mxu0
        %2968 = vmatprep.mubr.bf16.mxu0 0
        %2969 = vmatmul.mubr.bf16.gmra.mrb[0].mxu0 %v2765
        %v2970 = vpop.f32.mrb[0].mxu0
        %v2971 = vadd.f32 0.0, %v2970
        %v2972 = vpop.f32.mrb[0].mxu0
        %v2973 = vpop.f32.mrb[0].mxu0
        %v2974 = vadd.f32 0.0, %v2973
        %v2975 = vpop.f32.mrb[0].mxu0
        %2976 = vmatprep.mubr.bf16.mxu0 0
        %2977 = vmatmul.mubr.bf16.gmra.mrb[0].mxu0 %v2766
        %v2978 = vpop.f32.mrb[0].mxu0
        %v2979 = vadd.f32 0.0, %v2978
        %v2980 = vpop.f32.mrb[0].mxu0
        %v2981 = vpop.f32.mrb[0].mxu0
        %v2982 = vadd.f32 0.0, %v2981
        %v2983 = vpop.f32.mrb[0].mxu0
        %2984 = vmatprep.mubr.bf16.mxu0 0
        %2985 = vmatmul.mubr.bf16.gmra.mrb[0].mxu0 %v2767
        %v2986 = vpop.f32.mrb[0].mxu0
        %v2987 = vadd.f32 0.0, %v2986
        %v2988 = vpop.f32.mrb[0].mxu0
        %v2989 = vpop.f32.mrb[0].mxu0
        %v2990 = vadd.f32 0.0, %v2989
        %v2991 = vpop.f32.mrb[0].mxu0
        %2992 = vdwg.mxu0
        %v2993 = vld [vmem:[#allocation2] sm:$0xff]
        %v2994 = vld [vmem:[#allocation2 + $0x8] sm:$0xff]
        %v2995 = vld [vmem:[#allocation2 + $0x10] sm:$0xff]
        %v2996 = vld [vmem:[#allocation2 + $0x18] sm:$0xff]
        %v2997 = vld [vmem:[#allocation2 + $0x20] sm:$0xff]
        %v2998 = vld [vmem:[#allocation2 + $0x28] sm:$0xff]
        %v2999 = vld [vmem:[#allocation2 + $0x30] sm:$0xff]
        %v3000 = vld [vmem:[#allocation2 + $0x38] sm:$0xff]
        %v3001 = vld [vmem:[#allocation2 + $0x40] sm:$0xff]
        %v3002 = vld [vmem:[#allocation2 + $0x48] sm:$0xff]
        %v3003 = vld [vmem:[#allocation2 + $0x50] sm:$0xff]
        %v3004 = vld [vmem:[#allocation2 + $0x58] sm:$0xff]
        %v3005 = vld [vmem:[#allocation2 + $0x60] sm:$0xff]
        %v3006 = vld [vmem:[#allocation2 + $0x68] sm:$0xff]
        %v3007 = vld [vmem:[#allocation2 + $0x70] sm:$0xff]
        %v3008 = vld [vmem:[#allocation2 + $0x78] sm:$0xff]
        %v3009 = vld [vmem:[#allocation2 + $0x80] sm:$0xff]
        %v3010 = vld [vmem:[#allocation2 + $0x88] sm:$0xff]
        %v3011 = vld [vmem:[#allocation2 + $0x90] sm:$0xff]
        %v3012 = vld [vmem:[#allocation2 + $0x98] sm:$0xff]
        %v3013 = vld [vmem:[#allocation2 + $0xa0] sm:$0xff]
        %v3014 = vld [vmem:[#allocation2 + $0xa8] sm:$0xff]
        %v3015 = vld [vmem:[#allocation2 + $0xb0] sm:$0xff]
        %v3016 = vld [vmem:[#allocation2 + $0xb8] sm:$0xff]
        %v3017 = vld [vmem:[#allocation2 + $0xc0] sm:$0xff]
        %v3018 = vld [vmem:[#allocation2 + $0xc8] sm:$0xff]
        %v3019 = vld [vmem:[#allocation2 + $0xd0] sm:$0xff]
        %v3020 = vld [vmem:[#allocation2 + $0xd8] sm:$0xff]
        %v3021 = vld [vmem:[#allocation2 + $0xe0] sm:$0xff]
        %v3022 = vld [vmem:[#allocation2 + $0xe8] sm:$0xff]
        %v3023 = vld [vmem:[#allocation2 + $0xf0] sm:$0xff]
        %v3024 = vld [vmem:[#allocation2 + $0xf8] sm:$0xff]
        %v3025 = vadd.f32 %v2993, %v2867
        %v3026 = vadd.f32 %v2994, %v2870
        %v3027 = vadd.f32 %v2995, %v2875
        %v3028 = vadd.f32 %v2996, %v2878
        %v3029 = vadd.f32 %v2997, %v2883
        %v3030 = vadd.f32 %v2998, %v2886
        %v3031 = vadd.f32 %v2999, %v2891
        %v3032 = vadd.f32 %v3000, %v2894
        %v3033 = vadd.f32 %v3001, %v2899
        %v3034 = vadd.f32 %v3002, %v2902
        %v3035 = vadd.f32 %v3003, %v2907
        %v3036 = vadd.f32 %v3004, %v2910
        %v3037 = vadd.f32 %v3005, %v2915
        %v3038 = vadd.f32 %v3006, %v2918
        %v3039 = vadd.f32 %v3007, %v2923
        %v3040 = vadd.f32 %v3008, %v2926
        %v3041 = vadd.f32 %v3009, %v2931
        %v3042 = vadd.f32 %v3010, %v2934
        %v3043 = vadd.f32 %v3011, %v2939
        %v3044 = vadd.f32 %v3012, %v2942
        %v3045 = vadd.f32 %v3013, %v2947
        %v3046 = vadd.f32 %v3014, %v2950
        %v3047 = vadd.f32 %v3015, %v2955
        %v3048 = vadd.f32 %v3016, %v2958
        %v3049 = vadd.f32 %v3017, %v2963
        %v3050 = vadd.f32 %v3018, %v2966
        %v3051 = vadd.f32 %v3019, %v2971
        %v3052 = vadd.f32 %v3020, %v2974
        %v3053 = vadd.f32 %v3021, %v2979
        %v3054 = vadd.f32 %v3022, %v2982
        %v3055 = vadd.f32 %v3023, %v2987
        %v3056 = vadd.f32 %v3024, %v2990
        %3057 = vst [vmem:[#allocation2] sm:$0xff] %v3025
        %3058 = vst [vmem:[#allocation2 + $0x8] sm:$0xff] %v3026
        %3059 = vst [vmem:[#allocation2 + $0x10] sm:$0xff] %v3027
        %3060 = vst [vmem:[#allocation2 + $0x18] sm:$0xff] %v3028
        %3061 = vst [vmem:[#allocation2 + $0x20] sm:$0xff] %v3029
        %3062 = vst [vmem:[#allocation2 + $0x28] sm:$0xff] %v3030
        %3063 = vst [vmem:[#allocation2 + $0x30] sm:$0xff] %v3031
        %3064 = vst [vmem:[#allocation2 + $0x38] sm:$0xff] %v3032
        %3065 = vst [vmem:[#allocation2 + $0x40] sm:$0xff] %v3033
        %3066 = vst [vmem:[#allocation2 + $0x48] sm:$0xff] %v3034
        %3067 = vst [vmem:[#allocation2 + $0x50] sm:$0xff] %v3035
        %3068 = vst [vmem:[#allocation2 + $0x58] sm:$0xff] %v3036
        %3069 = vst [vmem:[#allocation2 + $0x60] sm:$0xff] %v3037
        %3070 = vst [vmem:[#allocation2 + $0x68] sm:$0xff] %v3038
        %3071 = vst [vmem:[#allocation2 + $0x70] sm:$0xff] %v3039
        %3072 = vst [vmem:[#allocation2 + $0x78] sm:$0xff] %v3040
        %3073 = vst [vmem:[#allocation2 + $0x80] sm:$0xff] %v3041
        %3074 = vst [vmem:[#allocation2 + $0x88] sm:$0xff] %v3042
        %3075 = vst [vmem:[#allocation2 + $0x90] sm:$0xff] %v3043
        %3076 = vst [vmem:[#allocation2 + $0x98] sm:$0xff] %v3044
        %3077 = vst [vmem:[#allocation2 + $0xa0] sm:$0xff] %v3045
        %3078 = vst [vmem:[#allocation2 + $0xa8] sm:$0xff] %v3046
        %3079 = vst [vmem:[#allocation2 + $0xb0] sm:$0xff] %v3047
        %3080 = vst [vmem:[#allocation2 + $0xb8] sm:$0xff] %v3048
        %3081 = vst [vmem:[#allocation2 + $0xc0] sm:$0xff] %v3049
        %3082 = vst [vmem:[#allocation2 + $0xc8] sm:$0xff] %v3050
        %3083 = vst [vmem:[#allocation2 + $0xd0] sm:$0xff] %v3051
        %3084 = vst [vmem:[#allocation2 + $0xd8] sm:$0xff] %v3052
        %3085 = vst [vmem:[#allocation2 + $0xe0] sm:$0xff] %v3053
        %3086 = vst [vmem:[#allocation2 + $0xe8] sm:$0xff] %v3054
        %3087 = vst [vmem:[#allocation2 + $0xf0] sm:$0xff] %v3055
        %3088 = vst [vmem:[#allocation2 + $0xf8] sm:$0xff] %v3056
        %s3089 = scalar_lea.vmem %s1, 320
        %v3090 = vld [vmem:[%s3089] sm:$0xf]
        %v3091 = vld [vmem:[%s3089 + $0x4] sm:$0xf]
        %v3092 = vld [vmem:[%s3089 + $0x8] sm:$0xf]
        %v3093 = vld [vmem:[%s3089 + $0xc] sm:$0xf]
        %v3094 = vld [vmem:[%s3089 + $0x10] sm:$0xf]
        %v3095 = vld [vmem:[%s3089 + $0x14] sm:$0xf]
        %v3096 = vld [vmem:[%s3089 + $0x18] sm:$0xf]
        %v3097 = vld [vmem:[%s3089 + $0x1c] sm:$0xf]
        %v3098 = vld [vmem:[%s3089 + $0x20] sm:$0xf]
        %v3099 = vld [vmem:[%s3089 + $0x24] sm:$0xf]
        %v3100 = vld [vmem:[%s3089 + $0x28] sm:$0xf]
        %v3101 = vld [vmem:[%s3089 + $0x2c] sm:$0xf]
        %v3102 = vld [vmem:[%s3089 + $0x30] sm:$0xf]
        %v3103 = vld [vmem:[%s3089 + $0x34] sm:$0xf]
        %v3104 = vld [vmem:[%s3089 + $0x38] sm:$0xf]
        %v3105 = vld [vmem:[%s3089 + $0x3c] sm:$0xf]
        %v3122 = vunpack.c.l.b16 %v3090
        %v3123 = vunpack.c.l.b16 %v3091
        %v3124 = vunpack.c.l.b16 %v3092
        %v3125 = vunpack.c.l.b16 %v3093
        %v3126 = vunpack.c.l.b16 %v3094
        %v3127 = vunpack.c.l.b16 %v3095
        %v3128 = vunpack.c.l.b16 %v3096
        %v3129 = vunpack.c.l.b16 %v3097
        %v3130 = vunpack.c.l.b16 %v3098
        %v3131 = vunpack.c.l.b16 %v3099
        %v3132 = vunpack.c.l.b16 %v3100
        %v3133 = vunpack.c.l.b16 %v3101
        %v3134 = vunpack.c.l.b16 %v3102
        %v3135 = vunpack.c.l.b16 %v3103
        %v3136 = vunpack.c.l.b16 %v3104
        %v3137 = vunpack.c.l.b16 %v3105
        %v3138 = vpack.c.b16 %v3123, %v3122
        %v3139 = vpack.c.b16 %v3125, %v3124
        %v3140 = vpack.c.b16 %v3127, %v3126
        %v3141 = vpack.c.b16 %v3129, %v3128
        %v3142 = vpack.c.b16 %v3131, %v3130
        %v3143 = vpack.c.b16 %v3133, %v3132
        %v3144 = vpack.c.b16 %v3135, %v3134
        %v3145 = vpack.c.b16 %v3137, %v3136
        %3154 = vmatprep.subr.bf16.mxu0 0
        %3155 = vmatpush1.bf16.msra.mxu0 %v3138
        %3156 = vmatprep.subr.bf16.mxu0 0
        %3157 = vmatpush1.bf16.msra.mxu0 %v3139
        %3158 = vmatprep.subr.bf16.mxu0 0
        %3159 = vmatpush1.bf16.msra.mxu0 %v3140
        %3160 = vmatprep.subr.bf16.mxu0 0
        %3161 = vmatpush1.bf16.msra.mxu0 %v3141
        %3162 = vmatprep.subr.bf16.mxu0 0
        %3163 = vmatpush1.bf16.msra.mxu0 %v3142
        %3164 = vmatprep.subr.bf16.mxu0 0
        %3165 = vmatpush1.bf16.msra.mxu0 %v3143
        %3166 = vmatprep.subr.bf16.mxu0 0
        %3167 = vmatpush1.bf16.msra.mxu0 %v3144
        %3168 = vmatprep.subr.bf16.mxu0 0
        %3169 = vmatpush1.bf16.msra.mxu0 %v3145
        %3170 = vmatprep.subr.bf16.mxu0 0
        %3171 = vmatpush1.bf16.msra.mxu0 0
        %3172 = vmatprep.subr.bf16.mxu0 0
        %3173 = vmatpush1.bf16.msra.mxu0 0
        %3174 = vmatprep.subr.bf16.mxu0 0
        %3175 = vmatpush1.bf16.msra.mxu0 0
        %3176 = vmatprep.subr.bf16.mxu0 0
        %3177 = vmatpush1.bf16.msra.mxu0 0
        %3178 = vmatprep.subr.bf16.mxu0 0
        %3179 = vmatpush1.bf16.msra.mxu0 0
        %3180 = vmatprep.subr.bf16.mxu0 0
        %3181 = vmatpush1.bf16.msra.mxu0 0
        %3182 = vmatprep.subr.bf16.mxu0 0
        %3183 = vmatpush1.bf16.msra.mxu0 0
        %3184 = vmatprep.subr.bf16.mxu0 0
        %3185 = vmatpush1.bf16.msra.mxu0 0
        %3186 = vmatprep.mubr.bf16.mxu0 0
        %3187 = vmatmul.mubr.bf16.gmra.mrb[0].mxu0 %v1562
        %v3188 = vpop.f32.mrb[0].mxu0
        %v3189 = vadd.f32 0.0, %v3188
        %v3190 = vpop.f32.mrb[0].mxu0
        %v3191 = vpop.f32.mrb[0].mxu0
        %v3192 = vadd.f32 0.0, %v3191
        %v3193 = vpop.f32.mrb[0].mxu0
        %3194 = vmatprep.mubr.bf16.mxu0 0
        %3195 = vmatmul.mubr.bf16.gmra.mrb[0].mxu0 %v1563
        %v3196 = vpop.f32.mrb[0].mxu0
        %v3197 = vadd.f32 0.0, %v3196
        %v3198 = vpop.f32.mrb[0].mxu0
        %v3199 = vpop.f32.mrb[0].mxu0
        %v3200 = vadd.f32 0.0, %v3199
        %v3201 = vpop.f32.mrb[0].mxu0
        %3202 = vmatprep.mubr.bf16.mxu0 0
        %3203 = vmatmul.mubr.bf16.gmra.mrb[0].mxu0 %v1564
        %v3204 = vpop.f32.mrb[0].mxu0
        %v3205 = vadd.f32 0.0, %v3204
        %v3206 = vpop.f32.mrb[0].mxu0
        %v3207 = vpop.f32.mrb[0].mxu0
        %v3208 = vadd.f32 0.0, %v3207
        %v3209 = vpop.f32.mrb[0].mxu0
        %3210 = vmatprep.mubr.bf16.mxu0 0
        %3211 = vmatmul.mubr.bf16.gmra.mrb[0].mxu0 %v1565
        %v3212 = vpop.f32.mrb[0].mxu0
        %v3213 = vadd.f32 0.0, %v3212
        %v3214 = vpop.f32.mrb[0].mxu0
        %v3215 = vpop.f32.mrb[0].mxu0
        %v3216 = vadd.f32 0.0, %v3215
        %v3217 = vpop.f32.mrb[0].mxu0
        %3218 = vmatprep.mubr.bf16.mxu0 0
        %3219 = vmatmul.mubr.bf16.gmra.mrb[0].mxu0 %v1566
        %v3220 = vpop.f32.mrb[0].mxu0
        %v3221 = vadd.f32 0.0, %v3220
        %v3222 = vpop.f32.mrb[0].mxu0
        %v3223 = vpop.f32.mrb[0].mxu0
        %v3224 = vadd.f32 0.0, %v3223
        %v3225 = vpop.f32.mrb[0].mxu0
        %3226 = vmatprep.mubr.bf16.mxu0 0
        %3227 = vmatmul.mubr.bf16.gmra.mrb[0].mxu0 %v1567
        %v3228 = vpop.f32.mrb[0].mxu0
        %v3229 = vadd.f32 0.0, %v3228
        %v3230 = vpop.f32.mrb[0].mxu0
        %v3231 = vpop.f32.mrb[0].mxu0
        %v3232 = vadd.f32 0.0, %v3231
        %v3233 = vpop.f32.mrb[0].mxu0
        %3234 = vmatprep.mubr.bf16.mxu0 0
        %3235 = vmatmul.mubr.bf16.gmra.mrb[0].mxu0 %v1568
        %v3236 = vpop.f32.mrb[0].mxu0
        %v3237 = vadd.f32 0.0, %v3236
        %v3238 = vpop.f32.mrb[0].mxu0
        %v3239 = vpop.f32.mrb[0].mxu0
        %v3240 = vadd.f32 0.0, %v3239
        %v3241 = vpop.f32.mrb[0].mxu0
        %3242 = vmatprep.mubr.bf16.mxu0 0
        %3243 = vmatmul.mubr.bf16.gmra.mrb[0].mxu0 %v1569
        %v3244 = vpop.f32.mrb[0].mxu0
        %v3245 = vadd.f32 0.0, %v3244
        %v3246 = vpop.f32.mrb[0].mxu0
        %v3247 = vpop.f32.mrb[0].mxu0
        %v3248 = vadd.f32 0.0, %v3247
        %v3249 = vpop.f32.mrb[0].mxu0
        %3250 = vmatprep.mubr.bf16.mxu0 0
        %3251 = vmatmul.mubr.bf16.gmra.mrb[0].mxu0 %v1570
        %v3252 = vpop.f32.mrb[0].mxu0
        %v3253 = vadd.f32 0.0, %v3252
        %v3254 = vpop.f32.mrb[0].mxu0
        %v3255 = vpop.f32.mrb[0].mxu0
        %v3256 = vadd.f32 0.0, %v3255
        %v3257 = vpop.f32.mrb[0].mxu0
        %3258 = vmatprep.mubr.bf16.mxu0 0
        %3259 = vmatmul.mubr.bf16.gmra.mrb[0].mxu0 %v1571
        %v3260 = vpop.f32.mrb[0].mxu0
        %v3261 = vadd.f32 0.0, %v3260
        %v3262 = vpop.f32.mrb[0].mxu0
        %v3263 = vpop.f32.mrb[0].mxu0
        %v3264 = vadd.f32 0.0, %v3263
        %v3265 = vpop.f32.mrb[0].mxu0
        %3266 = vmatprep.mubr.bf16.mxu0 0
        %3267 = vmatmul.mubr.bf16.gmra.mrb[0].mxu0 %v1572
        %v3268 = vpop.f32.mrb[0].mxu0
        %v3269 = vadd.f32 0.0, %v3268
        %v3270 = vpop.f32.mrb[0].mxu0
        %v3271 = vpop.f32.mrb[0].mxu0
        %v3272 = vadd.f32 0.0, %v3271
        %v3273 = vpop.f32.mrb[0].mxu0
        %3274 = vmatprep.mubr.bf16.mxu0 0
        %3275 = vmatmul.mubr.bf16.gmra.mrb[0].mxu0 %v1573
        %v3276 = vpop.f32.mrb[0].mxu0
        %v3277 = vadd.f32 0.0, %v3276
        %v3278 = vpop.f32.mrb[0].mxu0
        %v3279 = vpop.f32.mrb[0].mxu0
        %v3280 = vadd.f32 0.0, %v3279
        %v3281 = vpop.f32.mrb[0].mxu0
        %3282 = vmatprep.mubr.bf16.mxu0 0
        %3283 = vmatmul.mubr.bf16.gmra.mrb[0].mxu0 %v1574
        %v3284 = vpop.f32.mrb[0].mxu0
        %v3285 = vadd.f32 0.0, %v3284
        %v3286 = vpop.f32.mrb[0].mxu0
        %v3287 = vpop.f32.mrb[0].mxu0
        %v3288 = vadd.f32 0.0, %v3287
        %v3289 = vpop.f32.mrb[0].mxu0
        %3290 = vmatprep.mubr.bf16.mxu0 0
        %3291 = vmatmul.mubr.bf16.gmra.mrb[0].mxu0 %v1575
        %v3292 = vpop.f32.mrb[0].mxu0
        %v3293 = vadd.f32 0.0, %v3292
        %v3294 = vpop.f32.mrb[0].mxu0
        %v3295 = vpop.f32.mrb[0].mxu0
        %v3296 = vadd.f32 0.0, %v3295
        %v3297 = vpop.f32.mrb[0].mxu0
        %3298 = vmatprep.mubr.bf16.mxu0 0
        %3299 = vmatmul.mubr.bf16.gmra.mrb[0].mxu0 %v1576
        %v3300 = vpop.f32.mrb[0].mxu0
        %v3301 = vadd.f32 0.0, %v3300
        %v3302 = vpop.f32.mrb[0].mxu0
        %v3303 = vpop.f32.mrb[0].mxu0
        %v3304 = vadd.f32 0.0, %v3303
        %v3305 = vpop.f32.mrb[0].mxu0
        %3306 = vmatprep.mubr.bf16.mxu0 0
        %3307 = vmatmul.mubr.bf16.gmra.mrb[0].mxu0 %v1561
        %v3308 = vpop.f32.mrb[0].mxu0
        %v3309 = vadd.f32 0.0, %v3308
        %v3310 = vpop.f32.mrb[0].mxu0
        %v3311 = vpop.f32.mrb[0].mxu0
        %v3312 = vadd.f32 0.0, %v3311
        %v3313 = vpop.f32.mrb[0].mxu0
        %3314 = vdwg.mxu0
        %s3315 = scalar_lea.vmem %s7, 1280
        %v3316 = vld [vmem:[%s3315] sm:$0xff]
        %v3317 = vld [vmem:[%s3315 + $0x8] sm:$0xff]
        %v3318 = vld [vmem:[%s3315 + $0x10] sm:$0xff]
        %v3319 = vld [vmem:[%s3315 + $0x18] sm:$0xff]
        %v3320 = vld [vmem:[%s3315 + $0x20] sm:$0xff]
        %v3321 = vld [vmem:[%s3315 + $0x28] sm:$0xff]
        %v3322 = vld [vmem:[%s3315 + $0x30] sm:$0xff]
        %v3323 = vld [vmem:[%s3315 + $0x38] sm:$0xff]
        %v3324 = vld [vmem:[%s3315 + $0x40] sm:$0xff]
        %v3325 = vld [vmem:[%s3315 + $0x48] sm:$0xff]
        %v3326 = vld [vmem:[%s3315 + $0x50] sm:$0xff]
        %v3327 = vld [vmem:[%s3315 + $0x58] sm:$0xff]
        %v3328 = vld [vmem:[%s3315 + $0x60] sm:$0xff]
        %v3329 = vld [vmem:[%s3315 + $0x68] sm:$0xff]
        %v3330 = vld [vmem:[%s3315 + $0x70] sm:$0xff]
        %v3331 = vld [vmem:[%s3315 + $0x78] sm:$0xff]
        %v3332 = vld [vmem:[%s3315 + $0x80] sm:$0xff]
        %v3333 = vld [vmem:[%s3315 + $0x88] sm:$0xff]
        %v3334 = vld [vmem:[%s3315 + $0x90] sm:$0xff]
        %v3335 = vld [vmem:[%s3315 + $0x98] sm:$0xff]
        %v3336 = vld [vmem:[%s3315 + $0xa0] sm:$0xff]
        %v3337 = vld [vmem:[%s3315 + $0xa8] sm:$0xff]
        %v3338 = vld [vmem:[%s3315 + $0xb0] sm:$0xff]
        %v3339 = vld [vmem:[%s3315 + $0xb8] sm:$0xff]
        %v3340 = vld [vmem:[%s3315 + $0xc0] sm:$0xff]
        %v3341 = vld [vmem:[%s3315 + $0xc8] sm:$0xff]
        %v3342 = vld [vmem:[%s3315 + $0xd0] sm:$0xff]
        %v3343 = vld [vmem:[%s3315 + $0xd8] sm:$0xff]
        %v3344 = vld [vmem:[%s3315 + $0xe0] sm:$0xff]
        %v3345 = vld [vmem:[%s3315 + $0xe8] sm:$0xff]
        %v3346 = vld [vmem:[%s3315 + $0xf0] sm:$0xff]
        %v3347 = vld [vmem:[%s3315 + $0xf8] sm:$0xff]
        %3349 = vset.pattern.permute.xlu0 0
        %3350 = vperm.xlu0 %3349, %v3316
        %v3351 = vpop.permute.xlu0 %3350
        %3354 = vset.pattern.permute.xlu0 0
        %3355 = vperm.xlu0 %3354, %v3317
        %v3356 = vpop.permute.xlu0 %3355
        %3359 = vset.pattern.permute.xlu0 0
        %3360 = vperm.xlu0 %3359, %v3318
        %v3361 = vpop.permute.xlu0 %3360
        %3364 = vset.pattern.permute.xlu0 0
        %3365 = vperm.xlu0 %3364, %v3319
        %v3366 = vpop.permute.xlu0 %3365
        %3369 = vset.pattern.permute.xlu0 0
        %3370 = vperm.xlu0 %3369, %v3320
        %v3371 = vpop.permute.xlu0 %3370
        %3374 = vset.pattern.permute.xlu0 0
        %3375 = vperm.xlu0 %3374, %v3321
        %v3376 = vpop.permute.xlu0 %3375
        %3379 = vset.pattern.permute.xlu0 0
        %3380 = vperm.xlu0 %3379, %v3322
        %v3381 = vpop.permute.xlu0 %3380
        %3384 = vset.pattern.permute.xlu0 0
        %3385 = vperm.xlu0 %3384, %v3323
        %v3386 = vpop.permute.xlu0 %3385
        %3389 = vset.pattern.permute.xlu0 0
        %3390 = vperm.xlu0 %3389, %v3324
        %v3391 = vpop.permute.xlu0 %3390
        %3394 = vset.pattern.permute.xlu0 0
        %3395 = vperm.xlu0 %3394, %v3325
        %v3396 = vpop.permute.xlu0 %3395
        %3399 = vset.pattern.permute.xlu0 0
        %3400 = vperm.xlu0 %3399, %v3326
        %v3401 = vpop.permute.xlu0 %3400
        %3404 = vset.pattern.permute.xlu0 0
        %3405 = vperm.xlu0 %3404, %v3327
        %v3406 = vpop.permute.xlu0 %3405
        %3409 = vset.pattern.permute.xlu0 0
        %3410 = vperm.xlu0 %3409, %v3328
        %v3411 = vpop.permute.xlu0 %3410
        %3414 = vset.pattern.permute.xlu0 0
        %3415 = vperm.xlu0 %3414, %v3329
        %v3416 = vpop.permute.xlu0 %3415
        %3419 = vset.pattern.permute.xlu0 0
        %3420 = vperm.xlu0 %3419, %v3330
        %v3421 = vpop.permute.xlu0 %3420
        %3424 = vset.pattern.permute.xlu0 0
        %3425 = vperm.xlu0 %3424, %v3331
        %v3426 = vpop.permute.xlu0 %3425
        %3429 = vset.pattern.permute.xlu0 0
        %3430 = vperm.xlu0 %3429, %v3332
        %v3431 = vpop.permute.xlu0 %3430
        %3434 = vset.pattern.permute.xlu0 0
        %3435 = vperm.xlu0 %3434, %v3333
        %v3436 = vpop.permute.xlu0 %3435
        %3439 = vset.pattern.permute.xlu0 0
        %3440 = vperm.xlu0 %3439, %v3334
        %v3441 = vpop.permute.xlu0 %3440
        %3444 = vset.pattern.permute.xlu0 0
        %3445 = vperm.xlu0 %3444, %v3335
        %v3446 = vpop.permute.xlu0 %3445
        %3449 = vset.pattern.permute.xlu0 0
        %3450 = vperm.xlu0 %3449, %v3336
        %v3451 = vpop.permute.xlu0 %3450
        %3454 = vset.pattern.permute.xlu0 0
        %3455 = vperm.xlu0 %3454, %v3337
        %v3456 = vpop.permute.xlu0 %3455
        %3459 = vset.pattern.permute.xlu0 0
        %3460 = vperm.xlu0 %3459, %v3338
        %v3461 = vpop.permute.xlu0 %3460
        %3464 = vset.pattern.permute.xlu0 0
        %3465 = vperm.xlu0 %3464, %v3339
        %v3466 = vpop.permute.xlu0 %3465
        %3469 = vset.pattern.permute.xlu0 0
        %3470 = vperm.xlu0 %3469, %v3340
        %v3471 = vpop.permute.xlu0 %3470
        %3474 = vset.pattern.permute.xlu0 0
        %3475 = vperm.xlu0 %3474, %v3341
        %v3476 = vpop.permute.xlu0 %3475
        %3479 = vset.pattern.permute.xlu0 0
        %3480 = vperm.xlu0 %3479, %v3342
        %v3481 = vpop.permute.xlu0 %3480
        %3484 = vset.pattern.permute.xlu0 0
        %3485 = vperm.xlu0 %3484, %v3343
        %v3486 = vpop.permute.xlu0 %3485
        %3489 = vset.pattern.permute.xlu0 0
        %3490 = vperm.xlu0 %3489, %v3344
        %v3491 = vpop.permute.xlu0 %3490
        %3494 = vset.pattern.permute.xlu0 0
        %3495 = vperm.xlu0 %3494, %v3345
        %v3496 = vpop.permute.xlu0 %3495
        %3499 = vset.pattern.permute.xlu0 0
        %3500 = vperm.xlu0 %3499, %v3346
        %v3501 = vpop.permute.xlu0 %3500
        %3504 = vset.pattern.permute.xlu0 0
        %3505 = vperm.xlu0 %3504, %v3347
        %v3506 = vpop.permute.xlu0 %3505
        %v3508 = vmul.f32 %v3189, %v3351
        %v3509 = vmul.f32 %v3192, %v3356
        %v3510 = vmul.f32 %v3197, %v3361
        %v3511 = vmul.f32 %v3200, %v3366
        %v3512 = vmul.f32 %v3205, %v3371
        %v3513 = vmul.f32 %v3208, %v3376
        %v3514 = vmul.f32 %v3213, %v3381
        %v3515 = vmul.f32 %v3216, %v3386
        %v3516 = vmul.f32 %v3221, %v3391
        %v3517 = vmul.f32 %v3224, %v3396
        %v3518 = vmul.f32 %v3229, %v3401
        %v3519 = vmul.f32 %v3232, %v3406
        %v3520 = vmul.f32 %v3237, %v3411
        %v3521 = vmul.f32 %v3240, %v3416
        %v3522 = vmul.f32 %v3245, %v3421
        %v3523 = vmul.f32 %v3248, %v3426
        %v3524 = vmul.f32 %v3253, %v3431
        %v3525 = vmul.f32 %v3256, %v3436
        %v3526 = vmul.f32 %v3261, %v3441
        %v3527 = vmul.f32 %v3264, %v3446
        %v3528 = vmul.f32 %v3269, %v3451
        %v3529 = vmul.f32 %v3272, %v3456
        %v3530 = vmul.f32 %v3277, %v3461
        %v3531 = vmul.f32 %v3280, %v3466
        %v3532 = vmul.f32 %v3285, %v3471
        %v3533 = vmul.f32 %v3288, %v3476
        %v3534 = vmul.f32 %v3293, %v3481
        %v3535 = vmul.f32 %v3296, %v3486
        %v3536 = vmul.f32 %v3301, %v3491
        %v3537 = vmul.f32 %v3304, %v3496
        %v3538 = vmul.f32 %v3309, %v3501
        %v3539 = vmul.f32 %v3312, %v3506
        %v3540 = vld [vmem:[#allocation2] sm:$0xff]
        %v3541 = vld [vmem:[#allocation2 + $0x8] sm:$0xff]
        %v3542 = vld [vmem:[#allocation2 + $0x10] sm:$0xff]
        %v3543 = vld [vmem:[#allocation2 + $0x18] sm:$0xff]
        %v3544 = vld [vmem:[#allocation2 + $0x20] sm:$0xff]
        %v3545 = vld [vmem:[#allocation2 + $0x28] sm:$0xff]
        %v3546 = vld [vmem:[#allocation2 + $0x30] sm:$0xff]
        %v3547 = vld [vmem:[#allocation2 + $0x38] sm:$0xff]
        %v3548 = vld [vmem:[#allocation2 + $0x40] sm:$0xff]
        %v3549 = vld [vmem:[#allocation2 + $0x48] sm:$0xff]
        %v3550 = vld [vmem:[#allocation2 + $0x50] sm:$0xff]
        %v3551 = vld [vmem:[#allocation2 + $0x58] sm:$0xff]
        %v3552 = vld [vmem:[#allocation2 + $0x60] sm:$0xff]
        %v3553 = vld [vmem:[#allocation2 + $0x68] sm:$0xff]
        %v3554 = vld [vmem:[#allocation2 + $0x70] sm:$0xff]
        %v3555 = vld [vmem:[#allocation2 + $0x78] sm:$0xff]
        %v3556 = vld [vmem:[#allocation2 + $0x80] sm:$0xff]
        %v3557 = vld [vmem:[#allocation2 + $0x88] sm:$0xff]
        %v3558 = vld [vmem:[#allocation2 + $0x90] sm:$0xff]
        %v3559 = vld [vmem:[#allocation2 + $0x98] sm:$0xff]
        %v3560 = vld [vmem:[#allocation2 + $0xa0] sm:$0xff]
        %v3561 = vld [vmem:[#allocation2 + $0xa8] sm:$0xff]
        %v3562 = vld [vmem:[#allocation2 + $0xb0] sm:$0xff]
        %v3563 = vld [vmem:[#allocation2 + $0xb8] sm:$0xff]
        %v3564 = vld [vmem:[#allocation2 + $0xc0] sm:$0xff]
        %v3565 = vld [vmem:[#allocation2 + $0xc8] sm:$0xff]
        %v3566 = vld [vmem:[#allocation2 + $0xd0] sm:$0xff]
        %v3567 = vld [vmem:[#allocation2 + $0xd8] sm:$0xff]
        %v3568 = vld [vmem:[#allocation2 + $0xe0] sm:$0xff]
        %v3569 = vld [vmem:[#allocation2 + $0xe8] sm:$0xff]
        %v3570 = vld [vmem:[#allocation2 + $0xf0] sm:$0xff]
        %v3571 = vld [vmem:[#allocation2 + $0xf8] sm:$0xff]
        %v3572 = vadd.f32 %v3540, %v3508
        %v3573 = vadd.f32 %v3541, %v3509
        %v3574 = vadd.f32 %v3542, %v3510
        %v3575 = vadd.f32 %v3543, %v3511
        %v3576 = vadd.f32 %v3544, %v3512
        %v3577 = vadd.f32 %v3545, %v3513
        %v3578 = vadd.f32 %v3546, %v3514
        %v3579 = vadd.f32 %v3547, %v3515
        %v3580 = vadd.f32 %v3548, %v3516
        %v3581 = vadd.f32 %v3549, %v3517
        %v3582 = vadd.f32 %v3550, %v3518
        %v3583 = vadd.f32 %v3551, %v3519
        %v3584 = vadd.f32 %v3552, %v3520
        %v3585 = vadd.f32 %v3553, %v3521
        %v3586 = vadd.f32 %v3554, %v3522
        %v3587 = vadd.f32 %v3555, %v3523
        %v3588 = vadd.f32 %v3556, %v3524
        %v3589 = vadd.f32 %v3557, %v3525
        %v3590 = vadd.f32 %v3558, %v3526
        %v3591 = vadd.f32 %v3559, %v3527
        %v3592 = vadd.f32 %v3560, %v3528
        %v3593 = vadd.f32 %v3561, %v3529
        %v3594 = vadd.f32 %v3562, %v3530
        %v3595 = vadd.f32 %v3563, %v3531
        %v3596 = vadd.f32 %v3564, %v3532
        %v3597 = vadd.f32 %v3565, %v3533
        %v3598 = vadd.f32 %v3566, %v3534
        %v3599 = vadd.f32 %v3567, %v3535
        %v3600 = vadd.f32 %v3568, %v3536
        %v3601 = vadd.f32 %v3569, %v3537
        %v3602 = vadd.f32 %v3570, %v3538
        %v3603 = vadd.f32 %v3571, %v3539
        %3604 = vst [vmem:[#allocation2] sm:$0xff] %v3572
        %3605 = vst [vmem:[#allocation2 + $0x8] sm:$0xff] %v3573
        %3606 = vst [vmem:[#allocation2 + $0x10] sm:$0xff] %v3574
        %3607 = vst [vmem:[#allocation2 + $0x18] sm:$0xff] %v3575
        %3608 = vst [vmem:[#allocation2 + $0x20] sm:$0xff] %v3576
        %3609 = vst [vmem:[#allocation2 + $0x28] sm:$0xff] %v3577
        %3610 = vst [vmem:[#allocation2 + $0x30] sm:$0xff] %v3578
        %3611 = vst [vmem:[#allocation2 + $0x38] sm:$0xff] %v3579
        %3612 = vst [vmem:[#allocation2 + $0x40] sm:$0xff] %v3580
        %3613 = vst [vmem:[#allocation2 + $0x48] sm:$0xff] %v3581
        %3614 = vst [vmem:[#allocation2 + $0x50] sm:$0xff] %v3582
        %3615 = vst [vmem:[#allocation2 + $0x58] sm:$0xff] %v3583
        %3616 = vst [vmem:[#allocation2 + $0x60] sm:$0xff] %v3584
        %3617 = vst [vmem:[#allocation2 + $0x68] sm:$0xff] %v3585
        %3618 = vst [vmem:[#allocation2 + $0x70] sm:$0xff] %v3586
        %3619 = vst [vmem:[#allocation2 + $0x78] sm:$0xff] %v3587
        %3620 = vst [vmem:[#allocation2 + $0x80] sm:$0xff] %v3588
        %3621 = vst [vmem:[#allocation2 + $0x88] sm:$0xff] %v3589
        %3622 = vst [vmem:[#allocation2 + $0x90] sm:$0xff] %v3590
        %3623 = vst [vmem:[#allocation2 + $0x98] sm:$0xff] %v3591
        %3624 = vst [vmem:[#allocation2 + $0xa0] sm:$0xff] %v3592
        %3625 = vst [vmem:[#allocation2 + $0xa8] sm:$0xff] %v3593
        %3626 = vst [vmem:[#allocation2 + $0xb0] sm:$0xff] %v3594
        %3627 = vst [vmem:[#allocation2 + $0xb8] sm:$0xff] %v3595
        %3628 = vst [vmem:[#allocation2 + $0xc0] sm:$0xff] %v3596
        %3629 = vst [vmem:[#allocation2 + $0xc8] sm:$0xff] %v3597
        %3630 = vst [vmem:[#allocation2 + $0xd0] sm:$0xff] %v3598
        %3631 = vst [vmem:[#allocation2 + $0xd8] sm:$0xff] %v3599
        %3632 = vst [vmem:[#allocation2 + $0xe0] sm:$0xff] %v3600
        %3633 = vst [vmem:[#allocation2 + $0xe8] sm:$0xff] %v3601
        %3634 = vst [vmem:[#allocation2 + $0xf0] sm:$0xff] %v3602
        %3635 = vst [vmem:[#allocation2 + $0xf8] sm:$0xff] %v3603
        %s3636 = scalar_lea.vmem %s1, 384
        %v3637 = vld [vmem:[%s3636] sm:$0xf]
        %v3638 = vld [vmem:[%s3636 + $0x4] sm:$0xf]
        %v3639 = vld [vmem:[%s3636 + $0x8] sm:$0xf]
        %v3640 = vld [vmem:[%s3636 + $0xc] sm:$0xf]
        %v3641 = vld [vmem:[%s3636 + $0x10] sm:$0xf]
        %v3642 = vld [vmem:[%s3636 + $0x14] sm:$0xf]
        %v3643 = vld [vmem:[%s3636 + $0x18] sm:$0xf]
        %v3644 = vld [vmem:[%s3636 + $0x1c] sm:$0xf]
        %v3645 = vld [vmem:[%s3636 + $0x20] sm:$0xf]
        %v3646 = vld [vmem:[%s3636 + $0x24] sm:$0xf]
        %v3647 = vld [vmem:[%s3636 + $0x28] sm:$0xf]
        %v3648 = vld [vmem:[%s3636 + $0x2c] sm:$0xf]
        %v3649 = vld [vmem:[%s3636 + $0x30] sm:$0xf]
        %v3650 = vld [vmem:[%s3636 + $0x34] sm:$0xf]
        %v3651 = vld [vmem:[%s3636 + $0x38] sm:$0xf]
        %v3652 = vld [vmem:[%s3636 + $0x3c] sm:$0xf]
        %v3669 = vunpack.c.l.b16 %v3637
        %v3670 = vunpack.c.l.b16 %v3638
        %v3671 = vunpack.c.l.b16 %v3639
        %v3672 = vunpack.c.l.b16 %v3640
        %v3673 = vunpack.c.l.b16 %v3641
        %v3674 = vunpack.c.l.b16 %v3642
        %v3675 = vunpack.c.l.b16 %v3643
        %v3676 = vunpack.c.l.b16 %v3644
        %v3677 = vunpack.c.l.b16 %v3645
        %v3678 = vunpack.c.l.b16 %v3646
        %v3679 = vunpack.c.l.b16 %v3647
        %v3680 = vunpack.c.l.b16 %v3648
        %v3681 = vunpack.c.l.b16 %v3649
        %v3682 = vunpack.c.l.b16 %v3650
        %v3683 = vunpack.c.l.b16 %v3651
        %v3684 = vunpack.c.l.b16 %v3652
        %v3685 = vpack.c.b16 %v3670, %v3669
        %v3686 = vpack.c.b16 %v3672, %v3671
        %v3687 = vpack.c.b16 %v3674, %v3673
        %v3688 = vpack.c.b16 %v3676, %v3675
        %v3689 = vpack.c.b16 %v3678, %v3677
        %v3690 = vpack.c.b16 %v3680, %v3679
        %v3691 = vpack.c.b16 %v3682, %v3681
        %v3692 = vpack.c.b16 %v3684, %v3683
        %3701 = vmatprep.subr.bf16.mxu0 0
        %3702 = vmatpush1.bf16.msra.mxu0 %v3685
        %3703 = vmatprep.subr.bf16.mxu0 0
        %3704 = vmatpush1.bf16.msra.mxu0 %v3686
        %3705 = vmatprep.subr.bf16.mxu0 0
        %3706 = vmatpush1.bf16.msra.mxu0 %v3687
        %3707 = vmatprep.subr.bf16.mxu0 0
        %3708 = vmatpush1.bf16.msra.mxu0 %v3688
        %3709 = vmatprep.subr.bf16.mxu0 0
        %3710 = vmatpush1.bf16.msra.mxu0 %v3689
        %3711 = vmatprep.subr.bf16.mxu0 0
        %3712 = vmatpush1.bf16.msra.mxu0 %v3690
        %3713 = vmatprep.subr.bf16.mxu0 0
        %3714 = vmatpush1.bf16.msra.mxu0 %v3691
        %3715 = vmatprep.subr.bf16.mxu0 0
        %3716 = vmatpush1.bf16.msra.mxu0 %v3692
        %3717 = vmatprep.subr.bf16.mxu0 0
        %3718 = vmatpush1.bf16.msra.mxu0 0
        %3719 = vmatprep.subr.bf16.mxu0 0
        %3720 = vmatpush1.bf16.msra.mxu0 0
        %3721 = vmatprep.subr.bf16.mxu0 0
        %3722 = vmatpush1.bf16.msra.mxu0 0
        %3723 = vmatprep.subr.bf16.mxu0 0
        %3724 = vmatpush1.bf16.msra.mxu0 0
        %3725 = vmatprep.subr.bf16.mxu0 0
        %3726 = vmatpush1.bf16.msra.mxu0 0
        %3727 = vmatprep.subr.bf16.mxu0 0
        %3728 = vmatpush1.bf16.msra.mxu0 0
        %3729 = vmatprep.subr.bf16.mxu0 0
        %3730 = vmatpush1.bf16.msra.mxu0 0
        %3731 = vmatprep.subr.bf16.mxu0 0
        %3732 = vmatpush1.bf16.msra.mxu0 0
        %3733 = vmatprep.mubr.bf16.mxu0 0
        %3734 = vmatmul.mubr.bf16.gmra.mrb[0].mxu0 %v438
        %v3735 = vpop.f32.mrb[0].mxu0
        %v3736 = vadd.f32 0.0, %v3735
        %v3737 = vpop.f32.mrb[0].mxu0
        %v3738 = vpop.f32.mrb[0].mxu0
        %v3739 = vadd.f32 0.0, %v3738
        %v3740 = vpop.f32.mrb[0].mxu0
        %3741 = vmatprep.mubr.bf16.mxu0 0
        %3742 = vmatmul.mubr.bf16.gmra.mrb[0].mxu0 %v439
        %v3743 = vpop.f32.mrb[0].mxu0
        %v3744 = vadd.f32 0.0, %v3743
        %v3745 = vpop.f32.mrb[0].mxu0
        %v3746 = vpop.f32.mrb[0].mxu0
        %v3747 = vadd.f32 0.0, %v3746
        %v3748 = vpop.f32.mrb[0].mxu0
        %3749 = vmatprep.mubr.bf16.mxu0 0
        %3750 = vmatmul.mubr.bf16.gmra.mrb[0].mxu0 %v440
        %v3751 = vpop.f32.mrb[0].mxu0
        %v3752 = vadd.f32 0.0, %v3751
        %v3753 = vpop.f32.mrb[0].mxu0
        %v3754 = vpop.f32.mrb[0].mxu0
        %v3755 = vadd.f32 0.0, %v3754
        %v3756 = vpop.f32.mrb[0].mxu0
        %3757 = vmatprep.mubr.bf16.mxu0 0
        %3758 = vmatmul.mubr.bf16.gmra.mrb[0].mxu0 %v441
        %v3759 = vpop.f32.mrb[0].mxu0
        %v3760 = vadd.f32 0.0, %v3759
        %v3761 = vpop.f32.mrb[0].mxu0
        %v3762 = vpop.f32.mrb[0].mxu0
        %v3763 = vadd.f32 0.0, %v3762
        %v3764 = vpop.f32.mrb[0].mxu0
        %3765 = vmatprep.mubr.bf16.mxu0 0
        %3766 = vmatmul.mubr.bf16.gmra.mrb[0].mxu0 %v442
        %v3767 = vpop.f32.mrb[0].mxu0
        %v3768 = vadd.f32 0.0, %v3767
        %v3769 = vpop.f32.mrb[0].mxu0
        %v3770 = vpop.f32.mrb[0].mxu0
        %v3771 = vadd.f32 0.0, %v3770
        %v3772 = vpop.f32.mrb[0].mxu0
        %3773 = vmatprep.mubr.bf16.mxu0 0
        %3774 = vmatmul.mubr.bf16.gmra.mrb[0].mxu0 %v443
        %v3775 = vpop.f32.mrb[0].mxu0
        %v3776 = vadd.f32 0.0, %v3775
        %v3777 = vpop.f32.mrb[0].mxu0
        %v3778 = vpop.f32.mrb[0].mxu0
        %v3779 = vadd.f32 0.0, %v3778
        %v3780 = vpop.f32.mrb[0].mxu0
        %3781 = vmatprep.mubr.bf16.mxu0 0
        %3782 = vmatmul.mubr.bf16.gmra.mrb[0].mxu0 %v444
        %v3783 = vpop.f32.mrb[0].mxu0
        %v3784 = vadd.f32 0.0, %v3783
        %v3785 = vpop.f32.mrb[0].mxu0
        %v3786 = vpop.f32.mrb[0].mxu0
        %v3787 = vadd.f32 0.0, %v3786
        %v3788 = vpop.f32.mrb[0].mxu0
        %3789 = vmatprep.mubr.bf16.mxu0 0
        %3790 = vmatmul.mubr.bf16.gmra.mrb[0].mxu0 %v445
        %v3791 = vpop.f32.mrb[0].mxu0
        %v3792 = vadd.f32 0.0, %v3791
        %v3793 = vpop.f32.mrb[0].mxu0
        %v3794 = vpop.f32.mrb[0].mxu0
        %v3795 = vadd.f32 0.0, %v3794
        %v3796 = vpop.f32.mrb[0].mxu0
        %3797 = vmatprep.mubr.bf16.mxu0 0
        %3798 = vmatmul.mubr.bf16.gmra.mrb[0].mxu0 %v446
        %v3799 = vpop.f32.mrb[0].mxu0
        %v3800 = vadd.f32 0.0, %v3799
        %v3801 = vpop.f32.mrb[0].mxu0
        %v3802 = vpop.f32.mrb[0].mxu0
        %v3803 = vadd.f32 0.0, %v3802
        %v3804 = vpop.f32.mrb[0].mxu0
        %3805 = vmatprep.mubr.bf16.mxu0 0
        %3806 = vmatmul.mubr.bf16.gmra.mrb[0].mxu0 %v447
        %v3807 = vpop.f32.mrb[0].mxu0
        %v3808 = vadd.f32 0.0, %v3807
        %v3809 = vpop.f32.mrb[0].mxu0
        %v3810 = vpop.f32.mrb[0].mxu0
        %v3811 = vadd.f32 0.0, %v3810
        %v3812 = vpop.f32.mrb[0].mxu0
        %3813 = vmatprep.mubr.bf16.mxu0 0
        %3814 = vmatmul.mubr.bf16.gmra.mrb[0].mxu0 %v448
        %v3815 = vpop.f32.mrb[0].mxu0
        %v3816 = vadd.f32 0.0, %v3815
        %v3817 = vpop.f32.mrb[0].mxu0
        %v3818 = vpop.f32.mrb[0].mxu0
        %v3819 = vadd.f32 0.0, %v3818
        %v3820 = vpop.f32.mrb[0].mxu0
        %3821 = vmatprep.mubr.bf16.mxu0 0
        %3822 = vmatmul.mubr.bf16.gmra.mrb[0].mxu0 %v449
        %v3823 = vpop.f32.mrb[0].mxu0
        %v3824 = vadd.f32 0.0, %v3823
        %v3825 = vpop.f32.mrb[0].mxu0
        %v3826 = vpop.f32.mrb[0].mxu0
        %v3827 = vadd.f32 0.0, %v3826
        %v3828 = vpop.f32.mrb[0].mxu0
        %3829 = vmatprep.mubr.bf16.mxu0 0
        %3830 = vmatmul.mubr.bf16.gmra.mrb[0].mxu0 %v450
        %v3831 = vpop.f32.mrb[0].mxu0
        %v3832 = vadd.f32 0.0, %v3831
        %v3833 = vpop.f32.mrb[0].mxu0
        %v3834 = vpop.f32.mrb[0].mxu0
        %v3835 = vadd.f32 0.0, %v3834
        %v3836 = vpop.f32.mrb[0].mxu0
        %3837 = vmatprep.mubr.bf16.mxu0 0
        %3838 = vmatmul.mubr.bf16.gmra.mrb[0].mxu0 %v451
        %v3839 = vpop.f32.mrb[0].mxu0
        %v3840 = vadd.f32 0.0, %v3839
        %v3841 = vpop.f32.mrb[0].mxu0
        %v3842 = vpop.f32.mrb[0].mxu0
        %v3843 = vadd.f32 0.0, %v3842
        %v3844 = vpop.f32.mrb[0].mxu0
        %3845 = vmatprep.mubr.bf16.mxu0 0
        %3846 = vmatmul.mubr.bf16.gmra.mrb[0].mxu0 %v436
        %v3847 = vpop.f32.mrb[0].mxu0
        %v3848 = vadd.f32 0.0, %v3847
        %v3849 = vpop.f32.mrb[0].mxu0
        %v3850 = vpop.f32.mrb[0].mxu0
        %v3851 = vadd.f32 0.0, %v3850
        %v3852 = vpop.f32.mrb[0].mxu0
        %3853 = vmatprep.mubr.bf16.mxu0 0
        %3854 = vmatmul.mubr.bf16.gmra.mrb[0].mxu0 %v437
        %v3855 = vpop.f32.mrb[0].mxu0
        %v3856 = vadd.f32 0.0, %v3855
        %v3857 = vpop.f32.mrb[0].mxu0
        %v3858 = vpop.f32.mrb[0].mxu0
        %v3859 = vadd.f32 0.0, %v3858
        %v3860 = vpop.f32.mrb[0].mxu0
        %3861 = vdwg.mxu0
        %s3862 = scalar_lea.vmem %s7, 1536
        %v3863 = vld [vmem:[%s3862] sm:$0xff]
        %v3864 = vld [vmem:[%s3862 + $0x8] sm:$0xff]
        %v3865 = vld [vmem:[%s3862 + $0x10] sm:$0xff]
        %v3866 = vld [vmem:[%s3862 + $0x18] sm:$0xff]
        %v3867 = vld [vmem:[%s3862 + $0x20] sm:$0xff]
        %v3868 = vld [vmem:[%s3862 + $0x28] sm:$0xff]
        %v3869 = vld [vmem:[%s3862 + $0x30] sm:$0xff]
        %v3870 = vld [vmem:[%s3862 + $0x38] sm:$0xff]
        %v3871 = vld [vmem:[%s3862 + $0x40] sm:$0xff]
        %v3872 = vld [vmem:[%s3862 + $0x48] sm:$0xff]
        %v3873 = vld [vmem:[%s3862 + $0x50] sm:$0xff]
        %v3874 = vld [vmem:[%s3862 + $0x58] sm:$0xff]
        %v3875 = vld [vmem:[%s3862 + $0x60] sm:$0xff]
        %v3876 = vld [vmem:[%s3862 + $0x68] sm:$0xff]
        %v3877 = vld [vmem:[%s3862 + $0x70] sm:$0xff]
        %v3878 = vld [vmem:[%s3862 + $0x78] sm:$0xff]
        %v3879 = vld [vmem:[%s3862 + $0x80] sm:$0xff]
        %v3880 = vld [vmem:[%s3862 + $0x88] sm:$0xff]
        %v3881 = vld [vmem:[%s3862 + $0x90] sm:$0xff]
        %v3882 = vld [vmem:[%s3862 + $0x98] sm:$0xff]
        %v3883 = vld [vmem:[%s3862 + $0xa0] sm:$0xff]
        %v3884 = vld [vmem:[%s3862 + $0xa8] sm:$0xff]
        %v3885 = vld [vmem:[%s3862 + $0xb0] sm:$0xff]
        %v3886 = vld [vmem:[%s3862 + $0xb8] sm:$0xff]
        %v3887 = vld [vmem:[%s3862 + $0xc0] sm:$0xff]
        %v3888 = vld [vmem:[%s3862 + $0xc8] sm:$0xff]
        %v3889 = vld [vmem:[%s3862 + $0xd0] sm:$0xff]
        %v3890 = vld [vmem:[%s3862 + $0xd8] sm:$0xff]
        %v3891 = vld [vmem:[%s3862 + $0xe0] sm:$0xff]
        %v3892 = vld [vmem:[%s3862 + $0xe8] sm:$0xff]
        %v3893 = vld [vmem:[%s3862 + $0xf0] sm:$0xff]
        %v3894 = vld [vmem:[%s3862 + $0xf8] sm:$0xff]
        %3896 = vset.pattern.permute.xlu0 0
        %3897 = vperm.xlu0 %3896, %v3863
        %v3898 = vpop.permute.xlu0 %3897
        %3901 = vset.pattern.permute.xlu0 0
        %3902 = vperm.xlu0 %3901, %v3864
        %v3903 = vpop.permute.xlu0 %3902
        %3906 = vset.pattern.permute.xlu0 0
        %3907 = vperm.xlu0 %3906, %v3865
        %v3908 = vpop.permute.xlu0 %3907
        %3911 = vset.pattern.permute.xlu0 0
        %3912 = vperm.xlu0 %3911, %v3866
        %v3913 = vpop.permute.xlu0 %3912
        %3916 = vset.pattern.permute.xlu0 0
        %3917 = vperm.xlu0 %3916, %v3867
        %v3918 = vpop.permute.xlu0 %3917
        %3921 = vset.pattern.permute.xlu0 0
        %3922 = vperm.xlu0 %3921, %v3868
        %v3923 = vpop.permute.xlu0 %3922
        %3926 = vset.pattern.permute.xlu0 0
        %3927 = vperm.xlu0 %3926, %v3869
        %v3928 = vpop.permute.xlu0 %3927
        %3931 = vset.pattern.permute.xlu0 0
        %3932 = vperm.xlu0 %3931, %v3870
        %v3933 = vpop.permute.xlu0 %3932
        %3936 = vset.pattern.permute.xlu0 0
        %3937 = vperm.xlu0 %3936, %v3871
        %v3938 = vpop.permute.xlu0 %3937
        %3941 = vset.pattern.permute.xlu0 0
        %3942 = vperm.xlu0 %3941, %v3872
        %v3943 = vpop.permute.xlu0 %3942
        %3946 = vset.pattern.permute.xlu0 0
        %3947 = vperm.xlu0 %3946, %v3873
        %v3948 = vpop.permute.xlu0 %3947
        %3951 = vset.pattern.permute.xlu0 0
        %3952 = vperm.xlu0 %3951, %v3874
        %v3953 = vpop.permute.xlu0 %3952
        %3956 = vset.pattern.permute.xlu0 0
        %3957 = vperm.xlu0 %3956, %v3875
        %v3958 = vpop.permute.xlu0 %3957
        %3961 = vset.pattern.permute.xlu0 0
        %3962 = vperm.xlu0 %3961, %v3876
        %v3963 = vpop.permute.xlu0 %3962
        %3966 = vset.pattern.permute.xlu0 0
        %3967 = vperm.xlu0 %3966, %v3877
        %v3968 = vpop.permute.xlu0 %3967
        %3971 = vset.pattern.permute.xlu0 0
        %3972 = vperm.xlu0 %3971, %v3878
        %v3973 = vpop.permute.xlu0 %3972
        %3976 = vset.pattern.permute.xlu0 0
        %3977 = vperm.xlu0 %3976, %v3879
        %v3978 = vpop.permute.xlu0 %3977
        %3981 = vset.pattern.permute.xlu0 0
        %3982 = vperm.xlu0 %3981, %v3880
        %v3983 = vpop.permute.xlu0 %3982
        %3986 = vset.pattern.permute.xlu0 0
        %3987 = vperm.xlu0 %3986, %v3881
        %v3988 = vpop.permute.xlu0 %3987
        %3991 = vset.pattern.permute.xlu0 0
        %3992 = vperm.xlu0 %3991, %v3882
        %v3993 = vpop.permute.xlu0 %3992
        %3996 = vset.pattern.permute.xlu0 0
        %3997 = vperm.xlu0 %3996, %v3883
        %v3998 = vpop.permute.xlu0 %3997
        %4001 = vset.pattern.permute.xlu0 0
        %4002 = vperm.xlu0 %4001, %v3884
        %v4003 = vpop.permute.xlu0 %4002
        %4006 = vset.pattern.permute.xlu0 0
        %4007 = vperm.xlu0 %4006, %v3885
        %v4008 = vpop.permute.xlu0 %4007
        %4011 = vset.pattern.permute.xlu0 0
        %4012 = vperm.xlu0 %4011, %v3886
        %v4013 = vpop.permute.xlu0 %4012
        %4016 = vset.pattern.permute.xlu0 0
        %4017 = vperm.xlu0 %4016, %v3887
        %v4018 = vpop.permute.xlu0 %4017
        %4021 = vset.pattern.permute.xlu0 0
        %4022 = vperm.xlu0 %4021, %v3888
        %v4023 = vpop.permute.xlu0 %4022
        %4026 = vset.pattern.permute.xlu0 0
        %4027 = vperm.xlu0 %4026, %v3889
        %v4028 = vpop.permute.xlu0 %4027
        %4031 = vset.pattern.permute.xlu0 0
        %4032 = vperm.xlu0 %4031, %v3890
        %v4033 = vpop.permute.xlu0 %4032
        %4036 = vset.pattern.permute.xlu0 0
        %4037 = vperm.xlu0 %4036, %v3891
        %v4038 = vpop.permute.xlu0 %4037
        %4041 = vset.pattern.permute.xlu0 0
        %4042 = vperm.xlu0 %4041, %v3892
        %v4043 = vpop.permute.xlu0 %4042
        %4046 = vset.pattern.permute.xlu0 0
        %4047 = vperm.xlu0 %4046, %v3893
        %v4048 = vpop.permute.xlu0 %4047
        %4051 = vset.pattern.permute.xlu0 0
        %4052 = vperm.xlu0 %4051, %v3894
        %v4053 = vpop.permute.xlu0 %4052
        %v4055 = vmul.f32 %v3736, %v3898
        %v4056 = vmul.f32 %v3739, %v3903
        %v4057 = vmul.f32 %v3744, %v3908
        %v4058 = vmul.f32 %v3747, %v3913
        %v4059 = vmul.f32 %v3752, %v3918
        %v4060 = vmul.f32 %v3755, %v3923
        %v4061 = vmul.f32 %v3760, %v3928
        %v4062 = vmul.f32 %v3763, %v3933
        %v4063 = vmul.f32 %v3768, %v3938
        %v4064 = vmul.f32 %v3771, %v3943
        %v4065 = vmul.f32 %v3776, %v3948
        %v4066 = vmul.f32 %v3779, %v3953
        %v4067 = vmul.f32 %v3784, %v3958
        %v4068 = vmul.f32 %v3787, %v3963
        %v4069 = vmul.f32 %v3792, %v3968
        %v4070 = vmul.f32 %v3795, %v3973
        %v4071 = vmul.f32 %v3800, %v3978
        %v4072 = vmul.f32 %v3803, %v3983
        %v4073 = vmul.f32 %v3808, %v3988
        %v4074 = vmul.f32 %v3811, %v3993
        %v4075 = vmul.f32 %v3816, %v3998
        %v4076 = vmul.f32 %v3819, %v4003
        %v4077 = vmul.f32 %v3824, %v4008
        %v4078 = vmul.f32 %v3827, %v4013
        %v4079 = vmul.f32 %v3832, %v4018
        %v4080 = vmul.f32 %v3835, %v4023
        %v4081 = vmul.f32 %v3840, %v4028
        %v4082 = vmul.f32 %v3843, %v4033
        %v4083 = vmul.f32 %v3848, %v4038
        %v4084 = vmul.f32 %v3851, %v4043
        %v4085 = vmul.f32 %v3856, %v4048
        %v4086 = vmul.f32 %v3859, %v4053
        %v4087 = vld [vmem:[#allocation2] sm:$0xff]
        %v4088 = vld [vmem:[#allocation2 + $0x8] sm:$0xff]
        %v4089 = vld [vmem:[#allocation2 + $0x10] sm:$0xff]
        %v4090 = vld [vmem:[#allocation2 + $0x18] sm:$0xff]
        %v4091 = vld [vmem:[#allocation2 + $0x20] sm:$0xff]
        %v4092 = vld [vmem:[#allocation2 + $0x28] sm:$0xff]
        %v4093 = vld [vmem:[#allocation2 + $0x30] sm:$0xff]
        %v4094 = vld [vmem:[#allocation2 + $0x38] sm:$0xff]
        %v4095 = vld [vmem:[#allocation2 + $0x40] sm:$0xff]
        %v4096 = vld [vmem:[#allocation2 + $0x48] sm:$0xff]
        %v4097 = vld [vmem:[#allocation2 + $0x50] sm:$0xff]
        %v4098 = vld [vmem:[#allocation2 + $0x58] sm:$0xff]
        %v4099 = vld [vmem:[#allocation2 + $0x60] sm:$0xff]
        %v4100 = vld [vmem:[#allocation2 + $0x68] sm:$0xff]
        %v4101 = vld [vmem:[#allocation2 + $0x70] sm:$0xff]
        %v4102 = vld [vmem:[#allocation2 + $0x78] sm:$0xff]
        %v4103 = vld [vmem:[#allocation2 + $0x80] sm:$0xff]
        %v4104 = vld [vmem:[#allocation2 + $0x88] sm:$0xff]
        %v4105 = vld [vmem:[#allocation2 + $0x90] sm:$0xff]
        %v4106 = vld [vmem:[#allocation2 + $0x98] sm:$0xff]
        %v4107 = vld [vmem:[#allocation2 + $0xa0] sm:$0xff]
        %v4108 = vld [vmem:[#allocation2 + $0xa8] sm:$0xff]
        %v4109 = vld [vmem:[#allocation2 + $0xb0] sm:$0xff]
        %v4110 = vld [vmem:[#allocation2 + $0xb8] sm:$0xff]
        %v4111 = vld [vmem:[#allocation2 + $0xc0] sm:$0xff]
        %v4112 = vld [vmem:[#allocation2 + $0xc8] sm:$0xff]
        %v4113 = vld [vmem:[#allocation2 + $0xd0] sm:$0xff]
        %v4114 = vld [vmem:[#allocation2 + $0xd8] sm:$0xff]
        %v4115 = vld [vmem:[#allocation2 + $0xe0] sm:$0xff]
        %v4116 = vld [vmem:[#allocation2 + $0xe8] sm:$0xff]
        %v4117 = vld [vmem:[#allocation2 + $0xf0] sm:$0xff]
        %v4118 = vld [vmem:[#allocation2 + $0xf8] sm:$0xff]
        %v4119 = vadd.f32 %v4087, %v4055
        %v4120 = vadd.f32 %v4088, %v4056
        %v4121 = vadd.f32 %v4089, %v4057
        %v4122 = vadd.f32 %v4090, %v4058
        %v4123 = vadd.f32 %v4091, %v4059
        %v4124 = vadd.f32 %v4092, %v4060
        %v4125 = vadd.f32 %v4093, %v4061
        %v4126 = vadd.f32 %v4094, %v4062
        %v4127 = vadd.f32 %v4095, %v4063
        %v4128 = vadd.f32 %v4096, %v4064
        %v4129 = vadd.f32 %v4097, %v4065
        %v4130 = vadd.f32 %v4098, %v4066
        %v4131 = vadd.f32 %v4099, %v4067
        %v4132 = vadd.f32 %v4100, %v4068
        %v4133 = vadd.f32 %v4101, %v4069
        %v4134 = vadd.f32 %v4102, %v4070
        %v4135 = vadd.f32 %v4103, %v4071
        %v4136 = vadd.f32 %v4104, %v4072
        %v4137 = vadd.f32 %v4105, %v4073
        %v4138 = vadd.f32 %v4106, %v4074
        %v4139 = vadd.f32 %v4107, %v4075
        %v4140 = vadd.f32 %v4108, %v4076
        %v4141 = vadd.f32 %v4109, %v4077
        %v4142 = vadd.f32 %v4110, %v4078
        %v4143 = vadd.f32 %v4111, %v4079
        %v4144 = vadd.f32 %v4112, %v4080
        %v4145 = vadd.f32 %v4113, %v4081
        %v4146 = vadd.f32 %v4114, %v4082
        %v4147 = vadd.f32 %v4115, %v4083
        %v4148 = vadd.f32 %v4116, %v4084
        %v4149 = vadd.f32 %v4117, %v4085
        %v4150 = vadd.f32 %v4118, %v4086
        %4151 = vst [vmem:[#allocation2] sm:$0xff] %v4119
        %4152 = vst [vmem:[#allocation2 + $0x8] sm:$0xff] %v4120
        %4153 = vst [vmem:[#allocation2 + $0x10] sm:$0xff] %v4121
        %4154 = vst [vmem:[#allocation2 + $0x18] sm:$0xff] %v4122
        %4155 = vst [vmem:[#allocation2 + $0x20] sm:$0xff] %v4123
        %4156 = vst [vmem:[#allocation2 + $0x28] sm:$0xff] %v4124
        %4157 = vst [vmem:[#allocation2 + $0x30] sm:$0xff] %v4125
        %4158 = vst [vmem:[#allocation2 + $0x38] sm:$0xff] %v4126
        %4159 = vst [vmem:[#allocation2 + $0x40] sm:$0xff] %v4127
        %4160 = vst [vmem:[#allocation2 + $0x48] sm:$0xff] %v4128
        %4161 = vst [vmem:[#allocation2 + $0x50] sm:$0xff] %v4129
        %4162 = vst [vmem:[#allocation2 + $0x58] sm:$0xff] %v4130
        %4163 = vst [vmem:[#allocation2 + $0x60] sm:$0xff] %v4131
        %4164 = vst [vmem:[#allocation2 + $0x68] sm:$0xff] %v4132
        %4165 = vst [vmem:[#allocation2 + $0x70] sm:$0xff] %v4133
        %4166 = vst [vmem:[#allocation2 + $0x78] sm:$0xff] %v4134
        %4167 = vst [vmem:[#allocation2 + $0x80] sm:$0xff] %v4135
        %4168 = vst [vmem:[#allocation2 + $0x88] sm:$0xff] %v4136
        %4169 = vst [vmem:[#allocation2 + $0x90] sm:$0xff] %v4137
        %4170 = vst [vmem:[#allocation2 + $0x98] sm:$0xff] %v4138
        %4171 = vst [vmem:[#allocation2 + $0xa0] sm:$0xff] %v4139
        %4172 = vst [vmem:[#allocation2 + $0xa8] sm:$0xff] %v4140
        %4173 = vst [vmem:[#allocation2 + $0xb0] sm:$0xff] %v4141
        %4174 = vst [vmem:[#allocation2 + $0xb8] sm:$0xff] %v4142
        %4175 = vst [vmem:[#allocation2 + $0xc0] sm:$0xff] %v4143
        %4176 = vst [vmem:[#allocation2 + $0xc8] sm:$0xff] %v4144
        %4177 = vst [vmem:[#allocation2 + $0xd0] sm:$0xff] %v4145
        %4178 = vst [vmem:[#allocation2 + $0xd8] sm:$0xff] %v4146
        %4179 = vst [vmem:[#allocation2 + $0xe0] sm:$0xff] %v4147
        %4180 = vst [vmem:[#allocation2 + $0xe8] sm:$0xff] %v4148
        %4181 = vst [vmem:[#allocation2 + $0xf0] sm:$0xff] %v4149
        %4182 = vst [vmem:[#allocation2 + $0xf8] sm:$0xff] %v4150
        %s4183 = scalar_lea.vmem %s1, 448
        %v4184 = vld [vmem:[%s4183] sm:$0xf]
        %v4185 = vld [vmem:[%s4183 + $0x4] sm:$0xf]
        %v4186 = vld [vmem:[%s4183 + $0x8] sm:$0xf]
        %v4187 = vld [vmem:[%s4183 + $0xc] sm:$0xf]
        %v4188 = vld [vmem:[%s4183 + $0x10] sm:$0xf]
        %v4189 = vld [vmem:[%s4183 + $0x14] sm:$0xf]
        %v4190 = vld [vmem:[%s4183 + $0x18] sm:$0xf]
        %v4191 = vld [vmem:[%s4183 + $0x1c] sm:$0xf]
        %v4192 = vld [vmem:[%s4183 + $0x20] sm:$0xf]
        %v4193 = vld [vmem:[%s4183 + $0x24] sm:$0xf]
        %v4194 = vld [vmem:[%s4183 + $0x28] sm:$0xf]
        %v4195 = vld [vmem:[%s4183 + $0x2c] sm:$0xf]
        %v4196 = vld [vmem:[%s4183 + $0x30] sm:$0xf]
        %v4197 = vld [vmem:[%s4183 + $0x34] sm:$0xf]
        %v4198 = vld [vmem:[%s4183 + $0x38] sm:$0xf]
        %v4199 = vld [vmem:[%s4183 + $0x3c] sm:$0xf]
        %v4216 = vunpack.c.l.b16 %v4184
        %v4217 = vunpack.c.l.b16 %v4185
        %v4218 = vunpack.c.l.b16 %v4186
        %v4219 = vunpack.c.l.b16 %v4187
        %v4220 = vunpack.c.l.b16 %v4188
        %v4221 = vunpack.c.l.b16 %v4189
        %v4222 = vunpack.c.l.b16 %v4190
        %v4223 = vunpack.c.l.b16 %v4191
        %v4224 = vunpack.c.l.b16 %v4192
        %v4225 = vunpack.c.l.b16 %v4193
        %v4226 = vunpack.c.l.b16 %v4194
        %v4227 = vunpack.c.l.b16 %v4195
        %v4228 = vunpack.c.l.b16 %v4196
        %v4229 = vunpack.c.l.b16 %v4197
        %v4230 = vunpack.c.l.b16 %v4198
        %v4231 = vunpack.c.l.b16 %v4199
        %v4232 = vpack.c.b16 %v4217, %v4216
        %v4233 = vpack.c.b16 %v4219, %v4218
        %v4234 = vpack.c.b16 %v4221, %v4220
        %v4235 = vpack.c.b16 %v4223, %v4222
        %v4236 = vpack.c.b16 %v4225, %v4224
        %v4237 = vpack.c.b16 %v4227, %v4226
        %v4238 = vpack.c.b16 %v4229, %v4228
        %v4239 = vpack.c.b16 %v4231, %v4230
        %4248 = vmatprep.subr.bf16.mxu0 0
        %4249 = vmatpush1.bf16.msra.mxu0 %v4232
        %4250 = vmatprep.subr.bf16.mxu0 0
        %4251 = vmatpush1.bf16.msra.mxu0 %v4233
        %4252 = vmatprep.subr.bf16.mxu0 0
        %4253 = vmatpush1.bf16.msra.mxu0 %v4234
        %4254 = vmatprep.subr.bf16.mxu0 0
        %4255 = vmatpush1.bf16.msra.mxu0 %v4235
        %4256 = vmatprep.subr.bf16.mxu0 0
        %4257 = vmatpush1.bf16.msra.mxu0 %v4236
        %4258 = vmatprep.subr.bf16.mxu0 0
        %4259 = vmatpush1.bf16.msra.mxu0 %v4237
        %4260 = vmatprep.subr.bf16.mxu0 0
        %4261 = vmatpush1.bf16.msra.mxu0 %v4238
        %4262 = vmatprep.subr.bf16.mxu0 0
        %4263 = vmatpush1.bf16.msra.mxu0 %v4239
        %4264 = vmatprep.subr.bf16.mxu0 0
        %4265 = vmatpush1.bf16.msra.mxu0 0
        %4266 = vmatprep.subr.bf16.mxu0 0
        %4267 = vmatpush1.bf16.msra.mxu0 0
        %4268 = vmatprep.subr.bf16.mxu0 0
        %4269 = vmatpush1.bf16.msra.mxu0 0
        %4270 = vmatprep.subr.bf16.mxu0 0
        %4271 = vmatpush1.bf16.msra.mxu0 0
        %4272 = vmatprep.subr.bf16.mxu0 0
        %4273 = vmatpush1.bf16.msra.mxu0 0
        %4274 = vmatprep.subr.bf16.mxu0 0
        %4275 = vmatpush1.bf16.msra.mxu0 0
        %4276 = vmatprep.subr.bf16.mxu0 0
        %4277 = vmatpush1.bf16.msra.mxu0 0
        %4278 = vmatprep.subr.bf16.mxu0 0
        %4279 = vmatpush1.bf16.msra.mxu0 0
        %4280 = vmatprep.mubr.bf16.mxu0 0
        %4281 = vmatmul.mubr.bf16.gmra.mrb[0].mxu0 %v935
        %v4282 = vpop.f32.mrb[0].mxu0
        %v4283 = vadd.f32 0.0, %v4282
        %v4284 = vpop.f32.mrb[0].mxu0
        %v4285 = vpop.f32.mrb[0].mxu0
        %v4286 = vadd.f32 0.0, %v4285
        %v4287 = vpop.f32.mrb[0].mxu0
        %4288 = vmatprep.mubr.bf16.mxu0 0
        %4289 = vmatmul.mubr.bf16.gmra.mrb[0].mxu0 %v936
        %v4290 = vpop.f32.mrb[0].mxu0
        %v4291 = vadd.f32 0.0, %v4290
        %v4292 = vpop.f32.mrb[0].mxu0
        %v4293 = vpop.f32.mrb[0].mxu0
        %v4294 = vadd.f32 0.0, %v4293
        %v4295 = vpop.f32.mrb[0].mxu0
        %4296 = vmatprep.mubr.bf16.mxu0 0
        %4297 = vmatmul.mubr.bf16.gmra.mrb[0].mxu0 %v937
        %v4298 = vpop.f32.mrb[0].mxu0
        %v4299 = vadd.f32 0.0, %v4298
        %v4300 = vpop.f32.mrb[0].mxu0
        %v4301 = vpop.f32.mrb[0].mxu0
        %v4302 = vadd.f32 0.0, %v4301
        %v4303 = vpop.f32.mrb[0].mxu0
        %4304 = vmatprep.mubr.bf16.mxu0 0
        %4305 = vmatmul.mubr.bf16.gmra.mrb[0].mxu0 %v938
        %v4306 = vpop.f32.mrb[0].mxu0
        %v4307 = vadd.f32 0.0, %v4306
        %v4308 = vpop.f32.mrb[0].mxu0
        %v4309 = vpop.f32.mrb[0].mxu0
        %v4310 = vadd.f32 0.0, %v4309
        %v4311 = vpop.f32.mrb[0].mxu0
        %4312 = vmatprep.mubr.bf16.mxu0 0
        %4313 = vmatmul.mubr.bf16.gmra.mrb[0].mxu0 %v939
        %v4314 = vpop.f32.mrb[0].mxu0
        %v4315 = vadd.f32 0.0, %v4314
        %v4316 = vpop.f32.mrb[0].mxu0
        %v4317 = vpop.f32.mrb[0].mxu0
        %v4318 = vadd.f32 0.0, %v4317
        %v4319 = vpop.f32.mrb[0].mxu0
        %4320 = vmatprep.mubr.bf16.mxu0 0
        %4321 = vmatmul.mubr.bf16.gmra.mrb[0].mxu0 %v940
        %v4322 = vpop.f32.mrb[0].mxu0
        %v4323 = vadd.f32 0.0, %v4322
        %v4324 = vpop.f32.mrb[0].mxu0
        %v4325 = vpop.f32.mrb[0].mxu0
        %v4326 = vadd.f32 0.0, %v4325
        %v4327 = vpop.f32.mrb[0].mxu0
        %4328 = vmatprep.mubr.bf16.mxu0 0
        %4329 = vmatmul.mubr.bf16.gmra.mrb[0].mxu0 %v941
        %v4330 = vpop.f32.mrb[0].mxu0
        %v4331 = vadd.f32 0.0, %v4330
        %v4332 = vpop.f32.mrb[0].mxu0
        %v4333 = vpop.f32.mrb[0].mxu0
        %v4334 = vadd.f32 0.0, %v4333
        %v4335 = vpop.f32.mrb[0].mxu0
        %4336 = vmatprep.mubr.bf16.mxu0 0
        %4337 = vmatmul.mubr.bf16.gmra.mrb[0].mxu0 %v942
        %v4338 = vpop.f32.mrb[0].mxu0
        %v4339 = vadd.f32 0.0, %v4338
        %v4340 = vpop.f32.mrb[0].mxu0
        %v4341 = vpop.f32.mrb[0].mxu0
        %v4342 = vadd.f32 0.0, %v4341
        %v4343 = vpop.f32.mrb[0].mxu0
        %4344 = vmatprep.mubr.bf16.mxu0 0
        %4345 = vmatmul.mubr.bf16.gmra.mrb[0].mxu0 %v943
        %v4346 = vpop.f32.mrb[0].mxu0
        %v4347 = vadd.f32 0.0, %v4346
        %v4348 = vpop.f32.mrb[0].mxu0
        %v4349 = vpop.f32.mrb[0].mxu0
        %v4350 = vadd.f32 0.0, %v4349
        %v4351 = vpop.f32.mrb[0].mxu0
        %4352 = vmatprep.mubr.bf16.mxu0 0
        %4353 = vmatmul.mubr.bf16.gmra.mrb[0].mxu0 %v944
        %v4354 = vpop.f32.mrb[0].mxu0
        %v4355 = vadd.f32 0.0, %v4354
        %v4356 = vpop.f32.mrb[0].mxu0
        %v4357 = vpop.f32.mrb[0].mxu0
        %v4358 = vadd.f32 0.0, %v4357
        %v4359 = vpop.f32.mrb[0].mxu0
        %4360 = vmatprep.mubr.bf16.mxu0 0
        %4361 = vmatmul.mubr.bf16.gmra.mrb[0].mxu0 %v945
        %v4362 = vpop.f32.mrb[0].mxu0
        %v4363 = vadd.f32 0.0, %v4362
        %v4364 = vpop.f32.mrb[0].mxu0
        %v4365 = vpop.f32.mrb[0].mxu0
        %v4366 = vadd.f32 0.0, %v4365
        %v4367 = vpop.f32.mrb[0].mxu0
        %4368 = vmatprep.mubr.bf16.mxu0 0
        %4369 = vmatmul.mubr.bf16.gmra.mrb[0].mxu0 %v946
        %v4370 = vpop.f32.mrb[0].mxu0
        %v4371 = vadd.f32 0.0, %v4370
        %v4372 = vpop.f32.mrb[0].mxu0
        %v4373 = vpop.f32.mrb[0].mxu0
        %v4374 = vadd.f32 0.0, %v4373
        %v4375 = vpop.f32.mrb[0].mxu0
        %4376 = vmatprep.mubr.bf16.mxu0 0
        %4377 = vmatmul.mubr.bf16.gmra.mrb[0].mxu0 %v947
        %v4378 = vpop.f32.mrb[0].mxu0
        %v4379 = vadd.f32 0.0, %v4378
        %v4380 = vpop.f32.mrb[0].mxu0
        %v4381 = vpop.f32.mrb[0].mxu0
        %v4382 = vadd.f32 0.0, %v4381
        %v4383 = vpop.f32.mrb[0].mxu0
        %4384 = vmatprep.mubr.bf16.mxu0 0
        %4385 = vmatmul.mubr.bf16.gmra.mrb[0].mxu0 %v948
        %v4386 = vpop.f32.mrb[0].mxu0
        %v4387 = vadd.f32 0.0, %v4386
        %v4388 = vpop.f32.mrb[0].mxu0
        %v4389 = vpop.f32.mrb[0].mxu0
        %v4390 = vadd.f32 0.0, %v4389
        %v4391 = vpop.f32.mrb[0].mxu0
        %4392 = vmatprep.mubr.bf16.mxu0 0
        %4393 = vmatmul.mubr.bf16.gmra.mrb[0].mxu0 %v933
        %v4394 = vpop.f32.mrb[0].mxu0
        %v4395 = vadd.f32 0.0, %v4394
        %v4396 = vpop.f32.mrb[0].mxu0
        %v4397 = vpop.f32.mrb[0].mxu0
        %v4398 = vadd.f32 0.0, %v4397
        %v4399 = vpop.f32.mrb[0].mxu0
        %4400 = vmatprep.mubr.bf16.mxu0 0
        %4401 = vmatmul.mubr.bf16.gmra.mrb[0].mxu0 %v934
        %v4402 = vpop.f32.mrb[0].mxu0
        %v4403 = vadd.f32 0.0, %v4402
        %v4404 = vpop.f32.mrb[0].mxu0
        %v4405 = vpop.f32.mrb[0].mxu0
        %v4406 = vadd.f32 0.0, %v4405
        %v4407 = vpop.f32.mrb[0].mxu0
        %4408 = vdwg.mxu0
        %s4409 = scalar_lea.vmem %s7, 1792
        %v4410 = vld [vmem:[%s4409] sm:$0xff]
        %v4411 = vld [vmem:[%s4409 + $0x8] sm:$0xff]
        %v4412 = vld [vmem:[%s4409 + $0x10] sm:$0xff]
        %v4413 = vld [vmem:[%s4409 + $0x18] sm:$0xff]
        %v4414 = vld [vmem:[%s4409 + $0x20] sm:$0xff]
        %v4415 = vld [vmem:[%s4409 + $0x28] sm:$0xff]
        %v4416 = vld [vmem:[%s4409 + $0x30] sm:$0xff]
        %v4417 = vld [vmem:[%s4409 + $0x38] sm:$0xff]
        %v4418 = vld [vmem:[%s4409 + $0x40] sm:$0xff]
        %v4419 = vld [vmem:[%s4409 + $0x48] sm:$0xff]
        %v4420 = vld [vmem:[%s4409 + $0x50] sm:$0xff]
        %v4421 = vld [vmem:[%s4409 + $0x58] sm:$0xff]
        %v4422 = vld [vmem:[%s4409 + $0x60] sm:$0xff]
        %v4423 = vld [vmem:[%s4409 + $0x68] sm:$0xff]
        %v4424 = vld [vmem:[%s4409 + $0x70] sm:$0xff]
        %v4425 = vld [vmem:[%s4409 + $0x78] sm:$0xff]
        %v4426 = vld [vmem:[%s4409 + $0x80] sm:$0xff]
        %v4427 = vld [vmem:[%s4409 + $0x88] sm:$0xff]
        %v4428 = vld [vmem:[%s4409 + $0x90] sm:$0xff]
        %v4429 = vld [vmem:[%s4409 + $0x98] sm:$0xff]
        %v4430 = vld [vmem:[%s4409 + $0xa0] sm:$0xff]
        %v4431 = vld [vmem:[%s4409 + $0xa8] sm:$0xff]
        %v4432 = vld [vmem:[%s4409 + $0xb0] sm:$0xff]
        %v4433 = vld [vmem:[%s4409 + $0xb8] sm:$0xff]
        %v4434 = vld [vmem:[%s4409 + $0xc0] sm:$0xff]
        %v4435 = vld [vmem:[%s4409 + $0xc8] sm:$0xff]
        %v4436 = vld [vmem:[%s4409 + $0xd0] sm:$0xff]
        %v4437 = vld [vmem:[%s4409 + $0xd8] sm:$0xff]
        %v4438 = vld [vmem:[%s4409 + $0xe0] sm:$0xff]
        %v4439 = vld [vmem:[%s4409 + $0xe8] sm:$0xff]
        %v4440 = vld [vmem:[%s4409 + $0xf0] sm:$0xff]
        %v4441 = vld [vmem:[%s4409 + $0xf8] sm:$0xff]
        %4443 = vset.pattern.permute.xlu0 0
        %4444 = vperm.xlu0 %4443, %v4410
        %v4445 = vpop.permute.xlu0 %4444
        %4448 = vset.pattern.permute.xlu0 0
        %4449 = vperm.xlu0 %4448, %v4411
        %v4450 = vpop.permute.xlu0 %4449
        %4453 = vset.pattern.permute.xlu0 0
        %4454 = vperm.xlu0 %4453, %v4412
        %v4455 = vpop.permute.xlu0 %4454
        %4458 = vset.pattern.permute.xlu0 0
        %4459 = vperm.xlu0 %4458, %v4413
        %v4460 = vpop.permute.xlu0 %4459
        %4463 = vset.pattern.permute.xlu0 0
        %4464 = vperm.xlu0 %4463, %v4414
        %v4465 = vpop.permute.xlu0 %4464
        %4468 = vset.pattern.permute.xlu0 0
        %4469 = vperm.xlu0 %4468, %v4415
        %v4470 = vpop.permute.xlu0 %4469
        %4473 = vset.pattern.permute.xlu0 0
        %4474 = vperm.xlu0 %4473, %v4416
        %v4475 = vpop.permute.xlu0 %4474
        %4478 = vset.pattern.permute.xlu0 0
        %4479 = vperm.xlu0 %4478, %v4417
        %v4480 = vpop.permute.xlu0 %4479
        %4483 = vset.pattern.permute.xlu0 0
        %4484 = vperm.xlu0 %4483, %v4418
        %v4485 = vpop.permute.xlu0 %4484
        %4488 = vset.pattern.permute.xlu0 0
        %4489 = vperm.xlu0 %4488, %v4419
        %v4490 = vpop.permute.xlu0 %4489
        %4493 = vset.pattern.permute.xlu0 0
        %4494 = vperm.xlu0 %4493, %v4420
        %v4495 = vpop.permute.xlu0 %4494
        %4498 = vset.pattern.permute.xlu0 0
        %4499 = vperm.xlu0 %4498, %v4421
        %v4500 = vpop.permute.xlu0 %4499
        %4503 = vset.pattern.permute.xlu0 0
        %4504 = vperm.xlu0 %4503, %v4422
        %v4505 = vpop.permute.xlu0 %4504
        %4508 = vset.pattern.permute.xlu0 0
        %4509 = vperm.xlu0 %4508, %v4423
        %v4510 = vpop.permute.xlu0 %4509
        %4513 = vset.pattern.permute.xlu0 0
        %4514 = vperm.xlu0 %4513, %v4424
        %v4515 = vpop.permute.xlu0 %4514
        %4518 = vset.pattern.permute.xlu0 0
        %4519 = vperm.xlu0 %4518, %v4425
        %v4520 = vpop.permute.xlu0 %4519
        %4523 = vset.pattern.permute.xlu0 0
        %4524 = vperm.xlu0 %4523, %v4426
        %v4525 = vpop.permute.xlu0 %4524
        %4528 = vset.pattern.permute.xlu0 0
        %4529 = vperm.xlu0 %4528, %v4427
        %v4530 = vpop.permute.xlu0 %4529
        %4533 = vset.pattern.permute.xlu0 0
        %4534 = vperm.xlu0 %4533, %v4428
        %v4535 = vpop.permute.xlu0 %4534
        %4538 = vset.pattern.permute.xlu0 0
        %4539 = vperm.xlu0 %4538, %v4429
        %v4540 = vpop.permute.xlu0 %4539
        %4543 = vset.pattern.permute.xlu0 0
        %4544 = vperm.xlu0 %4543, %v4430
        %v4545 = vpop.permute.xlu0 %4544
        %4548 = vset.pattern.permute.xlu0 0
        %4549 = vperm.xlu0 %4548, %v4431
        %v4550 = vpop.permute.xlu0 %4549
        %4553 = vset.pattern.permute.xlu0 0
        %4554 = vperm.xlu0 %4553, %v4432
        %v4555 = vpop.permute.xlu0 %4554
        %4558 = vset.pattern.permute.xlu0 0
        %4559 = vperm.xlu0 %4558, %v4433
        %v4560 = vpop.permute.xlu0 %4559
        %4563 = vset.pattern.permute.xlu0 0
        %4564 = vperm.xlu0 %4563, %v4434
        %v4565 = vpop.permute.xlu0 %4564
        %4568 = vset.pattern.permute.xlu0 0
        %4569 = vperm.xlu0 %4568, %v4435
        %v4570 = vpop.permute.xlu0 %4569
        %4573 = vset.pattern.permute.xlu0 0
        %4574 = vperm.xlu0 %4573, %v4436
        %v4575 = vpop.permute.xlu0 %4574
        %4578 = vset.pattern.permute.xlu0 0
        %4579 = vperm.xlu0 %4578, %v4437
        %v4580 = vpop.permute.xlu0 %4579
        %4583 = vset.pattern.permute.xlu0 0
        %4584 = vperm.xlu0 %4583, %v4438
        %v4585 = vpop.permute.xlu0 %4584
        %4588 = vset.pattern.permute.xlu0 0
        %4589 = vperm.xlu0 %4588, %v4439
        %v4590 = vpop.permute.xlu0 %4589
        %4593 = vset.pattern.permute.xlu0 0
        %4594 = vperm.xlu0 %4593, %v4440
        %v4595 = vpop.permute.xlu0 %4594
        %4598 = vset.pattern.permute.xlu0 0
        %4599 = vperm.xlu0 %4598, %v4441
        %v4600 = vpop.permute.xlu0 %4599
        %v4602 = vmul.f32 %v4283, %v4445
        %v4603 = vmul.f32 %v4286, %v4450
        %v4604 = vmul.f32 %v4291, %v4455
        %v4605 = vmul.f32 %v4294, %v4460
        %v4606 = vmul.f32 %v4299, %v4465
        %v4607 = vmul.f32 %v4302, %v4470
        %v4608 = vmul.f32 %v4307, %v4475
        %v4609 = vmul.f32 %v4310, %v4480
        %v4610 = vmul.f32 %v4315, %v4485
        %v4611 = vmul.f32 %v4318, %v4490
        %v4612 = vmul.f32 %v4323, %v4495
        %v4613 = vmul.f32 %v4326, %v4500
        %v4614 = vmul.f32 %v4331, %v4505
        %v4615 = vmul.f32 %v4334, %v4510
        %v4616 = vmul.f32 %v4339, %v4515
        %v4617 = vmul.f32 %v4342, %v4520
        %v4618 = vmul.f32 %v4347, %v4525
        %v4619 = vmul.f32 %v4350, %v4530
        %v4620 = vmul.f32 %v4355, %v4535
        %v4621 = vmul.f32 %v4358, %v4540
        %v4622 = vmul.f32 %v4363, %v4545
        %v4623 = vmul.f32 %v4366, %v4550
        %v4624 = vmul.f32 %v4371, %v4555
        %v4625 = vmul.f32 %v4374, %v4560
        %v4626 = vmul.f32 %v4379, %v4565
        %v4627 = vmul.f32 %v4382, %v4570
        %v4628 = vmul.f32 %v4387, %v4575
        %v4629 = vmul.f32 %v4390, %v4580
        %v4630 = vmul.f32 %v4395, %v4585
        %v4631 = vmul.f32 %v4398, %v4590
        %v4632 = vmul.f32 %v4403, %v4595
        %v4633 = vmul.f32 %v4406, %v4600
        %v4634 = vld [vmem:[#allocation2] sm:$0xff]
        %v4635 = vld [vmem:[#allocation2 + $0x8] sm:$0xff]
        %v4636 = vld [vmem:[#allocation2 + $0x10] sm:$0xff]
        %v4637 = vld [vmem:[#allocation2 + $0x18] sm:$0xff]
        %v4638 = vld [vmem:[#allocation2 + $0x20] sm:$0xff]
        %v4639 = vld [vmem:[#allocation2 + $0x28] sm:$0xff]
        %v4640 = vld [vmem:[#allocation2 + $0x30] sm:$0xff]
        %v4641 = vld [vmem:[#allocation2 + $0x38] sm:$0xff]
        %v4642 = vld [vmem:[#allocation2 + $0x40] sm:$0xff]
        %v4643 = vld [vmem:[#allocation2 + $0x48] sm:$0xff]
        %v4644 = vld [vmem:[#allocation2 + $0x50] sm:$0xff]
        %v4645 = vld [vmem:[#allocation2 + $0x58] sm:$0xff]
        %v4646 = vld [vmem:[#allocation2 + $0x60] sm:$0xff]
        %v4647 = vld [vmem:[#allocation2 + $0x68] sm:$0xff]
        %v4648 = vld [vmem:[#allocation2 + $0x70] sm:$0xff]
        %v4649 = vld [vmem:[#allocation2 + $0x78] sm:$0xff]
        %v4650 = vld [vmem:[#allocation2 + $0x80] sm:$0xff]
        %v4651 = vld [vmem:[#allocation2 + $0x88] sm:$0xff]
        %v4652 = vld [vmem:[#allocation2 + $0x90] sm:$0xff]
        %v4653 = vld [vmem:[#allocation2 + $0x98] sm:$0xff]
        %v4654 = vld [vmem:[#allocation2 + $0xa0] sm:$0xff]
        %v4655 = vld [vmem:[#allocation2 + $0xa8] sm:$0xff]
        %v4656 = vld [vmem:[#allocation2 + $0xb0] sm:$0xff]
        %v4657 = vld [vmem:[#allocation2 + $0xb8] sm:$0xff]
        %v4658 = vld [vmem:[#allocation2 + $0xc0] sm:$0xff]
        %v4659 = vld [vmem:[#allocation2 + $0xc8] sm:$0xff]
        %v4660 = vld [vmem:[#allocation2 + $0xd0] sm:$0xff]
        %v4661 = vld [vmem:[#allocation2 + $0xd8] sm:$0xff]
        %v4662 = vld [vmem:[#allocation2 + $0xe0] sm:$0xff]
        %v4663 = vld [vmem:[#allocation2 + $0xe8] sm:$0xff]
        %v4664 = vld [vmem:[#allocation2 + $0xf0] sm:$0xff]
        %v4665 = vld [vmem:[#allocation2 + $0xf8] sm:$0xff]
        %v4666 = vadd.f32 %v4634, %v4602
        %v4667 = vadd.f32 %v4635, %v4603
        %v4668 = vadd.f32 %v4636, %v4604
        %v4669 = vadd.f32 %v4637, %v4605
        %v4670 = vadd.f32 %v4638, %v4606
        %v4671 = vadd.f32 %v4639, %v4607
        %v4672 = vadd.f32 %v4640, %v4608
        %v4673 = vadd.f32 %v4641, %v4609
        %v4674 = vadd.f32 %v4642, %v4610
        %v4675 = vadd.f32 %v4643, %v4611
        %v4676 = vadd.f32 %v4644, %v4612
        %v4677 = vadd.f32 %v4645, %v4613
        %v4678 = vadd.f32 %v4646, %v4614
        %v4679 = vadd.f32 %v4647, %v4615
        %v4680 = vadd.f32 %v4648, %v4616
        %v4681 = vadd.f32 %v4649, %v4617
        %v4682 = vadd.f32 %v4650, %v4618
        %v4683 = vadd.f32 %v4651, %v4619
        %v4684 = vadd.f32 %v4652, %v4620
        %v4685 = vadd.f32 %v4653, %v4621
        %v4686 = vadd.f32 %v4654, %v4622
        %v4687 = vadd.f32 %v4655, %v4623
        %v4688 = vadd.f32 %v4656, %v4624
        %v4689 = vadd.f32 %v4657, %v4625
        %v4690 = vadd.f32 %v4658, %v4626
        %v4691 = vadd.f32 %v4659, %v4627
        %v4692 = vadd.f32 %v4660, %v4628
        %v4693 = vadd.f32 %v4661, %v4629
        %v4694 = vadd.f32 %v4662, %v4630
        %v4695 = vadd.f32 %v4663, %v4631
        %v4696 = vadd.f32 %v4664, %v4632
        %v4697 = vadd.f32 %v4665, %v4633
        %4698 = vst [vmem:[#allocation2] sm:$0xff] %v4666
        %4699 = vst [vmem:[#allocation2 + $0x8] sm:$0xff] %v4667
        %4700 = vst [vmem:[#allocation2 + $0x10] sm:$0xff] %v4668
        %4701 = vst [vmem:[#allocation2 + $0x18] sm:$0xff] %v4669
        %4702 = vst [vmem:[#allocation2 + $0x20] sm:$0xff] %v4670
        %4703 = vst [vmem:[#allocation2 + $0x28] sm:$0xff] %v4671
        %4704 = vst [vmem:[#allocation2 + $0x30] sm:$0xff] %v4672
        %4705 = vst [vmem:[#allocation2 + $0x38] sm:$0xff] %v4673
        %4706 = vst [vmem:[#allocation2 + $0x40] sm:$0xff] %v4674
        %4707 = vst [vmem:[#allocation2 + $0x48] sm:$0xff] %v4675
        %4708 = vst [vmem:[#allocation2 + $0x50] sm:$0xff] %v4676
        %4709 = vst [vmem:[#allocation2 + $0x58] sm:$0xff] %v4677
        %4710 = vst [vmem:[#allocation2 + $0x60] sm:$0xff] %v4678
        %4711 = vst [vmem:[#allocation2 + $0x68] sm:$0xff] %v4679
        %4712 = vst [vmem:[#allocation2 + $0x70] sm:$0xff] %v4680
        %4713 = vst [vmem:[#allocation2 + $0x78] sm:$0xff] %v4681
        %4714 = vst [vmem:[#allocation2 + $0x80] sm:$0xff] %v4682
        %4715 = vst [vmem:[#allocation2 + $0x88] sm:$0xff] %v4683
        %4716 = vst [vmem:[#allocation2 + $0x90] sm:$0xff] %v4684
        %4717 = vst [vmem:[#allocation2 + $0x98] sm:$0xff] %v4685
        %4718 = vst [vmem:[#allocation2 + $0xa0] sm:$0xff] %v4686
        %4719 = vst [vmem:[#allocation2 + $0xa8] sm:$0xff] %v4687
        %4720 = vst [vmem:[#allocation2 + $0xb0] sm:$0xff] %v4688
        %4721 = vst [vmem:[#allocation2 + $0xb8] sm:$0xff] %v4689
        %4722 = vst [vmem:[#allocation2 + $0xc0] sm:$0xff] %v4690
        %4723 = vst [vmem:[#allocation2 + $0xc8] sm:$0xff] %v4691
        %4724 = vst [vmem:[#allocation2 + $0xd0] sm:$0xff] %v4692
        %4725 = vst [vmem:[#allocation2 + $0xd8] sm:$0xff] %v4693
        %4726 = vst [vmem:[#allocation2 + $0xe0] sm:$0xff] %v4694
        %4727 = vst [vmem:[#allocation2 + $0xe8] sm:$0xff] %v4695
        %4728 = vst [vmem:[#allocation2 + $0xf0] sm:$0xff] %v4696
        %4729 = vst [vmem:[#allocation2 + $0xf8] sm:$0xff] %v4697
        %s4730 = scalar_lea.vmem %s1, 512
        %v4731 = vld [vmem:[%s4730] sm:$0xf]
        %v4732 = vld [vmem:[%s4730 + $0x4] sm:$0xf]
        %v4733 = vld [vmem:[%s4730 + $0x8] sm:$0xf]
        %v4734 = vld [vmem:[%s4730 + $0xc] sm:$0xf]
        %v4735 = vld [vmem:[%s4730 + $0x10] sm:$0xf]
        %v4736 = vld [vmem:[%s4730 + $0x14] sm:$0xf]
        %v4737 = vld [vmem:[%s4730 + $0x18] sm:$0xf]
        %v4738 = vld [vmem:[%s4730 + $0x1c] sm:$0xf]
        %v4739 = vld [vmem:[%s4730 + $0x20] sm:$0xf]
        %v4740 = vld [vmem:[%s4730 + $0x24] sm:$0xf]
        %v4741 = vld [vmem:[%s4730 + $0x28] sm:$0xf]
        %v4742 = vld [vmem:[%s4730 + $0x2c] sm:$0xf]
        %v4743 = vld [vmem:[%s4730 + $0x30] sm:$0xf]
        %v4744 = vld [vmem:[%s4730 + $0x34] sm:$0xf]
        %v4745 = vld [vmem:[%s4730 + $0x38] sm:$0xf]
        %v4746 = vld [vmem:[%s4730 + $0x3c] sm:$0xf]
        %v4763 = vunpack.c.l.b16 %v4731
        %v4764 = vunpack.c.l.b16 %v4732
        %v4765 = vunpack.c.l.b16 %v4733
        %v4766 = vunpack.c.l.b16 %v4734
        %v4767 = vunpack.c.l.b16 %v4735
        %v4768 = vunpack.c.l.b16 %v4736
        %v4769 = vunpack.c.l.b16 %v4737
        %v4770 = vunpack.c.l.b16 %v4738
        %v4771 = vunpack.c.l.b16 %v4739
        %v4772 = vunpack.c.l.b16 %v4740
        %v4773 = vunpack.c.l.b16 %v4741
        %v4774 = vunpack.c.l.b16 %v4742
        %v4775 = vunpack.c.l.b16 %v4743
        %v4776 = vunpack.c.l.b16 %v4744
        %v4777 = vunpack.c.l.b16 %v4745
        %v4778 = vunpack.c.l.b16 %v4746
        %v4779 = vpack.c.b16 %v4764, %v4763
        %v4780 = vpack.c.b16 %v4766, %v4765
        %v4781 = vpack.c.b16 %v4768, %v4767
        %v4782 = vpack.c.b16 %v4770, %v4769
        %v4783 = vpack.c.b16 %v4772, %v4771
        %v4784 = vpack.c.b16 %v4774, %v4773
        %v4785 = vpack.c.b16 %v4776, %v4775
        %v4786 = vpack.c.b16 %v4778, %v4777
        %4795 = vmatprep.subr.bf16.mxu0 0
        %4796 = vmatpush1.bf16.msra.mxu0 %v4779
        %4797 = vmatprep.subr.bf16.mxu0 0
        %4798 = vmatpush1.bf16.msra.mxu0 %v4780
        %4799 = vmatprep.subr.bf16.mxu0 0
        %4800 = vmatpush1.bf16.msra.mxu0 %v4781
        %4801 = vmatprep.subr.bf16.mxu0 0
        %4802 = vmatpush1.bf16.msra.mxu0 %v4782
        %4803 = vmatprep.subr.bf16.mxu0 0
        %4804 = vmatpush1.bf16.msra.mxu0 %v4783
        %4805 = vmatprep.subr.bf16.mxu0 0
        %4806 = vmatpush1.bf16.msra.mxu0 %v4784
        %4807 = vmatprep.subr.bf16.mxu0 0
        %4808 = vmatpush1.bf16.msra.mxu0 %v4785
        %4809 = vmatprep.subr.bf16.mxu0 0
        %4810 = vmatpush1.bf16.msra.mxu0 %v4786
        %4811 = vmatprep.subr.bf16.mxu0 0
        %4812 = vmatpush1.bf16.msra.mxu0 0
        %4813 = vmatprep.subr.bf16.mxu0 0
        %4814 = vmatpush1.bf16.msra.mxu0 0
        %4815 = vmatprep.subr.bf16.mxu0 0
        %4816 = vmatpush1.bf16.msra.mxu0 0
        %4817 = vmatprep.subr.bf16.mxu0 0
        %4818 = vmatpush1.bf16.msra.mxu0 0
        %4819 = vmatprep.subr.bf16.mxu0 0
        %4820 = vmatpush1.bf16.msra.mxu0 0
        %4821 = vmatprep.subr.bf16.mxu0 0
        %4822 = vmatpush1.bf16.msra.mxu0 0
        %4823 = vmatprep.subr.bf16.mxu0 0
        %4824 = vmatpush1.bf16.msra.mxu0 0
        %4825 = vmatprep.subr.bf16.mxu0 0
        %4826 = vmatpush1.bf16.msra.mxu0 0
        %4827 = vmatprep.mubr.bf16.mxu0 0
        %4828 = vmatmul.mubr.bf16.gmra.mrb[0].mxu0 %v1563
        %v4829 = vpop.f32.mrb[0].mxu0
        %v4830 = vadd.f32 0.0, %v4829
        %v4831 = vpop.f32.mrb[0].mxu0
        %v4832 = vpop.f32.mrb[0].mxu0
        %v4833 = vadd.f32 0.0, %v4832
        %v4834 = vpop.f32.mrb[0].mxu0
        %4835 = vmatprep.mubr.bf16.mxu0 0
        %4836 = vmatmul.mubr.bf16.gmra.mrb[0].mxu0 %v1564
        %v4837 = vpop.f32.mrb[0].mxu0
        %v4838 = vadd.f32 0.0, %v4837
        %v4839 = vpop.f32.mrb[0].mxu0
        %v4840 = vpop.f32.mrb[0].mxu0
        %v4841 = vadd.f32 0.0, %v4840
        %v4842 = vpop.f32.mrb[0].mxu0
        %4843 = vmatprep.mubr.bf16.mxu0 0
        %4844 = vmatmul.mubr.bf16.gmra.mrb[0].mxu0 %v1565
        %v4845 = vpop.f32.mrb[0].mxu0
        %v4846 = vadd.f32 0.0, %v4845
        %v4847 = vpop.f32.mrb[0].mxu0
        %v4848 = vpop.f32.mrb[0].mxu0
        %v4849 = vadd.f32 0.0, %v4848
        %v4850 = vpop.f32.mrb[0].mxu0
        %4851 = vmatprep.mubr.bf16.mxu0 0
        %4852 = vmatmul.mubr.bf16.gmra.mrb[0].mxu0 %v1566
        %v4853 = vpop.f32.mrb[0].mxu0
        %v4854 = vadd.f32 0.0, %v4853
        %v4855 = vpop.f32.mrb[0].mxu0
        %v4856 = vpop.f32.mrb[0].mxu0
        %v4857 = vadd.f32 0.0, %v4856
        %v4858 = vpop.f32.mrb[0].mxu0
        %4859 = vmatprep.mubr.bf16.mxu0 0
        %4860 = vmatmul.mubr.bf16.gmra.mrb[0].mxu0 %v1567
        %v4861 = vpop.f32.mrb[0].mxu0
        %v4862 = vadd.f32 0.0, %v4861
        %v4863 = vpop.f32.mrb[0].mxu0
        %v4864 = vpop.f32.mrb[0].mxu0
        %v4865 = vadd.f32 0.0, %v4864
        %v4866 = vpop.f32.mrb[0].mxu0
        %4867 = vmatprep.mubr.bf16.mxu0 0
        %4868 = vmatmul.mubr.bf16.gmra.mrb[0].mxu0 %v1568
        %v4869 = vpop.f32.mrb[0].mxu0
        %v4870 = vadd.f32 0.0, %v4869
        %v4871 = vpop.f32.mrb[0].mxu0
        %v4872 = vpop.f32.mrb[0].mxu0
        %v4873 = vadd.f32 0.0, %v4872
        %v4874 = vpop.f32.mrb[0].mxu0
        %4875 = vmatprep.mubr.bf16.mxu0 0
        %4876 = vmatmul.mubr.bf16.gmra.mrb[0].mxu0 %v1569
        %v4877 = vpop.f32.mrb[0].mxu0
        %v4878 = vadd.f32 0.0, %v4877
        %v4879 = vpop.f32.mrb[0].mxu0
        %v4880 = vpop.f32.mrb[0].mxu0
        %v4881 = vadd.f32 0.0, %v4880
        %v4882 = vpop.f32.mrb[0].mxu0
        %4883 = vmatprep.mubr.bf16.mxu0 0
        %4884 = vmatmul.mubr.bf16.gmra.mrb[0].mxu0 %v1570
        %v4885 = vpop.f32.mrb[0].mxu0
        %v4886 = vadd.f32 0.0, %v4885
        %v4887 = vpop.f32.mrb[0].mxu0
        %v4888 = vpop.f32.mrb[0].mxu0
        %v4889 = vadd.f32 0.0, %v4888
        %v4890 = vpop.f32.mrb[0].mxu0
        %4891 = vmatprep.mubr.bf16.mxu0 0
        %4892 = vmatmul.mubr.bf16.gmra.mrb[0].mxu0 %v1571
        %v4893 = vpop.f32.mrb[0].mxu0
        %v4894 = vadd.f32 0.0, %v4893
        %v4895 = vpop.f32.mrb[0].mxu0
        %v4896 = vpop.f32.mrb[0].mxu0
        %v4897 = vadd.f32 0.0, %v4896
        %v4898 = vpop.f32.mrb[0].mxu0
        %4899 = vmatprep.mubr.bf16.mxu0 0
        %4900 = vmatmul.mubr.bf16.gmra.mrb[0].mxu0 %v1572
        %v4901 = vpop.f32.mrb[0].mxu0
        %v4902 = vadd.f32 0.0, %v4901
        %v4903 = vpop.f32.mrb[0].mxu0
        %v4904 = vpop.f32.mrb[0].mxu0
        %v4905 = vadd.f32 0.0, %v4904
        %v4906 = vpop.f32.mrb[0].mxu0
        %4907 = vmatprep.mubr.bf16.mxu0 0
        %4908 = vmatmul.mubr.bf16.gmra.mrb[0].mxu0 %v1573
        %v4909 = vpop.f32.mrb[0].mxu0
        %v4910 = vadd.f32 0.0, %v4909
        %v4911 = vpop.f32.mrb[0].mxu0
        %v4912 = vpop.f32.mrb[0].mxu0
        %v4913 = vadd.f32 0.0, %v4912
        %v4914 = vpop.f32.mrb[0].mxu0
        %4915 = vmatprep.mubr.bf16.mxu0 0
        %4916 = vmatmul.mubr.bf16.gmra.mrb[0].mxu0 %v1574
        %v4917 = vpop.f32.mrb[0].mxu0
        %v4918 = vadd.f32 0.0, %v4917
        %v4919 = vpop.f32.mrb[0].mxu0
        %v4920 = vpop.f32.mrb[0].mxu0
        %v4921 = vadd.f32 0.0, %v4920
        %v4922 = vpop.f32.mrb[0].mxu0
        %4923 = vmatprep.mubr.bf16.mxu0 0
        %4924 = vmatmul.mubr.bf16.gmra.mrb[0].mxu0 %v1575
        %v4925 = vpop.f32.mrb[0].mxu0
        %v4926 = vadd.f32 0.0, %v4925
        %v4927 = vpop.f32.mrb[0].mxu0
        %v4928 = vpop.f32.mrb[0].mxu0
        %v4929 = vadd.f32 0.0, %v4928
        %v4930 = vpop.f32.mrb[0].mxu0
        %4931 = vmatprep.mubr.bf16.mxu0 0
        %4932 = vmatmul.mubr.bf16.gmra.mrb[0].mxu0 %v1576
        %v4933 = vpop.f32.mrb[0].mxu0
        %v4934 = vadd.f32 0.0, %v4933
        %v4935 = vpop.f32.mrb[0].mxu0
        %v4936 = vpop.f32.mrb[0].mxu0
        %v4937 = vadd.f32 0.0, %v4936
        %v4938 = vpop.f32.mrb[0].mxu0
        %4939 = vmatprep.mubr.bf16.mxu0 0
        %4940 = vmatmul.mubr.bf16.gmra.mrb[0].mxu0 %v1561
        %v4941 = vpop.f32.mrb[0].mxu0
        %v4942 = vadd.f32 0.0, %v4941
        %v4943 = vpop.f32.mrb[0].mxu0
        %v4944 = vpop.f32.mrb[0].mxu0
        %v4945 = vadd.f32 0.0, %v4944
        %v4946 = vpop.f32.mrb[0].mxu0
        %4947 = vmatprep.mubr.bf16.mxu0 0
        %4948 = vmatmul.mubr.bf16.gmra.mrb[0].mxu0 %v1562
        %v4949 = vpop.f32.mrb[0].mxu0
        %v4950 = vadd.f32 0.0, %v4949
        %v4951 = vpop.f32.mrb[0].mxu0
        %v4952 = vpop.f32.mrb[0].mxu0
        %v4953 = vadd.f32 0.0, %v4952
        %v4954 = vpop.f32.mrb[0].mxu0
        %4955 = vdwg.mxu0
        %s4956 = scalar_lea.vmem %s7, 2048
        %v4957 = vld [vmem:[%s4956] sm:$0xff]
        %v4958 = vld [vmem:[%s4956 + $0x8] sm:$0xff]
        %v4959 = vld [vmem:[%s4956 + $0x10] sm:$0xff]
        %v4960 = vld [vmem:[%s4956 + $0x18] sm:$0xff]
        %v4961 = vld [vmem:[%s4956 + $0x20] sm:$0xff]
        %v4962 = vld [vmem:[%s4956 + $0x28] sm:$0xff]
        %v4963 = vld [vmem:[%s4956 + $0x30] sm:$0xff]
        %v4964 = vld [vmem:[%s4956 + $0x38] sm:$0xff]
        %v4965 = vld [vmem:[%s4956 + $0x40] sm:$0xff]
        %v4966 = vld [vmem:[%s4956 + $0x48] sm:$0xff]
        %v4967 = vld [vmem:[%s4956 + $0x50] sm:$0xff]
        %v4968 = vld [vmem:[%s4956 + $0x58] sm:$0xff]
        %v4969 = vld [vmem:[%s4956 + $0x60] sm:$0xff]
        %v4970 = vld [vmem:[%s4956 + $0x68] sm:$0xff]
        %v4971 = vld [vmem:[%s4956 + $0x70] sm:$0xff]
        %v4972 = vld [vmem:[%s4956 + $0x78] sm:$0xff]
        %v4973 = vld [vmem:[%s4956 + $0x80] sm:$0xff]
        %v4974 = vld [vmem:[%s4956 + $0x88] sm:$0xff]
        %v4975 = vld [vmem:[%s4956 + $0x90] sm:$0xff]
        %v4976 = vld [vmem:[%s4956 + $0x98] sm:$0xff]
        %v4977 = vld [vmem:[%s4956 + $0xa0] sm:$0xff]
        %v4978 = vld [vmem:[%s4956 + $0xa8] sm:$0xff]
        %v4979 = vld [vmem:[%s4956 + $0xb0] sm:$0xff]
        %v4980 = vld [vmem:[%s4956 + $0xb8] sm:$0xff]
        %v4981 = vld [vmem:[%s4956 + $0xc0] sm:$0xff]
        %v4982 = vld [vmem:[%s4956 + $0xc8] sm:$0xff]
        %v4983 = vld [vmem:[%s4956 + $0xd0] sm:$0xff]
        %v4984 = vld [vmem:[%s4956 + $0xd8] sm:$0xff]
        %v4985 = vld [vmem:[%s4956 + $0xe0] sm:$0xff]
        %v4986 = vld [vmem:[%s4956 + $0xe8] sm:$0xff]
        %v4987 = vld [vmem:[%s4956 + $0xf0] sm:$0xff]
        %v4988 = vld [vmem:[%s4956 + $0xf8] sm:$0xff]
        %4990 = vset.pattern.permute.xlu0 0
        %4991 = vperm.xlu0 %4990, %v4957
        %v4992 = vpop.permute.xlu0 %4991
        %4995 = vset.pattern.permute.xlu0 0
        %4996 = vperm.xlu0 %4995, %v4958
        %v4997 = vpop.permute.xlu0 %4996
        %5000 = vset.pattern.permute.xlu0 0
        %5001 = vperm.xlu0 %5000, %v4959
        %v5002 = vpop.permute.xlu0 %5001
        %5005 = vset.pattern.permute.xlu0 0
        %5006 = vperm.xlu0 %5005, %v4960
        %v5007 = vpop.permute.xlu0 %5006
        %5010 = vset.pattern.permute.xlu0 0
        %5011 = vperm.xlu0 %5010, %v4961
        %v5012 = vpop.permute.xlu0 %5011
        %5015 = vset.pattern.permute.xlu0 0
        %5016 = vperm.xlu0 %5015, %v4962
        %v5017 = vpop.permute.xlu0 %5016
        %5020 = vset.pattern.permute.xlu0 0
        %5021 = vperm.xlu0 %5020, %v4963
        %v5022 = vpop.permute.xlu0 %5021
        %5025 = vset.pattern.permute.xlu0 0
        %5026 = vperm.xlu0 %5025, %v4964
        %v5027 = vpop.permute.xlu0 %5026
        %5030 = vset.pattern.permute.xlu0 0
        %5031 = vperm.xlu0 %5030, %v4965
        %v5032 = vpop.permute.xlu0 %5031
        %5035 = vset.pattern.permute.xlu0 0
        %5036 = vperm.xlu0 %5035, %v4966
        %v5037 = vpop.permute.xlu0 %5036
        %5040 = vset.pattern.permute.xlu0 0
        %5041 = vperm.xlu0 %5040, %v4967
        %v5042 = vpop.permute.xlu0 %5041
        %5045 = vset.pattern.permute.xlu0 0
        %5046 = vperm.xlu0 %5045, %v4968
        %v5047 = vpop.permute.xlu0 %5046
        %5050 = vset.pattern.permute.xlu0 0
        %5051 = vperm.xlu0 %5050, %v4969
        %v5052 = vpop.permute.xlu0 %5051
        %5055 = vset.pattern.permute.xlu0 0
        %5056 = vperm.xlu0 %5055, %v4970
        %v5057 = vpop.permute.xlu0 %5056
        %5060 = vset.pattern.permute.xlu0 0
        %5061 = vperm.xlu0 %5060, %v4971
        %v5062 = vpop.permute.xlu0 %5061
        %5065 = vset.pattern.permute.xlu0 0
        %5066 = vperm.xlu0 %5065, %v4972
        %v5067 = vpop.permute.xlu0 %5066
        %5070 = vset.pattern.permute.xlu0 0
        %5071 = vperm.xlu0 %5070, %v4973
        %v5072 = vpop.permute.xlu0 %5071
        %5075 = vset.pattern.permute.xlu0 0
        %5076 = vperm.xlu0 %5075, %v4974
        %v5077 = vpop.permute.xlu0 %5076
        %5080 = vset.pattern.permute.xlu0 0
        %5081 = vperm.xlu0 %5080, %v4975
        %v5082 = vpop.permute.xlu0 %5081
        %5085 = vset.pattern.permute.xlu0 0
        %5086 = vperm.xlu0 %5085, %v4976
        %v5087 = vpop.permute.xlu0 %5086
        %5090 = vset.pattern.permute.xlu0 0
        %5091 = vperm.xlu0 %5090, %v4977
        %v5092 = vpop.permute.xlu0 %5091
        %5095 = vset.pattern.permute.xlu0 0
        %5096 = vperm.xlu0 %5095, %v4978
        %v5097 = vpop.permute.xlu0 %5096
        %5100 = vset.pattern.permute.xlu0 0
        %5101 = vperm.xlu0 %5100, %v4979
        %v5102 = vpop.permute.xlu0 %5101
        %5105 = vset.pattern.permute.xlu0 0
        %5106 = vperm.xlu0 %5105, %v4980
        %v5107 = vpop.permute.xlu0 %5106
        %5110 = vset.pattern.permute.xlu0 0
        %5111 = vperm.xlu0 %5110, %v4981
        %v5112 = vpop.permute.xlu0 %5111
        %5115 = vset.pattern.permute.xlu0 0
        %5116 = vperm.xlu0 %5115, %v4982
        %v5117 = vpop.permute.xlu0 %5116
        %5120 = vset.pattern.permute.xlu0 0
        %5121 = vperm.xlu0 %5120, %v4983
        %v5122 = vpop.permute.xlu0 %5121
        %5125 = vset.pattern.permute.xlu0 0
        %5126 = vperm.xlu0 %5125, %v4984
        %v5127 = vpop.permute.xlu0 %5126
        %5130 = vset.pattern.permute.xlu0 0
        %5131 = vperm.xlu0 %5130, %v4985
        %v5132 = vpop.permute.xlu0 %5131
        %5135 = vset.pattern.permute.xlu0 0
        %5136 = vperm.xlu0 %5135, %v4986
        %v5137 = vpop.permute.xlu0 %5136
        %5140 = vset.pattern.permute.xlu0 0
        %5141 = vperm.xlu0 %5140, %v4987
        %v5142 = vpop.permute.xlu0 %5141
        %5145 = vset.pattern.permute.xlu0 0
        %5146 = vperm.xlu0 %5145, %v4988
        %v5147 = vpop.permute.xlu0 %5146
        %v5149 = vmul.f32 %v4830, %v4992
        %v5150 = vmul.f32 %v4833, %v4997
        %v5151 = vmul.f32 %v4838, %v5002
        %v5152 = vmul.f32 %v4841, %v5007
        %v5153 = vmul.f32 %v4846, %v5012
        %v5154 = vmul.f32 %v4849, %v5017
        %v5155 = vmul.f32 %v4854, %v5022
        %v5156 = vmul.f32 %v4857, %v5027
        %v5157 = vmul.f32 %v4862, %v5032
        %v5158 = vmul.f32 %v4865, %v5037
        %v5159 = vmul.f32 %v4870, %v5042
        %v5160 = vmul.f32 %v4873, %v5047
        %v5161 = vmul.f32 %v4878, %v5052
        %v5162 = vmul.f32 %v4881, %v5057
        %v5163 = vmul.f32 %v4886, %v5062
        %v5164 = vmul.f32 %v4889, %v5067
        %v5165 = vmul.f32 %v4894, %v5072
        %v5166 = vmul.f32 %v4897, %v5077
        %v5167 = vmul.f32 %v4902, %v5082
        %v5168 = vmul.f32 %v4905, %v5087
        %v5169 = vmul.f32 %v4910, %v5092
        %v5170 = vmul.f32 %v4913, %v5097
        %v5171 = vmul.f32 %v4918, %v5102
        %v5172 = vmul.f32 %v4921, %v5107
        %v5173 = vmul.f32 %v4926, %v5112
        %v5174 = vmul.f32 %v4929, %v5117
        %v5175 = vmul.f32 %v4934, %v5122
        %v5176 = vmul.f32 %v4937, %v5127
        %v5177 = vmul.f32 %v4942, %v5132
        %v5178 = vmul.f32 %v4945, %v5137
        %v5179 = vmul.f32 %v4950, %v5142
        %v5180 = vmul.f32 %v4953, %v5147
        %v5181 = vld [vmem:[#allocation2] sm:$0xff]
        %v5182 = vld [vmem:[#allocation2 + $0x8] sm:$0xff]
        %v5183 = vld [vmem:[#allocation2 + $0x10] sm:$0xff]
        %v5184 = vld [vmem:[#allocation2 + $0x18] sm:$0xff]
        %v5185 = vld [vmem:[#allocation2 + $0x20] sm:$0xff]
        %v5186 = vld [vmem:[#allocation2 + $0x28] sm:$0xff]
        %v5187 = vld [vmem:[#allocation2 + $0x30] sm:$0xff]
        %v5188 = vld [vmem:[#allocation2 + $0x38] sm:$0xff]
        %v5189 = vld [vmem:[#allocation2 + $0x40] sm:$0xff]
        %v5190 = vld [vmem:[#allocation2 + $0x48] sm:$0xff]
        %v5191 = vld [vmem:[#allocation2 + $0x50] sm:$0xff]
        %v5192 = vld [vmem:[#allocation2 + $0x58] sm:$0xff]
        %v5193 = vld [vmem:[#allocation2 + $0x60] sm:$0xff]
        %v5194 = vld [vmem:[#allocation2 + $0x68] sm:$0xff]
        %v5195 = vld [vmem:[#allocation2 + $0x70] sm:$0xff]
        %v5196 = vld [vmem:[#allocation2 + $0x78] sm:$0xff]
        %v5197 = vld [vmem:[#allocation2 + $0x80] sm:$0xff]
        %v5198 = vld [vmem:[#allocation2 + $0x88] sm:$0xff]
        %v5199 = vld [vmem:[#allocation2 + $0x90] sm:$0xff]
        %v5200 = vld [vmem:[#allocation2 + $0x98] sm:$0xff]
        %v5201 = vld [vmem:[#allocation2 + $0xa0] sm:$0xff]
        %v5202 = vld [vmem:[#allocation2 + $0xa8] sm:$0xff]
        %v5203 = vld [vmem:[#allocation2 + $0xb0] sm:$0xff]
        %v5204 = vld [vmem:[#allocation2 + $0xb8] sm:$0xff]
        %v5205 = vld [vmem:[#allocation2 + $0xc0] sm:$0xff]
        %v5206 = vld [vmem:[#allocation2 + $0xc8] sm:$0xff]
        %v5207 = vld [vmem:[#allocation2 + $0xd0] sm:$0xff]
        %v5208 = vld [vmem:[#allocation2 + $0xd8] sm:$0xff]
        %v5209 = vld [vmem:[#allocation2 + $0xe0] sm:$0xff]
        %v5210 = vld [vmem:[#allocation2 + $0xe8] sm:$0xff]
        %v5211 = vld [vmem:[#allocation2 + $0xf0] sm:$0xff]
        %v5212 = vld [vmem:[#allocation2 + $0xf8] sm:$0xff]
        %v5213 = vadd.f32 %v5181, %v5149
        %v5214 = vadd.f32 %v5182, %v5150
        %v5215 = vadd.f32 %v5183, %v5151
        %v5216 = vadd.f32 %v5184, %v5152
        %v5217 = vadd.f32 %v5185, %v5153
        %v5218 = vadd.f32 %v5186, %v5154
        %v5219 = vadd.f32 %v5187, %v5155
        %v5220 = vadd.f32 %v5188, %v5156
        %v5221 = vadd.f32 %v5189, %v5157
        %v5222 = vadd.f32 %v5190, %v5158
        %v5223 = vadd.f32 %v5191, %v5159
        %v5224 = vadd.f32 %v5192, %v5160
        %v5225 = vadd.f32 %v5193, %v5161
        %v5226 = vadd.f32 %v5194, %v5162
        %v5227 = vadd.f32 %v5195, %v5163
        %v5228 = vadd.f32 %v5196, %v5164
        %v5229 = vadd.f32 %v5197, %v5165
        %v5230 = vadd.f32 %v5198, %v5166
        %v5231 = vadd.f32 %v5199, %v5167
        %v5232 = vadd.f32 %v5200, %v5168
        %v5233 = vadd.f32 %v5201, %v5169
        %v5234 = vadd.f32 %v5202, %v5170
        %v5235 = vadd.f32 %v5203, %v5171
        %v5236 = vadd.f32 %v5204, %v5172
        %v5237 = vadd.f32 %v5205, %v5173
        %v5238 = vadd.f32 %v5206, %v5174
        %v5239 = vadd.f32 %v5207, %v5175
        %v5240 = vadd.f32 %v5208, %v5176
        %v5241 = vadd.f32 %v5209, %v5177
        %v5242 = vadd.f32 %v5210, %v5178
        %v5243 = vadd.f32 %v5211, %v5179
        %v5244 = vadd.f32 %v5212, %v5180
        %5245 = vst [vmem:[#allocation2] sm:$0xff] %v5213
        %5246 = vst [vmem:[#allocation2 + $0x8] sm:$0xff] %v5214
        %5247 = vst [vmem:[#allocation2 + $0x10] sm:$0xff] %v5215
        %5248 = vst [vmem:[#allocation2 + $0x18] sm:$0xff] %v5216
        %5249 = vst [vmem:[#allocation2 + $0x20] sm:$0xff] %v5217
        %5250 = vst [vmem:[#allocation2 + $0x28] sm:$0xff] %v5218
        %5251 = vst [vmem:[#allocation2 + $0x30] sm:$0xff] %v5219
        %5252 = vst [vmem:[#allocation2 + $0x38] sm:$0xff] %v5220
        %5253 = vst [vmem:[#allocation2 + $0x40] sm:$0xff] %v5221
        %5254 = vst [vmem:[#allocation2 + $0x48] sm:$0xff] %v5222
        %5255 = vst [vmem:[#allocation2 + $0x50] sm:$0xff] %v5223
        %5256 = vst [vmem:[#allocation2 + $0x58] sm:$0xff] %v5224
        %5257 = vst [vmem:[#allocation2 + $0x60] sm:$0xff] %v5225
        %5258 = vst [vmem:[#allocation2 + $0x68] sm:$0xff] %v5226
        %5259 = vst [vmem:[#allocation2 + $0x70] sm:$0xff] %v5227
        %5260 = vst [vmem:[#allocation2 + $0x78] sm:$0xff] %v5228
        %5261 = vst [vmem:[#allocation2 + $0x80] sm:$0xff] %v5229
        %5262 = vst [vmem:[#allocation2 + $0x88] sm:$0xff] %v5230
        %5263 = vst [vmem:[#allocation2 + $0x90] sm:$0xff] %v5231
        %5264 = vst [vmem:[#allocation2 + $0x98] sm:$0xff] %v5232
        %5265 = vst [vmem:[#allocation2 + $0xa0] sm:$0xff] %v5233
        %5266 = vst [vmem:[#allocation2 + $0xa8] sm:$0xff] %v5234
        %5267 = vst [vmem:[#allocation2 + $0xb0] sm:$0xff] %v5235
        %5268 = vst [vmem:[#allocation2 + $0xb8] sm:$0xff] %v5236
        %5269 = vst [vmem:[#allocation2 + $0xc0] sm:$0xff] %v5237
        %5270 = vst [vmem:[#allocation2 + $0xc8] sm:$0xff] %v5238
        %5271 = vst [vmem:[#allocation2 + $0xd0] sm:$0xff] %v5239
        %5272 = vst [vmem:[#allocation2 + $0xd8] sm:$0xff] %v5240
        %5273 = vst [vmem:[#allocation2 + $0xe0] sm:$0xff] %v5241
        %5274 = vst [vmem:[#allocation2 + $0xe8] sm:$0xff] %v5242
        %5275 = vst [vmem:[#allocation2 + $0xf0] sm:$0xff] %v5243
        %5276 = vst [vmem:[#allocation2 + $0xf8] sm:$0xff] %v5244
        %v5277 = vld [vmem:[#allocation2] sm:$0xff]
        %v5278 = vld [vmem:[#allocation2 + $0x8] sm:$0xff]
        %v5279 = vld [vmem:[#allocation2 + $0x10] sm:$0xff]
        %v5280 = vld [vmem:[#allocation2 + $0x18] sm:$0xff]
        %v5281 = vld [vmem:[#allocation2 + $0x20] sm:$0xff]
        %v5282 = vld [vmem:[#allocation2 + $0x28] sm:$0xff]
        %v5283 = vld [vmem:[#allocation2 + $0x30] sm:$0xff]
        %v5284 = vld [vmem:[#allocation2 + $0x38] sm:$0xff]
        %v5285 = vld [vmem:[#allocation2 + $0x40] sm:$0xff]
        %v5286 = vld [vmem:[#allocation2 + $0x48] sm:$0xff]
        %v5287 = vld [vmem:[#allocation2 + $0x50] sm:$0xff]
        %v5288 = vld [vmem:[#allocation2 + $0x58] sm:$0xff]
        %v5289 = vld [vmem:[#allocation2 + $0x60] sm:$0xff]
        %v5290 = vld [vmem:[#allocation2 + $0x68] sm:$0xff]
        %v5291 = vld [vmem:[#allocation2 + $0x70] sm:$0xff]
        %v5292 = vld [vmem:[#allocation2 + $0x78] sm:$0xff]
        %v5293 = vld [vmem:[#allocation2 + $0x80] sm:$0xff]
        %v5294 = vld [vmem:[#allocation2 + $0x88] sm:$0xff]
        %v5295 = vld [vmem:[#allocation2 + $0x90] sm:$0xff]
        %v5296 = vld [vmem:[#allocation2 + $0x98] sm:$0xff]
        %v5297 = vld [vmem:[#allocation2 + $0xa0] sm:$0xff]
        %v5298 = vld [vmem:[#allocation2 + $0xa8] sm:$0xff]
        %v5299 = vld [vmem:[#allocation2 + $0xb0] sm:$0xff]
        %v5300 = vld [vmem:[#allocation2 + $0xb8] sm:$0xff]
        %v5301 = vld [vmem:[#allocation2 + $0xc0] sm:$0xff]
        %v5302 = vld [vmem:[#allocation2 + $0xc8] sm:$0xff]
        %v5303 = vld [vmem:[#allocation2 + $0xd0] sm:$0xff]
        %v5304 = vld [vmem:[#allocation2 + $0xd8] sm:$0xff]
        %v5305 = vld [vmem:[#allocation2 + $0xe0] sm:$0xff]
        %v5306 = vld [vmem:[#allocation2 + $0xe8] sm:$0xff]
        %v5307 = vld [vmem:[#allocation2 + $0xf0] sm:$0xff]
        %v5308 = vld [vmem:[#allocation2 + $0xf8] sm:$0xff]
        %v5309 = vld [vmem:[%s2] sm:$0x1]
        %v5311 = vlaneseq
        %v5312 = vshrl.u32 %v5311, 7
        %v5313 = vsub.s32 0, %v5312
        %v5314 = vrot.slane %v5309, %v5313
        %v5316 = vmul.f32 %v5277, %v5314
        %v5317 = vmul.f32 %v5278, %v5314
        %v5318 = vmul.f32 %v5279, %v5314
        %v5319 = vmul.f32 %v5280, %v5314
        %v5320 = vmul.f32 %v5281, %v5314
        %v5321 = vmul.f32 %v5282, %v5314
        %v5322 = vmul.f32 %v5283, %v5314
        %v5323 = vmul.f32 %v5284, %v5314
        %v5324 = vmul.f32 %v5285, %v5314
        %v5325 = vmul.f32 %v5286, %v5314
        %v5326 = vmul.f32 %v5287, %v5314
        %v5327 = vmul.f32 %v5288, %v5314
        %v5328 = vmul.f32 %v5289, %v5314
        %v5329 = vmul.f32 %v5290, %v5314
        %v5330 = vmul.f32 %v5291, %v5314
        %v5331 = vmul.f32 %v5292, %v5314
        %v5332 = vmul.f32 %v5293, %v5314
        %v5333 = vmul.f32 %v5294, %v5314
        %v5334 = vmul.f32 %v5295, %v5314
        %v5335 = vmul.f32 %v5296, %v5314
        %v5336 = vmul.f32 %v5297, %v5314
        %v5337 = vmul.f32 %v5298, %v5314
        %v5338 = vmul.f32 %v5299, %v5314
        %v5339 = vmul.f32 %v5300, %v5314
        %v5340 = vmul.f32 %v5301, %v5314
        %v5341 = vmul.f32 %v5302, %v5314
        %v5342 = vmul.f32 %v5303, %v5314
        %v5343 = vmul.f32 %v5304, %v5314
        %v5344 = vmul.f32 %v5305, %v5314
        %v5345 = vmul.f32 %v5306, %v5314
        %v5346 = vmul.f32 %v5307, %v5314
        %v5347 = vmul.f32 %v5308, %v5314
        %v5348 = vld [vmem:[%s3] sm:$0x1]
        %v5350 = vlaneseq
        %v5351 = vshrl.u32 %v5350, 7
        %v5352 = vsub.s32 0, %v5351
        %v5353 = vrot.slane %v5348, %v5352
        %v5355 = vadd.f32 %v5316, %v5353
        %v5356 = vadd.f32 %v5317, %v5353
        %v5357 = vadd.f32 %v5318, %v5353
        %v5358 = vadd.f32 %v5319, %v5353
        %v5359 = vadd.f32 %v5320, %v5353
        %v5360 = vadd.f32 %v5321, %v5353
        %v5361 = vadd.f32 %v5322, %v5353
        %v5362 = vadd.f32 %v5323, %v5353
        %v5363 = vadd.f32 %v5324, %v5353
        %v5364 = vadd.f32 %v5325, %v5353
        %v5365 = vadd.f32 %v5326, %v5353
        %v5366 = vadd.f32 %v5327, %v5353
        %v5367 = vadd.f32 %v5328, %v5353
        %v5368 = vadd.f32 %v5329, %v5353
        %v5369 = vadd.f32 %v5330, %v5353
        %v5370 = vadd.f32 %v5331, %v5353
        %v5371 = vadd.f32 %v5332, %v5353
        %v5372 = vadd.f32 %v5333, %v5353
        %v5373 = vadd.f32 %v5334, %v5353
        %v5374 = vadd.f32 %v5335, %v5353
        %v5375 = vadd.f32 %v5336, %v5353
        %v5376 = vadd.f32 %v5337, %v5353
        %v5377 = vadd.f32 %v5338, %v5353
        %v5378 = vadd.f32 %v5339, %v5353
        %v5379 = vadd.f32 %v5340, %v5353
        %v5380 = vadd.f32 %v5341, %v5353
        %v5381 = vadd.f32 %v5342, %v5353
        %v5382 = vadd.f32 %v5343, %v5353
        %v5383 = vadd.f32 %v5344, %v5353
        %v5384 = vadd.f32 %v5345, %v5353
        %v5385 = vadd.f32 %v5346, %v5353
        %v5386 = vadd.f32 %v5347, %v5353
        %v5387 = vmax.f32 %v5355, 0.0
        %v5388 = vmax.f32 %v5356, 0.0
        %v5389 = vmax.f32 %v5357, 0.0
        %v5390 = vmax.f32 %v5358, 0.0
        %v5391 = vmax.f32 %v5359, 0.0
        %v5392 = vmax.f32 %v5360, 0.0
        %v5393 = vmax.f32 %v5361, 0.0
        %v5394 = vmax.f32 %v5362, 0.0
        %v5395 = vmax.f32 %v5363, 0.0
        %v5396 = vmax.f32 %v5364, 0.0
        %v5397 = vmax.f32 %v5365, 0.0
        %v5398 = vmax.f32 %v5366, 0.0
        %v5399 = vmax.f32 %v5367, 0.0
        %v5400 = vmax.f32 %v5368, 0.0
        %v5401 = vmax.f32 %v5369, 0.0
        %v5402 = vmax.f32 %v5370, 0.0
        %v5403 = vmax.f32 %v5371, 0.0
        %v5404 = vmax.f32 %v5372, 0.0
        %v5405 = vmax.f32 %v5373, 0.0
        %v5406 = vmax.f32 %v5374, 0.0
        %v5407 = vmax.f32 %v5375, 0.0
        %v5408 = vmax.f32 %v5376, 0.0
        %v5409 = vmax.f32 %v5377, 0.0
        %v5410 = vmax.f32 %v5378, 0.0
        %v5411 = vmax.f32 %v5379, 0.0
        %v5412 = vmax.f32 %v5380, 0.0
        %v5413 = vmax.f32 %v5381, 0.0
        %v5414 = vmax.f32 %v5382, 0.0
        %v5415 = vmax.f32 %v5383, 0.0
        %v5416 = vmax.f32 %v5384, 0.0
        %v5417 = vmax.f32 %v5385, 0.0
        %v5418 = vmax.f32 %v5386, 0.0
        %v5419 = vrot.slane %v5387, 7
        %v5420 = vrot.slane %v5388, 7
        %v5421 = vrot.slane %v5389, 7
        %v5422 = vrot.slane %v5390, 7
        %v5423 = vrot.slane %v5391, 7
        %v5424 = vrot.slane %v5392, 7
        %v5425 = vrot.slane %v5393, 7
        %v5426 = vrot.slane %v5394, 7
        %v5427 = vrot.slane %v5395, 7
        %v5428 = vrot.slane %v5396, 7
        %v5429 = vrot.slane %v5397, 7
        %v5430 = vrot.slane %v5398, 7
        %v5431 = vrot.slane %v5399, 7
        %v5432 = vrot.slane %v5400, 7
        %v5433 = vrot.slane %v5401, 7
        %v5434 = vrot.slane %v5402, 7
        %v5435 = vrot.slane %v5403, 7
        %v5436 = vrot.slane %v5404, 7
        %v5437 = vrot.slane %v5405, 7
        %v5438 = vrot.slane %v5406, 7
        %v5439 = vrot.slane %v5407, 7
        %v5440 = vrot.slane %v5408, 7
        %v5441 = vrot.slane %v5409, 7
        %v5442 = vrot.slane %v5410, 7
        %v5443 = vrot.slane %v5411, 7
        %v5444 = vrot.slane %v5412, 7
        %v5445 = vrot.slane %v5413, 7
        %v5446 = vrot.slane %v5414, 7
        %v5447 = vrot.slane %v5415, 7
        %v5448 = vrot.slane %v5416, 7
        %v5449 = vrot.slane %v5417, 7
        %v5450 = vrot.slane %v5418, 7
        %v5451 = vsel %vm403, %v5449, %v5450
        %v5452 = vsel %vm403, %v5448, %v5449
        %v5453 = vsel %vm403, %v5447, %v5448
        %v5454 = vsel %vm403, %v5446, %v5447
        %v5455 = vsel %vm403, %v5445, %v5446
        %v5456 = vsel %vm403, %v5444, %v5445
        %v5457 = vsel %vm403, %v5443, %v5444
        %v5458 = vsel %vm403, %v5442, %v5443
        %v5459 = vsel %vm403, %v5441, %v5442
        %v5460 = vsel %vm403, %v5440, %v5441
        %v5461 = vsel %vm403, %v5439, %v5440
        %v5462 = vsel %vm403, %v5438, %v5439
        %v5463 = vsel %vm403, %v5437, %v5438
        %v5464 = vsel %vm403, %v5436, %v5437
        %v5465 = vsel %vm403, %v5435, %v5436
        %v5466 = vsel %vm403, %v5434, %v5435
        %v5467 = vsel %vm403, %v5433, %v5434
        %v5468 = vsel %vm403, %v5432, %v5433
        %v5469 = vsel %vm403, %v5431, %v5432
        %v5470 = vsel %vm403, %v5430, %v5431
        %v5471 = vsel %vm403, %v5429, %v5430
        %v5472 = vsel %vm403, %v5428, %v5429
        %v5473 = vsel %vm403, %v5427, %v5428
        %v5474 = vsel %vm403, %v5426, %v5427
        %v5475 = vsel %vm403, %v5425, %v5426
        %v5476 = vsel %vm403, %v5424, %v5425
        %v5477 = vsel %vm403, %v5423, %v5424
        %v5478 = vsel %vm403, %v5422, %v5423
        %v5479 = vsel %vm403, %v5421, %v5422
        %v5480 = vsel %vm403, %v5420, %v5421
        %v5481 = vsel %vm403, %v5419, %v5420
        %v5482 = vsel %vm403, %v5450, %v5419
        %v5483 = vpack.c.bf16 %v5451, %v5452
        %v5484 = vpack.c.bf16 %v5481, %v5482
        %v5485 = vpack.c.bf16 %v5479, %v5480
        %v5486 = vpack.c.bf16 %v5477, %v5478
        %v5487 = vpack.c.bf16 %v5475, %v5476
        %v5488 = vpack.c.bf16 %v5473, %v5474
        %v5489 = vpack.c.bf16 %v5471, %v5472
        %v5490 = vpack.c.bf16 %v5469, %v5470
        %v5491 = vpack.c.bf16 %v5467, %v5468
        %v5492 = vpack.c.bf16 %v5465, %v5466
        %v5493 = vpack.c.bf16 %v5463, %v5464
        %v5494 = vpack.c.bf16 %v5461, %v5462
        %v5495 = vpack.c.bf16 %v5459, %v5460
        %v5496 = vpack.c.bf16 %v5457, %v5458
        %v5497 = vpack.c.bf16 %v5455, %v5456
        %v5498 = vpack.c.bf16 %v5453, %v5454
        %v5499 = vld [vmem:[%s4] sm:$0xf]
        %v5500 = vld [vmem:[%s4 + $0x4] sm:$0xf]
        %v5501 = vld [vmem:[%s4 + $0x8] sm:$0xf]
        %v5502 = vld [vmem:[%s4 + $0xc] sm:$0xf]
        %v5503 = vld [vmem:[%s4 + $0x10] sm:$0xf]
        %v5504 = vld [vmem:[%s4 + $0x14] sm:$0xf]
        %v5505 = vld [vmem:[%s4 + $0x18] sm:$0xf]
        %v5506 = vld [vmem:[%s4 + $0x1c] sm:$0xf]
        %v5507 = vld [vmem:[%s4 + $0x20] sm:$0xf]
        %v5508 = vld [vmem:[%s4 + $0x24] sm:$0xf]
        %v5509 = vld [vmem:[%s4 + $0x28] sm:$0xf]
        %v5510 = vld [vmem:[%s4 + $0x2c] sm:$0xf]
        %v5511 = vld [vmem:[%s4 + $0x30] sm:$0xf]
        %v5512 = vld [vmem:[%s4 + $0x34] sm:$0xf]
        %v5513 = vld [vmem:[%s4 + $0x38] sm:$0xf]
        %v5514 = vld [vmem:[%s4 + $0x3c] sm:$0xf]
        %v5531 = vunpack.c.l.b16 %v5499
        %v5532 = vunpack.c.l.b16 %v5500
        %v5533 = vunpack.c.l.b16 %v5501
        %v5534 = vunpack.c.l.b16 %v5502
        %v5535 = vunpack.c.l.b16 %v5503
        %v5536 = vunpack.c.l.b16 %v5504
        %v5537 = vunpack.c.l.b16 %v5505
        %v5538 = vunpack.c.l.b16 %v5506
        %v5539 = vunpack.c.l.b16 %v5507
        %v5540 = vunpack.c.l.b16 %v5508
        %v5541 = vunpack.c.l.b16 %v5509
        %v5542 = vunpack.c.l.b16 %v5510
        %v5543 = vunpack.c.l.b16 %v5511
        %v5544 = vunpack.c.l.b16 %v5512
        %v5545 = vunpack.c.l.b16 %v5513
        %v5546 = vunpack.c.l.b16 %v5514
        %v5547 = vpack.c.b16 %v5532, %v5531
        %v5548 = vpack.c.b16 %v5534, %v5533
        %v5549 = vpack.c.b16 %v5536, %v5535
        %v5550 = vpack.c.b16 %v5538, %v5537
        %v5551 = vpack.c.b16 %v5540, %v5539
        %v5552 = vpack.c.b16 %v5542, %v5541
        %v5553 = vpack.c.b16 %v5544, %v5543
        %v5554 = vpack.c.b16 %v5546, %v5545
        %5563 = vmatprep.subr.bf16.mxu0 0
        %5564 = vmatpush1.bf16.msra.mxu0 %v5547
        %5565 = vmatprep.subr.bf16.mxu0 0
        %5566 = vmatpush1.bf16.msra.mxu0 %v5548
        %5567 = vmatprep.subr.bf16.mxu0 0
        %5568 = vmatpush1.bf16.msra.mxu0 %v5549
        %5569 = vmatprep.subr.bf16.mxu0 0
        %5570 = vmatpush1.bf16.msra.mxu0 %v5550
        %5571 = vmatprep.subr.bf16.mxu0 0
        %5572 = vmatpush1.bf16.msra.mxu0 %v5551
        %5573 = vmatprep.subr.bf16.mxu0 0
        %5574 = vmatpush1.bf16.msra.mxu0 %v5552
        %5575 = vmatprep.subr.bf16.mxu0 0
        %5576 = vmatpush1.bf16.msra.mxu0 %v5553
        %5577 = vmatprep.subr.bf16.mxu0 0
        %5578 = vmatpush1.bf16.msra.mxu0 %v5554
        %5579 = vmatprep.subr.bf16.mxu0 0
        %5580 = vmatpush1.bf16.msra.mxu0 0
        %5581 = vmatprep.subr.bf16.mxu0 0
        %5582 = vmatpush1.bf16.msra.mxu0 0
        %5583 = vmatprep.subr.bf16.mxu0 0
        %5584 = vmatpush1.bf16.msra.mxu0 0
        %5585 = vmatprep.subr.bf16.mxu0 0
        %5586 = vmatpush1.bf16.msra.mxu0 0
        %5587 = vmatprep.subr.bf16.mxu0 0
        %5588 = vmatpush1.bf16.msra.mxu0 0
        %5589 = vmatprep.subr.bf16.mxu0 0
        %5590 = vmatpush1.bf16.msra.mxu0 0
        %5591 = vmatprep.subr.bf16.mxu0 0
        %5592 = vmatpush1.bf16.msra.mxu0 0
        %5593 = vmatprep.subr.bf16.mxu0 0
        %5594 = vmatpush1.bf16.msra.mxu0 0
        %5595 = vmatprep.mubr.bf16.mxu0 0
        %5596 = vmatmul.mubr.bf16.gmra.mrb[0].mxu0 %v5483
        %v5597 = vpop.f32.mrb[0].mxu0
        %v5598 = vadd.f32 0.0, %v5597
        %v5599 = vpop.f32.mrb[0].mxu0
        %v5600 = vpop.f32.mrb[0].mxu0
        %v5601 = vadd.f32 0.0, %v5600
        %v5602 = vpop.f32.mrb[0].mxu0
        %5603 = vmatprep.mubr.bf16.mxu0 0
        %5604 = vmatmul.mubr.bf16.gmra.mrb[0].mxu0 %v5484
        %v5605 = vpop.f32.mrb[0].mxu0
        %v5606 = vadd.f32 0.0, %v5605
        %v5607 = vpop.f32.mrb[0].mxu0
        %v5608 = vpop.f32.mrb[0].mxu0
        %v5609 = vadd.f32 0.0, %v5608
        %v5610 = vpop.f32.mrb[0].mxu0
        %5611 = vmatprep.mubr.bf16.mxu0 0
        %5612 = vmatmul.mubr.bf16.gmra.mrb[0].mxu0 %v5485
        %v5613 = vpop.f32.mrb[0].mxu0
        %v5614 = vadd.f32 0.0, %v5613
        %v5615 = vpop.f32.mrb[0].mxu0
        %v5616 = vpop.f32.mrb[0].mxu0
        %v5617 = vadd.f32 0.0, %v5616
        %v5618 = vpop.f32.mrb[0].mxu0
        %5619 = vmatprep.mubr.bf16.mxu0 0
        %5620 = vmatmul.mubr.bf16.gmra.mrb[0].mxu0 %v5486
        %v5621 = vpop.f32.mrb[0].mxu0
        %v5622 = vadd.f32 0.0, %v5621
        %v5623 = vpop.f32.mrb[0].mxu0
        %v5624 = vpop.f32.mrb[0].mxu0
        %v5625 = vadd.f32 0.0, %v5624
        %v5626 = vpop.f32.mrb[0].mxu0
        %5627 = vmatprep.mubr.bf16.mxu0 0
        %5628 = vmatmul.mubr.bf16.gmra.mrb[0].mxu0 %v5487
        %v5629 = vpop.f32.mrb[0].mxu0
        %v5630 = vadd.f32 0.0, %v5629
        %v5631 = vpop.f32.mrb[0].mxu0
        %v5632 = vpop.f32.mrb[0].mxu0
        %v5633 = vadd.f32 0.0, %v5632
        %v5634 = vpop.f32.mrb[0].mxu0
        %5635 = vmatprep.mubr.bf16.mxu0 0
        %5636 = vmatmul.mubr.bf16.gmra.mrb[0].mxu0 %v5488
        %v5637 = vpop.f32.mrb[0].mxu0
        %v5638 = vadd.f32 0.0, %v5637
        %v5639 = vpop.f32.mrb[0].mxu0
        %v5640 = vpop.f32.mrb[0].mxu0
        %v5641 = vadd.f32 0.0, %v5640
        %v5642 = vpop.f32.mrb[0].mxu0
        %5643 = vmatprep.mubr.bf16.mxu0 0
        %5644 = vmatmul.mubr.bf16.gmra.mrb[0].mxu0 %v5489
        %v5645 = vpop.f32.mrb[0].mxu0
        %v5646 = vadd.f32 0.0, %v5645
        %v5647 = vpop.f32.mrb[0].mxu0
        %v5648 = vpop.f32.mrb[0].mxu0
        %v5649 = vadd.f32 0.0, %v5648
        %v5650 = vpop.f32.mrb[0].mxu0
        %5651 = vmatprep.mubr.bf16.mxu0 0
        %5652 = vmatmul.mubr.bf16.gmra.mrb[0].mxu0 %v5490
        %v5653 = vpop.f32.mrb[0].mxu0
        %v5654 = vadd.f32 0.0, %v5653
        %v5655 = vpop.f32.mrb[0].mxu0
        %v5656 = vpop.f32.mrb[0].mxu0
        %v5657 = vadd.f32 0.0, %v5656
        %v5658 = vpop.f32.mrb[0].mxu0
        %5659 = vmatprep.mubr.bf16.mxu0 0
        %5660 = vmatmul.mubr.bf16.gmra.mrb[0].mxu0 %v5491
        %v5661 = vpop.f32.mrb[0].mxu0
        %v5662 = vadd.f32 0.0, %v5661
        %v5663 = vpop.f32.mrb[0].mxu0
        %v5664 = vpop.f32.mrb[0].mxu0
        %v5665 = vadd.f32 0.0, %v5664
        %v5666 = vpop.f32.mrb[0].mxu0
        %5667 = vmatprep.mubr.bf16.mxu0 0
        %5668 = vmatmul.mubr.bf16.gmra.mrb[0].mxu0 %v5492
        %v5669 = vpop.f32.mrb[0].mxu0
        %v5670 = vadd.f32 0.0, %v5669
        %v5671 = vpop.f32.mrb[0].mxu0
        %v5672 = vpop.f32.mrb[0].mxu0
        %v5673 = vadd.f32 0.0, %v5672
        %v5674 = vpop.f32.mrb[0].mxu0
        %5675 = vmatprep.mubr.bf16.mxu0 0
        %5676 = vmatmul.mubr.bf16.gmra.mrb[0].mxu0 %v5493
        %v5677 = vpop.f32.mrb[0].mxu0
        %v5678 = vadd.f32 0.0, %v5677
        %v5679 = vpop.f32.mrb[0].mxu0
        %v5680 = vpop.f32.mrb[0].mxu0
        %v5681 = vadd.f32 0.0, %v5680
        %v5682 = vpop.f32.mrb[0].mxu0
        %5683 = vmatprep.mubr.bf16.mxu0 0
        %5684 = vmatmul.mubr.bf16.gmra.mrb[0].mxu0 %v5494
        %v5685 = vpop.f32.mrb[0].mxu0
        %v5686 = vadd.f32 0.0, %v5685
        %v5687 = vpop.f32.mrb[0].mxu0
        %v5688 = vpop.f32.mrb[0].mxu0
        %v5689 = vadd.f32 0.0, %v5688
        %v5690 = vpop.f32.mrb[0].mxu0
        %5691 = vmatprep.mubr.bf16.mxu0 0
        %5692 = vmatmul.mubr.bf16.gmra.mrb[0].mxu0 %v5495
        %v5693 = vpop.f32.mrb[0].mxu0
        %v5694 = vadd.f32 0.0, %v5693
        %v5695 = vpop.f32.mrb[0].mxu0
        %v5696 = vpop.f32.mrb[0].mxu0
        %v5697 = vadd.f32 0.0, %v5696
        %v5698 = vpop.f32.mrb[0].mxu0
        %5699 = vmatprep.mubr.bf16.mxu0 0
        %5700 = vmatmul.mubr.bf16.gmra.mrb[0].mxu0 %v5496
        %v5701 = vpop.f32.mrb[0].mxu0
        %v5702 = vadd.f32 0.0, %v5701
        %v5703 = vpop.f32.mrb[0].mxu0
        %v5704 = vpop.f32.mrb[0].mxu0
        %v5705 = vadd.f32 0.0, %v5704
        %v5706 = vpop.f32.mrb[0].mxu0
        %5707 = vmatprep.mubr.bf16.mxu0 0
        %5708 = vmatmul.mubr.bf16.gmra.mrb[0].mxu0 %v5497
        %v5709 = vpop.f32.mrb[0].mxu0
        %v5710 = vadd.f32 0.0, %v5709
        %v5711 = vpop.f32.mrb[0].mxu0
        %v5712 = vpop.f32.mrb[0].mxu0
        %v5713 = vadd.f32 0.0, %v5712
        %v5714 = vpop.f32.mrb[0].mxu0
        %5715 = vmatprep.mubr.bf16.mxu0 0
        %5716 = vmatmul.mubr.bf16.gmra.mrb[0].mxu0 %v5498
        %v5717 = vpop.f32.mrb[0].mxu0
        %v5718 = vadd.f32 0.0, %v5717
        %v5719 = vpop.f32.mrb[0].mxu0
        %v5720 = vpop.f32.mrb[0].mxu0
        %v5721 = vadd.f32 0.0, %v5720
        %v5722 = vpop.f32.mrb[0].mxu0
        %5723 = vdwg.mxu0
        %v5724 = vld [vmem:[%s7] sm:$0xff]
        %v5725 = vld [vmem:[%s7 + $0x8] sm:$0xff]
        %v5726 = vld [vmem:[%s7 + $0x10] sm:$0xff]
        %v5727 = vld [vmem:[%s7 + $0x18] sm:$0xff]
        %v5728 = vld [vmem:[%s7 + $0x20] sm:$0xff]
        %v5729 = vld [vmem:[%s7 + $0x28] sm:$0xff]
        %v5730 = vld [vmem:[%s7 + $0x30] sm:$0xff]
        %v5731 = vld [vmem:[%s7 + $0x38] sm:$0xff]
        %v5732 = vld [vmem:[%s7 + $0x40] sm:$0xff]
        %v5733 = vld [vmem:[%s7 + $0x48] sm:$0xff]
        %v5734 = vld [vmem:[%s7 + $0x50] sm:$0xff]
        %v5735 = vld [vmem:[%s7 + $0x58] sm:$0xff]
        %v5736 = vld [vmem:[%s7 + $0x60] sm:$0xff]
        %v5737 = vld [vmem:[%s7 + $0x68] sm:$0xff]
        %v5738 = vld [vmem:[%s7 + $0x70] sm:$0xff]
        %v5739 = vld [vmem:[%s7 + $0x78] sm:$0xff]
        %v5740 = vld [vmem:[%s7 + $0x80] sm:$0xff]
        %v5741 = vld [vmem:[%s7 + $0x88] sm:$0xff]
        %v5742 = vld [vmem:[%s7 + $0x90] sm:$0xff]
        %v5743 = vld [vmem:[%s7 + $0x98] sm:$0xff]
        %v5744 = vld [vmem:[%s7 + $0xa0] sm:$0xff]
        %v5745 = vld [vmem:[%s7 + $0xa8] sm:$0xff]
        %v5746 = vld [vmem:[%s7 + $0xb0] sm:$0xff]
        %v5747 = vld [vmem:[%s7 + $0xb8] sm:$0xff]
        %v5748 = vld [vmem:[%s7 + $0xc0] sm:$0xff]
        %v5749 = vld [vmem:[%s7 + $0xc8] sm:$0xff]
        %v5750 = vld [vmem:[%s7 + $0xd0] sm:$0xff]
        %v5751 = vld [vmem:[%s7 + $0xd8] sm:$0xff]
        %v5752 = vld [vmem:[%s7 + $0xe0] sm:$0xff]
        %v5753 = vld [vmem:[%s7 + $0xe8] sm:$0xff]
        %v5754 = vld [vmem:[%s7 + $0xf0] sm:$0xff]
        %v5755 = vld [vmem:[%s7 + $0xf8] sm:$0xff]
        %5757 = vset.pattern.permute.xlu0 0
        %5758 = vperm.xlu0 %5757, %v5724
        %v5759 = vpop.permute.xlu0 %5758
        %5762 = vset.pattern.permute.xlu0 0
        %5763 = vperm.xlu0 %5762, %v5725
        %v5764 = vpop.permute.xlu0 %5763
        %5767 = vset.pattern.permute.xlu0 0
        %5768 = vperm.xlu0 %5767, %v5726
        %v5769 = vpop.permute.xlu0 %5768
        %5772 = vset.pattern.permute.xlu0 0
        %5773 = vperm.xlu0 %5772, %v5727
        %v5774 = vpop.permute.xlu0 %5773
        %5777 = vset.pattern.permute.xlu0 0
        %5778 = vperm.xlu0 %5777, %v5728
        %v5779 = vpop.permute.xlu0 %5778
        %5782 = vset.pattern.permute.xlu0 0
        %5783 = vperm.xlu0 %5782, %v5729
        %v5784 = vpop.permute.xlu0 %5783
        %5787 = vset.pattern.permute.xlu0 0
        %5788 = vperm.xlu0 %5787, %v5730
        %v5789 = vpop.permute.xlu0 %5788
        %5792 = vset.pattern.permute.xlu0 0
        %5793 = vperm.xlu0 %5792, %v5731
        %v5794 = vpop.permute.xlu0 %5793
        %5797 = vset.pattern.permute.xlu0 0
        %5798 = vperm.xlu0 %5797, %v5732
        %v5799 = vpop.permute.xlu0 %5798
        %5802 = vset.pattern.permute.xlu0 0
        %5803 = vperm.xlu0 %5802, %v5733
        %v5804 = vpop.permute.xlu0 %5803
        %5807 = vset.pattern.permute.xlu0 0
        %5808 = vperm.xlu0 %5807, %v5734
        %v5809 = vpop.permute.xlu0 %5808
        %5812 = vset.pattern.permute.xlu0 0
        %5813 = vperm.xlu0 %5812, %v5735
        %v5814 = vpop.permute.xlu0 %5813
        %5817 = vset.pattern.permute.xlu0 0
        %5818 = vperm.xlu0 %5817, %v5736
        %v5819 = vpop.permute.xlu0 %5818
        %5822 = vset.pattern.permute.xlu0 0
        %5823 = vperm.xlu0 %5822, %v5737
        %v5824 = vpop.permute.xlu0 %5823
        %5827 = vset.pattern.permute.xlu0 0
        %5828 = vperm.xlu0 %5827, %v5738
        %v5829 = vpop.permute.xlu0 %5828
        %5832 = vset.pattern.permute.xlu0 0
        %5833 = vperm.xlu0 %5832, %v5739
        %v5834 = vpop.permute.xlu0 %5833
        %5837 = vset.pattern.permute.xlu0 0
        %5838 = vperm.xlu0 %5837, %v5740
        %v5839 = vpop.permute.xlu0 %5838
        %5842 = vset.pattern.permute.xlu0 0
        %5843 = vperm.xlu0 %5842, %v5741
        %v5844 = vpop.permute.xlu0 %5843
        %5847 = vset.pattern.permute.xlu0 0
        %5848 = vperm.xlu0 %5847, %v5742
        %v5849 = vpop.permute.xlu0 %5848
        %5852 = vset.pattern.permute.xlu0 0
        %5853 = vperm.xlu0 %5852, %v5743
        %v5854 = vpop.permute.xlu0 %5853
        %5857 = vset.pattern.permute.xlu0 0
        %5858 = vperm.xlu0 %5857, %v5744
        %v5859 = vpop.permute.xlu0 %5858
        %5862 = vset.pattern.permute.xlu0 0
        %5863 = vperm.xlu0 %5862, %v5745
        %v5864 = vpop.permute.xlu0 %5863
        %5867 = vset.pattern.permute.xlu0 0
        %5868 = vperm.xlu0 %5867, %v5746
        %v5869 = vpop.permute.xlu0 %5868
        %5872 = vset.pattern.permute.xlu0 0
        %5873 = vperm.xlu0 %5872, %v5747
        %v5874 = vpop.permute.xlu0 %5873
        %5877 = vset.pattern.permute.xlu0 0
        %5878 = vperm.xlu0 %5877, %v5748
        %v5879 = vpop.permute.xlu0 %5878
        %5882 = vset.pattern.permute.xlu0 0
        %5883 = vperm.xlu0 %5882, %v5749
        %v5884 = vpop.permute.xlu0 %5883
        %5887 = vset.pattern.permute.xlu0 0
        %5888 = vperm.xlu0 %5887, %v5750
        %v5889 = vpop.permute.xlu0 %5888
        %5892 = vset.pattern.permute.xlu0 0
        %5893 = vperm.xlu0 %5892, %v5751
        %v5894 = vpop.permute.xlu0 %5893
        %5897 = vset.pattern.permute.xlu0 0
        %5898 = vperm.xlu0 %5897, %v5752
        %v5899 = vpop.permute.xlu0 %5898
        %5902 = vset.pattern.permute.xlu0 0
        %5903 = vperm.xlu0 %5902, %v5753
        %v5904 = vpop.permute.xlu0 %5903
        %5907 = vset.pattern.permute.xlu0 0
        %5908 = vperm.xlu0 %5907, %v5754
        %v5909 = vpop.permute.xlu0 %5908
        %5912 = vset.pattern.permute.xlu0 0
        %5913 = vperm.xlu0 %5912, %v5755
        %v5914 = vpop.permute.xlu0 %5913
        %v5916 = vmul.f32 %v5598, %v5759
        %v5917 = vmul.f32 %v5601, %v5764
        %v5918 = vmul.f32 %v5606, %v5769
        %v5919 = vmul.f32 %v5609, %v5774
        %v5920 = vmul.f32 %v5614, %v5779
        %v5921 = vmul.f32 %v5617, %v5784
        %v5922 = vmul.f32 %v5622, %v5789
        %v5923 = vmul.f32 %v5625, %v5794
        %v5924 = vmul.f32 %v5630, %v5799
        %v5925 = vmul.f32 %v5633, %v5804
        %v5926 = vmul.f32 %v5638, %v5809
        %v5927 = vmul.f32 %v5641, %v5814
        %v5928 = vmul.f32 %v5646, %v5819
        %v5929 = vmul.f32 %v5649, %v5824
        %v5930 = vmul.f32 %v5654, %v5829
        %v5931 = vmul.f32 %v5657, %v5834
        %v5932 = vmul.f32 %v5662, %v5839
        %v5933 = vmul.f32 %v5665, %v5844
        %v5934 = vmul.f32 %v5670, %v5849
        %v5935 = vmul.f32 %v5673, %v5854
        %v5936 = vmul.f32 %v5678, %v5859
        %v5937 = vmul.f32 %v5681, %v5864
        %v5938 = vmul.f32 %v5686, %v5869
        %v5939 = vmul.f32 %v5689, %v5874
        %v5940 = vmul.f32 %v5694, %v5879
        %v5941 = vmul.f32 %v5697, %v5884
        %v5942 = vmul.f32 %v5702, %v5889
        %v5943 = vmul.f32 %v5705, %v5894
        %v5944 = vmul.f32 %v5710, %v5899
        %v5945 = vmul.f32 %v5713, %v5904
        %v5946 = vmul.f32 %v5718, %v5909
        %v5947 = vmul.f32 %v5721, %v5914
        %5948 = vst [vmem:[#allocation2] sm:$0xff] %v5916
        %5949 = vst [vmem:[#allocation2 + $0x8] sm:$0xff] %v5917
        %5950 = vst [vmem:[#allocation2 + $0x10] sm:$0xff] %v5918
        %5951 = vst [vmem:[#allocation2 + $0x18] sm:$0xff] %v5919
        %5952 = vst [vmem:[#allocation2 + $0x20] sm:$0xff] %v5920
        %5953 = vst [vmem:[#allocation2 + $0x28] sm:$0xff] %v5921
        %5954 = vst [vmem:[#allocation2 + $0x30] sm:$0xff] %v5922
        %5955 = vst [vmem:[#allocation2 + $0x38] sm:$0xff] %v5923
        %5956 = vst [vmem:[#allocation2 + $0x40] sm:$0xff] %v5924
        %5957 = vst [vmem:[#allocation2 + $0x48] sm:$0xff] %v5925
        %5958 = vst [vmem:[#allocation2 + $0x50] sm:$0xff] %v5926
        %5959 = vst [vmem:[#allocation2 + $0x58] sm:$0xff] %v5927
        %5960 = vst [vmem:[#allocation2 + $0x60] sm:$0xff] %v5928
        %5961 = vst [vmem:[#allocation2 + $0x68] sm:$0xff] %v5929
        %5962 = vst [vmem:[#allocation2 + $0x70] sm:$0xff] %v5930
        %5963 = vst [vmem:[#allocation2 + $0x78] sm:$0xff] %v5931
        %5964 = vst [vmem:[#allocation2 + $0x80] sm:$0xff] %v5932
        %5965 = vst [vmem:[#allocation2 + $0x88] sm:$0xff] %v5933
        %5966 = vst [vmem:[#allocation2 + $0x90] sm:$0xff] %v5934
        %5967 = vst [vmem:[#allocation2 + $0x98] sm:$0xff] %v5935
        %5968 = vst [vmem:[#allocation2 + $0xa0] sm:$0xff] %v5936
        %5969 = vst [vmem:[#allocation2 + $0xa8] sm:$0xff] %v5937
        %5970 = vst [vmem:[#allocation2 + $0xb0] sm:$0xff] %v5938
        %5971 = vst [vmem:[#allocation2 + $0xb8] sm:$0xff] %v5939
        %5972 = vst [vmem:[#allocation2 + $0xc0] sm:$0xff] %v5940
        %5973 = vst [vmem:[#allocation2 + $0xc8] sm:$0xff] %v5941
        %5974 = vst [vmem:[#allocation2 + $0xd0] sm:$0xff] %v5942
        %5975 = vst [vmem:[#allocation2 + $0xd8] sm:$0xff] %v5943
        %5976 = vst [vmem:[#allocation2 + $0xe0] sm:$0xff] %v5944
        %5977 = vst [vmem:[#allocation2 + $0xe8] sm:$0xff] %v5945
        %5978 = vst [vmem:[#allocation2 + $0xf0] sm:$0xff] %v5946
        %5979 = vst [vmem:[#allocation2 + $0xf8] sm:$0xff] %v5947
        %v5980 = vpack.c.bf16 %v5418, %v5417
        %v5981 = vpack.c.bf16 %v5388, %v5387
        %v5982 = vpack.c.bf16 %v5390, %v5389
        %v5983 = vpack.c.bf16 %v5392, %v5391
        %v5984 = vpack.c.bf16 %v5394, %v5393
        %v5985 = vpack.c.bf16 %v5396, %v5395
        %v5986 = vpack.c.bf16 %v5398, %v5397
        %v5987 = vpack.c.bf16 %v5400, %v5399
        %v5988 = vpack.c.bf16 %v5402, %v5401
        %v5989 = vpack.c.bf16 %v5404, %v5403
        %v5990 = vpack.c.bf16 %v5406, %v5405
        %v5991 = vpack.c.bf16 %v5408, %v5407
        %v5992 = vpack.c.bf16 %v5410, %v5409
        %v5993 = vpack.c.bf16 %v5412, %v5411
        %v5994 = vpack.c.bf16 %v5414, %v5413
        %v5995 = vpack.c.bf16 %v5416, %v5415
        %s5996 = scalar_lea.vmem %s4, 64
        %v5997 = vld [vmem:[%s5996] sm:$0xf]
        %v5998 = vld [vmem:[%s5996 + $0x4] sm:$0xf]
        %v5999 = vld [vmem:[%s5996 + $0x8] sm:$0xf]
        %v6000 = vld [vmem:[%s5996 + $0xc] sm:$0xf]
        %v6001 = vld [vmem:[%s5996 + $0x10] sm:$0xf]
        %v6002 = vld [vmem:[%s5996 + $0x14] sm:$0xf]
        %v6003 = vld [vmem:[%s5996 + $0x18] sm:$0xf]
        %v6004 = vld [vmem:[%s5996 + $0x1c] sm:$0xf]
        %v6005 = vld [vmem:[%s5996 + $0x20] sm:$0xf]
        %v6006 = vld [vmem:[%s5996 + $0x24] sm:$0xf]
        %v6007 = vld [vmem:[%s5996 + $0x28] sm:$0xf]
        %v6008 = vld [vmem:[%s5996 + $0x2c] sm:$0xf]
        %v6009 = vld [vmem:[%s5996 + $0x30] sm:$0xf]
        %v6010 = vld [vmem:[%s5996 + $0x34] sm:$0xf]
        %v6011 = vld [vmem:[%s5996 + $0x38] sm:$0xf]
        %v6012 = vld [vmem:[%s5996 + $0x3c] sm:$0xf]
        %v6029 = vunpack.c.l.b16 %v5997
        %v6030 = vunpack.c.l.b16 %v5998
        %v6031 = vunpack.c.l.b16 %v5999
        %v6032 = vunpack.c.l.b16 %v6000
        %v6033 = vunpack.c.l.b16 %v6001
        %v6034 = vunpack.c.l.b16 %v6002
        %v6035 = vunpack.c.l.b16 %v6003
        %v6036 = vunpack.c.l.b16 %v6004
        %v6037 = vunpack.c.l.b16 %v6005
        %v6038 = vunpack.c.l.b16 %v6006
        %v6039 = vunpack.c.l.b16 %v6007
        %v6040 = vunpack.c.l.b16 %v6008
        %v6041 = vunpack.c.l.b16 %v6009
        %v6042 = vunpack.c.l.b16 %v6010
        %v6043 = vunpack.c.l.b16 %v6011
        %v6044 = vunpack.c.l.b16 %v6012
        %v6045 = vpack.c.b16 %v6030, %v6029
        %v6046 = vpack.c.b16 %v6032, %v6031
        %v6047 = vpack.c.b16 %v6034, %v6033
        %v6048 = vpack.c.b16 %v6036, %v6035
        %v6049 = vpack.c.b16 %v6038, %v6037
        %v6050 = vpack.c.b16 %v6040, %v6039
        %v6051 = vpack.c.b16 %v6042, %v6041
        %v6052 = vpack.c.b16 %v6044, %v6043
        %6061 = vmatprep.subr.bf16.mxu0 0
        %6062 = vmatpush1.bf16.msra.mxu0 %v6045
        %6063 = vmatprep.subr.bf16.mxu0 0
        %6064 = vmatpush1.bf16.msra.mxu0 %v6046
        %6065 = vmatprep.subr.bf16.mxu0 0
        %6066 = vmatpush1.bf16.msra.mxu0 %v6047
        %6067 = vmatprep.subr.bf16.mxu0 0
        %6068 = vmatpush1.bf16.msra.mxu0 %v6048
        %6069 = vmatprep.subr.bf16.mxu0 0
        %6070 = vmatpush1.bf16.msra.mxu0 %v6049
        %6071 = vmatprep.subr.bf16.mxu0 0
        %6072 = vmatpush1.bf16.msra.mxu0 %v6050
        %6073 = vmatprep.subr.bf16.mxu0 0
        %6074 = vmatpush1.bf16.msra.mxu0 %v6051
        %6075 = vmatprep.subr.bf16.mxu0 0
        %6076 = vmatpush1.bf16.msra.mxu0 %v6052
        %6077 = vmatprep.subr.bf16.mxu0 0
        %6078 = vmatpush1.bf16.msra.mxu0 0
        %6079 = vmatprep.subr.bf16.mxu0 0
        %6080 = vmatpush1.bf16.msra.mxu0 0
        %6081 = vmatprep.subr.bf16.mxu0 0
        %6082 = vmatpush1.bf16.msra.mxu0 0
        %6083 = vmatprep.subr.bf16.mxu0 0
        %6084 = vmatpush1.bf16.msra.mxu0 0
        %6085 = vmatprep.subr.bf16.mxu0 0
        %6086 = vmatpush1.bf16.msra.mxu0 0
        %6087 = vmatprep.subr.bf16.mxu0 0
        %6088 = vmatpush1.bf16.msra.mxu0 0
        %6089 = vmatprep.subr.bf16.mxu0 0
        %6090 = vmatpush1.bf16.msra.mxu0 0
        %6091 = vmatprep.subr.bf16.mxu0 0
        %6092 = vmatpush1.bf16.msra.mxu0 0
        %6093 = vmatprep.mubr.bf16.mxu0 0
        %6094 = vmatmul.mubr.bf16.gmra.mrb[0].mxu0 %v5980
        %v6095 = vpop.f32.mrb[0].mxu0
        %v6096 = vadd.f32 0.0, %v6095
        %v6097 = vpop.f32.mrb[0].mxu0
        %v6098 = vpop.f32.mrb[0].mxu0
        %v6099 = vadd.f32 0.0, %v6098
        %v6100 = vpop.f32.mrb[0].mxu0
        %6101 = vmatprep.mubr.bf16.mxu0 0
        %6102 = vmatmul.mubr.bf16.gmra.mrb[0].mxu0 %v5981
        %v6103 = vpop.f32.mrb[0].mxu0
        %v6104 = vadd.f32 0.0, %v6103
        %v6105 = vpop.f32.mrb[0].mxu0
        %v6106 = vpop.f32.mrb[0].mxu0
        %v6107 = vadd.f32 0.0, %v6106
        %v6108 = vpop.f32.mrb[0].mxu0
        %6109 = vmatprep.mubr.bf16.mxu0 0
        %6110 = vmatmul.mubr.bf16.gmra.mrb[0].mxu0 %v5982
        %v6111 = vpop.f32.mrb[0].mxu0
        %v6112 = vadd.f32 0.0, %v6111
        %v6113 = vpop.f32.mrb[0].mxu0
        %v6114 = vpop.f32.mrb[0].mxu0
        %v6115 = vadd.f32 0.0, %v6114
        %v6116 = vpop.f32.mrb[0].mxu0
        %6117 = vmatprep.mubr.bf16.mxu0 0
        %6118 = vmatmul.mubr.bf16.gmra.mrb[0].mxu0 %v5983
        %v6119 = vpop.f32.mrb[0].mxu0
        %v6120 = vadd.f32 0.0, %v6119
        %v6121 = vpop.f32.mrb[0].mxu0
        %v6122 = vpop.f32.mrb[0].mxu0
        %v6123 = vadd.f32 0.0, %v6122
        %v6124 = vpop.f32.mrb[0].mxu0
        %6125 = vmatprep.mubr.bf16.mxu0 0
        %6126 = vmatmul.mubr.bf16.gmra.mrb[0].mxu0 %v5984
        %v6127 = vpop.f32.mrb[0].mxu0
        %v6128 = vadd.f32 0.0, %v6127
        %v6129 = vpop.f32.mrb[0].mxu0
        %v6130 = vpop.f32.mrb[0].mxu0
        %v6131 = vadd.f32 0.0, %v6130
        %v6132 = vpop.f32.mrb[0].mxu0
        %6133 = vmatprep.mubr.bf16.mxu0 0
        %6134 = vmatmul.mubr.bf16.gmra.mrb[0].mxu0 %v5985
        %v6135 = vpop.f32.mrb[0].mxu0
        %v6136 = vadd.f32 0.0, %v6135
        %v6137 = vpop.f32.mrb[0].mxu0
        %v6138 = vpop.f32.mrb[0].mxu0
        %v6139 = vadd.f32 0.0, %v6138
        %v6140 = vpop.f32.mrb[0].mxu0
        %6141 = vmatprep.mubr.bf16.mxu0 0
        %6142 = vmatmul.mubr.bf16.gmra.mrb[0].mxu0 %v5986
        %v6143 = vpop.f32.mrb[0].mxu0
        %v6144 = vadd.f32 0.0, %v6143
        %v6145 = vpop.f32.mrb[0].mxu0
        %v6146 = vpop.f32.mrb[0].mxu0
        %v6147 = vadd.f32 0.0, %v6146
        %v6148 = vpop.f32.mrb[0].mxu0
        %6149 = vmatprep.mubr.bf16.mxu0 0
        %6150 = vmatmul.mubr.bf16.gmra.mrb[0].mxu0 %v5987
        %v6151 = vpop.f32.mrb[0].mxu0
        %v6152 = vadd.f32 0.0, %v6151
        %v6153 = vpop.f32.mrb[0].mxu0
        %v6154 = vpop.f32.mrb[0].mxu0
        %v6155 = vadd.f32 0.0, %v6154
        %v6156 = vpop.f32.mrb[0].mxu0
        %6157 = vmatprep.mubr.bf16.mxu0 0
        %6158 = vmatmul.mubr.bf16.gmra.mrb[0].mxu0 %v5988
        %v6159 = vpop.f32.mrb[0].mxu0
        %v6160 = vadd.f32 0.0, %v6159
        %v6161 = vpop.f32.mrb[0].mxu0
        %v6162 = vpop.f32.mrb[0].mxu0
        %v6163 = vadd.f32 0.0, %v6162
        %v6164 = vpop.f32.mrb[0].mxu0
        %6165 = vmatprep.mubr.bf16.mxu0 0
        %6166 = vmatmul.mubr.bf16.gmra.mrb[0].mxu0 %v5989
        %v6167 = vpop.f32.mrb[0].mxu0
        %v6168 = vadd.f32 0.0, %v6167
        %v6169 = vpop.f32.mrb[0].mxu0
        %v6170 = vpop.f32.mrb[0].mxu0
        %v6171 = vadd.f32 0.0, %v6170
        %v6172 = vpop.f32.mrb[0].mxu0
        %6173 = vmatprep.mubr.bf16.mxu0 0
        %6174 = vmatmul.mubr.bf16.gmra.mrb[0].mxu0 %v5990
        %v6175 = vpop.f32.mrb[0].mxu0
        %v6176 = vadd.f32 0.0, %v6175
        %v6177 = vpop.f32.mrb[0].mxu0
        %v6178 = vpop.f32.mrb[0].mxu0
        %v6179 = vadd.f32 0.0, %v6178
        %v6180 = vpop.f32.mrb[0].mxu0
        %6181 = vmatprep.mubr.bf16.mxu0 0
        %6182 = vmatmul.mubr.bf16.gmra.mrb[0].mxu0 %v5991
        %v6183 = vpop.f32.mrb[0].mxu0
        %v6184 = vadd.f32 0.0, %v6183
        %v6185 = vpop.f32.mrb[0].mxu0
        %v6186 = vpop.f32.mrb[0].mxu0
        %v6187 = vadd.f32 0.0, %v6186
        %v6188 = vpop.f32.mrb[0].mxu0
        %6189 = vmatprep.mubr.bf16.mxu0 0
        %6190 = vmatmul.mubr.bf16.gmra.mrb[0].mxu0 %v5992
        %v6191 = vpop.f32.mrb[0].mxu0
        %v6192 = vadd.f32 0.0, %v6191
        %v6193 = vpop.f32.mrb[0].mxu0
        %v6194 = vpop.f32.mrb[0].mxu0
        %v6195 = vadd.f32 0.0, %v6194
        %v6196 = vpop.f32.mrb[0].mxu0
        %6197 = vmatprep.mubr.bf16.mxu0 0
        %6198 = vmatmul.mubr.bf16.gmra.mrb[0].mxu0 %v5993
        %v6199 = vpop.f32.mrb[0].mxu0
        %v6200 = vadd.f32 0.0, %v6199
        %v6201 = vpop.f32.mrb[0].mxu0
        %v6202 = vpop.f32.mrb[0].mxu0
        %v6203 = vadd.f32 0.0, %v6202
        %v6204 = vpop.f32.mrb[0].mxu0
        %6205 = vmatprep.mubr.bf16.mxu0 0
        %6206 = vmatmul.mubr.bf16.gmra.mrb[0].mxu0 %v5994
        %v6207 = vpop.f32.mrb[0].mxu0
        %v6208 = vadd.f32 0.0, %v6207
        %v6209 = vpop.f32.mrb[0].mxu0
        %v6210 = vpop.f32.mrb[0].mxu0
        %v6211 = vadd.f32 0.0, %v6210
        %v6212 = vpop.f32.mrb[0].mxu0
        %6213 = vmatprep.mubr.bf16.mxu0 0
        %6214 = vmatmul.mubr.bf16.gmra.mrb[0].mxu0 %v5995
        %v6215 = vpop.f32.mrb[0].mxu0
        %v6216 = vadd.f32 0.0, %v6215
        %v6217 = vpop.f32.mrb[0].mxu0
        %v6218 = vpop.f32.mrb[0].mxu0
        %v6219 = vadd.f32 0.0, %v6218
        %v6220 = vpop.f32.mrb[0].mxu0
        %6221 = vdwg.mxu0
        %v6222 = vld [vmem:[%s1175] sm:$0xff]
        %v6223 = vld [vmem:[%s1175 + $0x8] sm:$0xff]
        %v6224 = vld [vmem:[%s1175 + $0x10] sm:$0xff]
        %v6225 = vld [vmem:[%s1175 + $0x18] sm:$0xff]
        %v6226 = vld [vmem:[%s1175 + $0x20] sm:$0xff]
        %v6227 = vld [vmem:[%s1175 + $0x28] sm:$0xff]
        %v6228 = vld [vmem:[%s1175 + $0x30] sm:$0xff]
        %v6229 = vld [vmem:[%s1175 + $0x38] sm:$0xff]
        %v6230 = vld [vmem:[%s1175 + $0x40] sm:$0xff]
        %v6231 = vld [vmem:[%s1175 + $0x48] sm:$0xff]
        %v6232 = vld [vmem:[%s1175 + $0x50] sm:$0xff]
        %v6233 = vld [vmem:[%s1175 + $0x58] sm:$0xff]
        %v6234 = vld [vmem:[%s1175 + $0x60] sm:$0xff]
        %v6235 = vld [vmem:[%s1175 + $0x68] sm:$0xff]
        %v6236 = vld [vmem:[%s1175 + $0x70] sm:$0xff]
        %v6237 = vld [vmem:[%s1175 + $0x78] sm:$0xff]
        %v6238 = vld [vmem:[%s1175 + $0x80] sm:$0xff]
        %v6239 = vld [vmem:[%s1175 + $0x88] sm:$0xff]
        %v6240 = vld [vmem:[%s1175 + $0x90] sm:$0xff]
        %v6241 = vld [vmem:[%s1175 + $0x98] sm:$0xff]
        %v6242 = vld [vmem:[%s1175 + $0xa0] sm:$0xff]
        %v6243 = vld [vmem:[%s1175 + $0xa8] sm:$0xff]
        %v6244 = vld [vmem:[%s1175 + $0xb0] sm:$0xff]
        %v6245 = vld [vmem:[%s1175 + $0xb8] sm:$0xff]
        %v6246 = vld [vmem:[%s1175 + $0xc0] sm:$0xff]
        %v6247 = vld [vmem:[%s1175 + $0xc8] sm:$0xff]
        %v6248 = vld [vmem:[%s1175 + $0xd0] sm:$0xff]
        %v6249 = vld [vmem:[%s1175 + $0xd8] sm:$0xff]
        %v6250 = vld [vmem:[%s1175 + $0xe0] sm:$0xff]
        %v6251 = vld [vmem:[%s1175 + $0xe8] sm:$0xff]
        %v6252 = vld [vmem:[%s1175 + $0xf0] sm:$0xff]
        %v6253 = vld [vmem:[%s1175 + $0xf8] sm:$0xff]
        %6255 = vset.pattern.permute.xlu0 0
        %6256 = vperm.xlu0 %6255, %v6222
        %v6257 = vpop.permute.xlu0 %6256
        %6260 = vset.pattern.permute.xlu0 0
        %6261 = vperm.xlu0 %6260, %v6223
        %v6262 = vpop.permute.xlu0 %6261
        %6265 = vset.pattern.permute.xlu0 0
        %6266 = vperm.xlu0 %6265, %v6224
        %v6267 = vpop.permute.xlu0 %6266
        %6270 = vset.pattern.permute.xlu0 0
        %6271 = vperm.xlu0 %6270, %v6225
        %v6272 = vpop.permute.xlu0 %6271
        %6275 = vset.pattern.permute.xlu0 0
        %6276 = vperm.xlu0 %6275, %v6226
        %v6277 = vpop.permute.xlu0 %6276
        %6280 = vset.pattern.permute.xlu0 0
        %6281 = vperm.xlu0 %6280, %v6227
        %v6282 = vpop.permute.xlu0 %6281
        %6285 = vset.pattern.permute.xlu0 0
        %6286 = vperm.xlu0 %6285, %v6228
        %v6287 = vpop.permute.xlu0 %6286
        %6290 = vset.pattern.permute.xlu0 0
        %6291 = vperm.xlu0 %6290, %v6229
        %v6292 = vpop.permute.xlu0 %6291
        %6295 = vset.pattern.permute.xlu0 0
        %6296 = vperm.xlu0 %6295, %v6230
        %v6297 = vpop.permute.xlu0 %6296
        %6300 = vset.pattern.permute.xlu0 0
        %6301 = vperm.xlu0 %6300, %v6231
        %v6302 = vpop.permute.xlu0 %6301
        %6305 = vset.pattern.permute.xlu0 0
        %6306 = vperm.xlu0 %6305, %v6232
        %v6307 = vpop.permute.xlu0 %6306
        %6310 = vset.pattern.permute.xlu0 0
        %6311 = vperm.xlu0 %6310, %v6233
        %v6312 = vpop.permute.xlu0 %6311
        %6315 = vset.pattern.permute.xlu0 0
        %6316 = vperm.xlu0 %6315, %v6234
        %v6317 = vpop.permute.xlu0 %6316
        %6320 = vset.pattern.permute.xlu0 0
        %6321 = vperm.xlu0 %6320, %v6235
        %v6322 = vpop.permute.xlu0 %6321
        %6325 = vset.pattern.permute.xlu0 0
        %6326 = vperm.xlu0 %6325, %v6236
        %v6327 = vpop.permute.xlu0 %6326
        %6330 = vset.pattern.permute.xlu0 0
        %6331 = vperm.xlu0 %6330, %v6237
        %v6332 = vpop.permute.xlu0 %6331
        %6335 = vset.pattern.permute.xlu0 0
        %6336 = vperm.xlu0 %6335, %v6238
        %v6337 = vpop.permute.xlu0 %6336
        %6340 = vset.pattern.permute.xlu0 0
        %6341 = vperm.xlu0 %6340, %v6239
        %v6342 = vpop.permute.xlu0 %6341
        %6345 = vset.pattern.permute.xlu0 0
        %6346 = vperm.xlu0 %6345, %v6240
        %v6347 = vpop.permute.xlu0 %6346
        %6350 = vset.pattern.permute.xlu0 0
        %6351 = vperm.xlu0 %6350, %v6241
        %v6352 = vpop.permute.xlu0 %6351
        %6355 = vset.pattern.permute.xlu0 0
        %6356 = vperm.xlu0 %6355, %v6242
        %v6357 = vpop.permute.xlu0 %6356
        %6360 = vset.pattern.permute.xlu0 0
        %6361 = vperm.xlu0 %6360, %v6243
        %v6362 = vpop.permute.xlu0 %6361
        %6365 = vset.pattern.permute.xlu0 0
        %6366 = vperm.xlu0 %6365, %v6244
        %v6367 = vpop.permute.xlu0 %6366
        %6370 = vset.pattern.permute.xlu0 0
        %6371 = vperm.xlu0 %6370, %v6245
        %v6372 = vpop.permute.xlu0 %6371
        %6375 = vset.pattern.permute.xlu0 0
        %6376 = vperm.xlu0 %6375, %v6246
        %v6377 = vpop.permute.xlu0 %6376
        %6380 = vset.pattern.permute.xlu0 0
        %6381 = vperm.xlu0 %6380, %v6247
        %v6382 = vpop.permute.xlu0 %6381
        %6385 = vset.pattern.permute.xlu0 0
        %6386 = vperm.xlu0 %6385, %v6248
        %v6387 = vpop.permute.xlu0 %6386
        %6390 = vset.pattern.permute.xlu0 0
        %6391 = vperm.xlu0 %6390, %v6249
        %v6392 = vpop.permute.xlu0 %6391
        %6395 = vset.pattern.permute.xlu0 0
        %6396 = vperm.xlu0 %6395, %v6250
        %v6397 = vpop.permute.xlu0 %6396
        %6400 = vset.pattern.permute.xlu0 0
        %6401 = vperm.xlu0 %6400, %v6251
        %v6402 = vpop.permute.xlu0 %6401
        %6405 = vset.pattern.permute.xlu0 0
        %6406 = vperm.xlu0 %6405, %v6252
        %v6407 = vpop.permute.xlu0 %6406
        %6410 = vset.pattern.permute.xlu0 0
        %6411 = vperm.xlu0 %6410, %v6253
        %v6412 = vpop.permute.xlu0 %6411
        %v6414 = vmul.f32 %v6096, %v6257
        %v6415 = vmul.f32 %v6099, %v6262
        %v6416 = vmul.f32 %v6104, %v6267
        %v6417 = vmul.f32 %v6107, %v6272
        %v6418 = vmul.f32 %v6112, %v6277
        %v6419 = vmul.f32 %v6115, %v6282
        %v6420 = vmul.f32 %v6120, %v6287
        %v6421 = vmul.f32 %v6123, %v6292
        %v6422 = vmul.f32 %v6128, %v6297
        %v6423 = vmul.f32 %v6131, %v6302
        %v6424 = vmul.f32 %v6136, %v6307
        %v6425 = vmul.f32 %v6139, %v6312
        %v6426 = vmul.f32 %v6144, %v6317
        %v6427 = vmul.f32 %v6147, %v6322
        %v6428 = vmul.f32 %v6152, %v6327
        %v6429 = vmul.f32 %v6155, %v6332
        %v6430 = vmul.f32 %v6160, %v6337
        %v6431 = vmul.f32 %v6163, %v6342
        %v6432 = vmul.f32 %v6168, %v6347
        %v6433 = vmul.f32 %v6171, %v6352
        %v6434 = vmul.f32 %v6176, %v6357
        %v6435 = vmul.f32 %v6179, %v6362
        %v6436 = vmul.f32 %v6184, %v6367
        %v6437 = vmul.f32 %v6187, %v6372
        %v6438 = vmul.f32 %v6192, %v6377
        %v6439 = vmul.f32 %v6195, %v6382
        %v6440 = vmul.f32 %v6200, %v6387
        %v6441 = vmul.f32 %v6203, %v6392
        %v6442 = vmul.f32 %v6208, %v6397
        %v6443 = vmul.f32 %v6211, %v6402
        %v6444 = vmul.f32 %v6216, %v6407
        %v6445 = vmul.f32 %v6219, %v6412
        %v6446 = vld [vmem:[#allocation2] sm:$0xff]
        %v6447 = vld [vmem:[#allocation2 + $0x8] sm:$0xff]
        %v6448 = vld [vmem:[#allocation2 + $0x10] sm:$0xff]
        %v6449 = vld [vmem:[#allocation2 + $0x18] sm:$0xff]
        %v6450 = vld [vmem:[#allocation2 + $0x20] sm:$0xff]
        %v6451 = vld [vmem:[#allocation2 + $0x28] sm:$0xff]
        %v6452 = vld [vmem:[#allocation2 + $0x30] sm:$0xff]
        %v6453 = vld [vmem:[#allocation2 + $0x38] sm:$0xff]
        %v6454 = vld [vmem:[#allocation2 + $0x40] sm:$0xff]
        %v6455 = vld [vmem:[#allocation2 + $0x48] sm:$0xff]
        %v6456 = vld [vmem:[#allocation2 + $0x50] sm:$0xff]
        %v6457 = vld [vmem:[#allocation2 + $0x58] sm:$0xff]
        %v6458 = vld [vmem:[#allocation2 + $0x60] sm:$0xff]
        %v6459 = vld [vmem:[#allocation2 + $0x68] sm:$0xff]
        %v6460 = vld [vmem:[#allocation2 + $0x70] sm:$0xff]
        %v6461 = vld [vmem:[#allocation2 + $0x78] sm:$0xff]
        %v6462 = vld [vmem:[#allocation2 + $0x80] sm:$0xff]
        %v6463 = vld [vmem:[#allocation2 + $0x88] sm:$0xff]
        %v6464 = vld [vmem:[#allocation2 + $0x90] sm:$0xff]
        %v6465 = vld [vmem:[#allocation2 + $0x98] sm:$0xff]
        %v6466 = vld [vmem:[#allocation2 + $0xa0] sm:$0xff]
        %v6467 = vld [vmem:[#allocation2 + $0xa8] sm:$0xff]
        %v6468 = vld [vmem:[#allocation2 + $0xb0] sm:$0xff]
        %v6469 = vld [vmem:[#allocation2 + $0xb8] sm:$0xff]
        %v6470 = vld [vmem:[#allocation2 + $0xc0] sm:$0xff]
        %v6471 = vld [vmem:[#allocation2 + $0xc8] sm:$0xff]
        %v6472 = vld [vmem:[#allocation2 + $0xd0] sm:$0xff]
        %v6473 = vld [vmem:[#allocation2 + $0xd8] sm:$0xff]
        %v6474 = vld [vmem:[#allocation2 + $0xe0] sm:$0xff]
        %v6475 = vld [vmem:[#allocation2 + $0xe8] sm:$0xff]
        %v6476 = vld [vmem:[#allocation2 + $0xf0] sm:$0xff]
        %v6477 = vld [vmem:[#allocation2 + $0xf8] sm:$0xff]
        %v6478 = vadd.f32 %v6446, %v6414
        %v6479 = vadd.f32 %v6447, %v6415
        %v6480 = vadd.f32 %v6448, %v6416
        %v6481 = vadd.f32 %v6449, %v6417
        %v6482 = vadd.f32 %v6450, %v6418
        %v6483 = vadd.f32 %v6451, %v6419
        %v6484 = vadd.f32 %v6452, %v6420
        %v6485 = vadd.f32 %v6453, %v6421
        %v6486 = vadd.f32 %v6454, %v6422
        %v6487 = vadd.f32 %v6455, %v6423
        %v6488 = vadd.f32 %v6456, %v6424
        %v6489 = vadd.f32 %v6457, %v6425
        %v6490 = vadd.f32 %v6458, %v6426
        %v6491 = vadd.f32 %v6459, %v6427
        %v6492 = vadd.f32 %v6460, %v6428
        %v6493 = vadd.f32 %v6461, %v6429
        %v6494 = vadd.f32 %v6462, %v6430
        %v6495 = vadd.f32 %v6463, %v6431
        %v6496 = vadd.f32 %v6464, %v6432
        %v6497 = vadd.f32 %v6465, %v6433
        %v6498 = vadd.f32 %v6466, %v6434
        %v6499 = vadd.f32 %v6467, %v6435
        %v6500 = vadd.f32 %v6468, %v6436
        %v6501 = vadd.f32 %v6469, %v6437
        %v6502 = vadd.f32 %v6470, %v6438
        %v6503 = vadd.f32 %v6471, %v6439
        %v6504 = vadd.f32 %v6472, %v6440
        %v6505 = vadd.f32 %v6473, %v6441
        %v6506 = vadd.f32 %v6474, %v6442
        %v6507 = vadd.f32 %v6475, %v6443
        %v6508 = vadd.f32 %v6476, %v6444
        %v6509 = vadd.f32 %v6477, %v6445
        %6510 = vst [vmem:[#allocation2] sm:$0xff] %v6478
        %6511 = vst [vmem:[#allocation2 + $0x8] sm:$0xff] %v6479
        %6512 = vst [vmem:[#allocation2 + $0x10] sm:$0xff] %v6480
        %6513 = vst [vmem:[#allocation2 + $0x18] sm:$0xff] %v6481
        %6514 = vst [vmem:[#allocation2 + $0x20] sm:$0xff] %v6482
        %6515 = vst [vmem:[#allocation2 + $0x28] sm:$0xff] %v6483
        %6516 = vst [vmem:[#allocation2 + $0x30] sm:$0xff] %v6484
        %6517 = vst [vmem:[#allocation2 + $0x38] sm:$0xff] %v6485
        %6518 = vst [vmem:[#allocation2 + $0x40] sm:$0xff] %v6486
        %6519 = vst [vmem:[#allocation2 + $0x48] sm:$0xff] %v6487
        %6520 = vst [vmem:[#allocation2 + $0x50] sm:$0xff] %v6488
        %6521 = vst [vmem:[#allocation2 + $0x58] sm:$0xff] %v6489
        %6522 = vst [vmem:[#allocation2 + $0x60] sm:$0xff] %v6490
        %6523 = vst [vmem:[#allocation2 + $0x68] sm:$0xff] %v6491
        %6524 = vst [vmem:[#allocation2 + $0x70] sm:$0xff] %v6492
        %6525 = vst [vmem:[#allocation2 + $0x78] sm:$0xff] %v6493
        %6526 = vst [vmem:[#allocation2 + $0x80] sm:$0xff] %v6494
        %6527 = vst [vmem:[#allocation2 + $0x88] sm:$0xff] %v6495
        %6528 = vst [vmem:[#allocation2 + $0x90] sm:$0xff] %v6496
        %6529 = vst [vmem:[#allocation2 + $0x98] sm:$0xff] %v6497
        %6530 = vst [vmem:[#allocation2 + $0xa0] sm:$0xff] %v6498
        %6531 = vst [vmem:[#allocation2 + $0xa8] sm:$0xff] %v6499
        %6532 = vst [vmem:[#allocation2 + $0xb0] sm:$0xff] %v6500
        %6533 = vst [vmem:[#allocation2 + $0xb8] sm:$0xff] %v6501
        %6534 = vst [vmem:[#allocation2 + $0xc0] sm:$0xff] %v6502
        %6535 = vst [vmem:[#allocation2 + $0xc8] sm:$0xff] %v6503
        %6536 = vst [vmem:[#allocation2 + $0xd0] sm:$0xff] %v6504
        %6537 = vst [vmem:[#allocation2 + $0xd8] sm:$0xff] %v6505
        %6538 = vst [vmem:[#allocation2 + $0xe0] sm:$0xff] %v6506
        %6539 = vst [vmem:[#allocation2 + $0xe8] sm:$0xff] %v6507
        %6540 = vst [vmem:[#allocation2 + $0xf0] sm:$0xff] %v6508
        %6541 = vst [vmem:[#allocation2 + $0xf8] sm:$0xff] %v6509
        %v6542 = vrot.slane %v5387, 1
        %v6543 = vrot.slane %v5388, 1
        %v6544 = vrot.slane %v5389, 1
        %v6545 = vrot.slane %v5390, 1
        %v6546 = vrot.slane %v5391, 1
        %v6547 = vrot.slane %v5392, 1
        %v6548 = vrot.slane %v5393, 1
        %v6549 = vrot.slane %v5394, 1
        %v6550 = vrot.slane %v5395, 1
        %v6551 = vrot.slane %v5396, 1
        %v6552 = vrot.slane %v5397, 1
        %v6553 = vrot.slane %v5398, 1
        %v6554 = vrot.slane %v5399, 1
        %v6555 = vrot.slane %v5400, 1
        %v6556 = vrot.slane %v5401, 1
        %v6557 = vrot.slane %v5402, 1
        %v6558 = vrot.slane %v5403, 1
        %v6559 = vrot.slane %v5404, 1
        %v6560 = vrot.slane %v5405, 1
        %v6561 = vrot.slane %v5406, 1
        %v6562 = vrot.slane %v5407, 1
        %v6563 = vrot.slane %v5408, 1
        %v6564 = vrot.slane %v5409, 1
        %v6565 = vrot.slane %v5410, 1
        %v6566 = vrot.slane %v5411, 1
        %v6567 = vrot.slane %v5412, 1
        %v6568 = vrot.slane %v5413, 1
        %v6569 = vrot.slane %v5414, 1
        %v6570 = vrot.slane %v5415, 1
        %v6571 = vrot.slane %v5416, 1
        %v6572 = vrot.slane %v5417, 1
        %v6573 = vrot.slane %v5418, 1
        %v6574 = vsel %vm1528, %v6572, %v6573
        %v6575 = vsel %vm1528, %v6571, %v6572
        %v6576 = vsel %vm1528, %v6570, %v6571
        %v6577 = vsel %vm1528, %v6569, %v6570
        %v6578 = vsel %vm1528, %v6568, %v6569
        %v6579 = vsel %vm1528, %v6567, %v6568
        %v6580 = vsel %vm1528, %v6566, %v6567
        %v6581 = vsel %vm1528, %v6565, %v6566
        %v6582 = vsel %vm1528, %v6564, %v6565
        %v6583 = vsel %vm1528, %v6563, %v6564
        %v6584 = vsel %vm1528, %v6562, %v6563
        %v6585 = vsel %vm1528, %v6561, %v6562
        %v6586 = vsel %vm1528, %v6560, %v6561
        %v6587 = vsel %vm1528, %v6559, %v6560
        %v6588 = vsel %vm1528, %v6558, %v6559
        %v6589 = vsel %vm1528, %v6557, %v6558
        %v6590 = vsel %vm1528, %v6556, %v6557
        %v6591 = vsel %vm1528, %v6555, %v6556
        %v6592 = vsel %vm1528, %v6554, %v6555
        %v6593 = vsel %vm1528, %v6553, %v6554
        %v6594 = vsel %vm1528, %v6552, %v6553
        %v6595 = vsel %vm1528, %v6551, %v6552
        %v6596 = vsel %vm1528, %v6550, %v6551
        %v6597 = vsel %vm1528, %v6549, %v6550
        %v6598 = vsel %vm1528, %v6548, %v6549
        %v6599 = vsel %vm1528, %v6547, %v6548
        %v6600 = vsel %vm1528, %v6546, %v6547
        %v6601 = vsel %vm1528, %v6545, %v6546
        %v6602 = vsel %vm1528, %v6544, %v6545
        %v6603 = vsel %vm1528, %v6543, %v6544
        %v6604 = vsel %vm1528, %v6542, %v6543
        %v6605 = vsel %vm1528, %v6573, %v6542
        %v6606 = vpack.c.bf16 %v6605, %v6574
        %v6607 = vpack.c.bf16 %v6603, %v6604
        %v6608 = vpack.c.bf16 %v6601, %v6602
        %v6609 = vpack.c.bf16 %v6599, %v6600
        %v6610 = vpack.c.bf16 %v6597, %v6598
        %v6611 = vpack.c.bf16 %v6595, %v6596
        %v6612 = vpack.c.bf16 %v6593, %v6594
        %v6613 = vpack.c.bf16 %v6591, %v6592
        %v6614 = vpack.c.bf16 %v6589, %v6590
        %v6615 = vpack.c.bf16 %v6587, %v6588
        %v6616 = vpack.c.bf16 %v6585, %v6586
        %v6617 = vpack.c.bf16 %v6583, %v6584
        %v6618 = vpack.c.bf16 %v6581, %v6582
        %v6619 = vpack.c.bf16 %v6579, %v6580
        %v6620 = vpack.c.bf16 %v6577, %v6578
        %v6621 = vpack.c.bf16 %v6575, %v6576
        %s6622 = scalar_lea.vmem %s4, 128
        %v6623 = vld [vmem:[%s6622] sm:$0xf]
        %v6624 = vld [vmem:[%s6622 + $0x4] sm:$0xf]
        %v6625 = vld [vmem:[%s6622 + $0x8] sm:$0xf]
        %v6626 = vld [vmem:[%s6622 + $0xc] sm:$0xf]
        %v6627 = vld [vmem:[%s6622 + $0x10] sm:$0xf]
        %v6628 = vld [vmem:[%s6622 + $0x14] sm:$0xf]
        %v6629 = vld [vmem:[%s6622 + $0x18] sm:$0xf]
        %v6630 = vld [vmem:[%s6622 + $0x1c] sm:$0xf]
        %v6631 = vld [vmem:[%s6622 + $0x20] sm:$0xf]
        %v6632 = vld [vmem:[%s6622 + $0x24] sm:$0xf]
        %v6633 = vld [vmem:[%s6622 + $0x28] sm:$0xf]
        %v6634 = vld [vmem:[%s6622 + $0x2c] sm:$0xf]
        %v6635 = vld [vmem:[%s6622 + $0x30] sm:$0xf]
        %v6636 = vld [vmem:[%s6622 + $0x34] sm:$0xf]
        %v6637 = vld [vmem:[%s6622 + $0x38] sm:$0xf]
        %v6638 = vld [vmem:[%s6622 + $0x3c] sm:$0xf]
        %v6655 = vunpack.c.l.b16 %v6623
        %v6656 = vunpack.c.l.b16 %v6624
        %v6657 = vunpack.c.l.b16 %v6625
        %v6658 = vunpack.c.l.b16 %v6626
        %v6659 = vunpack.c.l.b16 %v6627
        %v6660 = vunpack.c.l.b16 %v6628
        %v6661 = vunpack.c.l.b16 %v6629
        %v6662 = vunpack.c.l.b16 %v6630
        %v6663 = vunpack.c.l.b16 %v6631
        %v6664 = vunpack.c.l.b16 %v6632
        %v6665 = vunpack.c.l.b16 %v6633
        %v6666 = vunpack.c.l.b16 %v6634
        %v6667 = vunpack.c.l.b16 %v6635
        %v6668 = vunpack.c.l.b16 %v6636
        %v6669 = vunpack.c.l.b16 %v6637
        %v6670 = vunpack.c.l.b16 %v6638
        %v6671 = vpack.c.b16 %v6656, %v6655
        %v6672 = vpack.c.b16 %v6658, %v6657
        %v6673 = vpack.c.b16 %v6660, %v6659
        %v6674 = vpack.c.b16 %v6662, %v6661
        %v6675 = vpack.c.b16 %v6664, %v6663
        %v6676 = vpack.c.b16 %v6666, %v6665
        %v6677 = vpack.c.b16 %v6668, %v6667
        %v6678 = vpack.c.b16 %v6670, %v6669
        %6687 = vmatprep.subr.bf16.mxu0 0
        %6688 = vmatpush1.bf16.msra.mxu0 %v6671
        %6689 = vmatprep.subr.bf16.mxu0 0
        %6690 = vmatpush1.bf16.msra.mxu0 %v6672
        %6691 = vmatprep.subr.bf16.mxu0 0
        %6692 = vmatpush1.bf16.msra.mxu0 %v6673
        %6693 = vmatprep.subr.bf16.mxu0 0
        %6694 = vmatpush1.bf16.msra.mxu0 %v6674
        %6695 = vmatprep.subr.bf16.mxu0 0
        %6696 = vmatpush1.bf16.msra.mxu0 %v6675
        %6697 = vmatprep.subr.bf16.mxu0 0
        %6698 = vmatpush1.bf16.msra.mxu0 %v6676
        %6699 = vmatprep.subr.bf16.mxu0 0
        %6700 = vmatpush1.bf16.msra.mxu0 %v6677
        %6701 = vmatprep.subr.bf16.mxu0 0
        %6702 = vmatpush1.bf16.msra.mxu0 %v6678
        %6703 = vmatprep.subr.bf16.mxu0 0
        %6704 = vmatpush1.bf16.msra.mxu0 0
        %6705 = vmatprep.subr.bf16.mxu0 0
        %6706 = vmatpush1.bf16.msra.mxu0 0
        %6707 = vmatprep.subr.bf16.mxu0 0
        %6708 = vmatpush1.bf16.msra.mxu0 0
        %6709 = vmatprep.subr.bf16.mxu0 0
        %6710 = vmatpush1.bf16.msra.mxu0 0
        %6711 = vmatprep.subr.bf16.mxu0 0
        %6712 = vmatpush1.bf16.msra.mxu0 0
        %6713 = vmatprep.subr.bf16.mxu0 0
        %6714 = vmatpush1.bf16.msra.mxu0 0
        %6715 = vmatprep.subr.bf16.mxu0 0
        %6716 = vmatpush1.bf16.msra.mxu0 0
        %6717 = vmatprep.subr.bf16.mxu0 0
        %6718 = vmatpush1.bf16.msra.mxu0 0
        %6719 = vmatprep.mubr.bf16.mxu0 0
        %6720 = vmatmul.mubr.bf16.gmra.mrb[0].mxu0 %v6606
        %v6721 = vpop.f32.mrb[0].mxu0
        %v6722 = vadd.f32 0.0, %v6721
        %v6723 = vpop.f32.mrb[0].mxu0
        %v6724 = vpop.f32.mrb[0].mxu0
        %v6725 = vadd.f32 0.0, %v6724
        %v6726 = vpop.f32.mrb[0].mxu0
        %6727 = vmatprep.mubr.bf16.mxu0 0
        %6728 = vmatmul.mubr.bf16.gmra.mrb[0].mxu0 %v6607
        %v6729 = vpop.f32.mrb[0].mxu0
        %v6730 = vadd.f32 0.0, %v6729
        %v6731 = vpop.f32.mrb[0].mxu0
        %v6732 = vpop.f32.mrb[0].mxu0
        %v6733 = vadd.f32 0.0, %v6732
        %v6734 = vpop.f32.mrb[0].mxu0
        %6735 = vmatprep.mubr.bf16.mxu0 0
        %6736 = vmatmul.mubr.bf16.gmra.mrb[0].mxu0 %v6608
        %v6737 = vpop.f32.mrb[0].mxu0
        %v6738 = vadd.f32 0.0, %v6737
        %v6739 = vpop.f32.mrb[0].mxu0
        %v6740 = vpop.f32.mrb[0].mxu0
        %v6741 = vadd.f32 0.0, %v6740
        %v6742 = vpop.f32.mrb[0].mxu0
        %6743 = vmatprep.mubr.bf16.mxu0 0
        %6744 = vmatmul.mubr.bf16.gmra.mrb[0].mxu0 %v6609
        %v6745 = vpop.f32.mrb[0].mxu0
        %v6746 = vadd.f32 0.0, %v6745
        %v6747 = vpop.f32.mrb[0].mxu0
        %v6748 = vpop.f32.mrb[0].mxu0
        %v6749 = vadd.f32 0.0, %v6748
        %v6750 = vpop.f32.mrb[0].mxu0
        %6751 = vmatprep.mubr.bf16.mxu0 0
        %6752 = vmatmul.mubr.bf16.gmra.mrb[0].mxu0 %v6610
        %v6753 = vpop.f32.mrb[0].mxu0
        %v6754 = vadd.f32 0.0, %v6753
        %v6755 = vpop.f32.mrb[0].mxu0
        %v6756 = vpop.f32.mrb[0].mxu0
        %v6757 = vadd.f32 0.0, %v6756
        %v6758 = vpop.f32.mrb[0].mxu0
        %6759 = vmatprep.mubr.bf16.mxu0 0
        %6760 = vmatmul.mubr.bf16.gmra.mrb[0].mxu0 %v6611
        %v6761 = vpop.f32.mrb[0].mxu0
        %v6762 = vadd.f32 0.0, %v6761
        %v6763 = vpop.f32.mrb[0].mxu0
        %v6764 = vpop.f32.mrb[0].mxu0
        %v6765 = vadd.f32 0.0, %v6764
        %v6766 = vpop.f32.mrb[0].mxu0
        %6767 = vmatprep.mubr.bf16.mxu0 0
        %6768 = vmatmul.mubr.bf16.gmra.mrb[0].mxu0 %v6612
        %v6769 = vpop.f32.mrb[0].mxu0
        %v6770 = vadd.f32 0.0, %v6769
        %v6771 = vpop.f32.mrb[0].mxu0
        %v6772 = vpop.f32.mrb[0].mxu0
        %v6773 = vadd.f32 0.0, %v6772
        %v6774 = vpop.f32.mrb[0].mxu0
        %6775 = vmatprep.mubr.bf16.mxu0 0
        %6776 = vmatmul.mubr.bf16.gmra.mrb[0].mxu0 %v6613
        %v6777 = vpop.f32.mrb[0].mxu0
        %v6778 = vadd.f32 0.0, %v6777
        %v6779 = vpop.f32.mrb[0].mxu0
        %v6780 = vpop.f32.mrb[0].mxu0
        %v6781 = vadd.f32 0.0, %v6780
        %v6782 = vpop.f32.mrb[0].mxu0
        %6783 = vmatprep.mubr.bf16.mxu0 0
        %6784 = vmatmul.mubr.bf16.gmra.mrb[0].mxu0 %v6614
        %v6785 = vpop.f32.mrb[0].mxu0
        %v6786 = vadd.f32 0.0, %v6785
        %v6787 = vpop.f32.mrb[0].mxu0
        %v6788 = vpop.f32.mrb[0].mxu0
        %v6789 = vadd.f32 0.0, %v6788
        %v6790 = vpop.f32.mrb[0].mxu0
        %6791 = vmatprep.mubr.bf16.mxu0 0
        %6792 = vmatmul.mubr.bf16.gmra.mrb[0].mxu0 %v6615
        %v6793 = vpop.f32.mrb[0].mxu0
        %v6794 = vadd.f32 0.0, %v6793
        %v6795 = vpop.f32.mrb[0].mxu0
        %v6796 = vpop.f32.mrb[0].mxu0
        %v6797 = vadd.f32 0.0, %v6796
        %v6798 = vpop.f32.mrb[0].mxu0
        %6799 = vmatprep.mubr.bf16.mxu0 0
        %6800 = vmatmul.mubr.bf16.gmra.mrb[0].mxu0 %v6616
        %v6801 = vpop.f32.mrb[0].mxu0
        %v6802 = vadd.f32 0.0, %v6801
        %v6803 = vpop.f32.mrb[0].mxu0
        %v6804 = vpop.f32.mrb[0].mxu0
        %v6805 = vadd.f32 0.0, %v6804
        %v6806 = vpop.f32.mrb[0].mxu0
        %6807 = vmatprep.mubr.bf16.mxu0 0
        %6808 = vmatmul.mubr.bf16.gmra.mrb[0].mxu0 %v6617
        %v6809 = vpop.f32.mrb[0].mxu0
        %v6810 = vadd.f32 0.0, %v6809
        %v6811 = vpop.f32.mrb[0].mxu0
        %v6812 = vpop.f32.mrb[0].mxu0
        %v6813 = vadd.f32 0.0, %v6812
        %v6814 = vpop.f32.mrb[0].mxu0
        %6815 = vmatprep.mubr.bf16.mxu0 0
        %6816 = vmatmul.mubr.bf16.gmra.mrb[0].mxu0 %v6618
        %v6817 = vpop.f32.mrb[0].mxu0
        %v6818 = vadd.f32 0.0, %v6817
        %v6819 = vpop.f32.mrb[0].mxu0
        %v6820 = vpop.f32.mrb[0].mxu0
        %v6821 = vadd.f32 0.0, %v6820
        %v6822 = vpop.f32.mrb[0].mxu0
        %6823 = vmatprep.mubr.bf16.mxu0 0
        %6824 = vmatmul.mubr.bf16.gmra.mrb[0].mxu0 %v6619
        %v6825 = vpop.f32.mrb[0].mxu0
        %v6826 = vadd.f32 0.0, %v6825
        %v6827 = vpop.f32.mrb[0].mxu0
        %v6828 = vpop.f32.mrb[0].mxu0
        %v6829 = vadd.f32 0.0, %v6828
        %v6830 = vpop.f32.mrb[0].mxu0
        %6831 = vmatprep.mubr.bf16.mxu0 0
        %6832 = vmatmul.mubr.bf16.gmra.mrb[0].mxu0 %v6620
        %v6833 = vpop.f32.mrb[0].mxu0
        %v6834 = vadd.f32 0.0, %v6833
        %v6835 = vpop.f32.mrb[0].mxu0
        %v6836 = vpop.f32.mrb[0].mxu0
        %v6837 = vadd.f32 0.0, %v6836
        %v6838 = vpop.f32.mrb[0].mxu0
        %6839 = vmatprep.mubr.bf16.mxu0 0
        %6840 = vmatmul.mubr.bf16.gmra.mrb[0].mxu0 %v6621
        %v6841 = vpop.f32.mrb[0].mxu0
        %v6842 = vadd.f32 0.0, %v6841
        %v6843 = vpop.f32.mrb[0].mxu0
        %v6844 = vpop.f32.mrb[0].mxu0
        %v6845 = vadd.f32 0.0, %v6844
        %v6846 = vpop.f32.mrb[0].mxu0
        %6847 = vdwg.mxu0
        %v6848 = vld [vmem:[%s1803] sm:$0xff]
        %v6849 = vld [vmem:[%s1803 + $0x8] sm:$0xff]
        %v6850 = vld [vmem:[%s1803 + $0x10] sm:$0xff]
        %v6851 = vld [vmem:[%s1803 + $0x18] sm:$0xff]
        %v6852 = vld [vmem:[%s1803 + $0x20] sm:$0xff]
        %v6853 = vld [vmem:[%s1803 + $0x28] sm:$0xff]
        %v6854 = vld [vmem:[%s1803 + $0x30] sm:$0xff]
        %v6855 = vld [vmem:[%s1803 + $0x38] sm:$0xff]
        %v6856 = vld [vmem:[%s1803 + $0x40] sm:$0xff]
        %v6857 = vld [vmem:[%s1803 + $0x48] sm:$0xff]
        %v6858 = vld [vmem:[%s1803 + $0x50] sm:$0xff]
        %v6859 = vld [vmem:[%s1803 + $0x58] sm:$0xff]
        %v6860 = vld [vmem:[%s1803 + $0x60] sm:$0xff]
        %v6861 = vld [vmem:[%s1803 + $0x68] sm:$0xff]
        %v6862 = vld [vmem:[%s1803 + $0x70] sm:$0xff]
        %v6863 = vld [vmem:[%s1803 + $0x78] sm:$0xff]
        %v6864 = vld [vmem:[%s1803 + $0x80] sm:$0xff]
        %v6865 = vld [vmem:[%s1803 + $0x88] sm:$0xff]
        %v6866 = vld [vmem:[%s1803 + $0x90] sm:$0xff]
        %v6867 = vld [vmem:[%s1803 + $0x98] sm:$0xff]
        %v6868 = vld [vmem:[%s1803 + $0xa0] sm:$0xff]
        %v6869 = vld [vmem:[%s1803 + $0xa8] sm:$0xff]
        %v6870 = vld [vmem:[%s1803 + $0xb0] sm:$0xff]
        %v6871 = vld [vmem:[%s1803 + $0xb8] sm:$0xff]
        %v6872 = vld [vmem:[%s1803 + $0xc0] sm:$0xff]
        %v6873 = vld [vmem:[%s1803 + $0xc8] sm:$0xff]
        %v6874 = vld [vmem:[%s1803 + $0xd0] sm:$0xff]
        %v6875 = vld [vmem:[%s1803 + $0xd8] sm:$0xff]
        %v6876 = vld [vmem:[%s1803 + $0xe0] sm:$0xff]
        %v6877 = vld [vmem:[%s1803 + $0xe8] sm:$0xff]
        %v6878 = vld [vmem:[%s1803 + $0xf0] sm:$0xff]
        %v6879 = vld [vmem:[%s1803 + $0xf8] sm:$0xff]
        %6881 = vset.pattern.permute.xlu0 0
        %6882 = vperm.xlu0 %6881, %v6848
        %v6883 = vpop.permute.xlu0 %6882
        %6886 = vset.pattern.permute.xlu0 0
        %6887 = vperm.xlu0 %6886, %v6849
        %v6888 = vpop.permute.xlu0 %6887
        %6891 = vset.pattern.permute.xlu0 0
        %6892 = vperm.xlu0 %6891, %v6850
        %v6893 = vpop.permute.xlu0 %6892
        %6896 = vset.pattern.permute.xlu0 0
        %6897 = vperm.xlu0 %6896, %v6851
        %v6898 = vpop.permute.xlu0 %6897
        %6901 = vset.pattern.permute.xlu0 0
        %6902 = vperm.xlu0 %6901, %v6852
        %v6903 = vpop.permute.xlu0 %6902
        %6906 = vset.pattern.permute.xlu0 0
        %6907 = vperm.xlu0 %6906, %v6853
        %v6908 = vpop.permute.xlu0 %6907
        %6911 = vset.pattern.permute.xlu0 0
        %6912 = vperm.xlu0 %6911, %v6854
        %v6913 = vpop.permute.xlu0 %6912
        %6916 = vset.pattern.permute.xlu0 0
        %6917 = vperm.xlu0 %6916, %v6855
        %v6918 = vpop.permute.xlu0 %6917
        %6921 = vset.pattern.permute.xlu0 0
        %6922 = vperm.xlu0 %6921, %v6856
        %v6923 = vpop.permute.xlu0 %6922
        %6926 = vset.pattern.permute.xlu0 0
        %6927 = vperm.xlu0 %6926, %v6857
        %v6928 = vpop.permute.xlu0 %6927
        %6931 = vset.pattern.permute.xlu0 0
        %6932 = vperm.xlu0 %6931, %v6858
        %v6933 = vpop.permute.xlu0 %6932
        %6936 = vset.pattern.permute.xlu0 0
        %6937 = vperm.xlu0 %6936, %v6859
        %v6938 = vpop.permute.xlu0 %6937
        %6941 = vset.pattern.permute.xlu0 0
        %6942 = vperm.xlu0 %6941, %v6860
        %v6943 = vpop.permute.xlu0 %6942
        %6946 = vset.pattern.permute.xlu0 0
        %6947 = vperm.xlu0 %6946, %v6861
        %v6948 = vpop.permute.xlu0 %6947
        %6951 = vset.pattern.permute.xlu0 0
        %6952 = vperm.xlu0 %6951, %v6862
        %v6953 = vpop.permute.xlu0 %6952
        %6956 = vset.pattern.permute.xlu0 0
        %6957 = vperm.xlu0 %6956, %v6863
        %v6958 = vpop.permute.xlu0 %6957
        %6961 = vset.pattern.permute.xlu0 0
        %6962 = vperm.xlu0 %6961, %v6864
        %v6963 = vpop.permute.xlu0 %6962
        %6966 = vset.pattern.permute.xlu0 0
        %6967 = vperm.xlu0 %6966, %v6865
        %v6968 = vpop.permute.xlu0 %6967
        %6971 = vset.pattern.permute.xlu0 0
        %6972 = vperm.xlu0 %6971, %v6866
        %v6973 = vpop.permute.xlu0 %6972
        %6976 = vset.pattern.permute.xlu0 0
        %6977 = vperm.xlu0 %6976, %v6867
        %v6978 = vpop.permute.xlu0 %6977
        %6981 = vset.pattern.permute.xlu0 0
        %6982 = vperm.xlu0 %6981, %v6868
        %v6983 = vpop.permute.xlu0 %6982
        %6986 = vset.pattern.permute.xlu0 0
        %6987 = vperm.xlu0 %6986, %v6869
        %v6988 = vpop.permute.xlu0 %6987
        %6991 = vset.pattern.permute.xlu0 0
        %6992 = vperm.xlu0 %6991, %v6870
        %v6993 = vpop.permute.xlu0 %6992
        %6996 = vset.pattern.permute.xlu0 0
        %6997 = vperm.xlu0 %6996, %v6871
        %v6998 = vpop.permute.xlu0 %6997
        %7001 = vset.pattern.permute.xlu0 0
        %7002 = vperm.xlu0 %7001, %v6872
        %v7003 = vpop.permute.xlu0 %7002
        %7006 = vset.pattern.permute.xlu0 0
        %7007 = vperm.xlu0 %7006, %v6873
        %v7008 = vpop.permute.xlu0 %7007
        %7011 = vset.pattern.permute.xlu0 0
        %7012 = vperm.xlu0 %7011, %v6874
        %v7013 = vpop.permute.xlu0 %7012
        %7016 = vset.pattern.permute.xlu0 0
        %7017 = vperm.xlu0 %7016, %v6875
        %v7018 = vpop.permute.xlu0 %7017
        %7021 = vset.pattern.permute.xlu0 0
        %7022 = vperm.xlu0 %7021, %v6876
        %v7023 = vpop.permute.xlu0 %7022
        %7026 = vset.pattern.permute.xlu0 0
        %7027 = vperm.xlu0 %7026, %v6877
        %v7028 = vpop.permute.xlu0 %7027
        %7031 = vset.pattern.permute.xlu0 0
        %7032 = vperm.xlu0 %7031, %v6878
        %v7033 = vpop.permute.xlu0 %7032
        %7036 = vset.pattern.permute.xlu0 0
        %7037 = vperm.xlu0 %7036, %v6879
        %v7038 = vpop.permute.xlu0 %7037
        %v7040 = vmul.f32 %v6722, %v6883
        %v7041 = vmul.f32 %v6725, %v6888
        %v7042 = vmul.f32 %v6730, %v6893
        %v7043 = vmul.f32 %v6733, %v6898
        %v7044 = vmul.f32 %v6738, %v6903
        %v7045 = vmul.f32 %v6741, %v6908
        %v7046 = vmul.f32 %v6746, %v6913
        %v7047 = vmul.f32 %v6749, %v6918
        %v7048 = vmul.f32 %v6754, %v6923
        %v7049 = vmul.f32 %v6757, %v6928
        %v7050 = vmul.f32 %v6762, %v6933
        %v7051 = vmul.f32 %v6765, %v6938
        %v7052 = vmul.f32 %v6770, %v6943
        %v7053 = vmul.f32 %v6773, %v6948
        %v7054 = vmul.f32 %v6778, %v6953
        %v7055 = vmul.f32 %v6781, %v6958
        %v7056 = vmul.f32 %v6786, %v6963
        %v7057 = vmul.f32 %v6789, %v6968
        %v7058 = vmul.f32 %v6794, %v6973
        %v7059 = vmul.f32 %v6797, %v6978
        %v7060 = vmul.f32 %v6802, %v6983
        %v7061 = vmul.f32 %v6805, %v6988
        %v7062 = vmul.f32 %v6810, %v6993
        %v7063 = vmul.f32 %v6813, %v6998
        %v7064 = vmul.f32 %v6818, %v7003
        %v7065 = vmul.f32 %v6821, %v7008
        %v7066 = vmul.f32 %v6826, %v7013
        %v7067 = vmul.f32 %v6829, %v7018
        %v7068 = vmul.f32 %v6834, %v7023
        %v7069 = vmul.f32 %v6837, %v7028
        %v7070 = vmul.f32 %v6842, %v7033
        %v7071 = vmul.f32 %v6845, %v7038
        %v7072 = vld [vmem:[#allocation2] sm:$0xff]
        %v7073 = vld [vmem:[#allocation2 + $0x8] sm:$0xff]
        %v7074 = vld [vmem:[#allocation2 + $0x10] sm:$0xff]
        %v7075 = vld [vmem:[#allocation2 + $0x18] sm:$0xff]
        %v7076 = vld [vmem:[#allocation2 + $0x20] sm:$0xff]
        %v7077 = vld [vmem:[#allocation2 + $0x28] sm:$0xff]
        %v7078 = vld [vmem:[#allocation2 + $0x30] sm:$0xff]
        %v7079 = vld [vmem:[#allocation2 + $0x38] sm:$0xff]
        %v7080 = vld [vmem:[#allocation2 + $0x40] sm:$0xff]
        %v7081 = vld [vmem:[#allocation2 + $0x48] sm:$0xff]
        %v7082 = vld [vmem:[#allocation2 + $0x50] sm:$0xff]
        %v7083 = vld [vmem:[#allocation2 + $0x58] sm:$0xff]
        %v7084 = vld [vmem:[#allocation2 + $0x60] sm:$0xff]
        %v7085 = vld [vmem:[#allocation2 + $0x68] sm:$0xff]
        %v7086 = vld [vmem:[#allocation2 + $0x70] sm:$0xff]
        %v7087 = vld [vmem:[#allocation2 + $0x78] sm:$0xff]
        %v7088 = vld [vmem:[#allocation2 + $0x80] sm:$0xff]
        %v7089 = vld [vmem:[#allocation2 + $0x88] sm:$0xff]
        %v7090 = vld [vmem:[#allocation2 + $0x90] sm:$0xff]
        %v7091 = vld [vmem:[#allocation2 + $0x98] sm:$0xff]
        %v7092 = vld [vmem:[#allocation2 + $0xa0] sm:$0xff]
        %v7093 = vld [vmem:[#allocation2 + $0xa8] sm:$0xff]
        %v7094 = vld [vmem:[#allocation2 + $0xb0] sm:$0xff]
        %v7095 = vld [vmem:[#allocation2 + $0xb8] sm:$0xff]
        %v7096 = vld [vmem:[#allocation2 + $0xc0] sm:$0xff]
        %v7097 = vld [vmem:[#allocation2 + $0xc8] sm:$0xff]
        %v7098 = vld [vmem:[#allocation2 + $0xd0] sm:$0xff]
        %v7099 = vld [vmem:[#allocation2 + $0xd8] sm:$0xff]
        %v7100 = vld [vmem:[#allocation2 + $0xe0] sm:$0xff]
        %v7101 = vld [vmem:[#allocation2 + $0xe8] sm:$0xff]
        %v7102 = vld [vmem:[#allocation2 + $0xf0] sm:$0xff]
        %v7103 = vld [vmem:[#allocation2 + $0xf8] sm:$0xff]
        %v7104 = vadd.f32 %v7072, %v7040
        %v7105 = vadd.f32 %v7073, %v7041
        %v7106 = vadd.f32 %v7074, %v7042
        %v7107 = vadd.f32 %v7075, %v7043
        %v7108 = vadd.f32 %v7076, %v7044
        %v7109 = vadd.f32 %v7077, %v7045
        %v7110 = vadd.f32 %v7078, %v7046
        %v7111 = vadd.f32 %v7079, %v7047
        %v7112 = vadd.f32 %v7080, %v7048
        %v7113 = vadd.f32 %v7081, %v7049
        %v7114 = vadd.f32 %v7082, %v7050
        %v7115 = vadd.f32 %v7083, %v7051
        %v7116 = vadd.f32 %v7084, %v7052
        %v7117 = vadd.f32 %v7085, %v7053
        %v7118 = vadd.f32 %v7086, %v7054
        %v7119 = vadd.f32 %v7087, %v7055
        %v7120 = vadd.f32 %v7088, %v7056
        %v7121 = vadd.f32 %v7089, %v7057
        %v7122 = vadd.f32 %v7090, %v7058
        %v7123 = vadd.f32 %v7091, %v7059
        %v7124 = vadd.f32 %v7092, %v7060
        %v7125 = vadd.f32 %v7093, %v7061
        %v7126 = vadd.f32 %v7094, %v7062
        %v7127 = vadd.f32 %v7095, %v7063
        %v7128 = vadd.f32 %v7096, %v7064
        %v7129 = vadd.f32 %v7097, %v7065
        %v7130 = vadd.f32 %v7098, %v7066
        %v7131 = vadd.f32 %v7099, %v7067
        %v7132 = vadd.f32 %v7100, %v7068
        %v7133 = vadd.f32 %v7101, %v7069
        %v7134 = vadd.f32 %v7102, %v7070
        %v7135 = vadd.f32 %v7103, %v7071
        %7136 = vst [vmem:[#allocation2] sm:$0xff] %v7104
        %7137 = vst [vmem:[#allocation2 + $0x8] sm:$0xff] %v7105
        %7138 = vst [vmem:[#allocation2 + $0x10] sm:$0xff] %v7106
        %7139 = vst [vmem:[#allocation2 + $0x18] sm:$0xff] %v7107
        %7140 = vst [vmem:[#allocation2 + $0x20] sm:$0xff] %v7108
        %7141 = vst [vmem:[#allocation2 + $0x28] sm:$0xff] %v7109
        %7142 = vst [vmem:[#allocation2 + $0x30] sm:$0xff] %v7110
        %7143 = vst [vmem:[#allocation2 + $0x38] sm:$0xff] %v7111
        %7144 = vst [vmem:[#allocation2 + $0x40] sm:$0xff] %v7112
        %7145 = vst [vmem:[#allocation2 + $0x48] sm:$0xff] %v7113
        %7146 = vst [vmem:[#allocation2 + $0x50] sm:$0xff] %v7114
        %7147 = vst [vmem:[#allocation2 + $0x58] sm:$0xff] %v7115
        %7148 = vst [vmem:[#allocation2 + $0x60] sm:$0xff] %v7116
        %7149 = vst [vmem:[#allocation2 + $0x68] sm:$0xff] %v7117
        %7150 = vst [vmem:[#allocation2 + $0x70] sm:$0xff] %v7118
        %7151 = vst [vmem:[#allocation2 + $0x78] sm:$0xff] %v7119
        %7152 = vst [vmem:[#allocation2 + $0x80] sm:$0xff] %v7120
        %7153 = vst [vmem:[#allocation2 + $0x88] sm:$0xff] %v7121
        %7154 = vst [vmem:[#allocation2 + $0x90] sm:$0xff] %v7122
        %7155 = vst [vmem:[#allocation2 + $0x98] sm:$0xff] %v7123
        %7156 = vst [vmem:[#allocation2 + $0xa0] sm:$0xff] %v7124
        %7157 = vst [vmem:[#allocation2 + $0xa8] sm:$0xff] %v7125
        %7158 = vst [vmem:[#allocation2 + $0xb0] sm:$0xff] %v7126
        %7159 = vst [vmem:[#allocation2 + $0xb8] sm:$0xff] %v7127
        %7160 = vst [vmem:[#allocation2 + $0xc0] sm:$0xff] %v7128
        %7161 = vst [vmem:[#allocation2 + $0xc8] sm:$0xff] %v7129
        %7162 = vst [vmem:[#allocation2 + $0xd0] sm:$0xff] %v7130
        %7163 = vst [vmem:[#allocation2 + $0xd8] sm:$0xff] %v7131
        %7164 = vst [vmem:[#allocation2 + $0xe0] sm:$0xff] %v7132
        %7165 = vst [vmem:[#allocation2 + $0xe8] sm:$0xff] %v7133
        %7166 = vst [vmem:[#allocation2 + $0xf0] sm:$0xff] %v7134
        %7167 = vst [vmem:[#allocation2 + $0xf8] sm:$0xff] %v7135
        %s7168 = scalar_lea.vmem %s4, 192
        %v7169 = vld [vmem:[%s7168] sm:$0xf]
        %v7170 = vld [vmem:[%s7168 + $0x4] sm:$0xf]
        %v7171 = vld [vmem:[%s7168 + $0x8] sm:$0xf]
        %v7172 = vld [vmem:[%s7168 + $0xc] sm:$0xf]
        %v7173 = vld [vmem:[%s7168 + $0x10] sm:$0xf]
        %v7174 = vld [vmem:[%s7168 + $0x14] sm:$0xf]
        %v7175 = vld [vmem:[%s7168 + $0x18] sm:$0xf]
        %v7176 = vld [vmem:[%s7168 + $0x1c] sm:$0xf]
        %v7177 = vld [vmem:[%s7168 + $0x20] sm:$0xf]
        %v7178 = vld [vmem:[%s7168 + $0x24] sm:$0xf]
        %v7179 = vld [vmem:[%s7168 + $0x28] sm:$0xf]
        %v7180 = vld [vmem:[%s7168 + $0x2c] sm:$0xf]
        %v7181 = vld [vmem:[%s7168 + $0x30] sm:$0xf]
        %v7182 = vld [vmem:[%s7168 + $0x34] sm:$0xf]
        %v7183 = vld [vmem:[%s7168 + $0x38] sm:$0xf]
        %v7184 = vld [vmem:[%s7168 + $0x3c] sm:$0xf]
        %v7201 = vunpack.c.l.b16 %v7169
        %v7202 = vunpack.c.l.b16 %v7170
        %v7203 = vunpack.c.l.b16 %v7171
        %v7204 = vunpack.c.l.b16 %v7172
        %v7205 = vunpack.c.l.b16 %v7173
        %v7206 = vunpack.c.l.b16 %v7174
        %v7207 = vunpack.c.l.b16 %v7175
        %v7208 = vunpack.c.l.b16 %v7176
        %v7209 = vunpack.c.l.b16 %v7177
        %v7210 = vunpack.c.l.b16 %v7178
        %v7211 = vunpack.c.l.b16 %v7179
        %v7212 = vunpack.c.l.b16 %v7180
        %v7213 = vunpack.c.l.b16 %v7181
        %v7214 = vunpack.c.l.b16 %v7182
        %v7215 = vunpack.c.l.b16 %v7183
        %v7216 = vunpack.c.l.b16 %v7184
        %v7217 = vpack.c.b16 %v7202, %v7201
        %v7218 = vpack.c.b16 %v7204, %v7203
        %v7219 = vpack.c.b16 %v7206, %v7205
        %v7220 = vpack.c.b16 %v7208, %v7207
        %v7221 = vpack.c.b16 %v7210, %v7209
        %v7222 = vpack.c.b16 %v7212, %v7211
        %v7223 = vpack.c.b16 %v7214, %v7213
        %v7224 = vpack.c.b16 %v7216, %v7215
        %7233 = vmatprep.subr.bf16.mxu0 0
        %7234 = vmatpush1.bf16.msra.mxu0 %v7217
        %7235 = vmatprep.subr.bf16.mxu0 0
        %7236 = vmatpush1.bf16.msra.mxu0 %v7218
        %7237 = vmatprep.subr.bf16.mxu0 0
        %7238 = vmatpush1.bf16.msra.mxu0 %v7219
        %7239 = vmatprep.subr.bf16.mxu0 0
        %7240 = vmatpush1.bf16.msra.mxu0 %v7220
        %7241 = vmatprep.subr.bf16.mxu0 0
        %7242 = vmatpush1.bf16.msra.mxu0 %v7221
        %7243 = vmatprep.subr.bf16.mxu0 0
        %7244 = vmatpush1.bf16.msra.mxu0 %v7222
        %7245 = vmatprep.subr.bf16.mxu0 0
        %7246 = vmatpush1.bf16.msra.mxu0 %v7223
        %7247 = vmatprep.subr.bf16.mxu0 0
        %7248 = vmatpush1.bf16.msra.mxu0 %v7224
        %7249 = vmatprep.subr.bf16.mxu0 0
        %7250 = vmatpush1.bf16.msra.mxu0 0
        %7251 = vmatprep.subr.bf16.mxu0 0
        %7252 = vmatpush1.bf16.msra.mxu0 0
        %7253 = vmatprep.subr.bf16.mxu0 0
        %7254 = vmatpush1.bf16.msra.mxu0 0
        %7255 = vmatprep.subr.bf16.mxu0 0
        %7256 = vmatpush1.bf16.msra.mxu0 0
        %7257 = vmatprep.subr.bf16.mxu0 0
        %7258 = vmatpush1.bf16.msra.mxu0 0
        %7259 = vmatprep.subr.bf16.mxu0 0
        %7260 = vmatpush1.bf16.msra.mxu0 0
        %7261 = vmatprep.subr.bf16.mxu0 0
        %7262 = vmatpush1.bf16.msra.mxu0 0
        %7263 = vmatprep.subr.bf16.mxu0 0
        %7264 = vmatpush1.bf16.msra.mxu0 0
        %7265 = vmatprep.mubr.bf16.mxu0 0
        %7266 = vmatmul.mubr.bf16.gmra.mrb[0].mxu0 %v5484
        %v7267 = vpop.f32.mrb[0].mxu0
        %v7268 = vadd.f32 0.0, %v7267
        %v7269 = vpop.f32.mrb[0].mxu0
        %v7270 = vpop.f32.mrb[0].mxu0
        %v7271 = vadd.f32 0.0, %v7270
        %v7272 = vpop.f32.mrb[0].mxu0
        %7273 = vmatprep.mubr.bf16.mxu0 0
        %7274 = vmatmul.mubr.bf16.gmra.mrb[0].mxu0 %v5485
        %v7275 = vpop.f32.mrb[0].mxu0
        %v7276 = vadd.f32 0.0, %v7275
        %v7277 = vpop.f32.mrb[0].mxu0
        %v7278 = vpop.f32.mrb[0].mxu0
        %v7279 = vadd.f32 0.0, %v7278
        %v7280 = vpop.f32.mrb[0].mxu0
        %7281 = vmatprep.mubr.bf16.mxu0 0
        %7282 = vmatmul.mubr.bf16.gmra.mrb[0].mxu0 %v5486
        %v7283 = vpop.f32.mrb[0].mxu0
        %v7284 = vadd.f32 0.0, %v7283
        %v7285 = vpop.f32.mrb[0].mxu0
        %v7286 = vpop.f32.mrb[0].mxu0
        %v7287 = vadd.f32 0.0, %v7286
        %v7288 = vpop.f32.mrb[0].mxu0
        %7289 = vmatprep.mubr.bf16.mxu0 0
        %7290 = vmatmul.mubr.bf16.gmra.mrb[0].mxu0 %v5487
        %v7291 = vpop.f32.mrb[0].mxu0
        %v7292 = vadd.f32 0.0, %v7291
        %v7293 = vpop.f32.mrb[0].mxu0
        %v7294 = vpop.f32.mrb[0].mxu0
        %v7295 = vadd.f32 0.0, %v7294
        %v7296 = vpop.f32.mrb[0].mxu0
        %7297 = vmatprep.mubr.bf16.mxu0 0
        %7298 = vmatmul.mubr.bf16.gmra.mrb[0].mxu0 %v5488
        %v7299 = vpop.f32.mrb[0].mxu0
        %v7300 = vadd.f32 0.0, %v7299
        %v7301 = vpop.f32.mrb[0].mxu0
        %v7302 = vpop.f32.mrb[0].mxu0
        %v7303 = vadd.f32 0.0, %v7302
        %v7304 = vpop.f32.mrb[0].mxu0
        %7305 = vmatprep.mubr.bf16.mxu0 0
        %7306 = vmatmul.mubr.bf16.gmra.mrb[0].mxu0 %v5489
        %v7307 = vpop.f32.mrb[0].mxu0
        %v7308 = vadd.f32 0.0, %v7307
        %v7309 = vpop.f32.mrb[0].mxu0
        %v7310 = vpop.f32.mrb[0].mxu0
        %v7311 = vadd.f32 0.0, %v7310
        %v7312 = vpop.f32.mrb[0].mxu0
        %7313 = vmatprep.mubr.bf16.mxu0 0
        %7314 = vmatmul.mubr.bf16.gmra.mrb[0].mxu0 %v5490
        %v7315 = vpop.f32.mrb[0].mxu0
        %v7316 = vadd.f32 0.0, %v7315
        %v7317 = vpop.f32.mrb[0].mxu0
        %v7318 = vpop.f32.mrb[0].mxu0
        %v7319 = vadd.f32 0.0, %v7318
        %v7320 = vpop.f32.mrb[0].mxu0
        %7321 = vmatprep.mubr.bf16.mxu0 0
        %7322 = vmatmul.mubr.bf16.gmra.mrb[0].mxu0 %v5491
        %v7323 = vpop.f32.mrb[0].mxu0
        %v7324 = vadd.f32 0.0, %v7323
        %v7325 = vpop.f32.mrb[0].mxu0
        %v7326 = vpop.f32.mrb[0].mxu0
        %v7327 = vadd.f32 0.0, %v7326
        %v7328 = vpop.f32.mrb[0].mxu0
        %7329 = vmatprep.mubr.bf16.mxu0 0
        %7330 = vmatmul.mubr.bf16.gmra.mrb[0].mxu0 %v5492
        %v7331 = vpop.f32.mrb[0].mxu0
        %v7332 = vadd.f32 0.0, %v7331
        %v7333 = vpop.f32.mrb[0].mxu0
        %v7334 = vpop.f32.mrb[0].mxu0
        %v7335 = vadd.f32 0.0, %v7334
        %v7336 = vpop.f32.mrb[0].mxu0
        %7337 = vmatprep.mubr.bf16.mxu0 0
        %7338 = vmatmul.mubr.bf16.gmra.mrb[0].mxu0 %v5493
        %v7339 = vpop.f32.mrb[0].mxu0
        %v7340 = vadd.f32 0.0, %v7339
        %v7341 = vpop.f32.mrb[0].mxu0
        %v7342 = vpop.f32.mrb[0].mxu0
        %v7343 = vadd.f32 0.0, %v7342
        %v7344 = vpop.f32.mrb[0].mxu0
        %7345 = vmatprep.mubr.bf16.mxu0 0
        %7346 = vmatmul.mubr.bf16.gmra.mrb[0].mxu0 %v5494
        %v7347 = vpop.f32.mrb[0].mxu0
        %v7348 = vadd.f32 0.0, %v7347
        %v7349 = vpop.f32.mrb[0].mxu0
        %v7350 = vpop.f32.mrb[0].mxu0
        %v7351 = vadd.f32 0.0, %v7350
        %v7352 = vpop.f32.mrb[0].mxu0
        %7353 = vmatprep.mubr.bf16.mxu0 0
        %7354 = vmatmul.mubr.bf16.gmra.mrb[0].mxu0 %v5495
        %v7355 = vpop.f32.mrb[0].mxu0
        %v7356 = vadd.f32 0.0, %v7355
        %v7357 = vpop.f32.mrb[0].mxu0
        %v7358 = vpop.f32.mrb[0].mxu0
        %v7359 = vadd.f32 0.0, %v7358
        %v7360 = vpop.f32.mrb[0].mxu0
        %7361 = vmatprep.mubr.bf16.mxu0 0
        %7362 = vmatmul.mubr.bf16.gmra.mrb[0].mxu0 %v5496
        %v7363 = vpop.f32.mrb[0].mxu0
        %v7364 = vadd.f32 0.0, %v7363
        %v7365 = vpop.f32.mrb[0].mxu0
        %v7366 = vpop.f32.mrb[0].mxu0
        %v7367 = vadd.f32 0.0, %v7366
        %v7368 = vpop.f32.mrb[0].mxu0
        %7369 = vmatprep.mubr.bf16.mxu0 0
        %7370 = vmatmul.mubr.bf16.gmra.mrb[0].mxu0 %v5497
        %v7371 = vpop.f32.mrb[0].mxu0
        %v7372 = vadd.f32 0.0, %v7371
        %v7373 = vpop.f32.mrb[0].mxu0
        %v7374 = vpop.f32.mrb[0].mxu0
        %v7375 = vadd.f32 0.0, %v7374
        %v7376 = vpop.f32.mrb[0].mxu0
        %7377 = vmatprep.mubr.bf16.mxu0 0
        %7378 = vmatmul.mubr.bf16.gmra.mrb[0].mxu0 %v5498
        %v7379 = vpop.f32.mrb[0].mxu0
        %v7380 = vadd.f32 0.0, %v7379
        %v7381 = vpop.f32.mrb[0].mxu0
        %v7382 = vpop.f32.mrb[0].mxu0
        %v7383 = vadd.f32 0.0, %v7382
        %v7384 = vpop.f32.mrb[0].mxu0
        %7385 = vmatprep.mubr.bf16.mxu0 0
        %7386 = vmatmul.mubr.bf16.gmra.mrb[0].mxu0 %v5483
        %v7387 = vpop.f32.mrb[0].mxu0
        %v7388 = vadd.f32 0.0, %v7387
        %v7389 = vpop.f32.mrb[0].mxu0
        %v7390 = vpop.f32.mrb[0].mxu0
        %v7391 = vadd.f32 0.0, %v7390
        %v7392 = vpop.f32.mrb[0].mxu0
        %7393 = vdwg.mxu0
        %v7394 = vld [vmem:[%s2350] sm:$0xff]
        %v7395 = vld [vmem:[%s2350 + $0x8] sm:$0xff]
        %v7396 = vld [vmem:[%s2350 + $0x10] sm:$0xff]
        %v7397 = vld [vmem:[%s2350 + $0x18] sm:$0xff]
        %v7398 = vld [vmem:[%s2350 + $0x20] sm:$0xff]
        %v7399 = vld [vmem:[%s2350 + $0x28] sm:$0xff]
        %v7400 = vld [vmem:[%s2350 + $0x30] sm:$0xff]
        %v7401 = vld [vmem:[%s2350 + $0x38] sm:$0xff]
        %v7402 = vld [vmem:[%s2350 + $0x40] sm:$0xff]
        %v7403 = vld [vmem:[%s2350 + $0x48] sm:$0xff]
        %v7404 = vld [vmem:[%s2350 + $0x50] sm:$0xff]
        %v7405 = vld [vmem:[%s2350 + $0x58] sm:$0xff]
        %v7406 = vld [vmem:[%s2350 + $0x60] sm:$0xff]
        %v7407 = vld [vmem:[%s2350 + $0x68] sm:$0xff]
        %v7408 = vld [vmem:[%s2350 + $0x70] sm:$0xff]
        %v7409 = vld [vmem:[%s2350 + $0x78] sm:$0xff]
        %v7410 = vld [vmem:[%s2350 + $0x80] sm:$0xff]
        %v7411 = vld [vmem:[%s2350 + $0x88] sm:$0xff]
        %v7412 = vld [vmem:[%s2350 + $0x90] sm:$0xff]
        %v7413 = vld [vmem:[%s2350 + $0x98] sm:$0xff]
        %v7414 = vld [vmem:[%s2350 + $0xa0] sm:$0xff]
        %v7415 = vld [vmem:[%s2350 + $0xa8] sm:$0xff]
        %v7416 = vld [vmem:[%s2350 + $0xb0] sm:$0xff]
        %v7417 = vld [vmem:[%s2350 + $0xb8] sm:$0xff]
        %v7418 = vld [vmem:[%s2350 + $0xc0] sm:$0xff]
        %v7419 = vld [vmem:[%s2350 + $0xc8] sm:$0xff]
        %v7420 = vld [vmem:[%s2350 + $0xd0] sm:$0xff]
        %v7421 = vld [vmem:[%s2350 + $0xd8] sm:$0xff]
        %v7422 = vld [vmem:[%s2350 + $0xe0] sm:$0xff]
        %v7423 = vld [vmem:[%s2350 + $0xe8] sm:$0xff]
        %v7424 = vld [vmem:[%s2350 + $0xf0] sm:$0xff]
        %v7425 = vld [vmem:[%s2350 + $0xf8] sm:$0xff]
        %7427 = vset.pattern.permute.xlu0 0
        %7428 = vperm.xlu0 %7427, %v7394
        %v7429 = vpop.permute.xlu0 %7428
        %7432 = vset.pattern.permute.xlu0 0
        %7433 = vperm.xlu0 %7432, %v7395
        %v7434 = vpop.permute.xlu0 %7433
        %7437 = vset.pattern.permute.xlu0 0
        %7438 = vperm.xlu0 %7437, %v7396
        %v7439 = vpop.permute.xlu0 %7438
        %7442 = vset.pattern.permute.xlu0 0
        %7443 = vperm.xlu0 %7442, %v7397
        %v7444 = vpop.permute.xlu0 %7443
        %7447 = vset.pattern.permute.xlu0 0
        %7448 = vperm.xlu0 %7447, %v7398
        %v7449 = vpop.permute.xlu0 %7448
        %7452 = vset.pattern.permute.xlu0 0
        %7453 = vperm.xlu0 %7452, %v7399
        %v7454 = vpop.permute.xlu0 %7453
        %7457 = vset.pattern.permute.xlu0 0
        %7458 = vperm.xlu0 %7457, %v7400
        %v7459 = vpop.permute.xlu0 %7458
        %7462 = vset.pattern.permute.xlu0 0
        %7463 = vperm.xlu0 %7462, %v7401
        %v7464 = vpop.permute.xlu0 %7463
        %7467 = vset.pattern.permute.xlu0 0
        %7468 = vperm.xlu0 %7467, %v7402
        %v7469 = vpop.permute.xlu0 %7468
        %7472 = vset.pattern.permute.xlu0 0
        %7473 = vperm.xlu0 %7472, %v7403
        %v7474 = vpop.permute.xlu0 %7473
        %7477 = vset.pattern.permute.xlu0 0
        %7478 = vperm.xlu0 %7477, %v7404
        %v7479 = vpop.permute.xlu0 %7478
        %7482 = vset.pattern.permute.xlu0 0
        %7483 = vperm.xlu0 %7482, %v7405
        %v7484 = vpop.permute.xlu0 %7483
        %7487 = vset.pattern.permute.xlu0 0
        %7488 = vperm.xlu0 %7487, %v7406
        %v7489 = vpop.permute.xlu0 %7488
        %7492 = vset.pattern.permute.xlu0 0
        %7493 = vperm.xlu0 %7492, %v7407
        %v7494 = vpop.permute.xlu0 %7493
        %7497 = vset.pattern.permute.xlu0 0
        %7498 = vperm.xlu0 %7497, %v7408
        %v7499 = vpop.permute.xlu0 %7498
        %7502 = vset.pattern.permute.xlu0 0
        %7503 = vperm.xlu0 %7502, %v7409
        %v7504 = vpop.permute.xlu0 %7503
        %7507 = vset.pattern.permute.xlu0 0
        %7508 = vperm.xlu0 %7507, %v7410
        %v7509 = vpop.permute.xlu0 %7508
        %7512 = vset.pattern.permute.xlu0 0
        %7513 = vperm.xlu0 %7512, %v7411
        %v7514 = vpop.permute.xlu0 %7513
        %7517 = vset.pattern.permute.xlu0 0
        %7518 = vperm.xlu0 %7517, %v7412
        %v7519 = vpop.permute.xlu0 %7518
        %7522 = vset.pattern.permute.xlu0 0
        %7523 = vperm.xlu0 %7522, %v7413
        %v7524 = vpop.permute.xlu0 %7523
        %7527 = vset.pattern.permute.xlu0 0
        %7528 = vperm.xlu0 %7527, %v7414
        %v7529 = vpop.permute.xlu0 %7528
        %7532 = vset.pattern.permute.xlu0 0
        %7533 = vperm.xlu0 %7532, %v7415
        %v7534 = vpop.permute.xlu0 %7533
        %7537 = vset.pattern.permute.xlu0 0
        %7538 = vperm.xlu0 %7537, %v7416
        %v7539 = vpop.permute.xlu0 %7538
        %7542 = vset.pattern.permute.xlu0 0
        %7543 = vperm.xlu0 %7542, %v7417
        %v7544 = vpop.permute.xlu0 %7543
        %7547 = vset.pattern.permute.xlu0 0
        %7548 = vperm.xlu0 %7547, %v7418
        %v7549 = vpop.permute.xlu0 %7548
        %7552 = vset.pattern.permute.xlu0 0
        %7553 = vperm.xlu0 %7552, %v7419
        %v7554 = vpop.permute.xlu0 %7553
        %7557 = vset.pattern.permute.xlu0 0
        %7558 = vperm.xlu0 %7557, %v7420
        %v7559 = vpop.permute.xlu0 %7558
        %7562 = vset.pattern.permute.xlu0 0
        %7563 = vperm.xlu0 %7562, %v7421
        %v7564 = vpop.permute.xlu0 %7563
        %7567 = vset.pattern.permute.xlu0 0
        %7568 = vperm.xlu0 %7567, %v7422
        %v7569 = vpop.permute.xlu0 %7568
        %7572 = vset.pattern.permute.xlu0 0
        %7573 = vperm.xlu0 %7572, %v7423
        %v7574 = vpop.permute.xlu0 %7573
        %7577 = vset.pattern.permute.xlu0 0
        %7578 = vperm.xlu0 %7577, %v7424
        %v7579 = vpop.permute.xlu0 %7578
        %7582 = vset.pattern.permute.xlu0 0
        %7583 = vperm.xlu0 %7582, %v7425
        %v7584 = vpop.permute.xlu0 %7583
        %v7586 = vmul.f32 %v7268, %v7429
        %v7587 = vmul.f32 %v7271, %v7434
        %v7588 = vmul.f32 %v7276, %v7439
        %v7589 = vmul.f32 %v7279, %v7444
        %v7590 = vmul.f32 %v7284, %v7449
        %v7591 = vmul.f32 %v7287, %v7454
        %v7592 = vmul.f32 %v7292, %v7459
        %v7593 = vmul.f32 %v7295, %v7464
        %v7594 = vmul.f32 %v7300, %v7469
        %v7595 = vmul.f32 %v7303, %v7474
        %v7596 = vmul.f32 %v7308, %v7479
        %v7597 = vmul.f32 %v7311, %v7484
        %v7598 = vmul.f32 %v7316, %v7489
        %v7599 = vmul.f32 %v7319, %v7494
        %v7600 = vmul.f32 %v7324, %v7499
        %v7601 = vmul.f32 %v7327, %v7504
        %v7602 = vmul.f32 %v7332, %v7509
        %v7603 = vmul.f32 %v7335, %v7514
        %v7604 = vmul.f32 %v7340, %v7519
        %v7605 = vmul.f32 %v7343, %v7524
        %v7606 = vmul.f32 %v7348, %v7529
        %v7607 = vmul.f32 %v7351, %v7534
        %v7608 = vmul.f32 %v7356, %v7539
        %v7609 = vmul.f32 %v7359, %v7544
        %v7610 = vmul.f32 %v7364, %v7549
        %v7611 = vmul.f32 %v7367, %v7554
        %v7612 = vmul.f32 %v7372, %v7559
        %v7613 = vmul.f32 %v7375, %v7564
        %v7614 = vmul.f32 %v7380, %v7569
        %v7615 = vmul.f32 %v7383, %v7574
        %v7616 = vmul.f32 %v7388, %v7579
        %v7617 = vmul.f32 %v7391, %v7584
        %v7618 = vld [vmem:[#allocation2] sm:$0xff]
        %v7619 = vld [vmem:[#allocation2 + $0x8] sm:$0xff]
        %v7620 = vld [vmem:[#allocation2 + $0x10] sm:$0xff]
        %v7621 = vld [vmem:[#allocation2 + $0x18] sm:$0xff]
        %v7622 = vld [vmem:[#allocation2 + $0x20] sm:$0xff]
        %v7623 = vld [vmem:[#allocation2 + $0x28] sm:$0xff]
        %v7624 = vld [vmem:[#allocation2 + $0x30] sm:$0xff]
        %v7625 = vld [vmem:[#allocation2 + $0x38] sm:$0xff]
        %v7626 = vld [vmem:[#allocation2 + $0x40] sm:$0xff]
        %v7627 = vld [vmem:[#allocation2 + $0x48] sm:$0xff]
        %v7628 = vld [vmem:[#allocation2 + $0x50] sm:$0xff]
        %v7629 = vld [vmem:[#allocation2 + $0x58] sm:$0xff]
        %v7630 = vld [vmem:[#allocation2 + $0x60] sm:$0xff]
        %v7631 = vld [vmem:[#allocation2 + $0x68] sm:$0xff]
        %v7632 = vld [vmem:[#allocation2 + $0x70] sm:$0xff]
        %v7633 = vld [vmem:[#allocation2 + $0x78] sm:$0xff]
        %v7634 = vld [vmem:[#allocation2 + $0x80] sm:$0xff]
        %v7635 = vld [vmem:[#allocation2 + $0x88] sm:$0xff]
        %v7636 = vld [vmem:[#allocation2 + $0x90] sm:$0xff]
        %v7637 = vld [vmem:[#allocation2 + $0x98] sm:$0xff]
        %v7638 = vld [vmem:[#allocation2 + $0xa0] sm:$0xff]
        %v7639 = vld [vmem:[#allocation2 + $0xa8] sm:$0xff]
        %v7640 = vld [vmem:[#allocation2 + $0xb0] sm:$0xff]
        %v7641 = vld [vmem:[#allocation2 + $0xb8] sm:$0xff]
        %v7642 = vld [vmem:[#allocation2 + $0xc0] sm:$0xff]
        %v7643 = vld [vmem:[#allocation2 + $0xc8] sm:$0xff]
        %v7644 = vld [vmem:[#allocation2 + $0xd0] sm:$0xff]
        %v7645 = vld [vmem:[#allocation2 + $0xd8] sm:$0xff]
        %v7646 = vld [vmem:[#allocation2 + $0xe0] sm:$0xff]
        %v7647 = vld [vmem:[#allocation2 + $0xe8] sm:$0xff]
        %v7648 = vld [vmem:[#allocation2 + $0xf0] sm:$0xff]
        %v7649 = vld [vmem:[#allocation2 + $0xf8] sm:$0xff]
        %v7650 = vadd.f32 %v7618, %v7586
        %v7651 = vadd.f32 %v7619, %v7587
        %v7652 = vadd.f32 %v7620, %v7588
        %v7653 = vadd.f32 %v7621, %v7589
        %v7654 = vadd.f32 %v7622, %v7590
        %v7655 = vadd.f32 %v7623, %v7591
        %v7656 = vadd.f32 %v7624, %v7592
        %v7657 = vadd.f32 %v7625, %v7593
        %v7658 = vadd.f32 %v7626, %v7594
        %v7659 = vadd.f32 %v7627, %v7595
        %v7660 = vadd.f32 %v7628, %v7596
        %v7661 = vadd.f32 %v7629, %v7597
        %v7662 = vadd.f32 %v7630, %v7598
        %v7663 = vadd.f32 %v7631, %v7599
        %v7664 = vadd.f32 %v7632, %v7600
        %v7665 = vadd.f32 %v7633, %v7601
        %v7666 = vadd.f32 %v7634, %v7602
        %v7667 = vadd.f32 %v7635, %v7603
        %v7668 = vadd.f32 %v7636, %v7604
        %v7669 = vadd.f32 %v7637, %v7605
        %v7670 = vadd.f32 %v7638, %v7606
        %v7671 = vadd.f32 %v7639, %v7607
        %v7672 = vadd.f32 %v7640, %v7608
        %v7673 = vadd.f32 %v7641, %v7609
        %v7674 = vadd.f32 %v7642, %v7610
        %v7675 = vadd.f32 %v7643, %v7611
        %v7676 = vadd.f32 %v7644, %v7612
        %v7677 = vadd.f32 %v7645, %v7613
        %v7678 = vadd.f32 %v7646, %v7614
        %v7679 = vadd.f32 %v7647, %v7615
        %v7680 = vadd.f32 %v7648, %v7616
        %v7681 = vadd.f32 %v7649, %v7617
        %7682 = vst [vmem:[#allocation2] sm:$0xff] %v7650
        %7683 = vst [vmem:[#allocation2 + $0x8] sm:$0xff] %v7651
        %7684 = vst [vmem:[#allocation2 + $0x10] sm:$0xff] %v7652
        %7685 = vst [vmem:[#allocation2 + $0x18] sm:$0xff] %v7653
        %7686 = vst [vmem:[#allocation2 + $0x20] sm:$0xff] %v7654
        %7687 = vst [vmem:[#allocation2 + $0x28] sm:$0xff] %v7655
        %7688 = vst [vmem:[#allocation2 + $0x30] sm:$0xff] %v7656
        %7689 = vst [vmem:[#allocation2 + $0x38] sm:$0xff] %v7657
        %7690 = vst [vmem:[#allocation2 + $0x40] sm:$0xff] %v7658
        %7691 = vst [vmem:[#allocation2 + $0x48] sm:$0xff] %v7659
        %7692 = vst [vmem:[#allocation2 + $0x50] sm:$0xff] %v7660
        %7693 = vst [vmem:[#allocation2 + $0x58] sm:$0xff] %v7661
        %7694 = vst [vmem:[#allocation2 + $0x60] sm:$0xff] %v7662
        %7695 = vst [vmem:[#allocation2 + $0x68] sm:$0xff] %v7663
        %7696 = vst [vmem:[#allocation2 + $0x70] sm:$0xff] %v7664
        %7697 = vst [vmem:[#allocation2 + $0x78] sm:$0xff] %v7665
        %7698 = vst [vmem:[#allocation2 + $0x80] sm:$0xff] %v7666
        %7699 = vst [vmem:[#allocation2 + $0x88] sm:$0xff] %v7667
        %7700 = vst [vmem:[#allocation2 + $0x90] sm:$0xff] %v7668
        %7701 = vst [vmem:[#allocation2 + $0x98] sm:$0xff] %v7669
        %7702 = vst [vmem:[#allocation2 + $0xa0] sm:$0xff] %v7670
        %7703 = vst [vmem:[#allocation2 + $0xa8] sm:$0xff] %v7671
        %7704 = vst [vmem:[#allocation2 + $0xb0] sm:$0xff] %v7672
        %7705 = vst [vmem:[#allocation2 + $0xb8] sm:$0xff] %v7673
        %7706 = vst [vmem:[#allocation2 + $0xc0] sm:$0xff] %v7674
        %7707 = vst [vmem:[#allocation2 + $0xc8] sm:$0xff] %v7675
        %7708 = vst [vmem:[#allocation2 + $0xd0] sm:$0xff] %v7676
        %7709 = vst [vmem:[#allocation2 + $0xd8] sm:$0xff] %v7677
        %7710 = vst [vmem:[#allocation2 + $0xe0] sm:$0xff] %v7678
        %7711 = vst [vmem:[#allocation2 + $0xe8] sm:$0xff] %v7679
        %7712 = vst [vmem:[#allocation2 + $0xf0] sm:$0xff] %v7680
        %7713 = vst [vmem:[#allocation2 + $0xf8] sm:$0xff] %v7681
        %s7714 = scalar_lea.vmem %s4, 256
        %v7715 = vld [vmem:[%s7714] sm:$0xf]
        %v7716 = vld [vmem:[%s7714 + $0x4] sm:$0xf]
        %v7717 = vld [vmem:[%s7714 + $0x8] sm:$0xf]
        %v7718 = vld [vmem:[%s7714 + $0xc] sm:$0xf]
        %v7719 = vld [vmem:[%s7714 + $0x10] sm:$0xf]
        %v7720 = vld [vmem:[%s7714 + $0x14] sm:$0xf]
        %v7721 = vld [vmem:[%s7714 + $0x18] sm:$0xf]
        %v7722 = vld [vmem:[%s7714 + $0x1c] sm:$0xf]
        %v7723 = vld [vmem:[%s7714 + $0x20] sm:$0xf]
        %v7724 = vld [vmem:[%s7714 + $0x24] sm:$0xf]
        %v7725 = vld [vmem:[%s7714 + $0x28] sm:$0xf]
        %v7726 = vld [vmem:[%s7714 + $0x2c] sm:$0xf]
        %v7727 = vld [vmem:[%s7714 + $0x30] sm:$0xf]
        %v7728 = vld [vmem:[%s7714 + $0x34] sm:$0xf]
        %v7729 = vld [vmem:[%s7714 + $0x38] sm:$0xf]
        %v7730 = vld [vmem:[%s7714 + $0x3c] sm:$0xf]
        %v7747 = vunpack.c.l.b16 %v7715
        %v7748 = vunpack.c.l.b16 %v7716
        %v7749 = vunpack.c.l.b16 %v7717
        %v7750 = vunpack.c.l.b16 %v7718
        %v7751 = vunpack.c.l.b16 %v7719
        %v7752 = vunpack.c.l.b16 %v7720
        %v7753 = vunpack.c.l.b16 %v7721
        %v7754 = vunpack.c.l.b16 %v7722
        %v7755 = vunpack.c.l.b16 %v7723
        %v7756 = vunpack.c.l.b16 %v7724
        %v7757 = vunpack.c.l.b16 %v7725
        %v7758 = vunpack.c.l.b16 %v7726
        %v7759 = vunpack.c.l.b16 %v7727
        %v7760 = vunpack.c.l.b16 %v7728
        %v7761 = vunpack.c.l.b16 %v7729
        %v7762 = vunpack.c.l.b16 %v7730
        %v7763 = vpack.c.b16 %v7748, %v7747
        %v7764 = vpack.c.b16 %v7750, %v7749
        %v7765 = vpack.c.b16 %v7752, %v7751
        %v7766 = vpack.c.b16 %v7754, %v7753
        %v7767 = vpack.c.b16 %v7756, %v7755
        %v7768 = vpack.c.b16 %v7758, %v7757
        %v7769 = vpack.c.b16 %v7760, %v7759
        %v7770 = vpack.c.b16 %v7762, %v7761
        %7779 = vmatprep.subr.bf16.mxu0 0
        %7780 = vmatpush1.bf16.msra.mxu0 %v7763
        %7781 = vmatprep.subr.bf16.mxu0 0
        %7782 = vmatpush1.bf16.msra.mxu0 %v7764
        %7783 = vmatprep.subr.bf16.mxu0 0
        %7784 = vmatpush1.bf16.msra.mxu0 %v7765
        %7785 = vmatprep.subr.bf16.mxu0 0
        %7786 = vmatpush1.bf16.msra.mxu0 %v7766
        %7787 = vmatprep.subr.bf16.mxu0 0
        %7788 = vmatpush1.bf16.msra.mxu0 %v7767
        %7789 = vmatprep.subr.bf16.mxu0 0
        %7790 = vmatpush1.bf16.msra.mxu0 %v7768
        %7791 = vmatprep.subr.bf16.mxu0 0
        %7792 = vmatpush1.bf16.msra.mxu0 %v7769
        %7793 = vmatprep.subr.bf16.mxu0 0
        %7794 = vmatpush1.bf16.msra.mxu0 %v7770
        %7795 = vmatprep.subr.bf16.mxu0 0
        %7796 = vmatpush1.bf16.msra.mxu0 0
        %7797 = vmatprep.subr.bf16.mxu0 0
        %7798 = vmatpush1.bf16.msra.mxu0 0
        %7799 = vmatprep.subr.bf16.mxu0 0
        %7800 = vmatpush1.bf16.msra.mxu0 0
        %7801 = vmatprep.subr.bf16.mxu0 0
        %7802 = vmatpush1.bf16.msra.mxu0 0
        %7803 = vmatprep.subr.bf16.mxu0 0
        %7804 = vmatpush1.bf16.msra.mxu0 0
        %7805 = vmatprep.subr.bf16.mxu0 0
        %7806 = vmatpush1.bf16.msra.mxu0 0
        %7807 = vmatprep.subr.bf16.mxu0 0
        %7808 = vmatpush1.bf16.msra.mxu0 0
        %7809 = vmatprep.subr.bf16.mxu0 0
        %7810 = vmatpush1.bf16.msra.mxu0 0
        %7811 = vmatprep.mubr.bf16.mxu0 0
        %7812 = vmatmul.mubr.bf16.gmra.mrb[0].mxu0 %v5981
        %v7813 = vpop.f32.mrb[0].mxu0
        %v7814 = vadd.f32 0.0, %v7813
        %v7815 = vpop.f32.mrb[0].mxu0
        %v7816 = vpop.f32.mrb[0].mxu0
        %v7817 = vadd.f32 0.0, %v7816
        %v7818 = vpop.f32.mrb[0].mxu0
        %7819 = vmatprep.mubr.bf16.mxu0 0
        %7820 = vmatmul.mubr.bf16.gmra.mrb[0].mxu0 %v5982
        %v7821 = vpop.f32.mrb[0].mxu0
        %v7822 = vadd.f32 0.0, %v7821
        %v7823 = vpop.f32.mrb[0].mxu0
        %v7824 = vpop.f32.mrb[0].mxu0
        %v7825 = vadd.f32 0.0, %v7824
        %v7826 = vpop.f32.mrb[0].mxu0
        %7827 = vmatprep.mubr.bf16.mxu0 0
        %7828 = vmatmul.mubr.bf16.gmra.mrb[0].mxu0 %v5983
        %v7829 = vpop.f32.mrb[0].mxu0
        %v7830 = vadd.f32 0.0, %v7829
        %v7831 = vpop.f32.mrb[0].mxu0
        %v7832 = vpop.f32.mrb[0].mxu0
        %v7833 = vadd.f32 0.0, %v7832
        %v7834 = vpop.f32.mrb[0].mxu0
        %7835 = vmatprep.mubr.bf16.mxu0 0
        %7836 = vmatmul.mubr.bf16.gmra.mrb[0].mxu0 %v5984
        %v7837 = vpop.f32.mrb[0].mxu0
        %v7838 = vadd.f32 0.0, %v7837
        %v7839 = vpop.f32.mrb[0].mxu0
        %v7840 = vpop.f32.mrb[0].mxu0
        %v7841 = vadd.f32 0.0, %v7840
        %v7842 = vpop.f32.mrb[0].mxu0
        %7843 = vmatprep.mubr.bf16.mxu0 0
        %7844 = vmatmul.mubr.bf16.gmra.mrb[0].mxu0 %v5985
        %v7845 = vpop.f32.mrb[0].mxu0
        %v7846 = vadd.f32 0.0, %v7845
        %v7847 = vpop.f32.mrb[0].mxu0
        %v7848 = vpop.f32.mrb[0].mxu0
        %v7849 = vadd.f32 0.0, %v7848
        %v7850 = vpop.f32.mrb[0].mxu0
        %7851 = vmatprep.mubr.bf16.mxu0 0
        %7852 = vmatmul.mubr.bf16.gmra.mrb[0].mxu0 %v5986
        %v7853 = vpop.f32.mrb[0].mxu0
        %v7854 = vadd.f32 0.0, %v7853
        %v7855 = vpop.f32.mrb[0].mxu0
        %v7856 = vpop.f32.mrb[0].mxu0
        %v7857 = vadd.f32 0.0, %v7856
        %v7858 = vpop.f32.mrb[0].mxu0
        %7859 = vmatprep.mubr.bf16.mxu0 0
        %7860 = vmatmul.mubr.bf16.gmra.mrb[0].mxu0 %v5987
        %v7861 = vpop.f32.mrb[0].mxu0
        %v7862 = vadd.f32 0.0, %v7861
        %v7863 = vpop.f32.mrb[0].mxu0
        %v7864 = vpop.f32.mrb[0].mxu0
        %v7865 = vadd.f32 0.0, %v7864
        %v7866 = vpop.f32.mrb[0].mxu0
        %7867 = vmatprep.mubr.bf16.mxu0 0
        %7868 = vmatmul.mubr.bf16.gmra.mrb[0].mxu0 %v5988
        %v7869 = vpop.f32.mrb[0].mxu0
        %v7870 = vadd.f32 0.0, %v7869
        %v7871 = vpop.f32.mrb[0].mxu0
        %v7872 = vpop.f32.mrb[0].mxu0
        %v7873 = vadd.f32 0.0, %v7872
        %v7874 = vpop.f32.mrb[0].mxu0
        %7875 = vmatprep.mubr.bf16.mxu0 0
        %7876 = vmatmul.mubr.bf16.gmra.mrb[0].mxu0 %v5989
        %v7877 = vpop.f32.mrb[0].mxu0
        %v7878 = vadd.f32 0.0, %v7877
        %v7879 = vpop.f32.mrb[0].mxu0
        %v7880 = vpop.f32.mrb[0].mxu0
        %v7881 = vadd.f32 0.0, %v7880
        %v7882 = vpop.f32.mrb[0].mxu0
        %7883 = vmatprep.mubr.bf16.mxu0 0
        %7884 = vmatmul.mubr.bf16.gmra.mrb[0].mxu0 %v5990
        %v7885 = vpop.f32.mrb[0].mxu0
        %v7886 = vadd.f32 0.0, %v7885
        %v7887 = vpop.f32.mrb[0].mxu0
        %v7888 = vpop.f32.mrb[0].mxu0
        %v7889 = vadd.f32 0.0, %v7888
        %v7890 = vpop.f32.mrb[0].mxu0
        %7891 = vmatprep.mubr.bf16.mxu0 0
        %7892 = vmatmul.mubr.bf16.gmra.mrb[0].mxu0 %v5991
        %v7893 = vpop.f32.mrb[0].mxu0
        %v7894 = vadd.f32 0.0, %v7893
        %v7895 = vpop.f32.mrb[0].mxu0
        %v7896 = vpop.f32.mrb[0].mxu0
        %v7897 = vadd.f32 0.0, %v7896
        %v7898 = vpop.f32.mrb[0].mxu0
        %7899 = vmatprep.mubr.bf16.mxu0 0
        %7900 = vmatmul.mubr.bf16.gmra.mrb[0].mxu0 %v5992
        %v7901 = vpop.f32.mrb[0].mxu0
        %v7902 = vadd.f32 0.0, %v7901
        %v7903 = vpop.f32.mrb[0].mxu0
        %v7904 = vpop.f32.mrb[0].mxu0
        %v7905 = vadd.f32 0.0, %v7904
        %v7906 = vpop.f32.mrb[0].mxu0
        %7907 = vmatprep.mubr.bf16.mxu0 0
        %7908 = vmatmul.mubr.bf16.gmra.mrb[0].mxu0 %v5993
        %v7909 = vpop.f32.mrb[0].mxu0
        %v7910 = vadd.f32 0.0, %v7909
        %v7911 = vpop.f32.mrb[0].mxu0
        %v7912 = vpop.f32.mrb[0].mxu0
        %v7913 = vadd.f32 0.0, %v7912
        %v7914 = vpop.f32.mrb[0].mxu0
        %7915 = vmatprep.mubr.bf16.mxu0 0
        %7916 = vmatmul.mubr.bf16.gmra.mrb[0].mxu0 %v5994
        %v7917 = vpop.f32.mrb[0].mxu0
        %v7918 = vadd.f32 0.0, %v7917
        %v7919 = vpop.f32.mrb[0].mxu0
        %v7920 = vpop.f32.mrb[0].mxu0
        %v7921 = vadd.f32 0.0, %v7920
        %v7922 = vpop.f32.mrb[0].mxu0
        %7923 = vmatprep.mubr.bf16.mxu0 0
        %7924 = vmatmul.mubr.bf16.gmra.mrb[0].mxu0 %v5995
        %v7925 = vpop.f32.mrb[0].mxu0
        %v7926 = vadd.f32 0.0, %v7925
        %v7927 = vpop.f32.mrb[0].mxu0
        %v7928 = vpop.f32.mrb[0].mxu0
        %v7929 = vadd.f32 0.0, %v7928
        %v7930 = vpop.f32.mrb[0].mxu0
        %7931 = vmatprep.mubr.bf16.mxu0 0
        %7932 = vmatmul.mubr.bf16.gmra.mrb[0].mxu0 %v5980
        %v7933 = vpop.f32.mrb[0].mxu0
        %v7934 = vadd.f32 0.0, %v7933
        %v7935 = vpop.f32.mrb[0].mxu0
        %v7936 = vpop.f32.mrb[0].mxu0
        %v7937 = vadd.f32 0.0, %v7936
        %v7938 = vpop.f32.mrb[0].mxu0
        %7939 = vdwg.mxu0
        %v7940 = vld [vmem:[#allocation2] sm:$0xff]
        %v7941 = vld [vmem:[#allocation2 + $0x8] sm:$0xff]
        %v7942 = vld [vmem:[#allocation2 + $0x10] sm:$0xff]
        %v7943 = vld [vmem:[#allocation2 + $0x18] sm:$0xff]
        %v7944 = vld [vmem:[#allocation2 + $0x20] sm:$0xff]
        %v7945 = vld [vmem:[#allocation2 + $0x28] sm:$0xff]
        %v7946 = vld [vmem:[#allocation2 + $0x30] sm:$0xff]
        %v7947 = vld [vmem:[#allocation2 + $0x38] sm:$0xff]
        %v7948 = vld [vmem:[#allocation2 + $0x40] sm:$0xff]
        %v7949 = vld [vmem:[#allocation2 + $0x48] sm:$0xff]
        %v7950 = vld [vmem:[#allocation2 + $0x50] sm:$0xff]
        %v7951 = vld [vmem:[#allocation2 + $0x58] sm:$0xff]
        %v7952 = vld [vmem:[#allocation2 + $0x60] sm:$0xff]
        %v7953 = vld [vmem:[#allocation2 + $0x68] sm:$0xff]
        %v7954 = vld [vmem:[#allocation2 + $0x70] sm:$0xff]
        %v7955 = vld [vmem:[#allocation2 + $0x78] sm:$0xff]
        %v7956 = vld [vmem:[#allocation2 + $0x80] sm:$0xff]
        %v7957 = vld [vmem:[#allocation2 + $0x88] sm:$0xff]
        %v7958 = vld [vmem:[#allocation2 + $0x90] sm:$0xff]
        %v7959 = vld [vmem:[#allocation2 + $0x98] sm:$0xff]
        %v7960 = vld [vmem:[#allocation2 + $0xa0] sm:$0xff]
        %v7961 = vld [vmem:[#allocation2 + $0xa8] sm:$0xff]
        %v7962 = vld [vmem:[#allocation2 + $0xb0] sm:$0xff]
        %v7963 = vld [vmem:[#allocation2 + $0xb8] sm:$0xff]
        %v7964 = vld [vmem:[#allocation2 + $0xc0] sm:$0xff]
        %v7965 = vld [vmem:[#allocation2 + $0xc8] sm:$0xff]
        %v7966 = vld [vmem:[#allocation2 + $0xd0] sm:$0xff]
        %v7967 = vld [vmem:[#allocation2 + $0xd8] sm:$0xff]
        %v7968 = vld [vmem:[#allocation2 + $0xe0] sm:$0xff]
        %v7969 = vld [vmem:[#allocation2 + $0xe8] sm:$0xff]
        %v7970 = vld [vmem:[#allocation2 + $0xf0] sm:$0xff]
        %v7971 = vld [vmem:[#allocation2 + $0xf8] sm:$0xff]
        %v7972 = vadd.f32 %v7940, %v7814
        %v7973 = vadd.f32 %v7941, %v7817
        %v7974 = vadd.f32 %v7942, %v7822
        %v7975 = vadd.f32 %v7943, %v7825
        %v7976 = vadd.f32 %v7944, %v7830
        %v7977 = vadd.f32 %v7945, %v7833
        %v7978 = vadd.f32 %v7946, %v7838
        %v7979 = vadd.f32 %v7947, %v7841
        %v7980 = vadd.f32 %v7948, %v7846
        %v7981 = vadd.f32 %v7949, %v7849
        %v7982 = vadd.f32 %v7950, %v7854
        %v7983 = vadd.f32 %v7951, %v7857
        %v7984 = vadd.f32 %v7952, %v7862
        %v7985 = vadd.f32 %v7953, %v7865
        %v7986 = vadd.f32 %v7954, %v7870
        %v7987 = vadd.f32 %v7955, %v7873
        %v7988 = vadd.f32 %v7956, %v7878
        %v7989 = vadd.f32 %v7957, %v7881
        %v7990 = vadd.f32 %v7958, %v7886
        %v7991 = vadd.f32 %v7959, %v7889
        %v7992 = vadd.f32 %v7960, %v7894
        %v7993 = vadd.f32 %v7961, %v7897
        %v7994 = vadd.f32 %v7962, %v7902
        %v7995 = vadd.f32 %v7963, %v7905
        %v7996 = vadd.f32 %v7964, %v7910
        %v7997 = vadd.f32 %v7965, %v7913
        %v7998 = vadd.f32 %v7966, %v7918
        %v7999 = vadd.f32 %v7967, %v7921
        %v8000 = vadd.f32 %v7968, %v7926
        %v8001 = vadd.f32 %v7969, %v7929
        %v8002 = vadd.f32 %v7970, %v7934
        %v8003 = vadd.f32 %v7971, %v7937
        %8004 = vst [vmem:[#allocation2] sm:$0xff] %v7972
        %8005 = vst [vmem:[#allocation2 + $0x8] sm:$0xff] %v7973
        %8006 = vst [vmem:[#allocation2 + $0x10] sm:$0xff] %v7974
        %8007 = vst [vmem:[#allocation2 + $0x18] sm:$0xff] %v7975
        %8008 = vst [vmem:[#allocation2 + $0x20] sm:$0xff] %v7976
        %8009 = vst [vmem:[#allocation2 + $0x28] sm:$0xff] %v7977
        %8010 = vst [vmem:[#allocation2 + $0x30] sm:$0xff] %v7978
        %8011 = vst [vmem:[#allocation2 + $0x38] sm:$0xff] %v7979
        %8012 = vst [vmem:[#allocation2 + $0x40] sm:$0xff] %v7980
        %8013 = vst [vmem:[#allocation2 + $0x48] sm:$0xff] %v7981
        %8014 = vst [vmem:[#allocation2 + $0x50] sm:$0xff] %v7982
        %8015 = vst [vmem:[#allocation2 + $0x58] sm:$0xff] %v7983
        %8016 = vst [vmem:[#allocation2 + $0x60] sm:$0xff] %v7984
        %8017 = vst [vmem:[#allocation2 + $0x68] sm:$0xff] %v7985
        %8018 = vst [vmem:[#allocation2 + $0x70] sm:$0xff] %v7986
        %8019 = vst [vmem:[#allocation2 + $0x78] sm:$0xff] %v7987
        %8020 = vst [vmem:[#allocation2 + $0x80] sm:$0xff] %v7988
        %8021 = vst [vmem:[#allocation2 + $0x88] sm:$0xff] %v7989
        %8022 = vst [vmem:[#allocation2 + $0x90] sm:$0xff] %v7990
        %8023 = vst [vmem:[#allocation2 + $0x98] sm:$0xff] %v7991
        %8024 = vst [vmem:[#allocation2 + $0xa0] sm:$0xff] %v7992
        %8025 = vst [vmem:[#allocation2 + $0xa8] sm:$0xff] %v7993
        %8026 = vst [vmem:[#allocation2 + $0xb0] sm:$0xff] %v7994
        %8027 = vst [vmem:[#allocation2 + $0xb8] sm:$0xff] %v7995
        %8028 = vst [vmem:[#allocation2 + $0xc0] sm:$0xff] %v7996
        %8029 = vst [vmem:[#allocation2 + $0xc8] sm:$0xff] %v7997
        %8030 = vst [vmem:[#allocation2 + $0xd0] sm:$0xff] %v7998
        %8031 = vst [vmem:[#allocation2 + $0xd8] sm:$0xff] %v7999
        %8032 = vst [vmem:[#allocation2 + $0xe0] sm:$0xff] %v8000
        %8033 = vst [vmem:[#allocation2 + $0xe8] sm:$0xff] %v8001
        %8034 = vst [vmem:[#allocation2 + $0xf0] sm:$0xff] %v8002
        %8035 = vst [vmem:[#allocation2 + $0xf8] sm:$0xff] %v8003
        %s8036 = scalar_lea.vmem %s4, 320
        %v8037 = vld [vmem:[%s8036] sm:$0xf]
        %v8038 = vld [vmem:[%s8036 + $0x4] sm:$0xf]
        %v8039 = vld [vmem:[%s8036 + $0x8] sm:$0xf]
        %v8040 = vld [vmem:[%s8036 + $0xc] sm:$0xf]
        %v8041 = vld [vmem:[%s8036 + $0x10] sm:$0xf]
        %v8042 = vld [vmem:[%s8036 + $0x14] sm:$0xf]
        %v8043 = vld [vmem:[%s8036 + $0x18] sm:$0xf]
        %v8044 = vld [vmem:[%s8036 + $0x1c] sm:$0xf]
        %v8045 = vld [vmem:[%s8036 + $0x20] sm:$0xf]
        %v8046 = vld [vmem:[%s8036 + $0x24] sm:$0xf]
        %v8047 = vld [vmem:[%s8036 + $0x28] sm:$0xf]
        %v8048 = vld [vmem:[%s8036 + $0x2c] sm:$0xf]
        %v8049 = vld [vmem:[%s8036 + $0x30] sm:$0xf]
        %v8050 = vld [vmem:[%s8036 + $0x34] sm:$0xf]
        %v8051 = vld [vmem:[%s8036 + $0x38] sm:$0xf]
        %v8052 = vld [vmem:[%s8036 + $0x3c] sm:$0xf]
        %v8069 = vunpack.c.l.b16 %v8037
        %v8070 = vunpack.c.l.b16 %v8038
        %v8071 = vunpack.c.l.b16 %v8039
        %v8072 = vunpack.c.l.b16 %v8040
        %v8073 = vunpack.c.l.b16 %v8041
        %v8074 = vunpack.c.l.b16 %v8042
        %v8075 = vunpack.c.l.b16 %v8043
        %v8076 = vunpack.c.l.b16 %v8044
        %v8077 = vunpack.c.l.b16 %v8045
        %v8078 = vunpack.c.l.b16 %v8046
        %v8079 = vunpack.c.l.b16 %v8047
        %v8080 = vunpack.c.l.b16 %v8048
        %v8081 = vunpack.c.l.b16 %v8049
        %v8082 = vunpack.c.l.b16 %v8050
        %v8083 = vunpack.c.l.b16 %v8051
        %v8084 = vunpack.c.l.b16 %v8052
        %v8085 = vpack.c.b16 %v8070, %v8069
        %v8086 = vpack.c.b16 %v8072, %v8071
        %v8087 = vpack.c.b16 %v8074, %v8073
        %v8088 = vpack.c.b16 %v8076, %v8075
        %v8089 = vpack.c.b16 %v8078, %v8077
        %v8090 = vpack.c.b16 %v8080, %v8079
        %v8091 = vpack.c.b16 %v8082, %v8081
        %v8092 = vpack.c.b16 %v8084, %v8083
        %8101 = vmatprep.subr.bf16.mxu0 0
        %8102 = vmatpush1.bf16.msra.mxu0 %v8085
        %8103 = vmatprep.subr.bf16.mxu0 0
        %8104 = vmatpush1.bf16.msra.mxu0 %v8086
        %8105 = vmatprep.subr.bf16.mxu0 0
        %8106 = vmatpush1.bf16.msra.mxu0 %v8087
        %8107 = vmatprep.subr.bf16.mxu0 0
        %8108 = vmatpush1.bf16.msra.mxu0 %v8088
        %8109 = vmatprep.subr.bf16.mxu0 0
        %8110 = vmatpush1.bf16.msra.mxu0 %v8089
        %8111 = vmatprep.subr.bf16.mxu0 0
        %8112 = vmatpush1.bf16.msra.mxu0 %v8090
        %8113 = vmatprep.subr.bf16.mxu0 0
        %8114 = vmatpush1.bf16.msra.mxu0 %v8091
        %8115 = vmatprep.subr.bf16.mxu0 0
        %8116 = vmatpush1.bf16.msra.mxu0 %v8092
        %8117 = vmatprep.subr.bf16.mxu0 0
        %8118 = vmatpush1.bf16.msra.mxu0 0
        %8119 = vmatprep.subr.bf16.mxu0 0
        %8120 = vmatpush1.bf16.msra.mxu0 0
        %8121 = vmatprep.subr.bf16.mxu0 0
        %8122 = vmatpush1.bf16.msra.mxu0 0
        %8123 = vmatprep.subr.bf16.mxu0 0
        %8124 = vmatpush1.bf16.msra.mxu0 0
        %8125 = vmatprep.subr.bf16.mxu0 0
        %8126 = vmatpush1.bf16.msra.mxu0 0
        %8127 = vmatprep.subr.bf16.mxu0 0
        %8128 = vmatpush1.bf16.msra.mxu0 0
        %8129 = vmatprep.subr.bf16.mxu0 0
        %8130 = vmatpush1.bf16.msra.mxu0 0
        %8131 = vmatprep.subr.bf16.mxu0 0
        %8132 = vmatpush1.bf16.msra.mxu0 0
        %8133 = vmatprep.mubr.bf16.mxu0 0
        %8134 = vmatmul.mubr.bf16.gmra.mrb[0].mxu0 %v6607
        %v8135 = vpop.f32.mrb[0].mxu0
        %v8136 = vadd.f32 0.0, %v8135
        %v8137 = vpop.f32.mrb[0].mxu0
        %v8138 = vpop.f32.mrb[0].mxu0
        %v8139 = vadd.f32 0.0, %v8138
        %v8140 = vpop.f32.mrb[0].mxu0
        %8141 = vmatprep.mubr.bf16.mxu0 0
        %8142 = vmatmul.mubr.bf16.gmra.mrb[0].mxu0 %v6608
        %v8143 = vpop.f32.mrb[0].mxu0
        %v8144 = vadd.f32 0.0, %v8143
        %v8145 = vpop.f32.mrb[0].mxu0
        %v8146 = vpop.f32.mrb[0].mxu0
        %v8147 = vadd.f32 0.0, %v8146
        %v8148 = vpop.f32.mrb[0].mxu0
        %8149 = vmatprep.mubr.bf16.mxu0 0
        %8150 = vmatmul.mubr.bf16.gmra.mrb[0].mxu0 %v6609
        %v8151 = vpop.f32.mrb[0].mxu0
        %v8152 = vadd.f32 0.0, %v8151
        %v8153 = vpop.f32.mrb[0].mxu0
        %v8154 = vpop.f32.mrb[0].mxu0
        %v8155 = vadd.f32 0.0, %v8154
        %v8156 = vpop.f32.mrb[0].mxu0
        %8157 = vmatprep.mubr.bf16.mxu0 0
        %8158 = vmatmul.mubr.bf16.gmra.mrb[0].mxu0 %v6610
        %v8159 = vpop.f32.mrb[0].mxu0
        %v8160 = vadd.f32 0.0, %v8159
        %v8161 = vpop.f32.mrb[0].mxu0
        %v8162 = vpop.f32.mrb[0].mxu0
        %v8163 = vadd.f32 0.0, %v8162
        %v8164 = vpop.f32.mrb[0].mxu0
        %8165 = vmatprep.mubr.bf16.mxu0 0
        %8166 = vmatmul.mubr.bf16.gmra.mrb[0].mxu0 %v6611
        %v8167 = vpop.f32.mrb[0].mxu0
        %v8168 = vadd.f32 0.0, %v8167
        %v8169 = vpop.f32.mrb[0].mxu0
        %v8170 = vpop.f32.mrb[0].mxu0
        %v8171 = vadd.f32 0.0, %v8170
        %v8172 = vpop.f32.mrb[0].mxu0
        %8173 = vmatprep.mubr.bf16.mxu0 0
        %8174 = vmatmul.mubr.bf16.gmra.mrb[0].mxu0 %v6612
        %v8175 = vpop.f32.mrb[0].mxu0
        %v8176 = vadd.f32 0.0, %v8175
        %v8177 = vpop.f32.mrb[0].mxu0
        %v8178 = vpop.f32.mrb[0].mxu0
        %v8179 = vadd.f32 0.0, %v8178
        %v8180 = vpop.f32.mrb[0].mxu0
        %8181 = vmatprep.mubr.bf16.mxu0 0
        %8182 = vmatmul.mubr.bf16.gmra.mrb[0].mxu0 %v6613
        %v8183 = vpop.f32.mrb[0].mxu0
        %v8184 = vadd.f32 0.0, %v8183
        %v8185 = vpop.f32.mrb[0].mxu0
        %v8186 = vpop.f32.mrb[0].mxu0
        %v8187 = vadd.f32 0.0, %v8186
        %v8188 = vpop.f32.mrb[0].mxu0
        %8189 = vmatprep.mubr.bf16.mxu0 0
        %8190 = vmatmul.mubr.bf16.gmra.mrb[0].mxu0 %v6614
        %v8191 = vpop.f32.mrb[0].mxu0
        %v8192 = vadd.f32 0.0, %v8191
        %v8193 = vpop.f32.mrb[0].mxu0
        %v8194 = vpop.f32.mrb[0].mxu0
        %v8195 = vadd.f32 0.0, %v8194
        %v8196 = vpop.f32.mrb[0].mxu0
        %8197 = vmatprep.mubr.bf16.mxu0 0
        %8198 = vmatmul.mubr.bf16.gmra.mrb[0].mxu0 %v6615
        %v8199 = vpop.f32.mrb[0].mxu0
        %v8200 = vadd.f32 0.0, %v8199
        %v8201 = vpop.f32.mrb[0].mxu0
        %v8202 = vpop.f32.mrb[0].mxu0
        %v8203 = vadd.f32 0.0, %v8202
        %v8204 = vpop.f32.mrb[0].mxu0
        %8205 = vmatprep.mubr.bf16.mxu0 0
        %8206 = vmatmul.mubr.bf16.gmra.mrb[0].mxu0 %v6616
        %v8207 = vpop.f32.mrb[0].mxu0
        %v8208 = vadd.f32 0.0, %v8207
        %v8209 = vpop.f32.mrb[0].mxu0
        %v8210 = vpop.f32.mrb[0].mxu0
        %v8211 = vadd.f32 0.0, %v8210
        %v8212 = vpop.f32.mrb[0].mxu0
        %8213 = vmatprep.mubr.bf16.mxu0 0
        %8214 = vmatmul.mubr.bf16.gmra.mrb[0].mxu0 %v6617
        %v8215 = vpop.f32.mrb[0].mxu0
        %v8216 = vadd.f32 0.0, %v8215
        %v8217 = vpop.f32.mrb[0].mxu0
        %v8218 = vpop.f32.mrb[0].mxu0
        %v8219 = vadd.f32 0.0, %v8218
        %v8220 = vpop.f32.mrb[0].mxu0
        %8221 = vmatprep.mubr.bf16.mxu0 0
        %8222 = vmatmul.mubr.bf16.gmra.mrb[0].mxu0 %v6618
        %v8223 = vpop.f32.mrb[0].mxu0
        %v8224 = vadd.f32 0.0, %v8223
        %v8225 = vpop.f32.mrb[0].mxu0
        %v8226 = vpop.f32.mrb[0].mxu0
        %v8227 = vadd.f32 0.0, %v8226
        %v8228 = vpop.f32.mrb[0].mxu0
        %8229 = vmatprep.mubr.bf16.mxu0 0
        %8230 = vmatmul.mubr.bf16.gmra.mrb[0].mxu0 %v6619
        %v8231 = vpop.f32.mrb[0].mxu0
        %v8232 = vadd.f32 0.0, %v8231
        %v8233 = vpop.f32.mrb[0].mxu0
        %v8234 = vpop.f32.mrb[0].mxu0
        %v8235 = vadd.f32 0.0, %v8234
        %v8236 = vpop.f32.mrb[0].mxu0
        %8237 = vmatprep.mubr.bf16.mxu0 0
        %8238 = vmatmul.mubr.bf16.gmra.mrb[0].mxu0 %v6620
        %v8239 = vpop.f32.mrb[0].mxu0
        %v8240 = vadd.f32 0.0, %v8239
        %v8241 = vpop.f32.mrb[0].mxu0
        %v8242 = vpop.f32.mrb[0].mxu0
        %v8243 = vadd.f32 0.0, %v8242
        %v8244 = vpop.f32.mrb[0].mxu0
        %8245 = vmatprep.mubr.bf16.mxu0 0
        %8246 = vmatmul.mubr.bf16.gmra.mrb[0].mxu0 %v6621
        %v8247 = vpop.f32.mrb[0].mxu0
        %v8248 = vadd.f32 0.0, %v8247
        %v8249 = vpop.f32.mrb[0].mxu0
        %v8250 = vpop.f32.mrb[0].mxu0
        %v8251 = vadd.f32 0.0, %v8250
        %v8252 = vpop.f32.mrb[0].mxu0
        %8253 = vmatprep.mubr.bf16.mxu0 0
        %8254 = vmatmul.mubr.bf16.gmra.mrb[0].mxu0 %v6606
        %v8255 = vpop.f32.mrb[0].mxu0
        %v8256 = vadd.f32 0.0, %v8255
        %v8257 = vpop.f32.mrb[0].mxu0
        %v8258 = vpop.f32.mrb[0].mxu0
        %v8259 = vadd.f32 0.0, %v8258
        %v8260 = vpop.f32.mrb[0].mxu0
        %8261 = vdwg.mxu0
        %v8262 = vld [vmem:[%s3315] sm:$0xff]
        %v8263 = vld [vmem:[%s3315 + $0x8] sm:$0xff]
        %v8264 = vld [vmem:[%s3315 + $0x10] sm:$0xff]
        %v8265 = vld [vmem:[%s3315 + $0x18] sm:$0xff]
        %v8266 = vld [vmem:[%s3315 + $0x20] sm:$0xff]
        %v8267 = vld [vmem:[%s3315 + $0x28] sm:$0xff]
        %v8268 = vld [vmem:[%s3315 + $0x30] sm:$0xff]
        %v8269 = vld [vmem:[%s3315 + $0x38] sm:$0xff]
        %v8270 = vld [vmem:[%s3315 + $0x40] sm:$0xff]
        %v8271 = vld [vmem:[%s3315 + $0x48] sm:$0xff]
        %v8272 = vld [vmem:[%s3315 + $0x50] sm:$0xff]
        %v8273 = vld [vmem:[%s3315 + $0x58] sm:$0xff]
        %v8274 = vld [vmem:[%s3315 + $0x60] sm:$0xff]
        %v8275 = vld [vmem:[%s3315 + $0x68] sm:$0xff]
        %v8276 = vld [vmem:[%s3315 + $0x70] sm:$0xff]
        %v8277 = vld [vmem:[%s3315 + $0x78] sm:$0xff]
        %v8278 = vld [vmem:[%s3315 + $0x80] sm:$0xff]
        %v8279 = vld [vmem:[%s3315 + $0x88] sm:$0xff]
        %v8280 = vld [vmem:[%s3315 + $0x90] sm:$0xff]
        %v8281 = vld [vmem:[%s3315 + $0x98] sm:$0xff]
        %v8282 = vld [vmem:[%s3315 + $0xa0] sm:$0xff]
        %v8283 = vld [vmem:[%s3315 + $0xa8] sm:$0xff]
        %v8284 = vld [vmem:[%s3315 + $0xb0] sm:$0xff]
        %v8285 = vld [vmem:[%s3315 + $0xb8] sm:$0xff]
        %v8286 = vld [vmem:[%s3315 + $0xc0] sm:$0xff]
        %v8287 = vld [vmem:[%s3315 + $0xc8] sm:$0xff]
        %v8288 = vld [vmem:[%s3315 + $0xd0] sm:$0xff]
        %v8289 = vld [vmem:[%s3315 + $0xd8] sm:$0xff]
        %v8290 = vld [vmem:[%s3315 + $0xe0] sm:$0xff]
        %v8291 = vld [vmem:[%s3315 + $0xe8] sm:$0xff]
        %v8292 = vld [vmem:[%s3315 + $0xf0] sm:$0xff]
        %v8293 = vld [vmem:[%s3315 + $0xf8] sm:$0xff]
        %8295 = vset.pattern.permute.xlu0 0
        %8296 = vperm.xlu0 %8295, %v8262
        %v8297 = vpop.permute.xlu0 %8296
        %8300 = vset.pattern.permute.xlu0 0
        %8301 = vperm.xlu0 %8300, %v8263
        %v8302 = vpop.permute.xlu0 %8301
        %8305 = vset.pattern.permute.xlu0 0
        %8306 = vperm.xlu0 %8305, %v8264
        %v8307 = vpop.permute.xlu0 %8306
        %8310 = vset.pattern.permute.xlu0 0
        %8311 = vperm.xlu0 %8310, %v8265
        %v8312 = vpop.permute.xlu0 %8311
        %8315 = vset.pattern.permute.xlu0 0
        %8316 = vperm.xlu0 %8315, %v8266
        %v8317 = vpop.permute.xlu0 %8316
        %8320 = vset.pattern.permute.xlu0 0
        %8321 = vperm.xlu0 %8320, %v8267
        %v8322 = vpop.permute.xlu0 %8321
        %8325 = vset.pattern.permute.xlu0 0
        %8326 = vperm.xlu0 %8325, %v8268
        %v8327 = vpop.permute.xlu0 %8326
        %8330 = vset.pattern.permute.xlu0 0
        %8331 = vperm.xlu0 %8330, %v8269
        %v8332 = vpop.permute.xlu0 %8331
        %8335 = vset.pattern.permute.xlu0 0
        %8336 = vperm.xlu0 %8335, %v8270
        %v8337 = vpop.permute.xlu0 %8336
        %8340 = vset.pattern.permute.xlu0 0
        %8341 = vperm.xlu0 %8340, %v8271
        %v8342 = vpop.permute.xlu0 %8341
        %8345 = vset.pattern.permute.xlu0 0
        %8346 = vperm.xlu0 %8345, %v8272
        %v8347 = vpop.permute.xlu0 %8346
        %8350 = vset.pattern.permute.xlu0 0
        %8351 = vperm.xlu0 %8350, %v8273
        %v8352 = vpop.permute.xlu0 %8351
        %8355 = vset.pattern.permute.xlu0 0
        %8356 = vperm.xlu0 %8355, %v8274
        %v8357 = vpop.permute.xlu0 %8356
        %8360 = vset.pattern.permute.xlu0 0
        %8361 = vperm.xlu0 %8360, %v8275
        %v8362 = vpop.permute.xlu0 %8361
        %8365 = vset.pattern.permute.xlu0 0
        %8366 = vperm.xlu0 %8365, %v8276
        %v8367 = vpop.permute.xlu0 %8366
        %8370 = vset.pattern.permute.xlu0 0
        %8371 = vperm.xlu0 %8370, %v8277
        %v8372 = vpop.permute.xlu0 %8371
        %8375 = vset.pattern.permute.xlu0 0
        %8376 = vperm.xlu0 %8375, %v8278
        %v8377 = vpop.permute.xlu0 %8376
        %8380 = vset.pattern.permute.xlu0 0
        %8381 = vperm.xlu0 %8380, %v8279
        %v8382 = vpop.permute.xlu0 %8381
        %8385 = vset.pattern.permute.xlu0 0
        %8386 = vperm.xlu0 %8385, %v8280
        %v8387 = vpop.permute.xlu0 %8386
        %8390 = vset.pattern.permute.xlu0 0
        %8391 = vperm.xlu0 %8390, %v8281
        %v8392 = vpop.permute.xlu0 %8391
        %8395 = vset.pattern.permute.xlu0 0
        %8396 = vperm.xlu0 %8395, %v8282
        %v8397 = vpop.permute.xlu0 %8396
        %8400 = vset.pattern.permute.xlu0 0
        %8401 = vperm.xlu0 %8400, %v8283
        %v8402 = vpop.permute.xlu0 %8401
        %8405 = vset.pattern.permute.xlu0 0
        %8406 = vperm.xlu0 %8405, %v8284
        %v8407 = vpop.permute.xlu0 %8406
        %8410 = vset.pattern.permute.xlu0 0
        %8411 = vperm.xlu0 %8410, %v8285
        %v8412 = vpop.permute.xlu0 %8411
        %8415 = vset.pattern.permute.xlu0 0
        %8416 = vperm.xlu0 %8415, %v8286
        %v8417 = vpop.permute.xlu0 %8416
        %8420 = vset.pattern.permute.xlu0 0
        %8421 = vperm.xlu0 %8420, %v8287
        %v8422 = vpop.permute.xlu0 %8421
        %8425 = vset.pattern.permute.xlu0 0
        %8426 = vperm.xlu0 %8425, %v8288
        %v8427 = vpop.permute.xlu0 %8426
        %8430 = vset.pattern.permute.xlu0 0
        %8431 = vperm.xlu0 %8430, %v8289
        %v8432 = vpop.permute.xlu0 %8431
        %8435 = vset.pattern.permute.xlu0 0
        %8436 = vperm.xlu0 %8435, %v8290
        %v8437 = vpop.permute.xlu0 %8436
        %8440 = vset.pattern.permute.xlu0 0
        %8441 = vperm.xlu0 %8440, %v8291
        %v8442 = vpop.permute.xlu0 %8441
        %8445 = vset.pattern.permute.xlu0 0
        %8446 = vperm.xlu0 %8445, %v8292
        %v8447 = vpop.permute.xlu0 %8446
        %8450 = vset.pattern.permute.xlu0 0
        %8451 = vperm.xlu0 %8450, %v8293
        %v8452 = vpop.permute.xlu0 %8451
        %v8454 = vmul.f32 %v8136, %v8297
        %v8455 = vmul.f32 %v8139, %v8302
        %v8456 = vmul.f32 %v8144, %v8307
        %v8457 = vmul.f32 %v8147, %v8312
        %v8458 = vmul.f32 %v8152, %v8317
        %v8459 = vmul.f32 %v8155, %v8322
        %v8460 = vmul.f32 %v8160, %v8327
        %v8461 = vmul.f32 %v8163, %v8332
        %v8462 = vmul.f32 %v8168, %v8337
        %v8463 = vmul.f32 %v8171, %v8342
        %v8464 = vmul.f32 %v8176, %v8347
        %v8465 = vmul.f32 %v8179, %v8352
        %v8466 = vmul.f32 %v8184, %v8357
        %v8467 = vmul.f32 %v8187, %v8362
        %v8468 = vmul.f32 %v8192, %v8367
        %v8469 = vmul.f32 %v8195, %v8372
        %v8470 = vmul.f32 %v8200, %v8377
        %v8471 = vmul.f32 %v8203, %v8382
        %v8472 = vmul.f32 %v8208, %v8387
        %v8473 = vmul.f32 %v8211, %v8392
        %v8474 = vmul.f32 %v8216, %v8397
        %v8475 = vmul.f32 %v8219, %v8402
        %v8476 = vmul.f32 %v8224, %v8407
        %v8477 = vmul.f32 %v8227, %v8412
        %v8478 = vmul.f32 %v8232, %v8417
        %v8479 = vmul.f32 %v8235, %v8422
        %v8480 = vmul.f32 %v8240, %v8427
        %v8481 = vmul.f32 %v8243, %v8432
        %v8482 = vmul.f32 %v8248, %v8437
        %v8483 = vmul.f32 %v8251, %v8442
        %v8484 = vmul.f32 %v8256, %v8447
        %v8485 = vmul.f32 %v8259, %v8452
        %v8486 = vld [vmem:[#allocation2] sm:$0xff]
        %v8487 = vld [vmem:[#allocation2 + $0x8] sm:$0xff]
        %v8488 = vld [vmem:[#allocation2 + $0x10] sm:$0xff]
        %v8489 = vld [vmem:[#allocation2 + $0x18] sm:$0xff]
        %v8490 = vld [vmem:[#allocation2 + $0x20] sm:$0xff]
        %v8491 = vld [vmem:[#allocation2 + $0x28] sm:$0xff]
        %v8492 = vld [vmem:[#allocation2 + $0x30] sm:$0xff]
        %v8493 = vld [vmem:[#allocation2 + $0x38] sm:$0xff]
        %v8494 = vld [vmem:[#allocation2 + $0x40] sm:$0xff]
        %v8495 = vld [vmem:[#allocation2 + $0x48] sm:$0xff]
        %v8496 = vld [vmem:[#allocation2 + $0x50] sm:$0xff]
        %v8497 = vld [vmem:[#allocation2 + $0x58] sm:$0xff]
        %v8498 = vld [vmem:[#allocation2 + $0x60] sm:$0xff]
        %v8499 = vld [vmem:[#allocation2 + $0x68] sm:$0xff]
        %v8500 = vld [vmem:[#allocation2 + $0x70] sm:$0xff]
        %v8501 = vld [vmem:[#allocation2 + $0x78] sm:$0xff]
        %v8502 = vld [vmem:[#allocation2 + $0x80] sm:$0xff]
        %v8503 = vld [vmem:[#allocation2 + $0x88] sm:$0xff]
        %v8504 = vld [vmem:[#allocation2 + $0x90] sm:$0xff]
        %v8505 = vld [vmem:[#allocation2 + $0x98] sm:$0xff]
        %v8506 = vld [vmem:[#allocation2 + $0xa0] sm:$0xff]
        %v8507 = vld [vmem:[#allocation2 + $0xa8] sm:$0xff]
        %v8508 = vld [vmem:[#allocation2 + $0xb0] sm:$0xff]
        %v8509 = vld [vmem:[#allocation2 + $0xb8] sm:$0xff]
        %v8510 = vld [vmem:[#allocation2 + $0xc0] sm:$0xff]
        %v8511 = vld [vmem:[#allocation2 + $0xc8] sm:$0xff]
        %v8512 = vld [vmem:[#allocation2 + $0xd0] sm:$0xff]
        %v8513 = vld [vmem:[#allocation2 + $0xd8] sm:$0xff]
        %v8514 = vld [vmem:[#allocation2 + $0xe0] sm:$0xff]
        %v8515 = vld [vmem:[#allocation2 + $0xe8] sm:$0xff]
        %v8516 = vld [vmem:[#allocation2 + $0xf0] sm:$0xff]
        %v8517 = vld [vmem:[#allocation2 + $0xf8] sm:$0xff]
        %v8518 = vadd.f32 %v8486, %v8454
        %v8519 = vadd.f32 %v8487, %v8455
        %v8520 = vadd.f32 %v8488, %v8456
        %v8521 = vadd.f32 %v8489, %v8457
        %v8522 = vadd.f32 %v8490, %v8458
        %v8523 = vadd.f32 %v8491, %v8459
        %v8524 = vadd.f32 %v8492, %v8460
        %v8525 = vadd.f32 %v8493, %v8461
        %v8526 = vadd.f32 %v8494, %v8462
        %v8527 = vadd.f32 %v8495, %v8463
        %v8528 = vadd.f32 %v8496, %v8464
        %v8529 = vadd.f32 %v8497, %v8465
        %v8530 = vadd.f32 %v8498, %v8466
        %v8531 = vadd.f32 %v8499, %v8467
        %v8532 = vadd.f32 %v8500, %v8468
        %v8533 = vadd.f32 %v8501, %v8469
        %v8534 = vadd.f32 %v8502, %v8470
        %v8535 = vadd.f32 %v8503, %v8471
        %v8536 = vadd.f32 %v8504, %v8472
        %v8537 = vadd.f32 %v8505, %v8473
        %v8538 = vadd.f32 %v8506, %v8474
        %v8539 = vadd.f32 %v8507, %v8475
        %v8540 = vadd.f32 %v8508, %v8476
        %v8541 = vadd.f32 %v8509, %v8477
        %v8542 = vadd.f32 %v8510, %v8478
        %v8543 = vadd.f32 %v8511, %v8479
        %v8544 = vadd.f32 %v8512, %v8480
        %v8545 = vadd.f32 %v8513, %v8481
        %v8546 = vadd.f32 %v8514, %v8482
        %v8547 = vadd.f32 %v8515, %v8483
        %v8548 = vadd.f32 %v8516, %v8484
        %v8549 = vadd.f32 %v8517, %v8485
        %8550 = vst [vmem:[#allocation2] sm:$0xff] %v8518
        %8551 = vst [vmem:[#allocation2 + $0x8] sm:$0xff] %v8519
        %8552 = vst [vmem:[#allocation2 + $0x10] sm:$0xff] %v8520
        %8553 = vst [vmem:[#allocation2 + $0x18] sm:$0xff] %v8521
        %8554 = vst [vmem:[#allocation2 + $0x20] sm:$0xff] %v8522
        %8555 = vst [vmem:[#allocation2 + $0x28] sm:$0xff] %v8523
        %8556 = vst [vmem:[#allocation2 + $0x30] sm:$0xff] %v8524
        %8557 = vst [vmem:[#allocation2 + $0x38] sm:$0xff] %v8525
        %8558 = vst [vmem:[#allocation2 + $0x40] sm:$0xff] %v8526
        %8559 = vst [vmem:[#allocation2 + $0x48] sm:$0xff] %v8527
        %8560 = vst [vmem:[#allocation2 + $0x50] sm:$0xff] %v8528
        %8561 = vst [vmem:[#allocation2 + $0x58] sm:$0xff] %v8529
        %8562 = vst [vmem:[#allocation2 + $0x60] sm:$0xff] %v8530
        %8563 = vst [vmem:[#allocation2 + $0x68] sm:$0xff] %v8531
        %8564 = vst [vmem:[#allocation2 + $0x70] sm:$0xff] %v8532
        %8565 = vst [vmem:[#allocation2 + $0x78] sm:$0xff] %v8533
        %8566 = vst [vmem:[#allocation2 + $0x80] sm:$0xff] %v8534
        %8567 = vst [vmem:[#allocation2 + $0x88] sm:$0xff] %v8535
        %8568 = vst [vmem:[#allocation2 + $0x90] sm:$0xff] %v8536
        %8569 = vst [vmem:[#allocation2 + $0x98] sm:$0xff] %v8537
        %8570 = vst [vmem:[#allocation2 + $0xa0] sm:$0xff] %v8538
        %8571 = vst [vmem:[#allocation2 + $0xa8] sm:$0xff] %v8539
        %8572 = vst [vmem:[#allocation2 + $0xb0] sm:$0xff] %v8540
        %8573 = vst [vmem:[#allocation2 + $0xb8] sm:$0xff] %v8541
        %8574 = vst [vmem:[#allocation2 + $0xc0] sm:$0xff] %v8542
        %8575 = vst [vmem:[#allocation2 + $0xc8] sm:$0xff] %v8543
        %8576 = vst [vmem:[#allocation2 + $0xd0] sm:$0xff] %v8544
        %8577 = vst [vmem:[#allocation2 + $0xd8] sm:$0xff] %v8545
        %8578 = vst [vmem:[#allocation2 + $0xe0] sm:$0xff] %v8546
        %8579 = vst [vmem:[#allocation2 + $0xe8] sm:$0xff] %v8547
        %8580 = vst [vmem:[#allocation2 + $0xf0] sm:$0xff] %v8548
        %8581 = vst [vmem:[#allocation2 + $0xf8] sm:$0xff] %v8549
        %s8582 = scalar_lea.vmem %s4, 384
        %v8583 = vld [vmem:[%s8582] sm:$0xf]
        %v8584 = vld [vmem:[%s8582 + $0x4] sm:$0xf]
        %v8585 = vld [vmem:[%s8582 + $0x8] sm:$0xf]
        %v8586 = vld [vmem:[%s8582 + $0xc] sm:$0xf]
        %v8587 = vld [vmem:[%s8582 + $0x10] sm:$0xf]
        %v8588 = vld [vmem:[%s8582 + $0x14] sm:$0xf]
        %v8589 = vld [vmem:[%s8582 + $0x18] sm:$0xf]
        %v8590 = vld [vmem:[%s8582 + $0x1c] sm:$0xf]
        %v8591 = vld [vmem:[%s8582 + $0x20] sm:$0xf]
        %v8592 = vld [vmem:[%s8582 + $0x24] sm:$0xf]
        %v8593 = vld [vmem:[%s8582 + $0x28] sm:$0xf]
        %v8594 = vld [vmem:[%s8582 + $0x2c] sm:$0xf]
        %v8595 = vld [vmem:[%s8582 + $0x30] sm:$0xf]
        %v8596 = vld [vmem:[%s8582 + $0x34] sm:$0xf]
        %v8597 = vld [vmem:[%s8582 + $0x38] sm:$0xf]
        %v8598 = vld [vmem:[%s8582 + $0x3c] sm:$0xf]
        %v8615 = vunpack.c.l.b16 %v8583
        %v8616 = vunpack.c.l.b16 %v8584
        %v8617 = vunpack.c.l.b16 %v8585
        %v8618 = vunpack.c.l.b16 %v8586
        %v8619 = vunpack.c.l.b16 %v8587
        %v8620 = vunpack.c.l.b16 %v8588
        %v8621 = vunpack.c.l.b16 %v8589
        %v8622 = vunpack.c.l.b16 %v8590
        %v8623 = vunpack.c.l.b16 %v8591
        %v8624 = vunpack.c.l.b16 %v8592
        %v8625 = vunpack.c.l.b16 %v8593
        %v8626 = vunpack.c.l.b16 %v8594
        %v8627 = vunpack.c.l.b16 %v8595
        %v8628 = vunpack.c.l.b16 %v8596
        %v8629 = vunpack.c.l.b16 %v8597
        %v8630 = vunpack.c.l.b16 %v8598
        %v8631 = vpack.c.b16 %v8616, %v8615
        %v8632 = vpack.c.b16 %v8618, %v8617
        %v8633 = vpack.c.b16 %v8620, %v8619
        %v8634 = vpack.c.b16 %v8622, %v8621
        %v8635 = vpack.c.b16 %v8624, %v8623
        %v8636 = vpack.c.b16 %v8626, %v8625
        %v8637 = vpack.c.b16 %v8628, %v8627
        %v8638 = vpack.c.b16 %v8630, %v8629
        %8647 = vmatprep.subr.bf16.mxu0 0
        %8648 = vmatpush1.bf16.msra.mxu0 %v8631
        %8649 = vmatprep.subr.bf16.mxu0 0
        %8650 = vmatpush1.bf16.msra.mxu0 %v8632
        %8651 = vmatprep.subr.bf16.mxu0 0
        %8652 = vmatpush1.bf16.msra.mxu0 %v8633
        %8653 = vmatprep.subr.bf16.mxu0 0
        %8654 = vmatpush1.bf16.msra.mxu0 %v8634
        %8655 = vmatprep.subr.bf16.mxu0 0
        %8656 = vmatpush1.bf16.msra.mxu0 %v8635
        %8657 = vmatprep.subr.bf16.mxu0 0
        %8658 = vmatpush1.bf16.msra.mxu0 %v8636
        %8659 = vmatprep.subr.bf16.mxu0 0
        %8660 = vmatpush1.bf16.msra.mxu0 %v8637
        %8661 = vmatprep.subr.bf16.mxu0 0
        %8662 = vmatpush1.bf16.msra.mxu0 %v8638
        %8663 = vmatprep.subr.bf16.mxu0 0
        %8664 = vmatpush1.bf16.msra.mxu0 0
        %8665 = vmatprep.subr.bf16.mxu0 0
        %8666 = vmatpush1.bf16.msra.mxu0 0
        %8667 = vmatprep.subr.bf16.mxu0 0
        %8668 = vmatpush1.bf16.msra.mxu0 0
        %8669 = vmatprep.subr.bf16.mxu0 0
        %8670 = vmatpush1.bf16.msra.mxu0 0
        %8671 = vmatprep.subr.bf16.mxu0 0
        %8672 = vmatpush1.bf16.msra.mxu0 0
        %8673 = vmatprep.subr.bf16.mxu0 0
        %8674 = vmatpush1.bf16.msra.mxu0 0
        %8675 = vmatprep.subr.bf16.mxu0 0
        %8676 = vmatpush1.bf16.msra.mxu0 0
        %8677 = vmatprep.subr.bf16.mxu0 0
        %8678 = vmatpush1.bf16.msra.mxu0 0
        %8679 = vmatprep.mubr.bf16.mxu0 0
        %8680 = vmatmul.mubr.bf16.gmra.mrb[0].mxu0 %v5485
        %v8681 = vpop.f32.mrb[0].mxu0
        %v8682 = vadd.f32 0.0, %v8681
        %v8683 = vpop.f32.mrb[0].mxu0
        %v8684 = vpop.f32.mrb[0].mxu0
        %v8685 = vadd.f32 0.0, %v8684
        %v8686 = vpop.f32.mrb[0].mxu0
        %8687 = vmatprep.mubr.bf16.mxu0 0
        %8688 = vmatmul.mubr.bf16.gmra.mrb[0].mxu0 %v5486
        %v8689 = vpop.f32.mrb[0].mxu0
        %v8690 = vadd.f32 0.0, %v8689
        %v8691 = vpop.f32.mrb[0].mxu0
        %v8692 = vpop.f32.mrb[0].mxu0
        %v8693 = vadd.f32 0.0, %v8692
        %v8694 = vpop.f32.mrb[0].mxu0
        %8695 = vmatprep.mubr.bf16.mxu0 0
        %8696 = vmatmul.mubr.bf16.gmra.mrb[0].mxu0 %v5487
        %v8697 = vpop.f32.mrb[0].mxu0
        %v8698 = vadd.f32 0.0, %v8697
        %v8699 = vpop.f32.mrb[0].mxu0
        %v8700 = vpop.f32.mrb[0].mxu0
        %v8701 = vadd.f32 0.0, %v8700
        %v8702 = vpop.f32.mrb[0].mxu0
        %8703 = vmatprep.mubr.bf16.mxu0 0
        %8704 = vmatmul.mubr.bf16.gmra.mrb[0].mxu0 %v5488
        %v8705 = vpop.f32.mrb[0].mxu0
        %v8706 = vadd.f32 0.0, %v8705
        %v8707 = vpop.f32.mrb[0].mxu0
        %v8708 = vpop.f32.mrb[0].mxu0
        %v8709 = vadd.f32 0.0, %v8708
        %v8710 = vpop.f32.mrb[0].mxu0
        %8711 = vmatprep.mubr.bf16.mxu0 0
        %8712 = vmatmul.mubr.bf16.gmra.mrb[0].mxu0 %v5489
        %v8713 = vpop.f32.mrb[0].mxu0
        %v8714 = vadd.f32 0.0, %v8713
        %v8715 = vpop.f32.mrb[0].mxu0
        %v8716 = vpop.f32.mrb[0].mxu0
        %v8717 = vadd.f32 0.0, %v8716
        %v8718 = vpop.f32.mrb[0].mxu0
        %8719 = vmatprep.mubr.bf16.mxu0 0
        %8720 = vmatmul.mubr.bf16.gmra.mrb[0].mxu0 %v5490
        %v8721 = vpop.f32.mrb[0].mxu0
        %v8722 = vadd.f32 0.0, %v8721
        %v8723 = vpop.f32.mrb[0].mxu0
        %v8724 = vpop.f32.mrb[0].mxu0
        %v8725 = vadd.f32 0.0, %v8724
        %v8726 = vpop.f32.mrb[0].mxu0
        %8727 = vmatprep.mubr.bf16.mxu0 0
        %8728 = vmatmul.mubr.bf16.gmra.mrb[0].mxu0 %v5491
        %v8729 = vpop.f32.mrb[0].mxu0
        %v8730 = vadd.f32 0.0, %v8729
        %v8731 = vpop.f32.mrb[0].mxu0
        %v8732 = vpop.f32.mrb[0].mxu0
        %v8733 = vadd.f32 0.0, %v8732
        %v8734 = vpop.f32.mrb[0].mxu0
        %8735 = vmatprep.mubr.bf16.mxu0 0
        %8736 = vmatmul.mubr.bf16.gmra.mrb[0].mxu0 %v5492
        %v8737 = vpop.f32.mrb[0].mxu0
        %v8738 = vadd.f32 0.0, %v8737
        %v8739 = vpop.f32.mrb[0].mxu0
        %v8740 = vpop.f32.mrb[0].mxu0
        %v8741 = vadd.f32 0.0, %v8740
        %v8742 = vpop.f32.mrb[0].mxu0
        %8743 = vmatprep.mubr.bf16.mxu0 0
        %8744 = vmatmul.mubr.bf16.gmra.mrb[0].mxu0 %v5493
        %v8745 = vpop.f32.mrb[0].mxu0
        %v8746 = vadd.f32 0.0, %v8745
        %v8747 = vpop.f32.mrb[0].mxu0
        %v8748 = vpop.f32.mrb[0].mxu0
        %v8749 = vadd.f32 0.0, %v8748
        %v8750 = vpop.f32.mrb[0].mxu0
        %8751 = vmatprep.mubr.bf16.mxu0 0
        %8752 = vmatmul.mubr.bf16.gmra.mrb[0].mxu0 %v5494
        %v8753 = vpop.f32.mrb[0].mxu0
        %v8754 = vadd.f32 0.0, %v8753
        %v8755 = vpop.f32.mrb[0].mxu0
        %v8756 = vpop.f32.mrb[0].mxu0
        %v8757 = vadd.f32 0.0, %v8756
        %v8758 = vpop.f32.mrb[0].mxu0
        %8759 = vmatprep.mubr.bf16.mxu0 0
        %8760 = vmatmul.mubr.bf16.gmra.mrb[0].mxu0 %v5495
        %v8761 = vpop.f32.mrb[0].mxu0
        %v8762 = vadd.f32 0.0, %v8761
        %v8763 = vpop.f32.mrb[0].mxu0
        %v8764 = vpop.f32.mrb[0].mxu0
        %v8765 = vadd.f32 0.0, %v8764
        %v8766 = vpop.f32.mrb[0].mxu0
        %8767 = vmatprep.mubr.bf16.mxu0 0
        %8768 = vmatmul.mubr.bf16.gmra.mrb[0].mxu0 %v5496
        %v8769 = vpop.f32.mrb[0].mxu0
        %v8770 = vadd.f32 0.0, %v8769
        %v8771 = vpop.f32.mrb[0].mxu0
        %v8772 = vpop.f32.mrb[0].mxu0
        %v8773 = vadd.f32 0.0, %v8772
        %v8774 = vpop.f32.mrb[0].mxu0
        %8775 = vmatprep.mubr.bf16.mxu0 0
        %8776 = vmatmul.mubr.bf16.gmra.mrb[0].mxu0 %v5497
        %v8777 = vpop.f32.mrb[0].mxu0
        %v8778 = vadd.f32 0.0, %v8777
        %v8779 = vpop.f32.mrb[0].mxu0
        %v8780 = vpop.f32.mrb[0].mxu0
        %v8781 = vadd.f32 0.0, %v8780
        %v8782 = vpop.f32.mrb[0].mxu0
        %8783 = vmatprep.mubr.bf16.mxu0 0
        %8784 = vmatmul.mubr.bf16.gmra.mrb[0].mxu0 %v5498
        %v8785 = vpop.f32.mrb[0].mxu0
        %v8786 = vadd.f32 0.0, %v8785
        %v8787 = vpop.f32.mrb[0].mxu0
        %v8788 = vpop.f32.mrb[0].mxu0
        %v8789 = vadd.f32 0.0, %v8788
        %v8790 = vpop.f32.mrb[0].mxu0
        %8791 = vmatprep.mubr.bf16.mxu0 0
        %8792 = vmatmul.mubr.bf16.gmra.mrb[0].mxu0 %v5483
        %v8793 = vpop.f32.mrb[0].mxu0
        %v8794 = vadd.f32 0.0, %v8793
        %v8795 = vpop.f32.mrb[0].mxu0
        %v8796 = vpop.f32.mrb[0].mxu0
        %v8797 = vadd.f32 0.0, %v8796
        %v8798 = vpop.f32.mrb[0].mxu0
        %8799 = vmatprep.mubr.bf16.mxu0 0
        %8800 = vmatmul.mubr.bf16.gmra.mrb[0].mxu0 %v5484
        %v8801 = vpop.f32.mrb[0].mxu0
        %v8802 = vadd.f32 0.0, %v8801
        %v8803 = vpop.f32.mrb[0].mxu0
        %v8804 = vpop.f32.mrb[0].mxu0
        %v8805 = vadd.f32 0.0, %v8804
        %v8806 = vpop.f32.mrb[0].mxu0
        %8807 = vdwg.mxu0
        %v8808 = vld [vmem:[%s3862] sm:$0xff]
        %v8809 = vld [vmem:[%s3862 + $0x8] sm:$0xff]
        %v8810 = vld [vmem:[%s3862 + $0x10] sm:$0xff]
        %v8811 = vld [vmem:[%s3862 + $0x18] sm:$0xff]
        %v8812 = vld [vmem:[%s3862 + $0x20] sm:$0xff]
        %v8813 = vld [vmem:[%s3862 + $0x28] sm:$0xff]
        %v8814 = vld [vmem:[%s3862 + $0x30] sm:$0xff]
        %v8815 = vld [vmem:[%s3862 + $0x38] sm:$0xff]
        %v8816 = vld [vmem:[%s3862 + $0x40] sm:$0xff]
        %v8817 = vld [vmem:[%s3862 + $0x48] sm:$0xff]
        %v8818 = vld [vmem:[%s3862 + $0x50] sm:$0xff]
        %v8819 = vld [vmem:[%s3862 + $0x58] sm:$0xff]
        %v8820 = vld [vmem:[%s3862 + $0x60] sm:$0xff]
        %v8821 = vld [vmem:[%s3862 + $0x68] sm:$0xff]
        %v8822 = vld [vmem:[%s3862 + $0x70] sm:$0xff]
        %v8823 = vld [vmem:[%s3862 + $0x78] sm:$0xff]
        %v8824 = vld [vmem:[%s3862 + $0x80] sm:$0xff]
        %v8825 = vld [vmem:[%s3862 + $0x88] sm:$0xff]
        %v8826 = vld [vmem:[%s3862 + $0x90] sm:$0xff]
        %v8827 = vld [vmem:[%s3862 + $0x98] sm:$0xff]
        %v8828 = vld [vmem:[%s3862 + $0xa0] sm:$0xff]
        %v8829 = vld [vmem:[%s3862 + $0xa8] sm:$0xff]
        %v8830 = vld [vmem:[%s3862 + $0xb0] sm:$0xff]
        %v8831 = vld [vmem:[%s3862 + $0xb8] sm:$0xff]
        %v8832 = vld [vmem:[%s3862 + $0xc0] sm:$0xff]
        %v8833 = vld [vmem:[%s3862 + $0xc8] sm:$0xff]
        %v8834 = vld [vmem:[%s3862 + $0xd0] sm:$0xff]
        %v8835 = vld [vmem:[%s3862 + $0xd8] sm:$0xff]
        %v8836 = vld [vmem:[%s3862 + $0xe0] sm:$0xff]
        %v8837 = vld [vmem:[%s3862 + $0xe8] sm:$0xff]
        %v8838 = vld [vmem:[%s3862 + $0xf0] sm:$0xff]
        %v8839 = vld [vmem:[%s3862 + $0xf8] sm:$0xff]
        %8841 = vset.pattern.permute.xlu0 0
        %8842 = vperm.xlu0 %8841, %v8808
        %v8843 = vpop.permute.xlu0 %8842
        %8846 = vset.pattern.permute.xlu0 0
        %8847 = vperm.xlu0 %8846, %v8809
        %v8848 = vpop.permute.xlu0 %8847
        %8851 = vset.pattern.permute.xlu0 0
        %8852 = vperm.xlu0 %8851, %v8810
        %v8853 = vpop.permute.xlu0 %8852
        %8856 = vset.pattern.permute.xlu0 0
        %8857 = vperm.xlu0 %8856, %v8811
        %v8858 = vpop.permute.xlu0 %8857
        %8861 = vset.pattern.permute.xlu0 0
        %8862 = vperm.xlu0 %8861, %v8812
        %v8863 = vpop.permute.xlu0 %8862
        %8866 = vset.pattern.permute.xlu0 0
        %8867 = vperm.xlu0 %8866, %v8813
        %v8868 = vpop.permute.xlu0 %8867
        %8871 = vset.pattern.permute.xlu0 0
        %8872 = vperm.xlu0 %8871, %v8814
        %v8873 = vpop.permute.xlu0 %8872
        %8876 = vset.pattern.permute.xlu0 0
        %8877 = vperm.xlu0 %8876, %v8815
        %v8878 = vpop.permute.xlu0 %8877
        %8881 = vset.pattern.permute.xlu0 0
        %8882 = vperm.xlu0 %8881, %v8816
        %v8883 = vpop.permute.xlu0 %8882
        %8886 = vset.pattern.permute.xlu0 0
        %8887 = vperm.xlu0 %8886, %v8817
        %v8888 = vpop.permute.xlu0 %8887
        %8891 = vset.pattern.permute.xlu0 0
        %8892 = vperm.xlu0 %8891, %v8818
        %v8893 = vpop.permute.xlu0 %8892
        %8896 = vset.pattern.permute.xlu0 0
        %8897 = vperm.xlu0 %8896, %v8819
        %v8898 = vpop.permute.xlu0 %8897
        %8901 = vset.pattern.permute.xlu0 0
        %8902 = vperm.xlu0 %8901, %v8820
        %v8903 = vpop.permute.xlu0 %8902
        %8906 = vset.pattern.permute.xlu0 0
        %8907 = vperm.xlu0 %8906, %v8821
        %v8908 = vpop.permute.xlu0 %8907
        %8911 = vset.pattern.permute.xlu0 0
        %8912 = vperm.xlu0 %8911, %v8822
        %v8913 = vpop.permute.xlu0 %8912
        %8916 = vset.pattern.permute.xlu0 0
        %8917 = vperm.xlu0 %8916, %v8823
        %v8918 = vpop.permute.xlu0 %8917
        %8921 = vset.pattern.permute.xlu0 0
        %8922 = vperm.xlu0 %8921, %v8824
        %v8923 = vpop.permute.xlu0 %8922
        %8926 = vset.pattern.permute.xlu0 0
        %8927 = vperm.xlu0 %8926, %v8825
        %v8928 = vpop.permute.xlu0 %8927
        %8931 = vset.pattern.permute.xlu0 0
        %8932 = vperm.xlu0 %8931, %v8826
        %v8933 = vpop.permute.xlu0 %8932
        %8936 = vset.pattern.permute.xlu0 0
        %8937 = vperm.xlu0 %8936, %v8827
        %v8938 = vpop.permute.xlu0 %8937
        %8941 = vset.pattern.permute.xlu0 0
        %8942 = vperm.xlu0 %8941, %v8828
        %v8943 = vpop.permute.xlu0 %8942
        %8946 = vset.pattern.permute.xlu0 0
        %8947 = vperm.xlu0 %8946, %v8829
        %v8948 = vpop.permute.xlu0 %8947
        %8951 = vset.pattern.permute.xlu0 0
        %8952 = vperm.xlu0 %8951, %v8830
        %v8953 = vpop.permute.xlu0 %8952
        %8956 = vset.pattern.permute.xlu0 0
        %8957 = vperm.xlu0 %8956, %v8831
        %v8958 = vpop.permute.xlu0 %8957
        %8961 = vset.pattern.permute.xlu0 0
        %8962 = vperm.xlu0 %8961, %v8832
        %v8963 = vpop.permute.xlu0 %8962
        %8966 = vset.pattern.permute.xlu0 0
        %8967 = vperm.xlu0 %8966, %v8833
        %v8968 = vpop.permute.xlu0 %8967
        %8971 = vset.pattern.permute.xlu0 0
        %8972 = vperm.xlu0 %8971, %v8834
        %v8973 = vpop.permute.xlu0 %8972
        %8976 = vset.pattern.permute.xlu0 0
        %8977 = vperm.xlu0 %8976, %v8835
        %v8978 = vpop.permute.xlu0 %8977
        %8981 = vset.pattern.permute.xlu0 0
        %8982 = vperm.xlu0 %8981, %v8836
        %v8983 = vpop.permute.xlu0 %8982
        %8986 = vset.pattern.permute.xlu0 0
        %8987 = vperm.xlu0 %8986, %v8837
        %v8988 = vpop.permute.xlu0 %8987
        %8991 = vset.pattern.permute.xlu0 0
        %8992 = vperm.xlu0 %8991, %v8838
        %v8993 = vpop.permute.xlu0 %8992
        %8996 = vset.pattern.permute.xlu0 0
        %8997 = vperm.xlu0 %8996, %v8839
        %v8998 = vpop.permute.xlu0 %8997
        %v9000 = vmul.f32 %v8682, %v8843
        %v9001 = vmul.f32 %v8685, %v8848
        %v9002 = vmul.f32 %v8690, %v8853
        %v9003 = vmul.f32 %v8693, %v8858
        %v9004 = vmul.f32 %v8698, %v8863
        %v9005 = vmul.f32 %v8701, %v8868
        %v9006 = vmul.f32 %v8706, %v8873
        %v9007 = vmul.f32 %v8709, %v8878
        %v9008 = vmul.f32 %v8714, %v8883
        %v9009 = vmul.f32 %v8717, %v8888
        %v9010 = vmul.f32 %v8722, %v8893
        %v9011 = vmul.f32 %v8725, %v8898
        %v9012 = vmul.f32 %v8730, %v8903
        %v9013 = vmul.f32 %v8733, %v8908
        %v9014 = vmul.f32 %v8738, %v8913
        %v9015 = vmul.f32 %v8741, %v8918
        %v9016 = vmul.f32 %v8746, %v8923
        %v9017 = vmul.f32 %v8749, %v8928
        %v9018 = vmul.f32 %v8754, %v8933
        %v9019 = vmul.f32 %v8757, %v8938
        %v9020 = vmul.f32 %v8762, %v8943
        %v9021 = vmul.f32 %v8765, %v8948
        %v9022 = vmul.f32 %v8770, %v8953
        %v9023 = vmul.f32 %v8773, %v8958
        %v9024 = vmul.f32 %v8778, %v8963
        %v9025 = vmul.f32 %v8781, %v8968
        %v9026 = vmul.f32 %v8786, %v8973
        %v9027 = vmul.f32 %v8789, %v8978
        %v9028 = vmul.f32 %v8794, %v8983
        %v9029 = vmul.f32 %v8797, %v8988
        %v9030 = vmul.f32 %v8802, %v8993
        %v9031 = vmul.f32 %v8805, %v8998
        %v9032 = vld [vmem:[#allocation2] sm:$0xff]
        %v9033 = vld [vmem:[#allocation2 + $0x8] sm:$0xff]
        %v9034 = vld [vmem:[#allocation2 + $0x10] sm:$0xff]
        %v9035 = vld [vmem:[#allocation2 + $0x18] sm:$0xff]
        %v9036 = vld [vmem:[#allocation2 + $0x20] sm:$0xff]
        %v9037 = vld [vmem:[#allocation2 + $0x28] sm:$0xff]
        %v9038 = vld [vmem:[#allocation2 + $0x30] sm:$0xff]
        %v9039 = vld [vmem:[#allocation2 + $0x38] sm:$0xff]
        %v9040 = vld [vmem:[#allocation2 + $0x40] sm:$0xff]
        %v9041 = vld [vmem:[#allocation2 + $0x48] sm:$0xff]
        %v9042 = vld [vmem:[#allocation2 + $0x50] sm:$0xff]
        %v9043 = vld [vmem:[#allocation2 + $0x58] sm:$0xff]
        %v9044 = vld [vmem:[#allocation2 + $0x60] sm:$0xff]
        %v9045 = vld [vmem:[#allocation2 + $0x68] sm:$0xff]
        %v9046 = vld [vmem:[#allocation2 + $0x70] sm:$0xff]
        %v9047 = vld [vmem:[#allocation2 + $0x78] sm:$0xff]
        %v9048 = vld [vmem:[#allocation2 + $0x80] sm:$0xff]
        %v9049 = vld [vmem:[#allocation2 + $0x88] sm:$0xff]
        %v9050 = vld [vmem:[#allocation2 + $0x90] sm:$0xff]
        %v9051 = vld [vmem:[#allocation2 + $0x98] sm:$0xff]
        %v9052 = vld [vmem:[#allocation2 + $0xa0] sm:$0xff]
        %v9053 = vld [vmem:[#allocation2 + $0xa8] sm:$0xff]
        %v9054 = vld [vmem:[#allocation2 + $0xb0] sm:$0xff]
        %v9055 = vld [vmem:[#allocation2 + $0xb8] sm:$0xff]
        %v9056 = vld [vmem:[#allocation2 + $0xc0] sm:$0xff]
        %v9057 = vld [vmem:[#allocation2 + $0xc8] sm:$0xff]
        %v9058 = vld [vmem:[#allocation2 + $0xd0] sm:$0xff]
        %v9059 = vld [vmem:[#allocation2 + $0xd8] sm:$0xff]
        %v9060 = vld [vmem:[#allocation2 + $0xe0] sm:$0xff]
        %v9061 = vld [vmem:[#allocation2 + $0xe8] sm:$0xff]
        %v9062 = vld [vmem:[#allocation2 + $0xf0] sm:$0xff]
        %v9063 = vld [vmem:[#allocation2 + $0xf8] sm:$0xff]
        %v9064 = vadd.f32 %v9032, %v9000
        %v9065 = vadd.f32 %v9033, %v9001
        %v9066 = vadd.f32 %v9034, %v9002
        %v9067 = vadd.f32 %v9035, %v9003
        %v9068 = vadd.f32 %v9036, %v9004
        %v9069 = vadd.f32 %v9037, %v9005
        %v9070 = vadd.f32 %v9038, %v9006
        %v9071 = vadd.f32 %v9039, %v9007
        %v9072 = vadd.f32 %v9040, %v9008
        %v9073 = vadd.f32 %v9041, %v9009
        %v9074 = vadd.f32 %v9042, %v9010
        %v9075 = vadd.f32 %v9043, %v9011
        %v9076 = vadd.f32 %v9044, %v9012
        %v9077 = vadd.f32 %v9045, %v9013
        %v9078 = vadd.f32 %v9046, %v9014
        %v9079 = vadd.f32 %v9047, %v9015
        %v9080 = vadd.f32 %v9048, %v9016
        %v9081 = vadd.f32 %v9049, %v9017
        %v9082 = vadd.f32 %v9050, %v9018
        %v9083 = vadd.f32 %v9051, %v9019
        %v9084 = vadd.f32 %v9052, %v9020
        %v9085 = vadd.f32 %v9053, %v9021
        %v9086 = vadd.f32 %v9054, %v9022
        %v9087 = vadd.f32 %v9055, %v9023
        %v9088 = vadd.f32 %v9056, %v9024
        %v9089 = vadd.f32 %v9057, %v9025
        %v9090 = vadd.f32 %v9058, %v9026
        %v9091 = vadd.f32 %v9059, %v9027
        %v9092 = vadd.f32 %v9060, %v9028
        %v9093 = vadd.f32 %v9061, %v9029
        %v9094 = vadd.f32 %v9062, %v9030
        %v9095 = vadd.f32 %v9063, %v9031
        %9096 = vst [vmem:[#allocation2] sm:$0xff] %v9064
        %9097 = vst [vmem:[#allocation2 + $0x8] sm:$0xff] %v9065
        %9098 = vst [vmem:[#allocation2 + $0x10] sm:$0xff] %v9066
        %9099 = vst [vmem:[#allocation2 + $0x18] sm:$0xff] %v9067
        %9100 = vst [vmem:[#allocation2 + $0x20] sm:$0xff] %v9068
        %9101 = vst [vmem:[#allocation2 + $0x28] sm:$0xff] %v9069
        %9102 = vst [vmem:[#allocation2 + $0x30] sm:$0xff] %v9070
        %9103 = vst [vmem:[#allocation2 + $0x38] sm:$0xff] %v9071
        %9104 = vst [vmem:[#allocation2 + $0x40] sm:$0xff] %v9072
        %9105 = vst [vmem:[#allocation2 + $0x48] sm:$0xff] %v9073
        %9106 = vst [vmem:[#allocation2 + $0x50] sm:$0xff] %v9074
        %9107 = vst [vmem:[#allocation2 + $0x58] sm:$0xff] %v9075
        %9108 = vst [vmem:[#allocation2 + $0x60] sm:$0xff] %v9076
        %9109 = vst [vmem:[#allocation2 + $0x68] sm:$0xff] %v9077
        %9110 = vst [vmem:[#allocation2 + $0x70] sm:$0xff] %v9078
        %9111 = vst [vmem:[#allocation2 + $0x78] sm:$0xff] %v9079
        %9112 = vst [vmem:[#allocation2 + $0x80] sm:$0xff] %v9080
        %9113 = vst [vmem:[#allocation2 + $0x88] sm:$0xff] %v9081
        %9114 = vst [vmem:[#allocation2 + $0x90] sm:$0xff] %v9082
        %9115 = vst [vmem:[#allocation2 + $0x98] sm:$0xff] %v9083
        %9116 = vst [vmem:[#allocation2 + $0xa0] sm:$0xff] %v9084
        %9117 = vst [vmem:[#allocation2 + $0xa8] sm:$0xff] %v9085
        %9118 = vst [vmem:[#allocation2 + $0xb0] sm:$0xff] %v9086
        %9119 = vst [vmem:[#allocation2 + $0xb8] sm:$0xff] %v9087
        %9120 = vst [vmem:[#allocation2 + $0xc0] sm:$0xff] %v9088
        %9121 = vst [vmem:[#allocation2 + $0xc8] sm:$0xff] %v9089
        %9122 = vst [vmem:[#allocation2 + $0xd0] sm:$0xff] %v9090
        %9123 = vst [vmem:[#allocation2 + $0xd8] sm:$0xff] %v9091
        %9124 = vst [vmem:[#allocation2 + $0xe0] sm:$0xff] %v9092
        %9125 = vst [vmem:[#allocation2 + $0xe8] sm:$0xff] %v9093
        %9126 = vst [vmem:[#allocation2 + $0xf0] sm:$0xff] %v9094
        %9127 = vst [vmem:[#allocation2 + $0xf8] sm:$0xff] %v9095
        %s9128 = scalar_lea.vmem %s4, 448
        %v9129 = vld [vmem:[%s9128] sm:$0xf]
        %v9130 = vld [vmem:[%s9128 + $0x4] sm:$0xf]
        %v9131 = vld [vmem:[%s9128 + $0x8] sm:$0xf]
        %v9132 = vld [vmem:[%s9128 + $0xc] sm:$0xf]
        %v9133 = vld [vmem:[%s9128 + $0x10] sm:$0xf]
        %v9134 = vld [vmem:[%s9128 + $0x14] sm:$0xf]
        %v9135 = vld [vmem:[%s9128 + $0x18] sm:$0xf]
        %v9136 = vld [vmem:[%s9128 + $0x1c] sm:$0xf]
        %v9137 = vld [vmem:[%s9128 + $0x20] sm:$0xf]
        %v9138 = vld [vmem:[%s9128 + $0x24] sm:$0xf]
        %v9139 = vld [vmem:[%s9128 + $0x28] sm:$0xf]
        %v9140 = vld [vmem:[%s9128 + $0x2c] sm:$0xf]
        %v9141 = vld [vmem:[%s9128 + $0x30] sm:$0xf]
        %v9142 = vld [vmem:[%s9128 + $0x34] sm:$0xf]
        %v9143 = vld [vmem:[%s9128 + $0x38] sm:$0xf]
        %v9144 = vld [vmem:[%s9128 + $0x3c] sm:$0xf]
        %v9161 = vunpack.c.l.b16 %v9129
        %v9162 = vunpack.c.l.b16 %v9130
        %v9163 = vunpack.c.l.b16 %v9131
        %v9164 = vunpack.c.l.b16 %v9132
        %v9165 = vunpack.c.l.b16 %v9133
        %v9166 = vunpack.c.l.b16 %v9134
        %v9167 = vunpack.c.l.b16 %v9135
        %v9168 = vunpack.c.l.b16 %v9136
        %v9169 = vunpack.c.l.b16 %v9137
        %v9170 = vunpack.c.l.b16 %v9138
        %v9171 = vunpack.c.l.b16 %v9139
        %v9172 = vunpack.c.l.b16 %v9140
        %v9173 = vunpack.c.l.b16 %v9141
        %v9174 = vunpack.c.l.b16 %v9142
        %v9175 = vunpack.c.l.b16 %v9143
        %v9176 = vunpack.c.l.b16 %v9144
        %v9177 = vpack.c.b16 %v9162, %v9161
        %v9178 = vpack.c.b16 %v9164, %v9163
        %v9179 = vpack.c.b16 %v9166, %v9165
        %v9180 = vpack.c.b16 %v9168, %v9167
        %v9181 = vpack.c.b16 %v9170, %v9169
        %v9182 = vpack.c.b16 %v9172, %v9171
        %v9183 = vpack.c.b16 %v9174, %v9173
        %v9184 = vpack.c.b16 %v9176, %v9175
        %9193 = vmatprep.subr.bf16.mxu0 0
        %9194 = vmatpush1.bf16.msra.mxu0 %v9177
        %9195 = vmatprep.subr.bf16.mxu0 0
        %9196 = vmatpush1.bf16.msra.mxu0 %v9178
        %9197 = vmatprep.subr.bf16.mxu0 0
        %9198 = vmatpush1.bf16.msra.mxu0 %v9179
        %9199 = vmatprep.subr.bf16.mxu0 0
        %9200 = vmatpush1.bf16.msra.mxu0 %v9180
        %9201 = vmatprep.subr.bf16.mxu0 0
        %9202 = vmatpush1.bf16.msra.mxu0 %v9181
        %9203 = vmatprep.subr.bf16.mxu0 0
        %9204 = vmatpush1.bf16.msra.mxu0 %v9182
        %9205 = vmatprep.subr.bf16.mxu0 0
        %9206 = vmatpush1.bf16.msra.mxu0 %v9183
        %9207 = vmatprep.subr.bf16.mxu0 0
        %9208 = vmatpush1.bf16.msra.mxu0 %v9184
        %9209 = vmatprep.subr.bf16.mxu0 0
        %9210 = vmatpush1.bf16.msra.mxu0 0
        %9211 = vmatprep.subr.bf16.mxu0 0
        %9212 = vmatpush1.bf16.msra.mxu0 0
        %9213 = vmatprep.subr.bf16.mxu0 0
        %9214 = vmatpush1.bf16.msra.mxu0 0
        %9215 = vmatprep.subr.bf16.mxu0 0
        %9216 = vmatpush1.bf16.msra.mxu0 0
        %9217 = vmatprep.subr.bf16.mxu0 0
        %9218 = vmatpush1.bf16.msra.mxu0 0
        %9219 = vmatprep.subr.bf16.mxu0 0
        %9220 = vmatpush1.bf16.msra.mxu0 0
        %9221 = vmatprep.subr.bf16.mxu0 0
        %9222 = vmatpush1.bf16.msra.mxu0 0
        %9223 = vmatprep.subr.bf16.mxu0 0
        %9224 = vmatpush1.bf16.msra.mxu0 0
        %9225 = vmatprep.mubr.bf16.mxu0 0
        %9226 = vmatmul.mubr.bf16.gmra.mrb[0].mxu0 %v5982
        %v9227 = vpop.f32.mrb[0].mxu0
        %v9228 = vadd.f32 0.0, %v9227
        %v9229 = vpop.f32.mrb[0].mxu0
        %v9230 = vpop.f32.mrb[0].mxu0
        %v9231 = vadd.f32 0.0, %v9230
        %v9232 = vpop.f32.mrb[0].mxu0
        %9233 = vmatprep.mubr.bf16.mxu0 0
        %9234 = vmatmul.mubr.bf16.gmra.mrb[0].mxu0 %v5983
        %v9235 = vpop.f32.mrb[0].mxu0
        %v9236 = vadd.f32 0.0, %v9235
        %v9237 = vpop.f32.mrb[0].mxu0
        %v9238 = vpop.f32.mrb[0].mxu0
        %v9239 = vadd.f32 0.0, %v9238
        %v9240 = vpop.f32.mrb[0].mxu0
        %9241 = vmatprep.mubr.bf16.mxu0 0
        %9242 = vmatmul.mubr.bf16.gmra.mrb[0].mxu0 %v5984
        %v9243 = vpop.f32.mrb[0].mxu0
        %v9244 = vadd.f32 0.0, %v9243
        %v9245 = vpop.f32.mrb[0].mxu0
        %v9246 = vpop.f32.mrb[0].mxu0
        %v9247 = vadd.f32 0.0, %v9246
        %v9248 = vpop.f32.mrb[0].mxu0
        %9249 = vmatprep.mubr.bf16.mxu0 0
        %9250 = vmatmul.mubr.bf16.gmra.mrb[0].mxu0 %v5985
        %v9251 = vpop.f32.mrb[0].mxu0
        %v9252 = vadd.f32 0.0, %v9251
        %v9253 = vpop.f32.mrb[0].mxu0
        %v9254 = vpop.f32.mrb[0].mxu0
        %v9255 = vadd.f32 0.0, %v9254
        %v9256 = vpop.f32.mrb[0].mxu0
        %9257 = vmatprep.mubr.bf16.mxu0 0
        %9258 = vmatmul.mubr.bf16.gmra.mrb[0].mxu0 %v5986
        %v9259 = vpop.f32.mrb[0].mxu0
        %v9260 = vadd.f32 0.0, %v9259
        %v9261 = vpop.f32.mrb[0].mxu0
        %v9262 = vpop.f32.mrb[0].mxu0
        %v9263 = vadd.f32 0.0, %v9262
        %v9264 = vpop.f32.mrb[0].mxu0
        %9265 = vmatprep.mubr.bf16.mxu0 0
        %9266 = vmatmul.mubr.bf16.gmra.mrb[0].mxu0 %v5987
        %v9267 = vpop.f32.mrb[0].mxu0
        %v9268 = vadd.f32 0.0, %v9267
        %v9269 = vpop.f32.mrb[0].mxu0
        %v9270 = vpop.f32.mrb[0].mxu0
        %v9271 = vadd.f32 0.0, %v9270
        %v9272 = vpop.f32.mrb[0].mxu0
        %9273 = vmatprep.mubr.bf16.mxu0 0
        %9274 = vmatmul.mubr.bf16.gmra.mrb[0].mxu0 %v5988
        %v9275 = vpop.f32.mrb[0].mxu0
        %v9276 = vadd.f32 0.0, %v9275
        %v9277 = vpop.f32.mrb[0].mxu0
        %v9278 = vpop.f32.mrb[0].mxu0
        %v9279 = vadd.f32 0.0, %v9278
        %v9280 = vpop.f32.mrb[0].mxu0
        %9281 = vmatprep.mubr.bf16.mxu0 0
        %9282 = vmatmul.mubr.bf16.gmra.mrb[0].mxu0 %v5989
        %v9283 = vpop.f32.mrb[0].mxu0
        %v9284 = vadd.f32 0.0, %v9283
        %v9285 = vpop.f32.mrb[0].mxu0
        %v9286 = vpop.f32.mrb[0].mxu0
        %v9287 = vadd.f32 0.0, %v9286
        %v9288 = vpop.f32.mrb[0].mxu0
        %9289 = vmatprep.mubr.bf16.mxu0 0
        %9290 = vmatmul.mubr.bf16.gmra.mrb[0].mxu0 %v5990
        %v9291 = vpop.f32.mrb[0].mxu0
        %v9292 = vadd.f32 0.0, %v9291
        %v9293 = vpop.f32.mrb[0].mxu0
        %v9294 = vpop.f32.mrb[0].mxu0
        %v9295 = vadd.f32 0.0, %v9294
        %v9296 = vpop.f32.mrb[0].mxu0
        %9297 = vmatprep.mubr.bf16.mxu0 0
        %9298 = vmatmul.mubr.bf16.gmra.mrb[0].mxu0 %v5991
        %v9299 = vpop.f32.mrb[0].mxu0
        %v9300 = vadd.f32 0.0, %v9299
        %v9301 = vpop.f32.mrb[0].mxu0
        %v9302 = vpop.f32.mrb[0].mxu0
        %v9303 = vadd.f32 0.0, %v9302
        %v9304 = vpop.f32.mrb[0].mxu0
        %9305 = vmatprep.mubr.bf16.mxu0 0
        %9306 = vmatmul.mubr.bf16.gmra.mrb[0].mxu0 %v5992
        %v9307 = vpop.f32.mrb[0].mxu0
        %v9308 = vadd.f32 0.0, %v9307
        %v9309 = vpop.f32.mrb[0].mxu0
        %v9310 = vpop.f32.mrb[0].mxu0
        %v9311 = vadd.f32 0.0, %v9310
        %v9312 = vpop.f32.mrb[0].mxu0
        %9313 = vmatprep.mubr.bf16.mxu0 0
        %9314 = vmatmul.mubr.bf16.gmra.mrb[0].mxu0 %v5993
        %v9315 = vpop.f32.mrb[0].mxu0
        %v9316 = vadd.f32 0.0, %v9315
        %v9317 = vpop.f32.mrb[0].mxu0
        %v9318 = vpop.f32.mrb[0].mxu0
        %v9319 = vadd.f32 0.0, %v9318
        %v9320 = vpop.f32.mrb[0].mxu0
        %9321 = vmatprep.mubr.bf16.mxu0 0
        %9322 = vmatmul.mubr.bf16.gmra.mrb[0].mxu0 %v5994
        %v9323 = vpop.f32.mrb[0].mxu0
        %v9324 = vadd.f32 0.0, %v9323
        %v9325 = vpop.f32.mrb[0].mxu0
        %v9326 = vpop.f32.mrb[0].mxu0
        %v9327 = vadd.f32 0.0, %v9326
        %v9328 = vpop.f32.mrb[0].mxu0
        %9329 = vmatprep.mubr.bf16.mxu0 0
        %9330 = vmatmul.mubr.bf16.gmra.mrb[0].mxu0 %v5995
        %v9331 = vpop.f32.mrb[0].mxu0
        %v9332 = vadd.f32 0.0, %v9331
        %v9333 = vpop.f32.mrb[0].mxu0
        %v9334 = vpop.f32.mrb[0].mxu0
        %v9335 = vadd.f32 0.0, %v9334
        %v9336 = vpop.f32.mrb[0].mxu0
        %9337 = vmatprep.mubr.bf16.mxu0 0
        %9338 = vmatmul.mubr.bf16.gmra.mrb[0].mxu0 %v5980
        %v9339 = vpop.f32.mrb[0].mxu0
        %v9340 = vadd.f32 0.0, %v9339
        %v9341 = vpop.f32.mrb[0].mxu0
        %v9342 = vpop.f32.mrb[0].mxu0
        %v9343 = vadd.f32 0.0, %v9342
        %v9344 = vpop.f32.mrb[0].mxu0
        %9345 = vmatprep.mubr.bf16.mxu0 0
        %9346 = vmatmul.mubr.bf16.gmra.mrb[0].mxu0 %v5981
        %v9347 = vpop.f32.mrb[0].mxu0
        %v9348 = vadd.f32 0.0, %v9347
        %v9349 = vpop.f32.mrb[0].mxu0
        %v9350 = vpop.f32.mrb[0].mxu0
        %v9351 = vadd.f32 0.0, %v9350
        %v9352 = vpop.f32.mrb[0].mxu0
        %9353 = vdwg.mxu0
        %v9354 = vld [vmem:[%s4409] sm:$0xff]
        %v9355 = vld [vmem:[%s4409 + $0x8] sm:$0xff]
        %v9356 = vld [vmem:[%s4409 + $0x10] sm:$0xff]
        %v9357 = vld [vmem:[%s4409 + $0x18] sm:$0xff]
        %v9358 = vld [vmem:[%s4409 + $0x20] sm:$0xff]
        %v9359 = vld [vmem:[%s4409 + $0x28] sm:$0xff]
        %v9360 = vld [vmem:[%s4409 + $0x30] sm:$0xff]
        %v9361 = vld [vmem:[%s4409 + $0x38] sm:$0xff]
        %v9362 = vld [vmem:[%s4409 + $0x40] sm:$0xff]
        %v9363 = vld [vmem:[%s4409 + $0x48] sm:$0xff]
        %v9364 = vld [vmem:[%s4409 + $0x50] sm:$0xff]
        %v9365 = vld [vmem:[%s4409 + $0x58] sm:$0xff]
        %v9366 = vld [vmem:[%s4409 + $0x60] sm:$0xff]
        %v9367 = vld [vmem:[%s4409 + $0x68] sm:$0xff]
        %v9368 = vld [vmem:[%s4409 + $0x70] sm:$0xff]
        %v9369 = vld [vmem:[%s4409 + $0x78] sm:$0xff]
        %v9370 = vld [vmem:[%s4409 + $0x80] sm:$0xff]
        %v9371 = vld [vmem:[%s4409 + $0x88] sm:$0xff]
        %v9372 = vld [vmem:[%s4409 + $0x90] sm:$0xff]
        %v9373 = vld [vmem:[%s4409 + $0x98] sm:$0xff]
        %v9374 = vld [vmem:[%s4409 + $0xa0] sm:$0xff]
        %v9375 = vld [vmem:[%s4409 + $0xa8] sm:$0xff]
        %v9376 = vld [vmem:[%s4409 + $0xb0] sm:$0xff]
        %v9377 = vld [vmem:[%s4409 + $0xb8] sm:$0xff]
        %v9378 = vld [vmem:[%s4409 + $0xc0] sm:$0xff]
        %v9379 = vld [vmem:[%s4409 + $0xc8] sm:$0xff]
        %v9380 = vld [vmem:[%s4409 + $0xd0] sm:$0xff]
        %v9381 = vld [vmem:[%s4409 + $0xd8] sm:$0xff]
        %v9382 = vld [vmem:[%s4409 + $0xe0] sm:$0xff]
        %v9383 = vld [vmem:[%s4409 + $0xe8] sm:$0xff]
        %v9384 = vld [vmem:[%s4409 + $0xf0] sm:$0xff]
        %v9385 = vld [vmem:[%s4409 + $0xf8] sm:$0xff]
        %9387 = vset.pattern.permute.xlu0 0
        %9388 = vperm.xlu0 %9387, %v9354
        %v9389 = vpop.permute.xlu0 %9388
        %9392 = vset.pattern.permute.xlu0 0
        %9393 = vperm.xlu0 %9392, %v9355
        %v9394 = vpop.permute.xlu0 %9393
        %9397 = vset.pattern.permute.xlu0 0
        %9398 = vperm.xlu0 %9397, %v9356
        %v9399 = vpop.permute.xlu0 %9398
        %9402 = vset.pattern.permute.xlu0 0
        %9403 = vperm.xlu0 %9402, %v9357
        %v9404 = vpop.permute.xlu0 %9403
        %9407 = vset.pattern.permute.xlu0 0
        %9408 = vperm.xlu0 %9407, %v9358
        %v9409 = vpop.permute.xlu0 %9408
        %9412 = vset.pattern.permute.xlu0 0
        %9413 = vperm.xlu0 %9412, %v9359
        %v9414 = vpop.permute.xlu0 %9413
        %9417 = vset.pattern.permute.xlu0 0
        %9418 = vperm.xlu0 %9417, %v9360
        %v9419 = vpop.permute.xlu0 %9418
        %9422 = vset.pattern.permute.xlu0 0
        %9423 = vperm.xlu0 %9422, %v9361
        %v9424 = vpop.permute.xlu0 %9423
        %9427 = vset.pattern.permute.xlu0 0
        %9428 = vperm.xlu0 %9427, %v9362
        %v9429 = vpop.permute.xlu0 %9428
        %9432 = vset.pattern.permute.xlu0 0
        %9433 = vperm.xlu0 %9432, %v9363
        %v9434 = vpop.permute.xlu0 %9433
        %9437 = vset.pattern.permute.xlu0 0
        %9438 = vperm.xlu0 %9437, %v9364
        %v9439 = vpop.permute.xlu0 %9438
        %9442 = vset.pattern.permute.xlu0 0
        %9443 = vperm.xlu0 %9442, %v9365
        %v9444 = vpop.permute.xlu0 %9443
        %9447 = vset.pattern.permute.xlu0 0
        %9448 = vperm.xlu0 %9447, %v9366
        %v9449 = vpop.permute.xlu0 %9448
        %9452 = vset.pattern.permute.xlu0 0
        %9453 = vperm.xlu0 %9452, %v9367
        %v9454 = vpop.permute.xlu0 %9453
        %9457 = vset.pattern.permute.xlu0 0
        %9458 = vperm.xlu0 %9457, %v9368
        %v9459 = vpop.permute.xlu0 %9458
        %9462 = vset.pattern.permute.xlu0 0
        %9463 = vperm.xlu0 %9462, %v9369
        %v9464 = vpop.permute.xlu0 %9463
        %9467 = vset.pattern.permute.xlu0 0
        %9468 = vperm.xlu0 %9467, %v9370
        %v9469 = vpop.permute.xlu0 %9468
        %9472 = vset.pattern.permute.xlu0 0
        %9473 = vperm.xlu0 %9472, %v9371
        %v9474 = vpop.permute.xlu0 %9473
        %9477 = vset.pattern.permute.xlu0 0
        %9478 = vperm.xlu0 %9477, %v9372
        %v9479 = vpop.permute.xlu0 %9478
        %9482 = vset.pattern.permute.xlu0 0
        %9483 = vperm.xlu0 %9482, %v9373
        %v9484 = vpop.permute.xlu0 %9483
        %9487 = vset.pattern.permute.xlu0 0
        %9488 = vperm.xlu0 %9487, %v9374
        %v9489 = vpop.permute.xlu0 %9488
        %9492 = vset.pattern.permute.xlu0 0
        %9493 = vperm.xlu0 %9492, %v9375
        %v9494 = vpop.permute.xlu0 %9493
        %9497 = vset.pattern.permute.xlu0 0
        %9498 = vperm.xlu0 %9497, %v9376
        %v9499 = vpop.permute.xlu0 %9498
        %9502 = vset.pattern.permute.xlu0 0
        %9503 = vperm.xlu0 %9502, %v9377
        %v9504 = vpop.permute.xlu0 %9503
        %9507 = vset.pattern.permute.xlu0 0
        %9508 = vperm.xlu0 %9507, %v9378
        %v9509 = vpop.permute.xlu0 %9508
        %9512 = vset.pattern.permute.xlu0 0
        %9513 = vperm.xlu0 %9512, %v9379
        %v9514 = vpop.permute.xlu0 %9513
        %9517 = vset.pattern.permute.xlu0 0
        %9518 = vperm.xlu0 %9517, %v9380
        %v9519 = vpop.permute.xlu0 %9518
        %9522 = vset.pattern.permute.xlu0 0
        %9523 = vperm.xlu0 %9522, %v9381
        %v9524 = vpop.permute.xlu0 %9523
        %9527 = vset.pattern.permute.xlu0 0
        %9528 = vperm.xlu0 %9527, %v9382
        %v9529 = vpop.permute.xlu0 %9528
        %9532 = vset.pattern.permute.xlu0 0
        %9533 = vperm.xlu0 %9532, %v9383
        %v9534 = vpop.permute.xlu0 %9533
        %9537 = vset.pattern.permute.xlu0 0
        %9538 = vperm.xlu0 %9537, %v9384
        %v9539 = vpop.permute.xlu0 %9538
        %9542 = vset.pattern.permute.xlu0 0
        %9543 = vperm.xlu0 %9542, %v9385
        %v9544 = vpop.permute.xlu0 %9543
        %v9546 = vmul.f32 %v9228, %v9389
        %v9547 = vmul.f32 %v9231, %v9394
        %v9548 = vmul.f32 %v9236, %v9399
        %v9549 = vmul.f32 %v9239, %v9404
        %v9550 = vmul.f32 %v9244, %v9409
        %v9551 = vmul.f32 %v9247, %v9414
        %v9552 = vmul.f32 %v9252, %v9419
        %v9553 = vmul.f32 %v9255, %v9424
        %v9554 = vmul.f32 %v9260, %v9429
        %v9555 = vmul.f32 %v9263, %v9434
        %v9556 = vmul.f32 %v9268, %v9439
        %v9557 = vmul.f32 %v9271, %v9444
        %v9558 = vmul.f32 %v9276, %v9449
        %v9559 = vmul.f32 %v9279, %v9454
        %v9560 = vmul.f32 %v9284, %v9459
        %v9561 = vmul.f32 %v9287, %v9464
        %v9562 = vmul.f32 %v9292, %v9469
        %v9563 = vmul.f32 %v9295, %v9474
        %v9564 = vmul.f32 %v9300, %v9479
        %v9565 = vmul.f32 %v9303, %v9484
        %v9566 = vmul.f32 %v9308, %v9489
        %v9567 = vmul.f32 %v9311, %v9494
        %v9568 = vmul.f32 %v9316, %v9499
        %v9569 = vmul.f32 %v9319, %v9504
        %v9570 = vmul.f32 %v9324, %v9509
        %v9571 = vmul.f32 %v9327, %v9514
        %v9572 = vmul.f32 %v9332, %v9519
        %v9573 = vmul.f32 %v9335, %v9524
        %v9574 = vmul.f32 %v9340, %v9529
        %v9575 = vmul.f32 %v9343, %v9534
        %v9576 = vmul.f32 %v9348, %v9539
        %v9577 = vmul.f32 %v9351, %v9544
        %v9578 = vld [vmem:[#allocation2] sm:$0xff]
        %v9579 = vld [vmem:[#allocation2 + $0x8] sm:$0xff]
        %v9580 = vld [vmem:[#allocation2 + $0x10] sm:$0xff]
        %v9581 = vld [vmem:[#allocation2 + $0x18] sm:$0xff]
        %v9582 = vld [vmem:[#allocation2 + $0x20] sm:$0xff]
        %v9583 = vld [vmem:[#allocation2 + $0x28] sm:$0xff]
        %v9584 = vld [vmem:[#allocation2 + $0x30] sm:$0xff]
        %v9585 = vld [vmem:[#allocation2 + $0x38] sm:$0xff]
        %v9586 = vld [vmem:[#allocation2 + $0x40] sm:$0xff]
        %v9587 = vld [vmem:[#allocation2 + $0x48] sm:$0xff]
        %v9588 = vld [vmem:[#allocation2 + $0x50] sm:$0xff]
        %v9589 = vld [vmem:[#allocation2 + $0x58] sm:$0xff]
        %v9590 = vld [vmem:[#allocation2 + $0x60] sm:$0xff]
        %v9591 = vld [vmem:[#allocation2 + $0x68] sm:$0xff]
        %v9592 = vld [vmem:[#allocation2 + $0x70] sm:$0xff]
        %v9593 = vld [vmem:[#allocation2 + $0x78] sm:$0xff]
        %v9594 = vld [vmem:[#allocation2 + $0x80] sm:$0xff]
        %v9595 = vld [vmem:[#allocation2 + $0x88] sm:$0xff]
        %v9596 = vld [vmem:[#allocation2 + $0x90] sm:$0xff]
        %v9597 = vld [vmem:[#allocation2 + $0x98] sm:$0xff]
        %v9598 = vld [vmem:[#allocation2 + $0xa0] sm:$0xff]
        %v9599 = vld [vmem:[#allocation2 + $0xa8] sm:$0xff]
        %v9600 = vld [vmem:[#allocation2 + $0xb0] sm:$0xff]
        %v9601 = vld [vmem:[#allocation2 + $0xb8] sm:$0xff]
        %v9602 = vld [vmem:[#allocation2 + $0xc0] sm:$0xff]
        %v9603 = vld [vmem:[#allocation2 + $0xc8] sm:$0xff]
        %v9604 = vld [vmem:[#allocation2 + $0xd0] sm:$0xff]
        %v9605 = vld [vmem:[#allocation2 + $0xd8] sm:$0xff]
        %v9606 = vld [vmem:[#allocation2 + $0xe0] sm:$0xff]
        %v9607 = vld [vmem:[#allocation2 + $0xe8] sm:$0xff]
        %v9608 = vld [vmem:[#allocation2 + $0xf0] sm:$0xff]
        %v9609 = vld [vmem:[#allocation2 + $0xf8] sm:$0xff]
        %v9610 = vadd.f32 %v9578, %v9546
        %v9611 = vadd.f32 %v9579, %v9547
        %v9612 = vadd.f32 %v9580, %v9548
        %v9613 = vadd.f32 %v9581, %v9549
        %v9614 = vadd.f32 %v9582, %v9550
        %v9615 = vadd.f32 %v9583, %v9551
        %v9616 = vadd.f32 %v9584, %v9552
        %v9617 = vadd.f32 %v9585, %v9553
        %v9618 = vadd.f32 %v9586, %v9554
        %v9619 = vadd.f32 %v9587, %v9555
        %v9620 = vadd.f32 %v9588, %v9556
        %v9621 = vadd.f32 %v9589, %v9557
        %v9622 = vadd.f32 %v9590, %v9558
        %v9623 = vadd.f32 %v9591, %v9559
        %v9624 = vadd.f32 %v9592, %v9560
        %v9625 = vadd.f32 %v9593, %v9561
        %v9626 = vadd.f32 %v9594, %v9562
        %v9627 = vadd.f32 %v9595, %v9563
        %v9628 = vadd.f32 %v9596, %v9564
        %v9629 = vadd.f32 %v9597, %v9565
        %v9630 = vadd.f32 %v9598, %v9566
        %v9631 = vadd.f32 %v9599, %v9567
        %v9632 = vadd.f32 %v9600, %v9568
        %v9633 = vadd.f32 %v9601, %v9569
        %v9634 = vadd.f32 %v9602, %v9570
        %v9635 = vadd.f32 %v9603, %v9571
        %v9636 = vadd.f32 %v9604, %v9572
        %v9637 = vadd.f32 %v9605, %v9573
        %v9638 = vadd.f32 %v9606, %v9574
        %v9639 = vadd.f32 %v9607, %v9575
        %v9640 = vadd.f32 %v9608, %v9576
        %v9641 = vadd.f32 %v9609, %v9577
        %9642 = vst [vmem:[#allocation2] sm:$0xff] %v9610
        %9643 = vst [vmem:[#allocation2 + $0x8] sm:$0xff] %v9611
        %9644 = vst [vmem:[#allocation2 + $0x10] sm:$0xff] %v9612
        %9645 = vst [vmem:[#allocation2 + $0x18] sm:$0xff] %v9613
        %9646 = vst [vmem:[#allocation2 + $0x20] sm:$0xff] %v9614
        %9647 = vst [vmem:[#allocation2 + $0x28] sm:$0xff] %v9615
        %9648 = vst [vmem:[#allocation2 + $0x30] sm:$0xff] %v9616
        %9649 = vst [vmem:[#allocation2 + $0x38] sm:$0xff] %v9617
        %9650 = vst [vmem:[#allocation2 + $0x40] sm:$0xff] %v9618
        %9651 = vst [vmem:[#allocation2 + $0x48] sm:$0xff] %v9619
        %9652 = vst [vmem:[#allocation2 + $0x50] sm:$0xff] %v9620
        %9653 = vst [vmem:[#allocation2 + $0x58] sm:$0xff] %v9621
        %9654 = vst [vmem:[#allocation2 + $0x60] sm:$0xff] %v9622
        %9655 = vst [vmem:[#allocation2 + $0x68] sm:$0xff] %v9623
        %9656 = vst [vmem:[#allocation2 + $0x70] sm:$0xff] %v9624
        %9657 = vst [vmem:[#allocation2 + $0x78] sm:$0xff] %v9625
        %9658 = vst [vmem:[#allocation2 + $0x80] sm:$0xff] %v9626
        %9659 = vst [vmem:[#allocation2 + $0x88] sm:$0xff] %v9627
        %9660 = vst [vmem:[#allocation2 + $0x90] sm:$0xff] %v9628
        %9661 = vst [vmem:[#allocation2 + $0x98] sm:$0xff] %v9629
        %9662 = vst [vmem:[#allocation2 + $0xa0] sm:$0xff] %v9630
        %9663 = vst [vmem:[#allocation2 + $0xa8] sm:$0xff] %v9631
        %9664 = vst [vmem:[#allocation2 + $0xb0] sm:$0xff] %v9632
        %9665 = vst [vmem:[#allocation2 + $0xb8] sm:$0xff] %v9633
        %9666 = vst [vmem:[#allocation2 + $0xc0] sm:$0xff] %v9634
        %9667 = vst [vmem:[#allocation2 + $0xc8] sm:$0xff] %v9635
        %9668 = vst [vmem:[#allocation2 + $0xd0] sm:$0xff] %v9636
        %9669 = vst [vmem:[#allocation2 + $0xd8] sm:$0xff] %v9637
        %9670 = vst [vmem:[#allocation2 + $0xe0] sm:$0xff] %v9638
        %9671 = vst [vmem:[#allocation2 + $0xe8] sm:$0xff] %v9639
        %9672 = vst [vmem:[#allocation2 + $0xf0] sm:$0xff] %v9640
        %9673 = vst [vmem:[#allocation2 + $0xf8] sm:$0xff] %v9641
        %s9674 = scalar_lea.vmem %s4, 512
        %v9675 = vld [vmem:[%s9674] sm:$0xf]
        %v9676 = vld [vmem:[%s9674 + $0x4] sm:$0xf]
        %v9677 = vld [vmem:[%s9674 + $0x8] sm:$0xf]
        %v9678 = vld [vmem:[%s9674 + $0xc] sm:$0xf]
        %v9679 = vld [vmem:[%s9674 + $0x10] sm:$0xf]
        %v9680 = vld [vmem:[%s9674 + $0x14] sm:$0xf]
        %v9681 = vld [vmem:[%s9674 + $0x18] sm:$0xf]
        %v9682 = vld [vmem:[%s9674 + $0x1c] sm:$0xf]
        %v9683 = vld [vmem:[%s9674 + $0x20] sm:$0xf]
        %v9684 = vld [vmem:[%s9674 + $0x24] sm:$0xf]
        %v9685 = vld [vmem:[%s9674 + $0x28] sm:$0xf]
        %v9686 = vld [vmem:[%s9674 + $0x2c] sm:$0xf]
        %v9687 = vld [vmem:[%s9674 + $0x30] sm:$0xf]
        %v9688 = vld [vmem:[%s9674 + $0x34] sm:$0xf]
        %v9689 = vld [vmem:[%s9674 + $0x38] sm:$0xf]
        %v9690 = vld [vmem:[%s9674 + $0x3c] sm:$0xf]
        %v9707 = vunpack.c.l.b16 %v9675
        %v9708 = vunpack.c.l.b16 %v9676
        %v9709 = vunpack.c.l.b16 %v9677
        %v9710 = vunpack.c.l.b16 %v9678
        %v9711 = vunpack.c.l.b16 %v9679
        %v9712 = vunpack.c.l.b16 %v9680
        %v9713 = vunpack.c.l.b16 %v9681
        %v9714 = vunpack.c.l.b16 %v9682
        %v9715 = vunpack.c.l.b16 %v9683
        %v9716 = vunpack.c.l.b16 %v9684
        %v9717 = vunpack.c.l.b16 %v9685
        %v9718 = vunpack.c.l.b16 %v9686
        %v9719 = vunpack.c.l.b16 %v9687
        %v9720 = vunpack.c.l.b16 %v9688
        %v9721 = vunpack.c.l.b16 %v9689
        %v9722 = vunpack.c.l.b16 %v9690
        %v9723 = vpack.c.b16 %v9708, %v9707
        %v9724 = vpack.c.b16 %v9710, %v9709
        %v9725 = vpack.c.b16 %v9712, %v9711
        %v9726 = vpack.c.b16 %v9714, %v9713
        %v9727 = vpack.c.b16 %v9716, %v9715
        %v9728 = vpack.c.b16 %v9718, %v9717
        %v9729 = vpack.c.b16 %v9720, %v9719
        %v9730 = vpack.c.b16 %v9722, %v9721
        %9739 = vmatprep.subr.bf16.mxu0 0
        %9740 = vmatpush1.bf16.msra.mxu0 %v9723
        %9741 = vmatprep.subr.bf16.mxu0 0
        %9742 = vmatpush1.bf16.msra.mxu0 %v9724
        %9743 = vmatprep.subr.bf16.mxu0 0
        %9744 = vmatpush1.bf16.msra.mxu0 %v9725
        %9745 = vmatprep.subr.bf16.mxu0 0
        %9746 = vmatpush1.bf16.msra.mxu0 %v9726
        %9747 = vmatprep.subr.bf16.mxu0 0
        %9748 = vmatpush1.bf16.msra.mxu0 %v9727
        %9749 = vmatprep.subr.bf16.mxu0 0
        %9750 = vmatpush1.bf16.msra.mxu0 %v9728
        %9751 = vmatprep.subr.bf16.mxu0 0
        %9752 = vmatpush1.bf16.msra.mxu0 %v9729
        %9753 = vmatprep.subr.bf16.mxu0 0
        %9754 = vmatpush1.bf16.msra.mxu0 %v9730
        %9755 = vmatprep.subr.bf16.mxu0 0
        %9756 = vmatpush1.bf16.msra.mxu0 0
        %9757 = vmatprep.subr.bf16.mxu0 0
        %9758 = vmatpush1.bf16.msra.mxu0 0
        %9759 = vmatprep.subr.bf16.mxu0 0
        %9760 = vmatpush1.bf16.msra.mxu0 0
        %9761 = vmatprep.subr.bf16.mxu0 0
        %9762 = vmatpush1.bf16.msra.mxu0 0
        %9763 = vmatprep.subr.bf16.mxu0 0
        %9764 = vmatpush1.bf16.msra.mxu0 0
        %9765 = vmatprep.subr.bf16.mxu0 0
        %9766 = vmatpush1.bf16.msra.mxu0 0
        %9767 = vmatprep.subr.bf16.mxu0 0
        %9768 = vmatpush1.bf16.msra.mxu0 0
        %9769 = vmatprep.subr.bf16.mxu0 0
        %9770 = vmatpush1.bf16.msra.mxu0 0
        %9771 = vmatprep.mubr.bf16.mxu0 0
        %9772 = vmatmul.mubr.bf16.gmra.mrb[0].mxu0 %v6608
        %v9773 = vpop.f32.mrb[0].mxu0
        %v9774 = vadd.f32 0.0, %v9773
        %v9775 = vpop.f32.mrb[0].mxu0
        %v9776 = vpop.f32.mrb[0].mxu0
        %v9777 = vadd.f32 0.0, %v9776
        %v9778 = vpop.f32.mrb[0].mxu0
        %9779 = vmatprep.mubr.bf16.mxu0 0
        %9780 = vmatmul.mubr.bf16.gmra.mrb[0].mxu0 %v6609
        %v9781 = vpop.f32.mrb[0].mxu0
        %v9782 = vadd.f32 0.0, %v9781
        %v9783 = vpop.f32.mrb[0].mxu0
        %v9784 = vpop.f32.mrb[0].mxu0
        %v9785 = vadd.f32 0.0, %v9784
        %v9786 = vpop.f32.mrb[0].mxu0
        %9787 = vmatprep.mubr.bf16.mxu0 0
        %9788 = vmatmul.mubr.bf16.gmra.mrb[0].mxu0 %v6610
        %v9789 = vpop.f32.mrb[0].mxu0
        %v9790 = vadd.f32 0.0, %v9789
        %v9791 = vpop.f32.mrb[0].mxu0
        %v9792 = vpop.f32.mrb[0].mxu0
        %v9793 = vadd.f32 0.0, %v9792
        %v9794 = vpop.f32.mrb[0].mxu0
        %9795 = vmatprep.mubr.bf16.mxu0 0
        %9796 = vmatmul.mubr.bf16.gmra.mrb[0].mxu0 %v6611
        %v9797 = vpop.f32.mrb[0].mxu0
        %v9798 = vadd.f32 0.0, %v9797
        %v9799 = vpop.f32.mrb[0].mxu0
        %v9800 = vpop.f32.mrb[0].mxu0
        %v9801 = vadd.f32 0.0, %v9800
        %v9802 = vpop.f32.mrb[0].mxu0
        %9803 = vmatprep.mubr.bf16.mxu0 0
        %9804 = vmatmul.mubr.bf16.gmra.mrb[0].mxu0 %v6612
        %v9805 = vpop.f32.mrb[0].mxu0
        %v9806 = vadd.f32 0.0, %v9805
        %v9807 = vpop.f32.mrb[0].mxu0
        %v9808 = vpop.f32.mrb[0].mxu0
        %v9809 = vadd.f32 0.0, %v9808
        %v9810 = vpop.f32.mrb[0].mxu0
        %9811 = vmatprep.mubr.bf16.mxu0 0
        %9812 = vmatmul.mubr.bf16.gmra.mrb[0].mxu0 %v6613
        %v9813 = vpop.f32.mrb[0].mxu0
        %v9814 = vadd.f32 0.0, %v9813
        %v9815 = vpop.f32.mrb[0].mxu0
        %v9816 = vpop.f32.mrb[0].mxu0
        %v9817 = vadd.f32 0.0, %v9816
        %v9818 = vpop.f32.mrb[0].mxu0
        %9819 = vmatprep.mubr.bf16.mxu0 0
        %9820 = vmatmul.mubr.bf16.gmra.mrb[0].mxu0 %v6614
        %v9821 = vpop.f32.mrb[0].mxu0
        %v9822 = vadd.f32 0.0, %v9821
        %v9823 = vpop.f32.mrb[0].mxu0
        %v9824 = vpop.f32.mrb[0].mxu0
        %v9825 = vadd.f32 0.0, %v9824
        %v9826 = vpop.f32.mrb[0].mxu0
        %9827 = vmatprep.mubr.bf16.mxu0 0
        %9828 = vmatmul.mubr.bf16.gmra.mrb[0].mxu0 %v6615
        %v9829 = vpop.f32.mrb[0].mxu0
        %v9830 = vadd.f32 0.0, %v9829
        %v9831 = vpop.f32.mrb[0].mxu0
        %v9832 = vpop.f32.mrb[0].mxu0
        %v9833 = vadd.f32 0.0, %v9832
        %v9834 = vpop.f32.mrb[0].mxu0
        %9835 = vmatprep.mubr.bf16.mxu0 0
        %9836 = vmatmul.mubr.bf16.gmra.mrb[0].mxu0 %v6616
        %v9837 = vpop.f32.mrb[0].mxu0
        %v9838 = vadd.f32 0.0, %v9837
        %v9839 = vpop.f32.mrb[0].mxu0
        %v9840 = vpop.f32.mrb[0].mxu0
        %v9841 = vadd.f32 0.0, %v9840
        %v9842 = vpop.f32.mrb[0].mxu0
        %9843 = vmatprep.mubr.bf16.mxu0 0
        %9844 = vmatmul.mubr.bf16.gmra.mrb[0].mxu0 %v6617
        %v9845 = vpop.f32.mrb[0].mxu0
        %v9846 = vadd.f32 0.0, %v9845
        %v9847 = vpop.f32.mrb[0].mxu0
        %v9848 = vpop.f32.mrb[0].mxu0
        %v9849 = vadd.f32 0.0, %v9848
        %v9850 = vpop.f32.mrb[0].mxu0
        %9851 = vmatprep.mubr.bf16.mxu0 0
        %9852 = vmatmul.mubr.bf16.gmra.mrb[0].mxu0 %v6618
        %v9853 = vpop.f32.mrb[0].mxu0
        %v9854 = vadd.f32 0.0, %v9853
        %v9855 = vpop.f32.mrb[0].mxu0
        %v9856 = vpop.f32.mrb[0].mxu0
        %v9857 = vadd.f32 0.0, %v9856
        %v9858 = vpop.f32.mrb[0].mxu0
        %9859 = vmatprep.mubr.bf16.mxu0 0
        %9860 = vmatmul.mubr.bf16.gmra.mrb[0].mxu0 %v6619
        %v9861 = vpop.f32.mrb[0].mxu0
        %v9862 = vadd.f32 0.0, %v9861
        %v9863 = vpop.f32.mrb[0].mxu0
        %v9864 = vpop.f32.mrb[0].mxu0
        %v9865 = vadd.f32 0.0, %v9864
        %v9866 = vpop.f32.mrb[0].mxu0
        %9867 = vmatprep.mubr.bf16.mxu0 0
        %9868 = vmatmul.mubr.bf16.gmra.mrb[0].mxu0 %v6620
        %v9869 = vpop.f32.mrb[0].mxu0
        %v9870 = vadd.f32 0.0, %v9869
        %v9871 = vpop.f32.mrb[0].mxu0
        %v9872 = vpop.f32.mrb[0].mxu0
        %v9873 = vadd.f32 0.0, %v9872
        %v9874 = vpop.f32.mrb[0].mxu0
        %9875 = vmatprep.mubr.bf16.mxu0 0
        %9876 = vmatmul.mubr.bf16.gmra.mrb[0].mxu0 %v6621
        %v9877 = vpop.f32.mrb[0].mxu0
        %v9878 = vadd.f32 0.0, %v9877
        %v9879 = vpop.f32.mrb[0].mxu0
        %v9880 = vpop.f32.mrb[0].mxu0
        %v9881 = vadd.f32 0.0, %v9880
        %v9882 = vpop.f32.mrb[0].mxu0
        %9883 = vmatprep.mubr.bf16.mxu0 0
        %9884 = vmatmul.mubr.bf16.gmra.mrb[0].mxu0 %v6606
        %v9885 = vpop.f32.mrb[0].mxu0
        %v9886 = vadd.f32 0.0, %v9885
        %v9887 = vpop.f32.mrb[0].mxu0
        %v9888 = vpop.f32.mrb[0].mxu0
        %v9889 = vadd.f32 0.0, %v9888
        %v9890 = vpop.f32.mrb[0].mxu0
        %9891 = vmatprep.mubr.bf16.mxu0 0
        %9892 = vmatmul.mubr.bf16.gmra.mrb[0].mxu0 %v6607
        %v9893 = vpop.f32.mrb[0].mxu0
        %v9894 = vadd.f32 0.0, %v9893
        %v9895 = vpop.f32.mrb[0].mxu0
        %v9896 = vpop.f32.mrb[0].mxu0
        %v9897 = vadd.f32 0.0, %v9896
        %v9898 = vpop.f32.mrb[0].mxu0
        %9899 = vdwg.mxu0
        %v9900 = vld [vmem:[%s4956] sm:$0xff]
        %v9901 = vld [vmem:[%s4956 + $0x8] sm:$0xff]
        %v9902 = vld [vmem:[%s4956 + $0x10] sm:$0xff]
        %v9903 = vld [vmem:[%s4956 + $0x18] sm:$0xff]
        %v9904 = vld [vmem:[%s4956 + $0x20] sm:$0xff]
        %v9905 = vld [vmem:[%s4956 + $0x28] sm:$0xff]
        %v9906 = vld [vmem:[%s4956 + $0x30] sm:$0xff]
        %v9907 = vld [vmem:[%s4956 + $0x38] sm:$0xff]
        %v9908 = vld [vmem:[%s4956 + $0x40] sm:$0xff]
        %v9909 = vld [vmem:[%s4956 + $0x48] sm:$0xff]
        %v9910 = vld [vmem:[%s4956 + $0x50] sm:$0xff]
        %v9911 = vld [vmem:[%s4956 + $0x58] sm:$0xff]
        %v9912 = vld [vmem:[%s4956 + $0x60] sm:$0xff]
        %v9913 = vld [vmem:[%s4956 + $0x68] sm:$0xff]
        %v9914 = vld [vmem:[%s4956 + $0x70] sm:$0xff]
        %v9915 = vld [vmem:[%s4956 + $0x78] sm:$0xff]
        %v9916 = vld [vmem:[%s4956 + $0x80] sm:$0xff]
        %v9917 = vld [vmem:[%s4956 + $0x88] sm:$0xff]
        %v9918 = vld [vmem:[%s4956 + $0x90] sm:$0xff]
        %v9919 = vld [vmem:[%s4956 + $0x98] sm:$0xff]
        %v9920 = vld [vmem:[%s4956 + $0xa0] sm:$0xff]
        %v9921 = vld [vmem:[%s4956 + $0xa8] sm:$0xff]
        %v9922 = vld [vmem:[%s4956 + $0xb0] sm:$0xff]
        %v9923 = vld [vmem:[%s4956 + $0xb8] sm:$0xff]
        %v9924 = vld [vmem:[%s4956 + $0xc0] sm:$0xff]
        %v9925 = vld [vmem:[%s4956 + $0xc8] sm:$0xff]
        %v9926 = vld [vmem:[%s4956 + $0xd0] sm:$0xff]
        %v9927 = vld [vmem:[%s4956 + $0xd8] sm:$0xff]
        %v9928 = vld [vmem:[%s4956 + $0xe0] sm:$0xff]
        %v9929 = vld [vmem:[%s4956 + $0xe8] sm:$0xff]
        %v9930 = vld [vmem:[%s4956 + $0xf0] sm:$0xff]
        %v9931 = vld [vmem:[%s4956 + $0xf8] sm:$0xff]
        %9933 = vset.pattern.permute.xlu0 0
        %9934 = vperm.xlu0 %9933, %v9900
        %v9935 = vpop.permute.xlu0 %9934
        %9938 = vset.pattern.permute.xlu0 0
        %9939 = vperm.xlu0 %9938, %v9901
        %v9940 = vpop.permute.xlu0 %9939
        %9943 = vset.pattern.permute.xlu0 0
        %9944 = vperm.xlu0 %9943, %v9902
        %v9945 = vpop.permute.xlu0 %9944
        %9948 = vset.pattern.permute.xlu0 0
        %9949 = vperm.xlu0 %9948, %v9903
        %v9950 = vpop.permute.xlu0 %9949
        %9953 = vset.pattern.permute.xlu0 0
        %9954 = vperm.xlu0 %9953, %v9904
        %v9955 = vpop.permute.xlu0 %9954
        %9958 = vset.pattern.permute.xlu0 0
        %9959 = vperm.xlu0 %9958, %v9905
        %v9960 = vpop.permute.xlu0 %9959
        %9963 = vset.pattern.permute.xlu0 0
        %9964 = vperm.xlu0 %9963, %v9906
        %v9965 = vpop.permute.xlu0 %9964
        %9968 = vset.pattern.permute.xlu0 0
        %9969 = vperm.xlu0 %9968, %v9907
        %v9970 = vpop.permute.xlu0 %9969
        %9973 = vset.pattern.permute.xlu0 0
        %9974 = vperm.xlu0 %9973, %v9908
        %v9975 = vpop.permute.xlu0 %9974
        %9978 = vset.pattern.permute.xlu0 0
        %9979 = vperm.xlu0 %9978, %v9909
        %v9980 = vpop.permute.xlu0 %9979
        %9983 = vset.pattern.permute.xlu0 0
        %9984 = vperm.xlu0 %9983, %v9910
        %v9985 = vpop.permute.xlu0 %9984
        %9988 = vset.pattern.permute.xlu0 0
        %9989 = vperm.xlu0 %9988, %v9911
        %v9990 = vpop.permute.xlu0 %9989
        %9993 = vset.pattern.permute.xlu0 0
        %9994 = vperm.xlu0 %9993, %v9912
        %v9995 = vpop.permute.xlu0 %9994
        %9998 = vset.pattern.permute.xlu0 0
        %9999 = vperm.xlu0 %9998, %v9913
        %v10000 = vpop.permute.xlu0 %9999
        %10003 = vset.pattern.permute.xlu0 0
        %10004 = vperm.xlu0 %10003, %v9914
        %v10005 = vpop.permute.xlu0 %10004
        %10008 = vset.pattern.permute.xlu0 0
        %10009 = vperm.xlu0 %10008, %v9915
        %v10010 = vpop.permute.xlu0 %10009
        %10013 = vset.pattern.permute.xlu0 0
        %10014 = vperm.xlu0 %10013, %v9916
        %v10015 = vpop.permute.xlu0 %10014
        %10018 = vset.pattern.permute.xlu0 0
        %10019 = vperm.xlu0 %10018, %v9917
        %v10020 = vpop.permute.xlu0 %10019
        %10023 = vset.pattern.permute.xlu0 0
        %10024 = vperm.xlu0 %10023, %v9918
        %v10025 = vpop.permute.xlu0 %10024
        %10028 = vset.pattern.permute.xlu0 0
        %10029 = vperm.xlu0 %10028, %v9919
        %v10030 = vpop.permute.xlu0 %10029
        %10033 = vset.pattern.permute.xlu0 0
        %10034 = vperm.xlu0 %10033, %v9920
        %v10035 = vpop.permute.xlu0 %10034
        %10038 = vset.pattern.permute.xlu0 0
        %10039 = vperm.xlu0 %10038, %v9921
        %v10040 = vpop.permute.xlu0 %10039
        %10043 = vset.pattern.permute.xlu0 0
        %10044 = vperm.xlu0 %10043, %v9922
        %v10045 = vpop.permute.xlu0 %10044
        %10048 = vset.pattern.permute.xlu0 0
        %10049 = vperm.xlu0 %10048, %v9923
        %v10050 = vpop.permute.xlu0 %10049
        %10053 = vset.pattern.permute.xlu0 0
        %10054 = vperm.xlu0 %10053, %v9924
        %v10055 = vpop.permute.xlu0 %10054
        %10058 = vset.pattern.permute.xlu0 0
        %10059 = vperm.xlu0 %10058, %v9925
        %v10060 = vpop.permute.xlu0 %10059
        %10063 = vset.pattern.permute.xlu0 0
        %10064 = vperm.xlu0 %10063, %v9926
        %v10065 = vpop.permute.xlu0 %10064
        %10068 = vset.pattern.permute.xlu0 0
        %10069 = vperm.xlu0 %10068, %v9927
        %v10070 = vpop.permute.xlu0 %10069
        %10073 = vset.pattern.permute.xlu0 0
        %10074 = vperm.xlu0 %10073, %v9928
        %v10075 = vpop.permute.xlu0 %10074
        %10078 = vset.pattern.permute.xlu0 0
        %10079 = vperm.xlu0 %10078, %v9929
        %v10080 = vpop.permute.xlu0 %10079
        %10083 = vset.pattern.permute.xlu0 0
        %10084 = vperm.xlu0 %10083, %v9930
        %v10085 = vpop.permute.xlu0 %10084
        %10088 = vset.pattern.permute.xlu0 0
        %10089 = vperm.xlu0 %10088, %v9931
        %v10090 = vpop.permute.xlu0 %10089
        %v10092 = vmul.f32 %v9774, %v9935
        %v10093 = vmul.f32 %v9777, %v9940
        %v10094 = vmul.f32 %v9782, %v9945
        %v10095 = vmul.f32 %v9785, %v9950
        %v10096 = vmul.f32 %v9790, %v9955
        %v10097 = vmul.f32 %v9793, %v9960
        %v10098 = vmul.f32 %v9798, %v9965
        %v10099 = vmul.f32 %v9801, %v9970
        %v10100 = vmul.f32 %v9806, %v9975
        %v10101 = vmul.f32 %v9809, %v9980
        %v10102 = vmul.f32 %v9814, %v9985
        %v10103 = vmul.f32 %v9817, %v9990
        %v10104 = vmul.f32 %v9822, %v9995
        %v10105 = vmul.f32 %v9825, %v10000
        %v10106 = vmul.f32 %v9830, %v10005
        %v10107 = vmul.f32 %v9833, %v10010
        %v10108 = vmul.f32 %v9838, %v10015
        %v10109 = vmul.f32 %v9841, %v10020
        %v10110 = vmul.f32 %v9846, %v10025
        %v10111 = vmul.f32 %v9849, %v10030
        %v10112 = vmul.f32 %v9854, %v10035
        %v10113 = vmul.f32 %v9857, %v10040
        %v10114 = vmul.f32 %v9862, %v10045
        %v10115 = vmul.f32 %v9865, %v10050
        %v10116 = vmul.f32 %v9870, %v10055
        %v10117 = vmul.f32 %v9873, %v10060
        %v10118 = vmul.f32 %v9878, %v10065
        %v10119 = vmul.f32 %v9881, %v10070
        %v10120 = vmul.f32 %v9886, %v10075
        %v10121 = vmul.f32 %v9889, %v10080
        %v10122 = vmul.f32 %v9894, %v10085
        %v10123 = vmul.f32 %v9897, %v10090
        %v10124 = vld [vmem:[#allocation2] sm:$0xff]
        %v10125 = vld [vmem:[#allocation2 + $0x8] sm:$0xff]
        %v10126 = vld [vmem:[#allocation2 + $0x10] sm:$0xff]
        %v10127 = vld [vmem:[#allocation2 + $0x18] sm:$0xff]
        %v10128 = vld [vmem:[#allocation2 + $0x20] sm:$0xff]
        %v10129 = vld [vmem:[#allocation2 + $0x28] sm:$0xff]
        %v10130 = vld [vmem:[#allocation2 + $0x30] sm:$0xff]
        %v10131 = vld [vmem:[#allocation2 + $0x38] sm:$0xff]
        %v10132 = vld [vmem:[#allocation2 + $0x40] sm:$0xff]
        %v10133 = vld [vmem:[#allocation2 + $0x48] sm:$0xff]
        %v10134 = vld [vmem:[#allocation2 + $0x50] sm:$0xff]
        %v10135 = vld [vmem:[#allocation2 + $0x58] sm:$0xff]
        %v10136 = vld [vmem:[#allocation2 + $0x60] sm:$0xff]
        %v10137 = vld [vmem:[#allocation2 + $0x68] sm:$0xff]
        %v10138 = vld [vmem:[#allocation2 + $0x70] sm:$0xff]
        %v10139 = vld [vmem:[#allocation2 + $0x78] sm:$0xff]
        %v10140 = vld [vmem:[#allocation2 + $0x80] sm:$0xff]
        %v10141 = vld [vmem:[#allocation2 + $0x88] sm:$0xff]
        %v10142 = vld [vmem:[#allocation2 + $0x90] sm:$0xff]
        %v10143 = vld [vmem:[#allocation2 + $0x98] sm:$0xff]
        %v10144 = vld [vmem:[#allocation2 + $0xa0] sm:$0xff]
        %v10145 = vld [vmem:[#allocation2 + $0xa8] sm:$0xff]
        %v10146 = vld [vmem:[#allocation2 + $0xb0] sm:$0xff]
        %v10147 = vld [vmem:[#allocation2 + $0xb8] sm:$0xff]
        %v10148 = vld [vmem:[#allocation2 + $0xc0] sm:$0xff]
        %v10149 = vld [vmem:[#allocation2 + $0xc8] sm:$0xff]
        %v10150 = vld [vmem:[#allocation2 + $0xd0] sm:$0xff]
        %v10151 = vld [vmem:[#allocation2 + $0xd8] sm:$0xff]
        %v10152 = vld [vmem:[#allocation2 + $0xe0] sm:$0xff]
        %v10153 = vld [vmem:[#allocation2 + $0xe8] sm:$0xff]
        %v10154 = vld [vmem:[#allocation2 + $0xf0] sm:$0xff]
        %v10155 = vld [vmem:[#allocation2 + $0xf8] sm:$0xff]
        %v10156 = vadd.f32 %v10124, %v10092
        %v10157 = vadd.f32 %v10125, %v10093
        %v10158 = vadd.f32 %v10126, %v10094
        %v10159 = vadd.f32 %v10127, %v10095
        %v10160 = vadd.f32 %v10128, %v10096
        %v10161 = vadd.f32 %v10129, %v10097
        %v10162 = vadd.f32 %v10130, %v10098
        %v10163 = vadd.f32 %v10131, %v10099
        %v10164 = vadd.f32 %v10132, %v10100
        %v10165 = vadd.f32 %v10133, %v10101
        %v10166 = vadd.f32 %v10134, %v10102
        %v10167 = vadd.f32 %v10135, %v10103
        %v10168 = vadd.f32 %v10136, %v10104
        %v10169 = vadd.f32 %v10137, %v10105
        %v10170 = vadd.f32 %v10138, %v10106
        %v10171 = vadd.f32 %v10139, %v10107
        %v10172 = vadd.f32 %v10140, %v10108
        %v10173 = vadd.f32 %v10141, %v10109
        %v10174 = vadd.f32 %v10142, %v10110
        %v10175 = vadd.f32 %v10143, %v10111
        %v10176 = vadd.f32 %v10144, %v10112
        %v10177 = vadd.f32 %v10145, %v10113
        %v10178 = vadd.f32 %v10146, %v10114
        %v10179 = vadd.f32 %v10147, %v10115
        %v10180 = vadd.f32 %v10148, %v10116
        %v10181 = vadd.f32 %v10149, %v10117
        %v10182 = vadd.f32 %v10150, %v10118
        %v10183 = vadd.f32 %v10151, %v10119
        %v10184 = vadd.f32 %v10152, %v10120
        %v10185 = vadd.f32 %v10153, %v10121
        %v10186 = vadd.f32 %v10154, %v10122
        %v10187 = vadd.f32 %v10155, %v10123
        %10188 = vst [vmem:[#allocation2] sm:$0xff] %v10156
        %10189 = vst [vmem:[#allocation2 + $0x8] sm:$0xff] %v10157
        %10190 = vst [vmem:[#allocation2 + $0x10] sm:$0xff] %v10158
        %10191 = vst [vmem:[#allocation2 + $0x18] sm:$0xff] %v10159
        %10192 = vst [vmem:[#allocation2 + $0x20] sm:$0xff] %v10160
        %10193 = vst [vmem:[#allocation2 + $0x28] sm:$0xff] %v10161
        %10194 = vst [vmem:[#allocation2 + $0x30] sm:$0xff] %v10162
        %10195 = vst [vmem:[#allocation2 + $0x38] sm:$0xff] %v10163
        %10196 = vst [vmem:[#allocation2 + $0x40] sm:$0xff] %v10164
        %10197 = vst [vmem:[#allocation2 + $0x48] sm:$0xff] %v10165
        %10198 = vst [vmem:[#allocation2 + $0x50] sm:$0xff] %v10166
        %10199 = vst [vmem:[#allocation2 + $0x58] sm:$0xff] %v10167
        %10200 = vst [vmem:[#allocation2 + $0x60] sm:$0xff] %v10168
        %10201 = vst [vmem:[#allocation2 + $0x68] sm:$0xff] %v10169
        %10202 = vst [vmem:[#allocation2 + $0x70] sm:$0xff] %v10170
        %10203 = vst [vmem:[#allocation2 + $0x78] sm:$0xff] %v10171
        %10204 = vst [vmem:[#allocation2 + $0x80] sm:$0xff] %v10172
        %10205 = vst [vmem:[#allocation2 + $0x88] sm:$0xff] %v10173
        %10206 = vst [vmem:[#allocation2 + $0x90] sm:$0xff] %v10174
        %10207 = vst [vmem:[#allocation2 + $0x98] sm:$0xff] %v10175
        %10208 = vst [vmem:[#allocation2 + $0xa0] sm:$0xff] %v10176
        %10209 = vst [vmem:[#allocation2 + $0xa8] sm:$0xff] %v10177
        %10210 = vst [vmem:[#allocation2 + $0xb0] sm:$0xff] %v10178
        %10211 = vst [vmem:[#allocation2 + $0xb8] sm:$0xff] %v10179
        %10212 = vst [vmem:[#allocation2 + $0xc0] sm:$0xff] %v10180
        %10213 = vst [vmem:[#allocation2 + $0xc8] sm:$0xff] %v10181
        %10214 = vst [vmem:[#allocation2 + $0xd0] sm:$0xff] %v10182
        %10215 = vst [vmem:[#allocation2 + $0xd8] sm:$0xff] %v10183
        %10216 = vst [vmem:[#allocation2 + $0xe0] sm:$0xff] %v10184
        %10217 = vst [vmem:[#allocation2 + $0xe8] sm:$0xff] %v10185
        %10218 = vst [vmem:[#allocation2 + $0xf0] sm:$0xff] %v10186
        %10219 = vst [vmem:[#allocation2 + $0xf8] sm:$0xff] %v10187
        %v10220 = vld [vmem:[#allocation2] sm:$0xff]
        %v10221 = vld [vmem:[#allocation2 + $0x8] sm:$0xff]
        %v10222 = vld [vmem:[#allocation2 + $0x10] sm:$0xff]
        %v10223 = vld [vmem:[#allocation2 + $0x18] sm:$0xff]
        %v10224 = vld [vmem:[#allocation2 + $0x20] sm:$0xff]
        %v10225 = vld [vmem:[#allocation2 + $0x28] sm:$0xff]
        %v10226 = vld [vmem:[#allocation2 + $0x30] sm:$0xff]
        %v10227 = vld [vmem:[#allocation2 + $0x38] sm:$0xff]
        %v10228 = vld [vmem:[#allocation2 + $0x40] sm:$0xff]
        %v10229 = vld [vmem:[#allocation2 + $0x48] sm:$0xff]
        %v10230 = vld [vmem:[#allocation2 + $0x50] sm:$0xff]
        %v10231 = vld [vmem:[#allocation2 + $0x58] sm:$0xff]
        %v10232 = vld [vmem:[#allocation2 + $0x60] sm:$0xff]
        %v10233 = vld [vmem:[#allocation2 + $0x68] sm:$0xff]
        %v10234 = vld [vmem:[#allocation2 + $0x70] sm:$0xff]
        %v10235 = vld [vmem:[#allocation2 + $0x78] sm:$0xff]
        %v10236 = vld [vmem:[#allocation2 + $0x80] sm:$0xff]
        %v10237 = vld [vmem:[#allocation2 + $0x88] sm:$0xff]
        %v10238 = vld [vmem:[#allocation2 + $0x90] sm:$0xff]
        %v10239 = vld [vmem:[#allocation2 + $0x98] sm:$0xff]
        %v10240 = vld [vmem:[#allocation2 + $0xa0] sm:$0xff]
        %v10241 = vld [vmem:[#allocation2 + $0xa8] sm:$0xff]
        %v10242 = vld [vmem:[#allocation2 + $0xb0] sm:$0xff]
        %v10243 = vld [vmem:[#allocation2 + $0xb8] sm:$0xff]
        %v10244 = vld [vmem:[#allocation2 + $0xc0] sm:$0xff]
        %v10245 = vld [vmem:[#allocation2 + $0xc8] sm:$0xff]
        %v10246 = vld [vmem:[#allocation2 + $0xd0] sm:$0xff]
        %v10247 = vld [vmem:[#allocation2 + $0xd8] sm:$0xff]
        %v10248 = vld [vmem:[#allocation2 + $0xe0] sm:$0xff]
        %v10249 = vld [vmem:[#allocation2 + $0xe8] sm:$0xff]
        %v10250 = vld [vmem:[#allocation2 + $0xf0] sm:$0xff]
        %v10251 = vld [vmem:[#allocation2 + $0xf8] sm:$0xff]
        %v10252 = vld [vmem:[%s5] sm:$0x1]
        %v10254 = vlaneseq
        %v10255 = vshrl.u32 %v10254, 7
        %v10256 = vsub.s32 0, %v10255
        %v10257 = vrot.slane %v10252, %v10256
        %v10259 = vmul.f32 %v10220, %v10257
        %v10260 = vmul.f32 %v10221, %v10257
        %v10261 = vmul.f32 %v10222, %v10257
        %v10262 = vmul.f32 %v10223, %v10257
        %v10263 = vmul.f32 %v10224, %v10257
        %v10264 = vmul.f32 %v10225, %v10257
        %v10265 = vmul.f32 %v10226, %v10257
        %v10266 = vmul.f32 %v10227, %v10257
        %v10267 = vmul.f32 %v10228, %v10257
        %v10268 = vmul.f32 %v10229, %v10257
        %v10269 = vmul.f32 %v10230, %v10257
        %v10270 = vmul.f32 %v10231, %v10257
        %v10271 = vmul.f32 %v10232, %v10257
        %v10272 = vmul.f32 %v10233, %v10257
        %v10273 = vmul.f32 %v10234, %v10257
        %v10274 = vmul.f32 %v10235, %v10257
        %v10275 = vmul.f32 %v10236, %v10257
        %v10276 = vmul.f32 %v10237, %v10257
        %v10277 = vmul.f32 %v10238, %v10257
        %v10278 = vmul.f32 %v10239, %v10257
        %v10279 = vmul.f32 %v10240, %v10257
        %v10280 = vmul.f32 %v10241, %v10257
        %v10281 = vmul.f32 %v10242, %v10257
        %v10282 = vmul.f32 %v10243, %v10257
        %v10283 = vmul.f32 %v10244, %v10257
        %v10284 = vmul.f32 %v10245, %v10257
        %v10285 = vmul.f32 %v10246, %v10257
        %v10286 = vmul.f32 %v10247, %v10257
        %v10287 = vmul.f32 %v10248, %v10257
        %v10288 = vmul.f32 %v10249, %v10257
        %v10289 = vmul.f32 %v10250, %v10257
        %v10290 = vmul.f32 %v10251, %v10257
        %v10291 = vld [vmem:[%s6] sm:$0x1]
        %v10293 = vlaneseq
        %v10294 = vshrl.u32 %v10293, 7
        %v10295 = vsub.s32 0, %v10294
        %v10296 = vrot.slane %v10291, %v10295
        %v10298 = vadd.f32 %v10259, %v10296
        %v10299 = vadd.f32 %v10260, %v10296
        %v10300 = vadd.f32 %v10261, %v10296
        %v10301 = vadd.f32 %v10262, %v10296
        %v10302 = vadd.f32 %v10263, %v10296
        %v10303 = vadd.f32 %v10264, %v10296
        %v10304 = vadd.f32 %v10265, %v10296
        %v10305 = vadd.f32 %v10266, %v10296
        %v10306 = vadd.f32 %v10267, %v10296
        %v10307 = vadd.f32 %v10268, %v10296
        %v10308 = vadd.f32 %v10269, %v10296
        %v10309 = vadd.f32 %v10270, %v10296
        %v10310 = vadd.f32 %v10271, %v10296
        %v10311 = vadd.f32 %v10272, %v10296
        %v10312 = vadd.f32 %v10273, %v10296
        %v10313 = vadd.f32 %v10274, %v10296
        %v10314 = vadd.f32 %v10275, %v10296
        %v10315 = vadd.f32 %v10276, %v10296
        %v10316 = vadd.f32 %v10277, %v10296
        %v10317 = vadd.f32 %v10278, %v10296
        %v10318 = vadd.f32 %v10279, %v10296
        %v10319 = vadd.f32 %v10280, %v10296
        %v10320 = vadd.f32 %v10281, %v10296
        %v10321 = vadd.f32 %v10282, %v10296
        %v10322 = vadd.f32 %v10283, %v10296
        %v10323 = vadd.f32 %v10284, %v10296
        %v10324 = vadd.f32 %v10285, %v10296
        %v10325 = vadd.f32 %v10286, %v10296
        %v10326 = vadd.f32 %v10287, %v10296
        %v10327 = vadd.f32 %v10288, %v10296
        %v10328 = vadd.f32 %v10289, %v10296
        %v10329 = vadd.f32 %v10290, %v10296
        %v10330 = vld [vmem:[%s303] sm:$0xf]
        %v10331 = vld [vmem:[%s303 + $0x4] sm:$0xf]
        %v10332 = vld [vmem:[%s303 + $0x8] sm:$0xf]
        %v10333 = vld [vmem:[%s303 + $0xc] sm:$0xf]
        %v10334 = vld [vmem:[%s303 + $0x10] sm:$0xf]
        %v10335 = vld [vmem:[%s303 + $0x14] sm:$0xf]
        %v10336 = vld [vmem:[%s303 + $0x18] sm:$0xf]
        %v10337 = vld [vmem:[%s303 + $0x1c] sm:$0xf]
        %v10338 = vld [vmem:[%s303 + $0x20] sm:$0xf]
        %v10339 = vld [vmem:[%s303 + $0x24] sm:$0xf]
        %v10340 = vld [vmem:[%s303 + $0x28] sm:$0xf]
        %v10341 = vld [vmem:[%s303 + $0x2c] sm:$0xf]
        %v10342 = vld [vmem:[%s303 + $0x30] sm:$0xf]
        %v10343 = vld [vmem:[%s303 + $0x34] sm:$0xf]
        %v10344 = vld [vmem:[%s303 + $0x38] sm:$0xf]
        %v10345 = vld [vmem:[%s303 + $0x3c] sm:$0xf]
        %v10346 = vld [vmem:[%s303 + $0x40] sm:$0xf]
        %v10347 = vld [vmem:[%s303 + $0x44] sm:$0xf]
        %v10348 = vld [vmem:[%s303 + $0x48] sm:$0xf]
        %v10349 = vld [vmem:[%s303 + $0x4c] sm:$0xf]
        %v10350 = vld [vmem:[%s303 + $0x50] sm:$0xf]
        %v10351 = vld [vmem:[%s303 + $0x54] sm:$0xf]
        %v10352 = vld [vmem:[%s303 + $0x58] sm:$0xf]
        %v10353 = vld [vmem:[%s303 + $0x5c] sm:$0xf]
        %v10354 = vld [vmem:[%s303 + $0x60] sm:$0xf]
        %v10355 = vld [vmem:[%s303 + $0x64] sm:$0xf]
        %v10356 = vld [vmem:[%s303 + $0x68] sm:$0xf]
        %v10357 = vld [vmem:[%s303 + $0x6c] sm:$0xf]
        %v10358 = vld [vmem:[%s303 + $0x70] sm:$0xf]
        %v10359 = vld [vmem:[%s303 + $0x74] sm:$0xf]
        %v10360 = vld [vmem:[%s303 + $0x78] sm:$0xf]
        %v10361 = vld [vmem:[%s303 + $0x7c] sm:$0xf]
        %v10362 = vunpack.c.l.bf16 %v10330
        %v10363 = vunpack.c.l.bf16 %v10331
        %v10364 = vunpack.c.l.bf16 %v10332
        %v10365 = vunpack.c.l.bf16 %v10333
        %v10366 = vunpack.c.l.bf16 %v10334
        %v10367 = vunpack.c.l.bf16 %v10335
        %v10368 = vunpack.c.l.bf16 %v10336
        %v10369 = vunpack.c.l.bf16 %v10337
        %v10370 = vunpack.c.l.bf16 %v10338
        %v10371 = vunpack.c.l.bf16 %v10339
        %v10372 = vunpack.c.l.bf16 %v10340
        %v10373 = vunpack.c.l.bf16 %v10341
        %v10374 = vunpack.c.l.bf16 %v10342
        %v10375 = vunpack.c.l.bf16 %v10343
        %v10376 = vunpack.c.l.bf16 %v10344
        %v10377 = vunpack.c.l.bf16 %v10345
        %v10378 = vunpack.c.l.bf16 %v10346
        %v10379 = vunpack.c.l.bf16 %v10347
        %v10380 = vunpack.c.l.bf16 %v10348
        %v10381 = vunpack.c.l.bf16 %v10349
        %v10382 = vunpack.c.l.bf16 %v10350
        %v10383 = vunpack.c.l.bf16 %v10351
        %v10384 = vunpack.c.l.bf16 %v10352
        %v10385 = vunpack.c.l.bf16 %v10353
        %v10386 = vunpack.c.l.bf16 %v10354
        %v10387 = vunpack.c.l.bf16 %v10355
        %v10388 = vunpack.c.l.bf16 %v10356
        %v10389 = vunpack.c.l.bf16 %v10357
        %v10390 = vunpack.c.l.bf16 %v10358
        %v10391 = vunpack.c.l.bf16 %v10359
        %v10392 = vunpack.c.l.bf16 %v10360
        %v10393 = vunpack.c.l.bf16 %v10361
        %v10394 = vadd.f32 %v10298, %v10362
        %v10395 = vadd.f32 %v10299, %v10363
        %v10396 = vadd.f32 %v10300, %v10364
        %v10397 = vadd.f32 %v10301, %v10365
        %v10398 = vadd.f32 %v10302, %v10366
        %v10399 = vadd.f32 %v10303, %v10367
        %v10400 = vadd.f32 %v10304, %v10368
        %v10401 = vadd.f32 %v10305, %v10369
        %v10402 = vadd.f32 %v10306, %v10370
        %v10403 = vadd.f32 %v10307, %v10371
        %v10404 = vadd.f32 %v10308, %v10372
        %v10405 = vadd.f32 %v10309, %v10373
        %v10406 = vadd.f32 %v10310, %v10374
        %v10407 = vadd.f32 %v10311, %v10375
        %v10408 = vadd.f32 %v10312, %v10376
        %v10409 = vadd.f32 %v10313, %v10377
        %v10410 = vadd.f32 %v10314, %v10378
        %v10411 = vadd.f32 %v10315, %v10379
        %v10412 = vadd.f32 %v10316, %v10380
        %v10413 = vadd.f32 %v10317, %v10381
        %v10414 = vadd.f32 %v10318, %v10382
        %v10415 = vadd.f32 %v10319, %v10383
        %v10416 = vadd.f32 %v10320, %v10384
        %v10417 = vadd.f32 %v10321, %v10385
        %v10418 = vadd.f32 %v10322, %v10386
        %v10419 = vadd.f32 %v10323, %v10387
        %v10420 = vadd.f32 %v10324, %v10388
        %v10421 = vadd.f32 %v10325, %v10389
        %v10422 = vadd.f32 %v10326, %v10390
        %v10423 = vadd.f32 %v10327, %v10391
        %v10424 = vadd.f32 %v10328, %v10392
        %v10425 = vadd.f32 %v10329, %v10393
        %v10426 = vmax.f32 %v10394, 0.0
        %v10427 = vmax.f32 %v10395, 0.0
        %v10428 = vmax.f32 %v10396, 0.0
        %v10429 = vmax.f32 %v10397, 0.0
        %v10430 = vmax.f32 %v10398, 0.0
        %v10431 = vmax.f32 %v10399, 0.0
        %v10432 = vmax.f32 %v10400, 0.0
        %v10433 = vmax.f32 %v10401, 0.0
        %v10434 = vmax.f32 %v10402, 0.0
        %v10435 = vmax.f32 %v10403, 0.0
        %v10436 = vmax.f32 %v10404, 0.0
        %v10437 = vmax.f32 %v10405, 0.0
        %v10438 = vmax.f32 %v10406, 0.0
        %v10439 = vmax.f32 %v10407, 0.0
        %v10440 = vmax.f32 %v10408, 0.0
        %v10441 = vmax.f32 %v10409, 0.0
        %v10442 = vmax.f32 %v10410, 0.0
        %v10443 = vmax.f32 %v10411, 0.0
        %v10444 = vmax.f32 %v10412, 0.0
        %v10445 = vmax.f32 %v10413, 0.0
        %v10446 = vmax.f32 %v10414, 0.0
        %v10447 = vmax.f32 %v10415, 0.0
        %v10448 = vmax.f32 %v10416, 0.0
        %v10449 = vmax.f32 %v10417, 0.0
        %v10450 = vmax.f32 %v10418, 0.0
        %v10451 = vmax.f32 %v10419, 0.0
        %v10452 = vmax.f32 %v10420, 0.0
        %v10453 = vmax.f32 %v10421, 0.0
        %v10454 = vmax.f32 %v10422, 0.0
        %v10455 = vmax.f32 %v10423, 0.0
        %v10456 = vmax.f32 %v10424, 0.0
        %v10457 = vmax.f32 %v10425, 0.0
        %10458 = vst [vmem:[%s298] sm:$0xff] %v10426
        %10459 = vst [vmem:[%s298 + $0x8] sm:$0xff] %v10427
        %10460 = vst [vmem:[%s298 + $0x10] sm:$0xff] %v10428
        %10461 = vst [vmem:[%s298 + $0x18] sm:$0xff] %v10429
        %10462 = vst [vmem:[%s298 + $0x20] sm:$0xff] %v10430
        %10463 = vst [vmem:[%s298 + $0x28] sm:$0xff] %v10431
        %10464 = vst [vmem:[%s298 + $0x30] sm:$0xff] %v10432
        %10465 = vst [vmem:[%s298 + $0x38] sm:$0xff] %v10433
        %10466 = vst [vmem:[%s298 + $0x40] sm:$0xff] %v10434
        %10467 = vst [vmem:[%s298 + $0x48] sm:$0xff] %v10435
        %10468 = vst [vmem:[%s298 + $0x50] sm:$0xff] %v10436
        %10469 = vst [vmem:[%s298 + $0x58] sm:$0xff] %v10437
        %10470 = vst [vmem:[%s298 + $0x60] sm:$0xff] %v10438
        %10471 = vst [vmem:[%s298 + $0x68] sm:$0xff] %v10439
        %10472 = vst [vmem:[%s298 + $0x70] sm:$0xff] %v10440
        %10473 = vst [vmem:[%s298 + $0x78] sm:$0xff] %v10441
        %10474 = vst [vmem:[%s298 + $0x80] sm:$0xff] %v10442
        %10475 = vst [vmem:[%s298 + $0x88] sm:$0xff] %v10443
        %10476 = vst [vmem:[%s298 + $0x90] sm:$0xff] %v10444
        %10477 = vst [vmem:[%s298 + $0x98] sm:$0xff] %v10445
        %10478 = vst [vmem:[%s298 + $0xa0] sm:$0xff] %v10446
        %10479 = vst [vmem:[%s298 + $0xa8] sm:$0xff] %v10447
        %10480 = vst [vmem:[%s298 + $0xb0] sm:$0xff] %v10448
        %10481 = vst [vmem:[%s298 + $0xb8] sm:$0xff] %v10449
        %10482 = vst [vmem:[%s298 + $0xc0] sm:$0xff] %v10450
        %10483 = vst [vmem:[%s298 + $0xc8] sm:$0xff] %v10451
        %10484 = vst [vmem:[%s298 + $0xd0] sm:$0xff] %v10452
        %10485 = vst [vmem:[%s298 + $0xd8] sm:$0xff] %v10453
        %10486 = vst [vmem:[%s298 + $0xe0] sm:$0xff] %v10454
        %10487 = vst [vmem:[%s298 + $0xe8] sm:$0xff] %v10455
        %10488 = vst [vmem:[%s298 + $0xf0] sm:$0xff] %v10456
        %10489 = vst [vmem:[%s298 + $0xf8] sm:$0xff] %v10457
        %s10490 = sand.u32 %s203, 1
        %s10491 = scalar_lea.sflag [#allocation4], %s10490
        %s10492 = sand.u32 %s203, 1
        %s10493 = smul.addr %s10492, 256
        %s10494 = scalar_lea.vmem [#allocation3], %s10493
        // Predicated region
        $region53: #{tpu_custom_call.1} parent=51 // pred_check
          %p10495 = pneg %p213
        $region54: #{tpu_custom_call.1} parent=51 // pred_check_branch
          %10497 = sbr.rel (%p10495) target = $region56
        $region55: #{tpu_custom_call.1} parent=51 // pred_region
          %s10499 = ssub.s32 4096, 4096
          %10500 = vsyncadd %s10491, %s10499
          %s10501 = smul.addr %s22, 32
          %s10502 = smul.addr %s10501, 128
          %s10503 = scalar_lea.hbm %s8, %s10502
          %s10504 = sshll.u32 %s10494, 4
          %s10505 = int_to_ptr.vmem [resolvable:$true] %s10504
          %10510 = dma.vmem_to_hbm [thread:$0]  %s10505, 4096, %s10503, %s10491, 128, 128, 8
        $region56: #{tpu_custom_call.1} parent=51 // pred_fallthru
          _
      $region52: #{tpu_custom_call.1} parent=5 // pred_fallthru
        _
      %p10511 = scmp.le.s32.totalorder 2, %s17
      // Predicated region
      $region57: #{tpu_custom_call.1} parent=5 // pred_check
        %p10512 = pneg %p10511
      $region58: #{tpu_custom_call.1} parent=5 // pred_check_branch
        %10514 = sbr.rel (%p10512) target = $region60
      $region59: #{tpu_custom_call.1} parent=5 // pred_region
        %s10515 = ssub.s32 %s17, 2
        // Predicated region
        $region61: #{tpu_custom_call.1} parent=59 // pred_check
          %p10516 = pneg %p219
        $region62: #{tpu_custom_call.1} parent=59 // pred_check_branch
          %10518 = sbr.rel (%p10516) target = $region64
        $region63: #{tpu_custom_call.1} parent=59 // pred_region
          %s10519 = sand.u32 %s204, 1
          %s10520 = scalar_lea.sflag [#allocation4], %s10519
          %s10521 = sand.u32 %s204, 1
          %s10522 = smul.addr %s10521, 256
          %s10523 = scalar_lea.vmem [#allocation3], %s10522
          %10524 = dma.done %s10520, 4096
        $region64: #{tpu_custom_call.1} parent=59 // pred_fallthru
          _
      $region60: #{tpu_custom_call.1} parent=5 // pred_fallthru
        _
    $region6: #{tpu_custom_call.1} parent=1 // loop_footer
      %s21 = sadd.s32 1, %s17
    $region7: #{tpu_custom_call.1} parent=1 // loop_footer_branch
      %16 = sbr.rel target = $region3
    $region8: #{tpu_custom_call.1} parent=1 // loop_exit
      _
    %10525 = vsyncpa [#allocation4], 1
    %s10526 = scalar_lea.sflag [#allocation4], 1
    %10527 = vsyncpa %s10526, 1

</llo_original>
